<compile_context>
chip_gen: v5e
topology: v5e:2x2
jax: 0.10.0
libtpu: 0.0.40
codegen_flags: <defaults>
</compile_context>

<pallas_src>
import functools

import jax
import jax.numpy as jnp
from jax.experimental import pallas as pl
from jax.experimental.pallas import tpu as pltpu

NUM_CAT = 10          # num_categorical_features
NUM_CLASS = 30        # num_class
HIDDEN = 768          # BERT hidden size
FC1_OUT = 512
FC_CAT_OUT = 50

CAT_PAD = 128         # padded categorical-feature width (lane-dense)
FC_CAT_PAD = 128      # padded fc_cat output width (lane-dense)
CLASS_PAD = 128       # padded num_class width (lane-dense output slab)
NEG = -1e30           # bias for padded logit lanes -> exp() underflows to 0

ROW_ALIGN = 16        # bf16 sublane packing granularity
VMEM_LIMIT_BYTES = 32 * 1024 * 1024   # explicit scoped-VMEM budget (all gens)


def _round_up(x, m):
    return ((x + m - 1) // m) * m


def _device_kind():
    try:
        return jax.devices()[0].device_kind.lower()
    except Exception:
        return ""


_IS_V5 = "v5" in _device_kind()
# v5e (16 MiB default scoped VMEM, no bf16 EUP): TM=512, f32 tanh.
# v6e/v7x: TM=1024 (~17 MiB resident) amortizes the ~0.35us grid-step
# overhead; bf16 tanh uses the bf16 EUP path.
TM_MAX = 512 if _IS_V5 else 1024
TANH_IN_BF16 = not _IS_V5


def bert_head_kernel(pooled_ref, cat_ref,
                     wp_ref, bp_ref,
                     w1_ref, b1_ref,
                     wc_ref, bc_ref,
                     w2a_ref, w2b_ref, b2_ref,
                     out_ref, *, tanh_in_bf16):
    # BERT pooler: dense(768->768) + tanh  -> cls_hs   (bf16 in, f32 MXU acc)
    pooled = pooled_ref[...]                                      # bf16 [TM, 768]
    acc = (jnp.dot(pooled, wp_ref[...], preferred_element_type=jnp.float32)
           + bp_ref[...])                                         # f32 [TM, 768]
    if tanh_in_bf16:
        # v6e/v7x: bf16 EUP tanh; result feeds a bf16 matmul anyway.
        cls_hs = jnp.tanh(acc.astype(jnp.bfloat16))               # bf16
    else:
        # v5e: no bf16 EUP -> keep the transcendental in f32.
        cls_hs = jnp.tanh(acc).astype(jnp.bfloat16)               # bf16

    # x = relu(fc1(cls_hs))
    x = (jnp.dot(cls_hs, w1_ref[...], preferred_element_type=jnp.float32)
         + b1_ref[...])
    x = jnp.maximum(x, 0.0)                                       # f32 [TM, 512]

    # x_cat = relu(fc_cat(categorical_features))   (padded lanes stay 0)
    x_cat = (jnp.dot(cat_ref[...], wc_ref[...],
                     preferred_element_type=jnp.float32) + bc_ref[...])
    x_cat = jnp.maximum(x_cat, 0.0)                               # f32 [TM, 128]

    # dropout(p=0.1) in eval mode == identity
    # fc2 over concat([x, x_cat], dim=1) via split (zero-padded) weights.
    # Padded logit lanes get bias NEG so they vanish in the softmax.
    logits = (jnp.dot(x.astype(jnp.bfloat16), w2a_ref[...],
                      preferred_element_type=jnp.float32)
              + jnp.dot(x_cat.astype(jnp.bfloat16), w2b_ref[...],
                        preferred_element_type=jnp.float32)
              + b2_ref[...])                                      # f32 [TM, 128]

    # numerically stable log_softmax along dim=1 (exact over the real classes:
    # padded lanes are ~ -1e30 -> exp underflows to 0)
    m = jnp.max(logits, axis=1, keepdims=True)
    shifted = logits - m
    lse = jnp.log(jnp.sum(jnp.exp(shifted), axis=1, keepdims=True))
    out_ref[...] = shifted - lse


def prepare_params(raw):
    """Cast/pad weights once (outside the kernel): bf16 matmul operands,
    f32 biases, lane-dense zero padding, NEG bias on padded logit lanes."""
    p = {}
    p["wp"] = raw["wp"].astype(jnp.bfloat16)                      # [768, 768]
    p["bp"] = raw["bp"].astype(jnp.float32)                       # [1, 768]
    p["w1"] = raw["w1"].astype(jnp.bfloat16)                      # [768, 512]
    p["b1"] = raw["b1"].astype(jnp.float32)                       # [1, 512]

    wc = jnp.zeros((CAT_PAD, FC_CAT_PAD), jnp.bfloat16)
    p["wc"] = wc.at[:NUM_CAT, :FC_CAT_OUT].set(raw["wc"].astype(jnp.bfloat16))
    bc = jnp.zeros((1, FC_CAT_PAD), jnp.float32)
    p["bc"] = bc.at[:, :FC_CAT_OUT].set(raw["bc"].astype(jnp.float32))

    w2a = jnp.zeros((FC1_OUT, CLASS_PAD), jnp.bfloat16)
    p["w2a"] = w2a.at[:, :NUM_CLASS].set(raw["w2a"].astype(jnp.bfloat16))
    w2b = jnp.zeros((FC_CAT_PAD, CLASS_PAD), jnp.bfloat16)
    p["w2b"] = w2b.at[:FC_CAT_OUT, :NUM_CLASS].set(raw["w2b"].astype(jnp.bfloat16))
    b2 = jnp.full((1, CLASS_PAD), NEG, jnp.float32)
    p["b2"] = b2.at[:, :NUM_CLASS].set(raw["b2"].astype(jnp.float32))
    return p


def bert_arch_head(pooled, prepared, cat_feats):
    """Pooler + classification head in one batch-tiled Pallas kernel."""
    B = pooled.shape[0]
    b_pad = _round_up(max(B, 1), ROW_ALIGN)
    tm = min(TM_MAX, b_pad)
    b_pad = _round_up(b_pad, tm)
    grid = (b_pad // tm,)

    # Single pad (no zeros+set double materialization); pooled is already bf16
    # from the surrogate pooler, so no extra cast/copy at full f32 width.
    pooled_p = pooled.astype(jnp.bfloat16)
    if b_pad != B:
        pooled_p = jnp.pad(pooled_p, ((0, b_pad - B), (0, 0)))
    cat_p = jnp.pad(cat_feats.astype(jnp.bfloat16),
                    ((0, b_pad - B), (0, CAT_PAD - NUM_CAT)))

    inputs = (
        pooled_p, cat_p,
        prepared["wp"], prepared["bp"],
        prepared["w1"], prepared["b1"],
        prepared["wc"], prepared["bc"],
        prepared["w2a"], prepared["w2b"], prepared["b2"],
    )

    flops = 2 * b_pad * (HIDDEN * HIDDEN + HIDDEN * FC1_OUT
                         + CAT_PAD * FC_CAT_PAD
                         + FC1_OUT * CLASS_PAD + FC_CAT_PAD * CLASS_PAD)
    transcendentals = b_pad * (HIDDEN + CLASS_PAD)   # tanh + exp
    weight_bytes = (2 * (HIDDEN * HIDDEN + HIDDEN * FC1_OUT
                         + CAT_PAD * FC_CAT_PAD
                         + FC1_OUT * CLASS_PAD + FC_CAT_PAD * CLASS_PAD)
                    + 4 * (HIDDEN + FC1_OUT + FC_CAT_PAD + CLASS_PAD))
    act_bytes = b_pad * (2 * (HIDDEN + CAT_PAD) + 4 * CLASS_PAD)
    cost = pl.CostEstimate(flops=flops,
                           transcendentals=transcendentals,
                           bytes_accessed=weight_bytes + act_bytes)

    kernel_fn = functools.partial(bert_head_kernel, tanh_in_bf16=TANH_IN_BF16)

    def run(weight_mode):
        # Batch-tiled activations; weights resident (constant index_map) so
        # they are DMA'd exactly once and stay in VMEM across grid steps.
        kw = {} if weight_mode is None else {"pipeline_mode": weight_mode}

        def act_spec(shape):
            return pl.BlockSpec(shape, lambda i: (i, 0))

        def w_spec(shape):
            return pl.BlockSpec(shape, lambda i: (0, 0), **kw)

        in_specs = [
            act_spec((tm, HIDDEN)),                 # pooled tile
            act_spec((tm, CAT_PAD)),                # cat tile
            w_spec((HIDDEN, HIDDEN)),               # wp
            w_spec((1, HIDDEN)),                    # bp
            w_spec((HIDDEN, FC1_OUT)),              # w1
            w_spec((1, FC1_OUT)),                   # b1
            w_spec((CAT_PAD, FC_CAT_PAD)),          # wc
            w_spec((1, FC_CAT_PAD)),                # bc
            w_spec((FC1_OUT, CLASS_PAD)),           # w2a
            w_spec((FC_CAT_PAD, CLASS_PAD)),        # w2b
            w_spec((1, CLASS_PAD)),                 # b2
        ]
        out_spec = pl.BlockSpec((tm, CLASS_PAD), lambda i: (i, 0))

        return pl.pallas_call(
            kernel_fn,
            out_shape=jax.ShapeDtypeStruct((b_pad, CLASS_PAD), jnp.float32),
            grid=grid,
            in_specs=in_specs,
            out_specs=out_spec,
            compiler_params=pltpu.CompilerParams(
                dimension_semantics=("parallel",),
                vmem_limit_bytes=VMEM_LIMIT_BYTES),
            cost_estimate=cost,
        )(*inputs)

    # Single-buffer the resident weights (constant index_map); fall back to
    # default buffering if this Pallas build rejects buffer_count=1.
    weight_mode = pl.Buffered(1) if hasattr(pl, "Buffered") else None
    if weight_mode is not None:
        try:
            out_pad = run(weight_mode)
        except Exception:
            out_pad = run(None)
    else:
        out_pad = run(None)

    return out_pad[:B, :NUM_CLASS]


def init_params(key):
    ks = jax.random.split(key, 8)
    scale = 0.02
    return {
        "wp":  scale * jax.random.normal(ks[0], (HIDDEN, HIDDEN), jnp.float32),
        "bp":  jnp.zeros((1, HIDDEN), jnp.float32),
        "w1":  scale * jax.random.normal(ks[1], (HIDDEN, FC1_OUT), jnp.float32),
        "b1":  0.01 * jnp.ones((1, FC1_OUT), jnp.float32),
        "wc":  scale * jax.random.normal(ks[2], (NUM_CAT, FC_CAT_OUT), jnp.float32),
        "bc":  0.01 * jnp.ones((1, FC_CAT_OUT), jnp.float32),
        "w2a": scale * jax.random.normal(ks[3], (FC1_OUT, NUM_CLASS), jnp.float32),
        "w2b": scale * jax.random.normal(ks[4], (FC_CAT_OUT, NUM_CLASS), jnp.float32),
        "b2":  jnp.zeros((1, NUM_CLASS), jnp.float32),
        "emb": scale * jax.random.normal(ks[5], (1000, HIDDEN), jnp.float32),
    }


def bert_surrogate_pool(params, sent_id, mask):
    """Plain-JAX glue: embedding lookup + mask-weighted mean pooling.
    Stands in for the transformer encoder's pooled output.  Emits bf16 so the
    cast fuses with the reduction and only one activation copy hits HBM."""
    emb = params["emb"][sent_id]                       # [B, S, 768]
    m = mask.astype(jnp.float32)[..., None]            # [B, S, 1]
    pooled = (emb * m).sum(axis=1) / jnp.maximum(m.sum(axis=1), 1.0)
    return pooled.astype(jnp.bfloat16)                 # bf16 [B, 768]


def bert_arch_forward(params, prepared, sent_id, mask, categorical_features):
    pooled = bert_surrogate_pool(params, sent_id, mask)
    return bert_arch_head(pooled, prepared, categorical_features)


def head_reference(raw, pooled, cat):
    """Pure-JAX f32 reference for the head (for correctness checking)."""
    cls = jnp.tanh(pooled @ raw["wp"] + raw["bp"])
    x = jnp.maximum(cls @ raw["w1"] + raw["b1"], 0.0)
    xc = jnp.maximum(cat @ raw["wc"] + raw["bc"], 0.0)
    logits = x @ raw["w2a"] + xc @ raw["w2b"] + raw["b2"]
    return jax.nn.log_softmax(logits, axis=1)


if __name__ == "__main__":
    key = jax.random.PRNGKey(0)
    kp, k1, k2, k3 = jax.random.split(key, 4)

    B, S = 4, 8
    params = init_params(kp)
    prepared = prepare_params(params)

    sent_id = jax.random.randint(k1, (B, S), 0, 1000, dtype=jnp.int32)
    mask = jnp.concatenate(
        [jnp.ones((B, S - 2), jnp.int32), jnp.zeros((B, 2), jnp.int32)], axis=1)
    categorical_features = jax.random.normal(k3, (B, NUM_CAT), jnp.float32)

    out = bert_arch_forward(params, prepared, sent_id, mask,
                            categorical_features)
    out = jax.block_until_ready(out)

    assert out.shape == (B, NUM_CLASS)
    # log_softmax rows should sum (in prob space) to ~1
    assert jnp.allclose(jnp.exp(out).sum(axis=1), 1.0, atol=1e-4)
    # Matches the f32 reference head (bf16 matmuls -> loose tolerance).
    pooled = bert_surrogate_pool(params, sent_id, mask).astype(jnp.float32)
    ref = head_reference(params, pooled, categorical_features)
    assert jnp.allclose(out, ref, atol=2e-2), float(jnp.abs(out - ref).max())
    print("KERNEL_OK")
</pallas_src>

<mosaic_0001>
module attributes {stable_mosaic.version = 11 : i64} {
  func.func @bert_head_kernel(%arg0: i32, %arg1: memref<16x768xbf16, #tpu.memory_space<vmem>>, %arg2: memref<16x128xbf16, #tpu.memory_space<vmem>>, %arg3: memref<768x768xbf16, #tpu.memory_space<vmem>>, %arg4: memref<1x768xf32, #tpu.memory_space<vmem>>, %arg5: memref<768x512xbf16, #tpu.memory_space<vmem>>, %arg6: memref<1x512xf32, #tpu.memory_space<vmem>>, %arg7: memref<128x128xbf16, #tpu.memory_space<vmem>>, %arg8: memref<1x128xf32, #tpu.memory_space<vmem>>, %arg9: memref<512x128xbf16, #tpu.memory_space<vmem>>, %arg10: memref<128x128xbf16, #tpu.memory_space<vmem>>, %arg11: memref<1x128xf32, #tpu.memory_space<vmem>>, %arg12: memref<16x128xf32, #tpu.memory_space<vmem>>) attributes {dimension_semantics = [#tpu.dimension_semantics<parallel>], iteration_bounds = array<i64: 1>, scalar_prefetch = 0 : i64, scratch_operands = 0 : i64, tpu.core_type = #tpu.core_type<tc>, window_params = [{transform_indices = @transform_0, window_bounds = array<i64: 16, 768>}, {transform_indices = @transform_1, window_bounds = array<i64: 16, 128>}, {pipeline_mode = #tpu.pipeline_mode<synchronous>, transform_indices = @transform_2, window_bounds = array<i64: 768, 768>}, {pipeline_mode = #tpu.pipeline_mode<synchronous>, transform_indices = @transform_3, window_bounds = array<i64: 1, 768>}, {pipeline_mode = #tpu.pipeline_mode<synchronous>, transform_indices = @transform_4, window_bounds = array<i64: 768, 512>}, {pipeline_mode = #tpu.pipeline_mode<synchronous>, transform_indices = @transform_5, window_bounds = array<i64: 1, 512>}, {pipeline_mode = #tpu.pipeline_mode<synchronous>, transform_indices = @transform_6, window_bounds = array<i64: 128, 128>}, {pipeline_mode = #tpu.pipeline_mode<synchronous>, transform_indices = @transform_7, window_bounds = array<i64: 1, 128>}, {pipeline_mode = #tpu.pipeline_mode<synchronous>, transform_indices = @transform_8, window_bounds = array<i64: 512, 128>}, {pipeline_mode = #tpu.pipeline_mode<synchronous>, transform_indices = @transform_9, window_bounds = array<i64: 128, 128>}, {pipeline_mode = #tpu.pipeline_mode<synchronous>, transform_indices = @transform_10, window_bounds = array<i64: 1, 128>}, {transform_indices = @transform_11, window_bounds = array<i64: 16, 128>}]} {
    %c0 = arith.constant 0 : index
    %c0_0 = arith.constant 0 : index
    %0 = vector.load %arg1[%c0, %c0_0] : memref<16x768xbf16, #tpu.memory_space<vmem>>, vector<16x768xbf16>
    %c0_1 = arith.constant 0 : index
    %c0_2 = arith.constant 0 : index
    %1 = vector.load %arg3[%c0_1, %c0_2] : memref<768x768xbf16, #tpu.memory_space<vmem>>, vector<768x768xbf16>
    %cst = arith.constant dense<0.000000e+00> : vector<16x768xf32>
    %2 = tpu.matmul %0, %1, %cst {dimension_numbers = #tpu.dot_dimension_numbers<[1], [0], [0], [1], [0, 0, 1, 1], [], []>} : vector<16x768xbf16>, vector<768x768xbf16>, vector<16x768xf32> -> vector<16x768xf32>
    %c0_3 = arith.constant 0 : index
    %c0_4 = arith.constant 0 : index
    %3 = vector.load %arg4[%c0_3, %c0_4] : memref<1x768xf32, #tpu.memory_space<vmem>>, vector<1x768xf32>
    %4 = vector.broadcast %3 : vector<1x768xf32> to vector<16x768xf32>
    %5 = arith.addf %2, %4 : vector<16x768xf32>
    %6 = arith.truncf %5 : vector<16x768xf32> to vector<16x768xbf16>
    %7 = math.tanh %6 : vector<16x768xbf16>
    %c0_5 = arith.constant 0 : index
    %c0_6 = arith.constant 0 : index
    %8 = vector.load %arg5[%c0_5, %c0_6] : memref<768x512xbf16, #tpu.memory_space<vmem>>, vector<768x512xbf16>
    %cst_7 = arith.constant dense<0.000000e+00> : vector<16x512xf32>
    %9 = tpu.matmul %7, %8, %cst_7 {dimension_numbers = #tpu.dot_dimension_numbers<[1], [0], [0], [1], [0, 0, 1, 1], [], []>} : vector<16x768xbf16>, vector<768x512xbf16>, vector<16x512xf32> -> vector<16x512xf32>
    %c0_8 = arith.constant 0 : index
    %c0_9 = arith.constant 0 : index
    %10 = vector.load %arg6[%c0_8, %c0_9] : memref<1x512xf32, #tpu.memory_space<vmem>>, vector<1x512xf32>
    %11 = vector.broadcast %10 : vector<1x512xf32> to vector<16x512xf32>
    %12 = arith.addf %9, %11 : vector<16x512xf32>
    %cst_10 = arith.constant 0.000000e+00 : f32
    %13 = vector.broadcast %cst_10 : f32 to vector<16x512xf32>
    %14 = arith.maximumf %12, %13 : vector<16x512xf32>
    %c0_11 = arith.constant 0 : index
    %c0_12 = arith.constant 0 : index
    %15 = vector.load %arg2[%c0_11, %c0_12] : memref<16x128xbf16, #tpu.memory_space<vmem>>, vector<16x128xbf16>
    %c0_13 = arith.constant 0 : index
    %c0_14 = arith.constant 0 : index
    %16 = vector.load %arg7[%c0_13, %c0_14] : memref<128x128xbf16, #tpu.memory_space<vmem>>, vector<128x128xbf16>
    %cst_15 = arith.constant dense<0.000000e+00> : vector<16x128xf32>
    %17 = tpu.matmul %15, %16, %cst_15 {dimension_numbers = #tpu.dot_dimension_numbers<[1], [0], [0], [1], [0, 0, 1, 1], [], []>} : vector<16x128xbf16>, vector<128x128xbf16>, vector<16x128xf32> -> vector<16x128xf32>
    %c0_16 = arith.constant 0 : index
    %c0_17 = arith.constant 0 : index
    %18 = vector.load %arg8[%c0_16, %c0_17] : memref<1x128xf32, #tpu.memory_space<vmem>>, vector<1x128xf32>
    %19 = vector.broadcast %18 : vector<1x128xf32> to vector<16x128xf32>
    %20 = arith.addf %17, %19 : vector<16x128xf32>
    %cst_18 = arith.constant 0.000000e+00 : f32
    %21 = vector.broadcast %cst_18 : f32 to vector<16x128xf32>
    %22 = arith.maximumf %20, %21 : vector<16x128xf32>
    %23 = arith.truncf %14 : vector<16x512xf32> to vector<16x512xbf16>
    %c0_19 = arith.constant 0 : index
    %c0_20 = arith.constant 0 : index
    %24 = vector.load %arg9[%c0_19, %c0_20] : memref<512x128xbf16, #tpu.memory_space<vmem>>, vector<512x128xbf16>
    %cst_21 = arith.constant dense<0.000000e+00> : vector<16x128xf32>
    %25 = tpu.matmul %23, %24, %cst_21 {dimension_numbers = #tpu.dot_dimension_numbers<[1], [0], [0], [1], [0, 0, 1, 1], [], []>} : vector<16x512xbf16>, vector<512x128xbf16>, vector<16x128xf32> -> vector<16x128xf32>
    %26 = arith.truncf %22 : vector<16x128xf32> to vector<16x128xbf16>
    %c0_22 = arith.constant 0 : index
    %c0_23 = arith.constant 0 : index
    %27 = vector.load %arg10[%c0_22, %c0_23] : memref<128x128xbf16, #tpu.memory_space<vmem>>, vector<128x128xbf16>
    %cst_24 = arith.constant dense<0.000000e+00> : vector<16x128xf32>
    %28 = tpu.matmul %26, %27, %cst_24 {dimension_numbers = #tpu.dot_dimension_numbers<[1], [0], [0], [1], [0, 0, 1, 1], [], []>} : vector<16x128xbf16>, vector<128x128xbf16>, vector<16x128xf32> -> vector<16x128xf32>
    %29 = arith.addf %25, %28 : vector<16x128xf32>
    %c0_25 = arith.constant 0 : index
    %c0_26 = arith.constant 0 : index
    %30 = vector.load %arg11[%c0_25, %c0_26] : memref<1x128xf32, #tpu.memory_space<vmem>>, vector<1x128xf32>
    %31 = vector.broadcast %30 : vector<1x128xf32> to vector<16x128xf32>
    %32 = arith.addf %29, %31 : vector<16x128xf32>
    %cst_27 = arith.constant dense<0xFF800000> : vector<16xf32>
    %33 = vector.multi_reduction <maximumf>, %32, %cst_27 [1] : vector<16x128xf32> to vector<16xf32>
    %34 = vector.shape_cast %33 : vector<16xf32> to vector<16x1xf32>
    %35 = vector.broadcast %34 : vector<16x1xf32> to vector<16x128xf32>
    %36 = arith.subf %32, %35 : vector<16x128xf32>
    %37 = math.exp %36 : vector<16x128xf32>
    %cst_28 = arith.constant dense<0.000000e+00> : vector<16xf32>
    %38 = vector.multi_reduction <add>, %37, %cst_28 [1] : vector<16x128xf32> to vector<16xf32>
    %39 = vector.shape_cast %38 : vector<16xf32> to vector<16x1xf32>
    %40 = math.log %39 : vector<16x1xf32>
    %41 = vector.broadcast %40 : vector<16x1xf32> to vector<16x128xf32>
    %42 = arith.subf %36, %41 : vector<16x128xf32>
    %c0_29 = arith.constant 0 : index
    %c0_30 = arith.constant 0 : index
    %43 = vector.load %arg12[%c0_29, %c0_30] : memref<16x128xf32, #tpu.memory_space<vmem>>, vector<16x128xf32>
    tpu.vector_store %arg12[%c0_29, %c0_30], %42 {strides = array<i32>} : memref<16x128xf32, #tpu.memory_space<vmem>>, vector<16x128xf32>,
    return
  }
  func.func @transform_0(%arg0: i32) -> (i32, i32) {
    %c0_i32 = arith.constant 0 : i32
    %c0_i32_0 = arith.constant 0 : i32
    return %arg0, %c0_i32 : i32, i32
  }
  func.func @transform_1(%arg0: i32) -> (i32, i32) {
    %c0_i32 = arith.constant 0 : i32
    %c0_i32_0 = arith.constant 0 : i32
    return %arg0, %c0_i32 : i32, i32
  }
  func.func @transform_2(%arg0: i32) -> (i32, i32) {
    %c0_i32 = arith.constant 0 : i32
    %c0_i32_0 = arith.constant 0 : i32
    %c0_i32_1 = arith.constant 0 : i32
    return %c0_i32, %c0_i32_0 : i32, i32
  }
  func.func @transform_3(%arg0: i32) -> (i32, i32) {
    %c0_i32 = arith.constant 0 : i32
    %c0_i32_0 = arith.constant 0 : i32
    %c0_i32_1 = arith.constant 0 : i32
    return %c0_i32, %c0_i32_0 : i32, i32
  }
  func.func @transform_4(%arg0: i32) -> (i32, i32) {
    %c0_i32 = arith.constant 0 : i32
    %c0_i32_0 = arith.constant 0 : i32
    %c0_i32_1 = arith.constant 0 : i32
    return %c0_i32, %c0_i32_0 : i32, i32
  }
  func.func @transform_5(%arg0: i32) -> (i32, i32) {
    %c0_i32 = arith.constant 0 : i32
    %c0_i32_0 = arith.constant 0 : i32
    %c0_i32_1 = arith.constant 0 : i32
    return %c0_i32, %c0_i32_0 : i32, i32
  }
  func.func @transform_6(%arg0: i32) -> (i32, i32) {
    %c0_i32 = arith.constant 0 : i32
    %c0_i32_0 = arith.constant 0 : i32
    %c0_i32_1 = arith.constant 0 : i32
    return %c0_i32, %c0_i32_0 : i32, i32
  }
  func.func @transform_7(%arg0: i32) -> (i32, i32) {
    %c0_i32 = arith.constant 0 : i32
    %c0_i32_0 = arith.constant 0 : i32
    %c0_i32_1 = arith.constant 0 : i32
    return %c0_i32, %c0_i32_0 : i32, i32
  }
  func.func @transform_8(%arg0: i32) -> (i32, i32) {
    %c0_i32 = arith.constant 0 : i32
    %c0_i32_0 = arith.constant 0 : i32
    %c0_i32_1 = arith.constant 0 : i32
    return %c0_i32, %c0_i32_0 : i32, i32
  }
  func.func @transform_9(%arg0: i32) -> (i32, i32) {
    %c0_i32 = arith.constant 0 : i32
    %c0_i32_0 = arith.constant 0 : i32
    %c0_i32_1 = arith.constant 0 : i32
    return %c0_i32, %c0_i32_0 : i32, i32
  }
  func.func @transform_10(%arg0: i32) -> (i32, i32) {
    %c0_i32 = arith.constant 0 : i32
    %c0_i32_0 = arith.constant 0 : i32
    %c0_i32_1 = arith.constant 0 : i32
    return %c0_i32, %c0_i32_0 : i32, i32
  }
  func.func @transform_11(%arg0: i32) -> (i32, i32) {
    %c0_i32 = arith.constant 0 : i32
    %c0_i32_0 = arith.constant 0 : i32
    return %arg0, %c0_i32 : i32, i32
  }
}

module attributes {stable_mosaic.version = 11 : i64} {
  func.func @bert_head_kernel(%arg0: i32, %arg1: memref<16x768xbf16, #tpu.memory_space<vmem>>, %arg2: memref<16x128xbf16, #tpu.memory_space<vmem>>, %arg3: memref<768x768xbf16, #tpu.memory_space<vmem>>, %arg4: memref<1x768xf32, #tpu.memory_space<vmem>>, %arg5: memref<768x512xbf16, #tpu.memory_space<vmem>>, %arg6: memref<1x512xf32, #tpu.memory_space<vmem>>, %arg7: memref<128x128xbf16, #tpu.memory_space<vmem>>, %arg8: memref<1x128xf32, #tpu.memory_space<vmem>>, %arg9: memref<512x128xbf16, #tpu.memory_space<vmem>>, %arg10: memref<128x128xbf16, #tpu.memory_space<vmem>>, %arg11: memref<1x128xf32, #tpu.memory_space<vmem>>, %arg12: memref<16x128xf32, #tpu.memory_space<vmem>>) attributes {dimension_semantics = [#tpu.dimension_semantics<parallel>], iteration_bounds = array<i64: 1>, scalar_prefetch = 0 : i64, scratch_operands = 0 : i64, tpu.core_type = #tpu.core_type<tc>, window_params = [{transform_indices = @transform_0, window_bounds = array<i64: 16, 768>}, {transform_indices = @transform_1, window_bounds = array<i64: 16, 128>}, {pipeline_mode = #tpu.pipeline_mode<synchronous>, transform_indices = @transform_2, window_bounds = array<i64: 768, 768>}, {pipeline_mode = #tpu.pipeline_mode<synchronous>, transform_indices = @transform_3, window_bounds = array<i64: 1, 768>}, {pipeline_mode = #tpu.pipeline_mode<synchronous>, transform_indices = @transform_4, window_bounds = array<i64: 768, 512>}, {pipeline_mode = #tpu.pipeline_mode<synchronous>, transform_indices = @transform_5, window_bounds = array<i64: 1, 512>}, {pipeline_mode = #tpu.pipeline_mode<synchronous>, transform_indices = @transform_6, window_bounds = array<i64: 128, 128>}, {pipeline_mode = #tpu.pipeline_mode<synchronous>, transform_indices = @transform_7, window_bounds = array<i64: 1, 128>}, {pipeline_mode = #tpu.pipeline_mode<synchronous>, transform_indices = @transform_8, window_bounds = array<i64: 512, 128>}, {pipeline_mode = #tpu.pipeline_mode<synchronous>, transform_indices = @transform_9, window_bounds = array<i64: 128, 128>}, {pipeline_mode = #tpu.pipeline_mode<synchronous>, transform_indices = @transform_10, window_bounds = array<i64: 1, 128>}, {transform_indices = @transform_11, window_bounds = array<i64: 16, 128>}]} {
    %c0 = arith.constant 0 : index
    %c0_0 = arith.constant 0 : index
    %0 = vector.load %arg1[%c0, %c0_0] : memref<16x768xbf16, #tpu.memory_space<vmem>>, vector<16x768xbf16>
    %c0_1 = arith.constant 0 : index
    %c0_2 = arith.constant 0 : index
    %1 = vector.load %arg3[%c0_1, %c0_2] : memref<768x768xbf16, #tpu.memory_space<vmem>>, vector<768x768xbf16>
    %cst = arith.constant dense<0.000000e+00> : vector<16x768xf32>
    %2 = tpu.matmul %0, %1, %cst {dimension_numbers = #tpu.dot_dimension_numbers<[1], [0], [0], [1], [0, 0, 1, 1], [], []>} : vector<16x768xbf16>, vector<768x768xbf16>, vector<16x768xf32> -> vector<16x768xf32>
    %c0_3 = arith.constant 0 : index
    %c0_4 = arith.constant 0 : index
    %3 = vector.load %arg4[%c0_3, %c0_4] : memref<1x768xf32, #tpu.memory_space<vmem>>, vector<1x768xf32>
    %4 = vector.broadcast %3 : vector<1x768xf32> to vector<16x768xf32>
    %5 = arith.addf %2, %4 : vector<16x768xf32>
    %6 = arith.truncf %5 : vector<16x768xf32> to vector<16x768xbf16>
    %7 = math.tanh %6 : vector<16x768xbf16>
    %c0_5 = arith.constant 0 : index
    %c0_6 = arith.constant 0 : index
    %8 = vector.load %arg5[%c0_5, %c0_6] : memref<768x512xbf16, #tpu.memory_space<vmem>>, vector<768x512xbf16>
    %cst_7 = arith.constant dense<0.000000e+00> : vector<16x512xf32>
    %9 = tpu.matmul %7, %8, %cst_7 {dimension_numbers = #tpu.dot_dimension_numbers<[1], [0], [0], [1], [0, 0, 1, 1], [], []>} : vector<16x768xbf16>, vector<768x512xbf16>, vector<16x512xf32> -> vector<16x512xf32>
    %c0_8 = arith.constant 0 : index
    %c0_9 = arith.constant 0 : index
    %10 = vector.load %arg6[%c0_8, %c0_9] : memref<1x512xf32, #tpu.memory_space<vmem>>, vector<1x512xf32>
    %11 = vector.broadcast %10 : vector<1x512xf32> to vector<16x512xf32>
    %12 = arith.addf %9, %11 : vector<16x512xf32>
    %cst_10 = arith.constant 0.000000e+00 : f32
    %13 = vector.broadcast %cst_10 : f32 to vector<16x512xf32>
    %14 = arith.maximumf %12, %13 : vector<16x512xf32>
    %c0_11 = arith.constant 0 : index
    %c0_12 = arith.constant 0 : index
    %15 = vector.load %arg2[%c0_11, %c0_12] : memref<16x128xbf16, #tpu.memory_space<vmem>>, vector<16x128xbf16>
    %c0_13 = arith.constant 0 : index
    %c0_14 = arith.constant 0 : index
    %16 = vector.load %arg7[%c0_13, %c0_14] : memref<128x128xbf16, #tpu.memory_space<vmem>>, vector<128x128xbf16>
    %cst_15 = arith.constant dense<0.000000e+00> : vector<16x128xf32>
    %17 = tpu.matmul %15, %16, %cst_15 {dimension_numbers = #tpu.dot_dimension_numbers<[1], [0], [0], [1], [0, 0, 1, 1], [], []>} : vector<16x128xbf16>, vector<128x128xbf16>, vector<16x128xf32> -> vector<16x128xf32>
    %c0_16 = arith.constant 0 : index
    %c0_17 = arith.constant 0 : index
    %18 = vector.load %arg8[%c0_16, %c0_17] : memref<1x128xf32, #tpu.memory_space<vmem>>, vector<1x128xf32>
    %19 = vector.broadcast %18 : vector<1x128xf32> to vector<16x128xf32>
    %20 = arith.addf %17, %19 : vector<16x128xf32>
    %cst_18 = arith.constant 0.000000e+00 : f32
    %21 = vector.broadcast %cst_18 : f32 to vector<16x128xf32>
    %22 = arith.maximumf %20, %21 : vector<16x128xf32>
    %23 = arith.truncf %14 : vector<16x512xf32> to vector<16x512xbf16>
    %c0_19 = arith.constant 0 : index
    %c0_20 = arith.constant 0 : index
    %24 = vector.load %arg9[%c0_19, %c0_20] : memref<512x128xbf16, #tpu.memory_space<vmem>>, vector<512x128xbf16>
    %cst_21 = arith.constant dense<0.000000e+00> : vector<16x128xf32>
    %25 = tpu.matmul %23, %24, %cst_21 {dimension_numbers = #tpu.dot_dimension_numbers<[1], [0], [0], [1], [0, 0, 1, 1], [], []>} : vector<16x512xbf16>, vector<512x128xbf16>, vector<16x128xf32> -> vector<16x128xf32>
    %26 = arith.truncf %22 : vector<16x128xf32> to vector<16x128xbf16>
    %c0_22 = arith.constant 0 : index
    %c0_23 = arith.constant 0 : index
    %27 = vector.load %arg10[%c0_22, %c0_23] : memref<128x128xbf16, #tpu.memory_space<vmem>>, vector<128x128xbf16>
    %cst_24 = arith.constant dense<0.000000e+00> : vector<16x128xf32>
    %28 = tpu.matmul %26, %27, %cst_24 {dimension_numbers = #tpu.dot_dimension_numbers<[1], [0], [0], [1], [0, 0, 1, 1], [], []>} : vector<16x128xbf16>, vector<128x128xbf16>, vector<16x128xf32> -> vector<16x128xf32>
    %29 = arith.addf %25, %28 : vector<16x128xf32>
    %c0_25 = arith.constant 0 : index
    %c0_26 = arith.constant 0 : index
    %30 = vector.load %arg11[%c0_25, %c0_26] : memref<1x128xf32, #tpu.memory_space<vmem>>, vector<1x128xf32>
    %31 = vector.broadcast %30 : vector<1x128xf32> to vector<16x128xf32>
    %32 = arith.addf %29, %31 : vector<16x128xf32>
    %cst_27 = arith.constant dense<0xFF800000> : vector<16xf32>
    %33 = vector.multi_reduction <maximumf>, %32, %cst_27 [1] : vector<16x128xf32> to vector<16xf32>
    %34 = vector.shape_cast %33 : vector<16xf32> to vector<16x1xf32>
    %35 = vector.broadcast %34 : vector<16x1xf32> to vector<16x128xf32>
    %36 = arith.subf %32, %35 : vector<16x128xf32>
    %37 = math.exp %36 : vector<16x128xf32>
    %cst_28 = arith.constant dense<0.000000e+00> : vector<16xf32>
    %38 = vector.multi_reduction <add>, %37, %cst_28 [1] : vector<16x128xf32> to vector<16xf32>
    %39 = vector.shape_cast %38 : vector<16xf32> to vector<16x1xf32>
    %40 = math.log %39 : vector<16x1xf32>
    %41 = vector.broadcast %40 : vector<16x1xf32> to vector<16x128xf32>
    %42 = arith.subf %36, %41 : vector<16x128xf32>
    %c0_29 = arith.constant 0 : index
    %c0_30 = arith.constant 0 : index
    %43 = vector.load %arg12[%c0_29, %c0_30] : memref<16x128xf32, #tpu.memory_space<vmem>>, vector<16x128xf32>
    tpu.vector_store %arg12[%c0_29, %c0_30], %42 {strides = array<i32>} : memref<16x128xf32, #tpu.memory_space<vmem>>, vector<16x128xf32>,
    return
  }
  func.func @transform_0(%arg0: i32) -> (i32, i32) {
    %c0_i32 = arith.constant 0 : i32
    %c0_i32_0 = arith.constant 0 : i32
    return %arg0, %c0_i32 : i32, i32
  }
  func.func @transform_1(%arg0: i32) -> (i32, i32) {
    %c0_i32 = arith.constant 0 : i32
    %c0_i32_0 = arith.constant 0 : i32
    return %arg0, %c0_i32 : i32, i32
  }
  func.func @transform_2(%arg0: i32) -> (i32, i32) {
    %c0_i32 = arith.constant 0 : i32
    %c0_i32_0 = arith.constant 0 : i32
    %c0_i32_1 = arith.constant 0 : i32
    return %c0_i32, %c0_i32_0 : i32, i32
  }
  func.func @transform_3(%arg0: i32) -> (i32, i32) {
    %c0_i32 = arith.constant 0 : i32
    %c0_i32_0 = arith.constant 0 : i32
    %c0_i32_1 = arith.constant 0 : i32
    return %c0_i32, %c0_i32_0 : i32, i32
  }
  func.func @transform_4(%arg0: i32) -> (i32, i32) {
    %c0_i32 = arith.constant 0 : i32
    %c0_i32_0 = arith.constant 0 : i32
    %c0_i32_1 = arith.constant 0 : i32
    return %c0_i32, %c0_i32_0 : i32, i32
  }
  func.func @transform_5(%arg0: i32) -> (i32, i32) {
    %c0_i32 = arith.constant 0 : i32
    %c0_i32_0 = arith.constant 0 : i32
    %c0_i32_1 = arith.constant 0 : i32
    return %c0_i32, %c0_i32_0 : i32, i32
  }
  func.func @transform_6(%arg0: i32) -> (i32, i32) {
    %c0_i32 = arith.constant 0 : i32
    %c0_i32_0 = arith.constant 0 : i32
    %c0_i32_1 = arith.constant 0 : i32
    return %c0_i32, %c0_i32_0 : i32, i32
  }
  func.func @transform_7(%arg0: i32) -> (i32, i32) {
    %c0_i32 = arith.constant 0 : i32
    %c0_i32_0 = arith.constant 0 : i32
    %c0_i32_1 = arith.constant 0 : i32
    return %c0_i32, %c0_i32_0 : i32, i32
  }
  func.func @transform_8(%arg0: i32) -> (i32, i32) {
    %c0_i32 = arith.constant 0 : i32
    %c0_i32_0 = arith.constant 0 : i32
    %c0_i32_1 = arith.constant 0 : i32
    return %c0_i32, %c0_i32_0 : i32, i32
  }
  func.func @transform_9(%arg0: i32) -> (i32, i32) {
    %c0_i32 = arith.constant 0 : i32
    %c0_i32_0 = arith.constant 0 : i32
    %c0_i32_1 = arith.constant 0 : i32
    return %c0_i32, %c0_i32_0 : i32, i32
  }
  func.func @transform_10(%arg0: i32) -> (i32, i32) {
    %c0_i32 = arith.constant 0 : i32
    %c0_i32_0 = arith.constant 0 : i32
    %c0_i32_1 = arith.constant 0 : i32
    return %c0_i32, %c0_i32_0 : i32, i32
  }
  func.func @transform_11(%arg0: i32) -> (i32, i32) {
    %c0_i32 = arith.constant 0 : i32
    %c0_i32_0 = arith.constant 0 : i32
    return %arg0, %c0_i32 : i32, i32
  }
}

</mosaic_0001>

<llo_original>
// kernel: tpu_custom_call.1
$region0: #{tpu_custom_call.1}
  #allocation0 [shape = 'u32[]', space=smem, size = 0x4, offset = 0x4, fixed_abs, tag = 'smem constant byte address 0x4 - core index']
  #allocation1 [shape = 'u32[72,128]{1,0:T(1,128)}', space=vmem, size = 0x9000, scoped, tag = 'internal scratch']
  %s0 = inlined_call_operand.hbm [shape: bf16[16,768], index: 0, kind: input, shape index: {}]
  %s1 = inlined_call_operand.hbm [shape: bf16[16,128], index: 1, kind: input, shape index: {}]
  %s2 = inlined_call_operand.hbm [shape: bf16[768,768], index: 2, kind: input, shape index: {}]
  %s3 = inlined_call_operand.hbm [shape: f32[1,768], index: 3, kind: input, shape index: {}]
  %s4 = inlined_call_operand.hbm [shape: bf16[768,512], index: 4, kind: input, shape index: {}]
  %s5 = inlined_call_operand.hbm [shape: f32[1,512], index: 5, kind: input, shape index: {}]
  %s6 = inlined_call_operand.hbm [shape: bf16[128,128], index: 6, kind: input, shape index: {}]
  %s7 = inlined_call_operand.hbm [shape: f32[1,128], index: 7, kind: input, shape index: {}]
  %s8 = inlined_call_operand.hbm [shape: bf16[512,128], index: 8, kind: input, shape index: {}]
  %s9 = inlined_call_operand.hbm [shape: bf16[128,128], index: 9, kind: input, shape index: {}]
  %s10 = inlined_call_operand.hbm [shape: f32[1,128], index: 10, kind: input, shape index: {}]
  %s11 = inlined_call_operand.hbm [shape: f32[16,128], index: 11, kind: output, shape index: {}]
  %s12 = sld [smem:[#allocation0]]
  $region98: #{tpu_custom_call.1} parent=0
    _
  %s14 = ssub.s32 1, %s12
  %s15 = scalar_select 0, %s14, %s12
  $region1: #{tpu_custom_call.1} parent=0
    #allocation2 [shape = 'u8[24576]{0}', space=vmem, size = 0x6000, scoped, tag = 'input window, operand 0, single buffered']
    #allocation3 [shape = 's32[1]{0}', space=sflag, size = 0x4, scoped, tag = 'scoped memory for tpu_custom_call.1']
    #allocation4 [shape = 's32[1]{0}', space=sflag, size = 0x4, scoped, tag = 'scoped memory for tpu_custom_call.1']
    #allocation5 [shape = 'u8[4096]{0}', space=vmem, size = 0x1000, scoped, tag = 'input window, operand 1, single buffered']
    #allocation6 [shape = 's32[1]{0}', space=sflag, size = 0x4, scoped, tag = 'scoped memory for tpu_custom_call.1']
    #allocation7 [shape = 'u8[1179648]{0}', space=vmem, size = 0x120000, scoped, tag = 'input window, operand 2, single buffered']
    #allocation8 [shape = 'u8[3072]{0}', space=vmem, size = 0xc00, scoped, tag = 'input window, operand 3, single buffered']
    #allocation9 [shape = 's32[1]{0}', space=sflag, size = 0x4, scoped, tag = 'scoped memory for tpu_custom_call.1']
    #allocation10 [shape = 'u8[786432]{0}', space=vmem, size = 0xc0000, scoped, tag = 'input window, operand 4, single buffered']
    #allocation11 [shape = 'u8[2048]{0}', space=vmem, size = 0x800, scoped, tag = 'input window, operand 5, single buffered']
    #allocation12 [shape = 's32[1]{0}', space=sflag, size = 0x4, scoped, tag = 'scoped memory for tpu_custom_call.1']
    #allocation13 [shape = 'u8[32768]{0}', space=vmem, size = 0x8000, scoped, tag = 'input window, operand 6, single buffered']
    #allocation14 [shape = 'u8[512]{0}', space=vmem, size = 0x400, scoped, tag = 'input window, operand 7, single buffered']
    #allocation15 [shape = 's32[1]{0}', space=sflag, size = 0x4, scoped, tag = 'scoped memory for tpu_custom_call.1']
    #allocation16 [shape = 'u8[131072]{0}', space=vmem, size = 0x20000, scoped, tag = 'input window, operand 8, single buffered']
    #allocation17 [shape = 'u8[32768]{0}', space=vmem, size = 0x8000, scoped, tag = 'input window, operand 9, single buffered']
    #allocation18 [shape = 's32[1]{0}', space=sflag, size = 0x4, scoped, tag = 'scoped memory for tpu_custom_call.1']
    #allocation19 [shape = 'u8[512]{0}', space=vmem, size = 0x400, scoped, tag = 'input window, operand 10, single buffered']
    #allocation20 [shape = 'u8[8192]{0}', space=vmem, size = 0x2000, scoped, tag = 'output window, operand 0, single buffered']
    %16 = vsyncpa [#allocation3], 0
    %17 = vsyncpa [#allocation6], 0
    %18 = vsyncpa [#allocation9], 0
    %19 = vsyncpa [#allocation12], 0
    %20 = vsyncpa [#allocation15], 0
    %21 = vsyncpa [#allocation18], 0
    %22 = vsyncpa [#allocation4], 0
    // Predicated region
    $region2: #{tpu_custom_call.1} parent=1 // pred_check
      _
    $region3: #{tpu_custom_call.1} parent=1 // pred_check_branch
      %24 = sbr.rel (0) target = $region5
    $region4: #{tpu_custom_call.1} parent=1 // pred_region
      %26 = vsyncadd [#allocation3], 0
      %s27 = sshll.u32 %s0, 4
      %s28 = int_to_ptr.hbm [resolvable:$true] %s27
      %s29 = sshll.u32 [#allocation2], 4
      %s30 = int_to_ptr.vmem [resolvable:$true] %s29
      %35 = dma.hbm_to_vmem [thread:$0]  %s28, 768, %s30, [#allocation3], 384, 384, 24
    $region5: #{tpu_custom_call.1} parent=1 // pred_fallthru
      _
    // Predicated region
    $region6: #{tpu_custom_call.1} parent=1 // pred_check
      _
    $region7: #{tpu_custom_call.1} parent=1 // pred_check_branch
      %37 = sbr.rel (0) target = $region9
    $region8: #{tpu_custom_call.1} parent=1 // pred_region
      %39 = vsyncadd [#allocation6], 0
      %s40 = sshll.u32 %s1, 4
      %s41 = int_to_ptr.hbm [resolvable:$true] %s40
      %s42 = sshll.u32 [#allocation5], 4
      %s43 = int_to_ptr.vmem [resolvable:$true] %s42
      %48 = dma.hbm_to_vmem [thread:$0]  %s41, 128, %s43, [#allocation6], 64, 64, 4
    $region9: #{tpu_custom_call.1} parent=1 // pred_fallthru
      _
    // Predicated region
    $region10: #{tpu_custom_call.1} parent=1 // pred_check
      _
    $region11: #{tpu_custom_call.1} parent=1 // pred_check_branch
      %50 = sbr.rel (0) target = $region13
    $region12: #{tpu_custom_call.1} parent=1 // pred_region
      %52 = vsyncadd [#allocation6], 0
      %s53 = sshll.u32 %s2, 4
      %s54 = int_to_ptr.hbm [resolvable:$true] %s53
      %s55 = sshll.u32 [#allocation7], 4
      %s56 = int_to_ptr.vmem [resolvable:$true] %s55
      %61 = dma.hbm_to_vmem [thread:$0]  %s54, 36864, %s56, [#allocation6], 384, 384, 24
    $region13: #{tpu_custom_call.1} parent=1 // pred_fallthru
      _
    // Predicated region
    $region14: #{tpu_custom_call.1} parent=1 // pred_check
      _
    $region15: #{tpu_custom_call.1} parent=1 // pred_check_branch
      %63 = sbr.rel (0) target = $region17
    $region16: #{tpu_custom_call.1} parent=1 // pred_region
      %65 = vsyncadd [#allocation9], 0
      %s67 = sshll.u32 %s3, 4
      %s68 = int_to_ptr.hbm [resolvable:$true] %s67
      %s69 = sshll.u32 [#allocation8], 4
      %s70 = int_to_ptr.vmem [resolvable:$true] %s69
      %72 = dma.hbm_to_vmem [thread:$0]  %s68, 96, %s70, [#allocation9]
    $region17: #{tpu_custom_call.1} parent=1 // pred_fallthru
      _
    // Predicated region
    $region18: #{tpu_custom_call.1} parent=1 // pred_check
      _
    $region19: #{tpu_custom_call.1} parent=1 // pred_check_branch
      %74 = sbr.rel (0) target = $region21
    $region20: #{tpu_custom_call.1} parent=1 // pred_region
      %76 = vsyncadd [#allocation9], 0
      %s77 = sshll.u32 %s4, 4
      %s78 = int_to_ptr.hbm [resolvable:$true] %s77
      %s79 = sshll.u32 [#allocation10], 4
      %s80 = int_to_ptr.vmem [resolvable:$true] %s79
      %85 = dma.hbm_to_vmem [thread:$0]  %s78, 24576, %s80, [#allocation9], 256, 256, 16
    $region21: #{tpu_custom_call.1} parent=1 // pred_fallthru
      _
    // Predicated region
    $region22: #{tpu_custom_call.1} parent=1 // pred_check
      _
    $region23: #{tpu_custom_call.1} parent=1 // pred_check_branch
      %87 = sbr.rel (0) target = $region25
    $region24: #{tpu_custom_call.1} parent=1 // pred_region
      %89 = vsyncadd [#allocation12], 0
      %s91 = sshll.u32 %s5, 4
      %s92 = int_to_ptr.hbm [resolvable:$true] %s91
      %s93 = sshll.u32 [#allocation11], 4
      %s94 = int_to_ptr.vmem [resolvable:$true] %s93
      %96 = dma.hbm_to_vmem [thread:$0]  %s92, 64, %s94, [#allocation12]
    $region25: #{tpu_custom_call.1} parent=1 // pred_fallthru
      _
    // Predicated region
    $region26: #{tpu_custom_call.1} parent=1 // pred_check
      _
    $region27: #{tpu_custom_call.1} parent=1 // pred_check_branch
      %98 = sbr.rel (0) target = $region29
    $region28: #{tpu_custom_call.1} parent=1 // pred_region
      %100 = vsyncadd [#allocation12], 0
      %s101 = sshll.u32 %s6, 4
      %s102 = int_to_ptr.hbm [resolvable:$true] %s101
      %s103 = sshll.u32 [#allocation13], 4
      %s104 = int_to_ptr.vmem [resolvable:$true] %s103
      %109 = dma.hbm_to_vmem [thread:$0]  %s102, 1024, %s104, [#allocation12], 64, 64, 4
    $region29: #{tpu_custom_call.1} parent=1 // pred_fallthru
      _
    // Predicated region
    $region30: #{tpu_custom_call.1} parent=1 // pred_check
      _
    $region31: #{tpu_custom_call.1} parent=1 // pred_check_branch
      %111 = sbr.rel (0) target = $region33
    $region32: #{tpu_custom_call.1} parent=1 // pred_region
      %113 = vsyncadd [#allocation15], 0
      %s115 = sshll.u32 %s7, 4
      %s116 = int_to_ptr.hbm [resolvable:$true] %s115
      %s117 = sshll.u32 [#allocation14], 4
      %s118 = int_to_ptr.vmem [resolvable:$true] %s117
      %120 = dma.hbm_to_vmem [thread:$0]  %s116, 16, %s118, [#allocation15]
    $region33: #{tpu_custom_call.1} parent=1 // pred_fallthru
      _
    // Predicated region
    $region34: #{tpu_custom_call.1} parent=1 // pred_check
      _
    $region35: #{tpu_custom_call.1} parent=1 // pred_check_branch
      %122 = sbr.rel (0) target = $region37
    $region36: #{tpu_custom_call.1} parent=1 // pred_region
      %124 = vsyncadd [#allocation15], 0
      %s125 = sshll.u32 %s8, 4
      %s126 = int_to_ptr.hbm [resolvable:$true] %s125
      %s127 = sshll.u32 [#allocation16], 4
      %s128 = int_to_ptr.vmem [resolvable:$true] %s127
      %133 = dma.hbm_to_vmem [thread:$0]  %s126, 4096, %s128, [#allocation15], 64, 64, 4
    $region37: #{tpu_custom_call.1} parent=1 // pred_fallthru
      _
    // Predicated region
    $region38: #{tpu_custom_call.1} parent=1 // pred_check
      _
    $region39: #{tpu_custom_call.1} parent=1 // pred_check_branch
      %135 = sbr.rel (0) target = $region41
    $region40: #{tpu_custom_call.1} parent=1 // pred_region
      %137 = vsyncadd [#allocation18], 0
      %s138 = sshll.u32 %s9, 4
      %s139 = int_to_ptr.hbm [resolvable:$true] %s138
      %s140 = sshll.u32 [#allocation17], 4
      %s141 = int_to_ptr.vmem [resolvable:$true] %s140
      %146 = dma.hbm_to_vmem [thread:$0]  %s139, 1024, %s141, [#allocation18], 64, 64, 4
    $region41: #{tpu_custom_call.1} parent=1 // pred_fallthru
      _
    // Predicated region
    $region42: #{tpu_custom_call.1} parent=1 // pred_check
      _
    $region43: #{tpu_custom_call.1} parent=1 // pred_check_branch
      %148 = sbr.rel (0) target = $region45
    $region44: #{tpu_custom_call.1} parent=1 // pred_region
      %150 = vsyncadd [#allocation18], 0
      %s152 = sshll.u32 %s10, 4
      %s153 = int_to_ptr.hbm [resolvable:$true] %s152
      %s154 = sshll.u32 [#allocation19], 4
      %s155 = int_to_ptr.vmem [resolvable:$true] %s154
      %157 = dma.hbm_to_vmem [thread:$0]  %s153, 16, %s155, [#allocation18]
    $region45: #{tpu_custom_call.1} parent=1 // pred_fallthru
      _
    // Predicated region
    $region46: #{tpu_custom_call.1} parent=1 // pred_check
      _
    $region47: #{tpu_custom_call.1} parent=1 // pred_check_branch
      %159 = sbr.rel (0) target = $region49
    $region48: #{tpu_custom_call.1} parent=1 // pred_region
      %161 = dma.done [#allocation3], 768
    $region49: #{tpu_custom_call.1} parent=1 // pred_fallthru
      _
    // Predicated region
    $region50: #{tpu_custom_call.1} parent=1 // pred_check
      _
    $region51: #{tpu_custom_call.1} parent=1 // pred_check_branch
      %163 = sbr.rel (0) target = $region53
    $region52: #{tpu_custom_call.1} parent=1 // pred_region
      %165 = dma.done [#allocation6], 128
    $region53: #{tpu_custom_call.1} parent=1 // pred_fallthru
      _
    // Predicated region
    $region54: #{tpu_custom_call.1} parent=1 // pred_check
      _
    $region55: #{tpu_custom_call.1} parent=1 // pred_check_branch
      %167 = sbr.rel (0) target = $region57
    $region56: #{tpu_custom_call.1} parent=1 // pred_region
      %169 = dma.done [#allocation6], 36864
    $region57: #{tpu_custom_call.1} parent=1 // pred_fallthru
      _
    // Predicated region
    $region58: #{tpu_custom_call.1} parent=1 // pred_check
      _
    $region59: #{tpu_custom_call.1} parent=1 // pred_check_branch
      %171 = sbr.rel (0) target = $region61
    $region60: #{tpu_custom_call.1} parent=1 // pred_region
      %173 = dma.done [#allocation9], 96
    $region61: #{tpu_custom_call.1} parent=1 // pred_fallthru
      _
    // Predicated region
    $region62: #{tpu_custom_call.1} parent=1 // pred_check
      _
    $region63: #{tpu_custom_call.1} parent=1 // pred_check_branch
      %175 = sbr.rel (0) target = $region65
    $region64: #{tpu_custom_call.1} parent=1 // pred_region
      %177 = dma.done [#allocation9], 24576
    $region65: #{tpu_custom_call.1} parent=1 // pred_fallthru
      _
    // Predicated region
    $region66: #{tpu_custom_call.1} parent=1 // pred_check
      _
    $region67: #{tpu_custom_call.1} parent=1 // pred_check_branch
      %179 = sbr.rel (0) target = $region69
    $region68: #{tpu_custom_call.1} parent=1 // pred_region
      %181 = dma.done [#allocation12], 64
    $region69: #{tpu_custom_call.1} parent=1 // pred_fallthru
      _
    // Predicated region
    $region70: #{tpu_custom_call.1} parent=1 // pred_check
      _
    $region71: #{tpu_custom_call.1} parent=1 // pred_check_branch
      %183 = sbr.rel (0) target = $region73
    $region72: #{tpu_custom_call.1} parent=1 // pred_region
      %185 = dma.done [#allocation12], 1024
    $region73: #{tpu_custom_call.1} parent=1 // pred_fallthru
      _
    // Predicated region
    $region74: #{tpu_custom_call.1} parent=1 // pred_check
      _
    $region75: #{tpu_custom_call.1} parent=1 // pred_check_branch
      %187 = sbr.rel (0) target = $region77
    $region76: #{tpu_custom_call.1} parent=1 // pred_region
      %189 = dma.done [#allocation15], 16
    $region77: #{tpu_custom_call.1} parent=1 // pred_fallthru
      _
    // Predicated region
    $region78: #{tpu_custom_call.1} parent=1 // pred_check
      _
    $region79: #{tpu_custom_call.1} parent=1 // pred_check_branch
      %191 = sbr.rel (0) target = $region81
    $region80: #{tpu_custom_call.1} parent=1 // pred_region
      %193 = dma.done [#allocation15], 4096
    $region81: #{tpu_custom_call.1} parent=1 // pred_fallthru
      _
    // Predicated region
    $region82: #{tpu_custom_call.1} parent=1 // pred_check
      _
    $region83: #{tpu_custom_call.1} parent=1 // pred_check_branch
      %195 = sbr.rel (0) target = $region85
    $region84: #{tpu_custom_call.1} parent=1 // pred_region
      %197 = dma.done [#allocation18], 1024
    $region85: #{tpu_custom_call.1} parent=1 // pred_fallthru
      _
    // Predicated region
    $region86: #{tpu_custom_call.1} parent=1 // pred_check
      _
    $region87: #{tpu_custom_call.1} parent=1 // pred_check_branch
      %199 = sbr.rel (0) target = $region89
    $region88: #{tpu_custom_call.1} parent=1 // pred_region
      %201 = dma.done [#allocation18], 16
    $region89: #{tpu_custom_call.1} parent=1 // pred_fallthru
      _
    %v202 = vld [vmem:[#allocation2] sm:$0xff]
    %v203 = vld [vmem:[#allocation2 + $0x8] sm:$0xff]
    %v204 = vld [vmem:[#allocation2 + $0x10] sm:$0xff]
    %v205 = vld [vmem:[#allocation2 + $0x18] sm:$0xff]
    %v206 = vld [vmem:[#allocation2 + $0x20] sm:$0xff]
    %v207 = vld [vmem:[#allocation2 + $0x28] sm:$0xff]
    %v208 = vld [vmem:[#allocation7] sm:$0xff]
    %v209 = vld [vmem:[#allocation7 + $0x8] sm:$0xff]
    %v210 = vld [vmem:[#allocation7 + $0x10] sm:$0xff]
    %v211 = vld [vmem:[#allocation7 + $0x18] sm:$0xff]
    %v212 = vld [vmem:[#allocation7 + $0x20] sm:$0xff]
    %v213 = vld [vmem:[#allocation7 + $0x28] sm:$0xff]
    %v214 = vld [vmem:[#allocation7 + $0x30] sm:$0xff]
    %v215 = vld [vmem:[#allocation7 + $0x38] sm:$0xff]
    %v216 = vld [vmem:[#allocation7 + $0x40] sm:$0xff]
    %v217 = vld [vmem:[#allocation7 + $0x48] sm:$0xff]
    %v218 = vld [vmem:[#allocation7 + $0x50] sm:$0xff]
    %v219 = vld [vmem:[#allocation7 + $0x58] sm:$0xff]
    %v220 = vld [vmem:[#allocation7 + $0x60] sm:$0xff]
    %v221 = vld [vmem:[#allocation7 + $0x68] sm:$0xff]
    %v222 = vld [vmem:[#allocation7 + $0x70] sm:$0xff]
    %v223 = vld [vmem:[#allocation7 + $0x78] sm:$0xff]
    %v224 = vld [vmem:[#allocation7 + $0x80] sm:$0xff]
    %v225 = vld [vmem:[#allocation7 + $0x88] sm:$0xff]
    %v226 = vld [vmem:[#allocation7 + $0x90] sm:$0xff]
    %v227 = vld [vmem:[#allocation7 + $0x98] sm:$0xff]
    %v228 = vld [vmem:[#allocation7 + $0xa0] sm:$0xff]
    %v229 = vld [vmem:[#allocation7 + $0xa8] sm:$0xff]
    %v230 = vld [vmem:[#allocation7 + $0xb0] sm:$0xff]
    %v231 = vld [vmem:[#allocation7 + $0xb8] sm:$0xff]
    %v232 = vld [vmem:[#allocation7 + $0xc0] sm:$0xff]
    %v233 = vld [vmem:[#allocation7 + $0xc8] sm:$0xff]
    %v234 = vld [vmem:[#allocation7 + $0xd0] sm:$0xff]
    %v235 = vld [vmem:[#allocation7 + $0xd8] sm:$0xff]
    %v236 = vld [vmem:[#allocation7 + $0xe0] sm:$0xff]
    %v237 = vld [vmem:[#allocation7 + $0xe8] sm:$0xff]
    %v238 = vld [vmem:[#allocation7 + $0xf0] sm:$0xff]
    %v239 = vld [vmem:[#allocation7 + $0xf8] sm:$0xff]
    %v240 = vld [vmem:[#allocation7 + $0x100] sm:$0xff]
    %v241 = vld [vmem:[#allocation7 + $0x108] sm:$0xff]
    %v242 = vld [vmem:[#allocation7 + $0x110] sm:$0xff]
    %v243 = vld [vmem:[#allocation7 + $0x118] sm:$0xff]
    %v244 = vld [vmem:[#allocation7 + $0x120] sm:$0xff]
    %v245 = vld [vmem:[#allocation7 + $0x128] sm:$0xff]
    %v246 = vld [vmem:[#allocation7 + $0x130] sm:$0xff]
    %v247 = vld [vmem:[#allocation7 + $0x138] sm:$0xff]
    %v248 = vld [vmem:[#allocation7 + $0x140] sm:$0xff]
    %v249 = vld [vmem:[#allocation7 + $0x148] sm:$0xff]
    %v250 = vld [vmem:[#allocation7 + $0x150] sm:$0xff]
    %v251 = vld [vmem:[#allocation7 + $0x158] sm:$0xff]
    %v252 = vld [vmem:[#allocation7 + $0x160] sm:$0xff]
    %v253 = vld [vmem:[#allocation7 + $0x168] sm:$0xff]
    %v254 = vld [vmem:[#allocation7 + $0x170] sm:$0xff]
    %v255 = vld [vmem:[#allocation7 + $0x178] sm:$0xff]
    %v256 = vld [vmem:[#allocation7 + $0x180] sm:$0xff]
    %v257 = vld [vmem:[#allocation7 + $0x188] sm:$0xff]
    %v258 = vld [vmem:[#allocation7 + $0x190] sm:$0xff]
    %v259 = vld [vmem:[#allocation7 + $0x198] sm:$0xff]
    %v260 = vld [vmem:[#allocation7 + $0x1a0] sm:$0xff]
    %v261 = vld [vmem:[#allocation7 + $0x1a8] sm:$0xff]
    %v262 = vld [vmem:[#allocation7 + $0x1b0] sm:$0xff]
    %v263 = vld [vmem:[#allocation7 + $0x1b8] sm:$0xff]
    %v264 = vld [vmem:[#allocation7 + $0x1c0] sm:$0xff]
    %v265 = vld [vmem:[#allocation7 + $0x1c8] sm:$0xff]
    %v266 = vld [vmem:[#allocation7 + $0x1d0] sm:$0xff]
    %v267 = vld [vmem:[#allocation7 + $0x1d8] sm:$0xff]
    %v268 = vld [vmem:[#allocation7 + $0x1e0] sm:$0xff]
    %v269 = vld [vmem:[#allocation7 + $0x1e8] sm:$0xff]
    %v270 = vld [vmem:[#allocation7 + $0x1f0] sm:$0xff]
    %v271 = vld [vmem:[#allocation7 + $0x1f8] sm:$0xff]
    %v272 = vld [vmem:[#allocation7 + $0x200] sm:$0xff]
    %v273 = vld [vmem:[#allocation7 + $0x208] sm:$0xff]
    %v274 = vld [vmem:[#allocation7 + $0x210] sm:$0xff]
    %v275 = vld [vmem:[#allocation7 + $0x218] sm:$0xff]
    %v276 = vld [vmem:[#allocation7 + $0x220] sm:$0xff]
    %v277 = vld [vmem:[#allocation7 + $0x228] sm:$0xff]
    %v278 = vld [vmem:[#allocation7 + $0x230] sm:$0xff]
    %v279 = vld [vmem:[#allocation7 + $0x238] sm:$0xff]
    %v280 = vld [vmem:[#allocation7 + $0x240] sm:$0xff]
    %v281 = vld [vmem:[#allocation7 + $0x248] sm:$0xff]
    %v282 = vld [vmem:[#allocation7 + $0x250] sm:$0xff]
    %v283 = vld [vmem:[#allocation7 + $0x258] sm:$0xff]
    %v284 = vld [vmem:[#allocation7 + $0x260] sm:$0xff]
    %v285 = vld [vmem:[#allocation7 + $0x268] sm:$0xff]
    %v286 = vld [vmem:[#allocation7 + $0x270] sm:$0xff]
    %v287 = vld [vmem:[#allocation7 + $0x278] sm:$0xff]
    %v288 = vld [vmem:[#allocation7 + $0x280] sm:$0xff]
    %v289 = vld [vmem:[#allocation7 + $0x288] sm:$0xff]
    %v290 = vld [vmem:[#allocation7 + $0x290] sm:$0xff]
    %v291 = vld [vmem:[#allocation7 + $0x298] sm:$0xff]
    %v292 = vld [vmem:[#allocation7 + $0x2a0] sm:$0xff]
    %v293 = vld [vmem:[#allocation7 + $0x2a8] sm:$0xff]
    %v294 = vld [vmem:[#allocation7 + $0x2b0] sm:$0xff]
    %v295 = vld [vmem:[#allocation7 + $0x2b8] sm:$0xff]
    %v296 = vld [vmem:[#allocation7 + $0x2c0] sm:$0xff]
    %v297 = vld [vmem:[#allocation7 + $0x2c8] sm:$0xff]
    %v298 = vld [vmem:[#allocation7 + $0x2d0] sm:$0xff]
    %v299 = vld [vmem:[#allocation7 + $0x2d8] sm:$0xff]
    %v300 = vld [vmem:[#allocation7 + $0x2e0] sm:$0xff]
    %v301 = vld [vmem:[#allocation7 + $0x2e8] sm:$0xff]
    %v302 = vld [vmem:[#allocation7 + $0x2f0] sm:$0xff]
    %v303 = vld [vmem:[#allocation7 + $0x2f8] sm:$0xff]
    %v304 = vld [vmem:[#allocation7 + $0x300] sm:$0xff]
    %v305 = vld [vmem:[#allocation7 + $0x308] sm:$0xff]
    %v306 = vld [vmem:[#allocation7 + $0x310] sm:$0xff]
    %v307 = vld [vmem:[#allocation7 + $0x318] sm:$0xff]
    %v308 = vld [vmem:[#allocation7 + $0x320] sm:$0xff]
    %v309 = vld [vmem:[#allocation7 + $0x328] sm:$0xff]
    %v310 = vld [vmem:[#allocation7 + $0x330] sm:$0xff]
    %v311 = vld [vmem:[#allocation7 + $0x338] sm:$0xff]
    %v312 = vld [vmem:[#allocation7 + $0x340] sm:$0xff]
    %v313 = vld [vmem:[#allocation7 + $0x348] sm:$0xff]
    %v314 = vld [vmem:[#allocation7 + $0x350] sm:$0xff]
    %v315 = vld [vmem:[#allocation7 + $0x358] sm:$0xff]
    %v316 = vld [vmem:[#allocation7 + $0x360] sm:$0xff]
    %v317 = vld [vmem:[#allocation7 + $0x368] sm:$0xff]
    %v318 = vld [vmem:[#allocation7 + $0x370] sm:$0xff]
    %v319 = vld [vmem:[#allocation7 + $0x378] sm:$0xff]
    %v320 = vld [vmem:[#allocation7 + $0x380] sm:$0xff]
    %v321 = vld [vmem:[#allocation7 + $0x388] sm:$0xff]
    %v322 = vld [vmem:[#allocation7 + $0x390] sm:$0xff]
    %v323 = vld [vmem:[#allocation7 + $0x398] sm:$0xff]
    %v324 = vld [vmem:[#allocation7 + $0x3a0] sm:$0xff]
    %v325 = vld [vmem:[#allocation7 + $0x3a8] sm:$0xff]
    %v326 = vld [vmem:[#allocation7 + $0x3b0] sm:$0xff]
    %v327 = vld [vmem:[#allocation7 + $0x3b8] sm:$0xff]
    %v328 = vld [vmem:[#allocation7 + $0x3c0] sm:$0xff]
    %v329 = vld [vmem:[#allocation7 + $0x3c8] sm:$0xff]
    %v330 = vld [vmem:[#allocation7 + $0x3d0] sm:$0xff]
    %v331 = vld [vmem:[#allocation7 + $0x3d8] sm:$0xff]
    %v332 = vld [vmem:[#allocation7 + $0x3e0] sm:$0xff]
    %v333 = vld [vmem:[#allocation7 + $0x3e8] sm:$0xff]
    %v334 = vld [vmem:[#allocation7 + $0x3f0] sm:$0xff]
    %v335 = vld [vmem:[#allocation7 + $0x3f8] sm:$0xff]
    %v336 = vld [vmem:[#allocation7 + $0x400] sm:$0xff]
    %v337 = vld [vmem:[#allocation7 + $0x408] sm:$0xff]
    %v338 = vld [vmem:[#allocation7 + $0x410] sm:$0xff]
    %v339 = vld [vmem:[#allocation7 + $0x418] sm:$0xff]
    %v340 = vld [vmem:[#allocation7 + $0x420] sm:$0xff]
    %v341 = vld [vmem:[#allocation7 + $0x428] sm:$0xff]
    %v342 = vld [vmem:[#allocation7 + $0x430] sm:$0xff]
    %v343 = vld [vmem:[#allocation7 + $0x438] sm:$0xff]
    %v344 = vld [vmem:[#allocation7 + $0x440] sm:$0xff]
    %v345 = vld [vmem:[#allocation7 + $0x448] sm:$0xff]
    %v346 = vld [vmem:[#allocation7 + $0x450] sm:$0xff]
    %v347 = vld [vmem:[#allocation7 + $0x458] sm:$0xff]
    %v348 = vld [vmem:[#allocation7 + $0x460] sm:$0xff]
    %v349 = vld [vmem:[#allocation7 + $0x468] sm:$0xff]
    %v350 = vld [vmem:[#allocation7 + $0x470] sm:$0xff]
    %v351 = vld [vmem:[#allocation7 + $0x478] sm:$0xff]
    %v352 = vld [vmem:[#allocation7 + $0x480] sm:$0xff]
    %v353 = vld [vmem:[#allocation7 + $0x488] sm:$0xff]
    %v354 = vld [vmem:[#allocation7 + $0x490] sm:$0xff]
    %v355 = vld [vmem:[#allocation7 + $0x498] sm:$0xff]
    %v356 = vld [vmem:[#allocation7 + $0x4a0] sm:$0xff]
    %v357 = vld [vmem:[#allocation7 + $0x4a8] sm:$0xff]
    %v358 = vld [vmem:[#allocation7 + $0x4b0] sm:$0xff]
    %v359 = vld [vmem:[#allocation7 + $0x4b8] sm:$0xff]
    %v360 = vld [vmem:[#allocation7 + $0x4c0] sm:$0xff]
    %v361 = vld [vmem:[#allocation7 + $0x4c8] sm:$0xff]
    %v362 = vld [vmem:[#allocation7 + $0x4d0] sm:$0xff]
    %v363 = vld [vmem:[#allocation7 + $0x4d8] sm:$0xff]
    %v364 = vld [vmem:[#allocation7 + $0x4e0] sm:$0xff]
    %v365 = vld [vmem:[#allocation7 + $0x4e8] sm:$0xff]
    %v366 = vld [vmem:[#allocation7 + $0x4f0] sm:$0xff]
    %v367 = vld [vmem:[#allocation7 + $0x4f8] sm:$0xff]
    %v368 = vld [vmem:[#allocation7 + $0x500] sm:$0xff]
    %v369 = vld [vmem:[#allocation7 + $0x508] sm:$0xff]
    %v370 = vld [vmem:[#allocation7 + $0x510] sm:$0xff]
    %v371 = vld [vmem:[#allocation7 + $0x518] sm:$0xff]
    %v372 = vld [vmem:[#allocation7 + $0x520] sm:$0xff]
    %v373 = vld [vmem:[#allocation7 + $0x528] sm:$0xff]
    %v374 = vld [vmem:[#allocation7 + $0x530] sm:$0xff]
    %v375 = vld [vmem:[#allocation7 + $0x538] sm:$0xff]
    %v376 = vld [vmem:[#allocation7 + $0x540] sm:$0xff]
    %v377 = vld [vmem:[#allocation7 + $0x548] sm:$0xff]
    %v378 = vld [vmem:[#allocation7 + $0x550] sm:$0xff]
    %v379 = vld [vmem:[#allocation7 + $0x558] sm:$0xff]
    %v380 = vld [vmem:[#allocation7 + $0x560] sm:$0xff]
    %v381 = vld [vmem:[#allocation7 + $0x568] sm:$0xff]
    %v382 = vld [vmem:[#allocation7 + $0x570] sm:$0xff]
    %v383 = vld [vmem:[#allocation7 + $0x578] sm:$0xff]
    %v384 = vld [vmem:[#allocation7 + $0x580] sm:$0xff]
    %v385 = vld [vmem:[#allocation7 + $0x588] sm:$0xff]
    %v386 = vld [vmem:[#allocation7 + $0x590] sm:$0xff]
    %v387 = vld [vmem:[#allocation7 + $0x598] sm:$0xff]
    %v388 = vld [vmem:[#allocation7 + $0x5a0] sm:$0xff]
    %v389 = vld [vmem:[#allocation7 + $0x5a8] sm:$0xff]
    %v390 = vld [vmem:[#allocation7 + $0x5b0] sm:$0xff]
    %v391 = vld [vmem:[#allocation7 + $0x5b8] sm:$0xff]
    %v392 = vld [vmem:[#allocation7 + $0x5c0] sm:$0xff]
    %v393 = vld [vmem:[#allocation7 + $0x5c8] sm:$0xff]
    %v394 = vld [vmem:[#allocation7 + $0x5d0] sm:$0xff]
    %v395 = vld [vmem:[#allocation7 + $0x5d8] sm:$0xff]
    %v396 = vld [vmem:[#allocation7 + $0x5e0] sm:$0xff]
    %v397 = vld [vmem:[#allocation7 + $0x5e8] sm:$0xff]
    %v398 = vld [vmem:[#allocation7 + $0x5f0] sm:$0xff]
    %v399 = vld [vmem:[#allocation7 + $0x5f8] sm:$0xff]
    %v400 = vld [vmem:[#allocation7 + $0x600] sm:$0xff]
    %v401 = vld [vmem:[#allocation7 + $0x608] sm:$0xff]
    %v402 = vld [vmem:[#allocation7 + $0x610] sm:$0xff]
    %v403 = vld [vmem:[#allocation7 + $0x618] sm:$0xff]
    %v404 = vld [vmem:[#allocation7 + $0x620] sm:$0xff]
    %v405 = vld [vmem:[#allocation7 + $0x628] sm:$0xff]
    %v406 = vld [vmem:[#allocation7 + $0x630] sm:$0xff]
    %v407 = vld [vmem:[#allocation7 + $0x638] sm:$0xff]
    %v408 = vld [vmem:[#allocation7 + $0x640] sm:$0xff]
    %v409 = vld [vmem:[#allocation7 + $0x648] sm:$0xff]
    %v410 = vld [vmem:[#allocation7 + $0x650] sm:$0xff]
    %v411 = vld [vmem:[#allocation7 + $0x658] sm:$0xff]
    %v412 = vld [vmem:[#allocation7 + $0x660] sm:$0xff]
    %v413 = vld [vmem:[#allocation7 + $0x668] sm:$0xff]
    %v414 = vld [vmem:[#allocation7 + $0x670] sm:$0xff]
    %v415 = vld [vmem:[#allocation7 + $0x678] sm:$0xff]
    %v416 = vld [vmem:[#allocation7 + $0x680] sm:$0xff]
    %v417 = vld [vmem:[#allocation7 + $0x688] sm:$0xff]
    %v418 = vld [vmem:[#allocation7 + $0x690] sm:$0xff]
    %v419 = vld [vmem:[#allocation7 + $0x698] sm:$0xff]
    %v420 = vld [vmem:[#allocation7 + $0x6a0] sm:$0xff]
    %v421 = vld [vmem:[#allocation7 + $0x6a8] sm:$0xff]
    %v422 = vld [vmem:[#allocation7 + $0x6b0] sm:$0xff]
    %v423 = vld [vmem:[#allocation7 + $0x6b8] sm:$0xff]
    %v424 = vld [vmem:[#allocation7 + $0x6c0] sm:$0xff]
    %v425 = vld [vmem:[#allocation7 + $0x6c8] sm:$0xff]
    %v426 = vld [vmem:[#allocation7 + $0x6d0] sm:$0xff]
    %v427 = vld [vmem:[#allocation7 + $0x6d8] sm:$0xff]
    %v428 = vld [vmem:[#allocation7 + $0x6e0] sm:$0xff]
    %v429 = vld [vmem:[#allocation7 + $0x6e8] sm:$0xff]
    %v430 = vld [vmem:[#allocation7 + $0x6f0] sm:$0xff]
    %v431 = vld [vmem:[#allocation7 + $0x6f8] sm:$0xff]
    %v432 = vld [vmem:[#allocation7 + $0x700] sm:$0xff]
    %v433 = vld [vmem:[#allocation7 + $0x708] sm:$0xff]
    %v434 = vld [vmem:[#allocation7 + $0x710] sm:$0xff]
    %v435 = vld [vmem:[#allocation7 + $0x718] sm:$0xff]
    %v436 = vld [vmem:[#allocation7 + $0x720] sm:$0xff]
    %v437 = vld [vmem:[#allocation7 + $0x728] sm:$0xff]
    %v438 = vld [vmem:[#allocation7 + $0x730] sm:$0xff]
    %v439 = vld [vmem:[#allocation7 + $0x738] sm:$0xff]
    %v440 = vld [vmem:[#allocation7 + $0x740] sm:$0xff]
    %v441 = vld [vmem:[#allocation7 + $0x748] sm:$0xff]
    %v442 = vld [vmem:[#allocation7 + $0x750] sm:$0xff]
    %v443 = vld [vmem:[#allocation7 + $0x758] sm:$0xff]
    %v444 = vld [vmem:[#allocation7 + $0x760] sm:$0xff]
    %v445 = vld [vmem:[#allocation7 + $0x768] sm:$0xff]
    %v446 = vld [vmem:[#allocation7 + $0x770] sm:$0xff]
    %v447 = vld [vmem:[#allocation7 + $0x778] sm:$0xff]
    %v448 = vld [vmem:[#allocation7 + $0x780] sm:$0xff]
    %v449 = vld [vmem:[#allocation7 + $0x788] sm:$0xff]
    %v450 = vld [vmem:[#allocation7 + $0x790] sm:$0xff]
    %v451 = vld [vmem:[#allocation7 + $0x798] sm:$0xff]
    %v452 = vld [vmem:[#allocation7 + $0x7a0] sm:$0xff]
    %v453 = vld [vmem:[#allocation7 + $0x7a8] sm:$0xff]
    %v454 = vld [vmem:[#allocation7 + $0x7b0] sm:$0xff]
    %v455 = vld [vmem:[#allocation7 + $0x7b8] sm:$0xff]
    %v456 = vld [vmem:[#allocation7 + $0x7c0] sm:$0xff]
    %v457 = vld [vmem:[#allocation7 + $0x7c8] sm:$0xff]
    %v458 = vld [vmem:[#allocation7 + $0x7d0] sm:$0xff]
    %v459 = vld [vmem:[#allocation7 + $0x7d8] sm:$0xff]
    %v460 = vld [vmem:[#allocation7 + $0x7e0] sm:$0xff]
    %v461 = vld [vmem:[#allocation7 + $0x7e8] sm:$0xff]
    %v462 = vld [vmem:[#allocation7 + $0x7f0] sm:$0xff]
    %v463 = vld [vmem:[#allocation7 + $0x7f8] sm:$0xff]
    %v464 = vld [vmem:[#allocation7 + $0x800] sm:$0xff]
    %v465 = vld [vmem:[#allocation7 + $0x808] sm:$0xff]
    %v466 = vld [vmem:[#allocation7 + $0x810] sm:$0xff]
    %v467 = vld [vmem:[#allocation7 + $0x818] sm:$0xff]
    %v468 = vld [vmem:[#allocation7 + $0x820] sm:$0xff]
    %v469 = vld [vmem:[#allocation7 + $0x828] sm:$0xff]
    %v470 = vld [vmem:[#allocation7 + $0x830] sm:$0xff]
    %v471 = vld [vmem:[#allocation7 + $0x838] sm:$0xff]
    %v472 = vld [vmem:[#allocation7 + $0x840] sm:$0xff]
    %v473 = vld [vmem:[#allocation7 + $0x848] sm:$0xff]
    %v474 = vld [vmem:[#allocation7 + $0x850] sm:$0xff]
    %v475 = vld [vmem:[#allocation7 + $0x858] sm:$0xff]
    %v476 = vld [vmem:[#allocation7 + $0x860] sm:$0xff]
    %v477 = vld [vmem:[#allocation7 + $0x868] sm:$0xff]
    %v478 = vld [vmem:[#allocation7 + $0x870] sm:$0xff]
    %v479 = vld [vmem:[#allocation7 + $0x878] sm:$0xff]
    %v480 = vld [vmem:[#allocation7 + $0x880] sm:$0xff]
    %v481 = vld [vmem:[#allocation7 + $0x888] sm:$0xff]
    %v482 = vld [vmem:[#allocation7 + $0x890] sm:$0xff]
    %v483 = vld [vmem:[#allocation7 + $0x898] sm:$0xff]
    %v484 = vld [vmem:[#allocation7 + $0x8a0] sm:$0xff]
    %v485 = vld [vmem:[#allocation7 + $0x8a8] sm:$0xff]
    %v486 = vld [vmem:[#allocation7 + $0x8b0] sm:$0xff]
    %v487 = vld [vmem:[#allocation7 + $0x8b8] sm:$0xff]
    %v488 = vld [vmem:[#allocation7 + $0x8c0] sm:$0xff]
    %v489 = vld [vmem:[#allocation7 + $0x8c8] sm:$0xff]
    %v490 = vld [vmem:[#allocation7 + $0x8d0] sm:$0xff]
    %v491 = vld [vmem:[#allocation7 + $0x8d8] sm:$0xff]
    %v492 = vld [vmem:[#allocation7 + $0x8e0] sm:$0xff]
    %v493 = vld [vmem:[#allocation7 + $0x8e8] sm:$0xff]
    %v494 = vld [vmem:[#allocation7 + $0x8f0] sm:$0xff]
    %v495 = vld [vmem:[#allocation7 + $0x8f8] sm:$0xff]
    %v496 = vld [vmem:[#allocation8] sm:$0x3f]
    %v498 = vperm.slane %v496, 0
    %v499 = vperm.slane %v496, 1
    %v500 = vperm.slane %v496, 2
    %v501 = vperm.slane %v496, 3
    %v502 = vperm.slane %v496, 4
    %v503 = vperm.slane %v496, 5
    %v516 = vunpack.c.l.b16 %v202
    %v517 = vunpack.c.h.b16 %v202
    %v518 = vunpack.c.l.b16 %v203
    %v519 = vunpack.c.h.b16 %v203
    %v520 = vunpack.c.l.b16 %v204
    %v521 = vunpack.c.h.b16 %v204
    %v522 = vunpack.c.l.b16 %v205
    %v523 = vunpack.c.h.b16 %v205
    %v524 = vunpack.c.l.b16 %v206
    %v525 = vunpack.c.h.b16 %v206
    %v526 = vunpack.c.l.b16 %v207
    %v527 = vunpack.c.h.b16 %v207
    %v528 = vpack.c.b16 %v522, %v516
    %v529 = vpack.c.b16 %v523, %v517
    %v530 = vpack.c.b16 %v524, %v518
    %v531 = vpack.c.b16 %v525, %v519
    %v532 = vpack.c.b16 %v526, %v520
    %v533 = vpack.c.b16 %v527, %v521
    %v828 = vunpack.c.l.b16 %v208
    %v829 = vunpack.c.h.b16 %v208
    %v830 = vunpack.c.l.b16 %v209
    %v831 = vunpack.c.h.b16 %v209
    %v832 = vunpack.c.l.b16 %v210
    %v833 = vunpack.c.h.b16 %v210
    %v834 = vunpack.c.l.b16 %v211
    %v835 = vunpack.c.h.b16 %v211
    %v836 = vunpack.c.l.b16 %v212
    %v837 = vunpack.c.h.b16 %v212
    %v838 = vunpack.c.l.b16 %v213
    %v839 = vunpack.c.h.b16 %v213
    %v840 = vunpack.c.l.b16 %v214
    %v841 = vunpack.c.h.b16 %v214
    %v842 = vunpack.c.l.b16 %v215
    %v843 = vunpack.c.h.b16 %v215
    %v844 = vunpack.c.l.b16 %v216
    %v845 = vunpack.c.h.b16 %v216
    %v846 = vunpack.c.l.b16 %v217
    %v847 = vunpack.c.h.b16 %v217
    %v848 = vunpack.c.l.b16 %v218
    %v849 = vunpack.c.h.b16 %v218
    %v850 = vunpack.c.l.b16 %v219
    %v851 = vunpack.c.h.b16 %v219
    %v852 = vunpack.c.l.b16 %v220
    %v853 = vunpack.c.h.b16 %v220
    %v854 = vunpack.c.l.b16 %v221
    %v855 = vunpack.c.h.b16 %v221
    %v856 = vunpack.c.l.b16 %v222
    %v857 = vunpack.c.h.b16 %v222
    %v858 = vunpack.c.l.b16 %v223
    %v859 = vunpack.c.h.b16 %v223
    %v860 = vunpack.c.l.b16 %v224
    %v861 = vunpack.c.h.b16 %v224
    %v862 = vunpack.c.l.b16 %v225
    %v863 = vunpack.c.h.b16 %v225
    %v864 = vunpack.c.l.b16 %v226
    %v865 = vunpack.c.h.b16 %v226
    %v866 = vunpack.c.l.b16 %v227
    %v867 = vunpack.c.h.b16 %v227
    %v868 = vunpack.c.l.b16 %v228
    %v869 = vunpack.c.h.b16 %v228
    %v870 = vunpack.c.l.b16 %v229
    %v871 = vunpack.c.h.b16 %v229
    %v872 = vunpack.c.l.b16 %v230
    %v873 = vunpack.c.h.b16 %v230
    %v874 = vunpack.c.l.b16 %v231
    %v875 = vunpack.c.h.b16 %v231
    %v876 = vunpack.c.l.b16 %v232
    %v877 = vunpack.c.h.b16 %v232
    %v878 = vunpack.c.l.b16 %v233
    %v879 = vunpack.c.h.b16 %v233
    %v880 = vunpack.c.l.b16 %v234
    %v881 = vunpack.c.h.b16 %v234
    %v882 = vunpack.c.l.b16 %v235
    %v883 = vunpack.c.h.b16 %v235
    %v884 = vunpack.c.l.b16 %v236
    %v885 = vunpack.c.h.b16 %v236
    %v886 = vunpack.c.l.b16 %v237
    %v887 = vunpack.c.h.b16 %v237
    %v888 = vunpack.c.l.b16 %v238
    %v889 = vunpack.c.h.b16 %v238
    %v890 = vunpack.c.l.b16 %v239
    %v891 = vunpack.c.h.b16 %v239
    %v892 = vunpack.c.l.b16 %v240
    %v893 = vunpack.c.h.b16 %v240
    %v894 = vunpack.c.l.b16 %v241
    %v895 = vunpack.c.h.b16 %v241
    %v896 = vunpack.c.l.b16 %v242
    %v897 = vunpack.c.h.b16 %v242
    %v898 = vunpack.c.l.b16 %v243
    %v899 = vunpack.c.h.b16 %v243
    %v900 = vunpack.c.l.b16 %v244
    %v901 = vunpack.c.h.b16 %v244
    %v902 = vunpack.c.l.b16 %v245
    %v903 = vunpack.c.h.b16 %v245
    %v904 = vunpack.c.l.b16 %v246
    %v905 = vunpack.c.h.b16 %v246
    %v906 = vunpack.c.l.b16 %v247
    %v907 = vunpack.c.h.b16 %v247
    %v908 = vunpack.c.l.b16 %v248
    %v909 = vunpack.c.h.b16 %v248
    %v910 = vunpack.c.l.b16 %v249
    %v911 = vunpack.c.h.b16 %v249
    %v912 = vunpack.c.l.b16 %v250
    %v913 = vunpack.c.h.b16 %v250
    %v914 = vunpack.c.l.b16 %v251
    %v915 = vunpack.c.h.b16 %v251
    %v916 = vunpack.c.l.b16 %v252
    %v917 = vunpack.c.h.b16 %v252
    %v918 = vunpack.c.l.b16 %v253
    %v919 = vunpack.c.h.b16 %v253
    %v920 = vunpack.c.l.b16 %v254
    %v921 = vunpack.c.h.b16 %v254
    %v922 = vunpack.c.l.b16 %v255
    %v923 = vunpack.c.h.b16 %v255
    %v924 = vunpack.c.l.b16 %v256
    %v925 = vunpack.c.h.b16 %v256
    %v926 = vunpack.c.l.b16 %v257
    %v927 = vunpack.c.h.b16 %v257
    %v928 = vunpack.c.l.b16 %v258
    %v929 = vunpack.c.h.b16 %v258
    %v930 = vunpack.c.l.b16 %v259
    %v931 = vunpack.c.h.b16 %v259
    %v932 = vunpack.c.l.b16 %v260
    %v933 = vunpack.c.h.b16 %v260
    %v934 = vunpack.c.l.b16 %v261
    %v935 = vunpack.c.h.b16 %v261
    %v936 = vunpack.c.l.b16 %v262
    %v937 = vunpack.c.h.b16 %v262
    %v938 = vunpack.c.l.b16 %v263
    %v939 = vunpack.c.h.b16 %v263
    %v940 = vunpack.c.l.b16 %v264
    %v941 = vunpack.c.h.b16 %v264
    %v942 = vunpack.c.l.b16 %v265
    %v943 = vunpack.c.h.b16 %v265
    %v944 = vunpack.c.l.b16 %v266
    %v945 = vunpack.c.h.b16 %v266
    %v946 = vunpack.c.l.b16 %v267
    %v947 = vunpack.c.h.b16 %v267
    %v948 = vunpack.c.l.b16 %v268
    %v949 = vunpack.c.h.b16 %v268
    %v950 = vunpack.c.l.b16 %v269
    %v951 = vunpack.c.h.b16 %v269
    %v952 = vunpack.c.l.b16 %v270
    %v953 = vunpack.c.h.b16 %v270
    %v954 = vunpack.c.l.b16 %v271
    %v955 = vunpack.c.h.b16 %v271
    %v956 = vunpack.c.l.b16 %v272
    %v957 = vunpack.c.h.b16 %v272
    %v958 = vunpack.c.l.b16 %v273
    %v959 = vunpack.c.h.b16 %v273
    %v960 = vunpack.c.l.b16 %v274
    %v961 = vunpack.c.h.b16 %v274
    %v962 = vunpack.c.l.b16 %v275
    %v963 = vunpack.c.h.b16 %v275
    %v964 = vunpack.c.l.b16 %v276
    %v965 = vunpack.c.h.b16 %v276
    %v966 = vunpack.c.l.b16 %v277
    %v967 = vunpack.c.h.b16 %v277
    %v968 = vunpack.c.l.b16 %v278
    %v969 = vunpack.c.h.b16 %v278
    %v970 = vunpack.c.l.b16 %v279
    %v971 = vunpack.c.h.b16 %v279
    %v972 = vunpack.c.l.b16 %v280
    %v973 = vunpack.c.h.b16 %v280
    %v974 = vunpack.c.l.b16 %v281
    %v975 = vunpack.c.h.b16 %v281
    %v976 = vunpack.c.l.b16 %v282
    %v977 = vunpack.c.h.b16 %v282
    %v978 = vunpack.c.l.b16 %v283
    %v979 = vunpack.c.h.b16 %v283
    %v980 = vunpack.c.l.b16 %v284
    %v981 = vunpack.c.h.b16 %v284
    %v982 = vunpack.c.l.b16 %v285
    %v983 = vunpack.c.h.b16 %v285
    %v984 = vunpack.c.l.b16 %v286
    %v985 = vunpack.c.h.b16 %v286
    %v986 = vunpack.c.l.b16 %v287
    %v987 = vunpack.c.h.b16 %v287
    %v988 = vunpack.c.l.b16 %v288
    %v989 = vunpack.c.h.b16 %v288
    %v990 = vunpack.c.l.b16 %v289
    %v991 = vunpack.c.h.b16 %v289
    %v992 = vunpack.c.l.b16 %v290
    %v993 = vunpack.c.h.b16 %v290
    %v994 = vunpack.c.l.b16 %v291
    %v995 = vunpack.c.h.b16 %v291
    %v996 = vunpack.c.l.b16 %v292
    %v997 = vunpack.c.h.b16 %v292
    %v998 = vunpack.c.l.b16 %v293
    %v999 = vunpack.c.h.b16 %v293
    %v1000 = vunpack.c.l.b16 %v294
    %v1001 = vunpack.c.h.b16 %v294
    %v1002 = vunpack.c.l.b16 %v295
    %v1003 = vunpack.c.h.b16 %v295
    %v1004 = vunpack.c.l.b16 %v296
    %v1005 = vunpack.c.h.b16 %v296
    %v1006 = vunpack.c.l.b16 %v297
    %v1007 = vunpack.c.h.b16 %v297
    %v1008 = vunpack.c.l.b16 %v298
    %v1009 = vunpack.c.h.b16 %v298
    %v1010 = vunpack.c.l.b16 %v299
    %v1011 = vunpack.c.h.b16 %v299
    %v1012 = vunpack.c.l.b16 %v300
    %v1013 = vunpack.c.h.b16 %v300
    %v1014 = vunpack.c.l.b16 %v301
    %v1015 = vunpack.c.h.b16 %v301
    %v1016 = vunpack.c.l.b16 %v302
    %v1017 = vunpack.c.h.b16 %v302
    %v1018 = vunpack.c.l.b16 %v303
    %v1019 = vunpack.c.h.b16 %v303
    %v1020 = vunpack.c.l.b16 %v304
    %v1021 = vunpack.c.h.b16 %v304
    %v1022 = vunpack.c.l.b16 %v305
    %v1023 = vunpack.c.h.b16 %v305
    %v1024 = vunpack.c.l.b16 %v306
    %v1025 = vunpack.c.h.b16 %v306
    %v1026 = vunpack.c.l.b16 %v307
    %v1027 = vunpack.c.h.b16 %v307
    %v1028 = vunpack.c.l.b16 %v308
    %v1029 = vunpack.c.h.b16 %v308
    %v1030 = vunpack.c.l.b16 %v309
    %v1031 = vunpack.c.h.b16 %v309
    %v1032 = vunpack.c.l.b16 %v310
    %v1033 = vunpack.c.h.b16 %v310
    %v1034 = vunpack.c.l.b16 %v311
    %v1035 = vunpack.c.h.b16 %v311
    %v1036 = vunpack.c.l.b16 %v312
    %v1037 = vunpack.c.h.b16 %v312
    %v1038 = vunpack.c.l.b16 %v313
    %v1039 = vunpack.c.h.b16 %v313
    %v1040 = vunpack.c.l.b16 %v314
    %v1041 = vunpack.c.h.b16 %v314
    %v1042 = vunpack.c.l.b16 %v315
    %v1043 = vunpack.c.h.b16 %v315
    %v1044 = vunpack.c.l.b16 %v316
    %v1045 = vunpack.c.h.b16 %v316
    %v1046 = vunpack.c.l.b16 %v317
    %v1047 = vunpack.c.h.b16 %v317
    %v1048 = vunpack.c.l.b16 %v318
    %v1049 = vunpack.c.h.b16 %v318
    %v1050 = vunpack.c.l.b16 %v319
    %v1051 = vunpack.c.h.b16 %v319
    %v1052 = vunpack.c.l.b16 %v320
    %v1053 = vunpack.c.h.b16 %v320
    %v1054 = vunpack.c.l.b16 %v321
    %v1055 = vunpack.c.h.b16 %v321
    %v1056 = vunpack.c.l.b16 %v322
    %v1057 = vunpack.c.h.b16 %v322
    %v1058 = vunpack.c.l.b16 %v323
    %v1059 = vunpack.c.h.b16 %v323
    %v1060 = vunpack.c.l.b16 %v324
    %v1061 = vunpack.c.h.b16 %v324
    %v1062 = vunpack.c.l.b16 %v325
    %v1063 = vunpack.c.h.b16 %v325
    %v1064 = vunpack.c.l.b16 %v326
    %v1065 = vunpack.c.h.b16 %v326
    %v1066 = vunpack.c.l.b16 %v327
    %v1067 = vunpack.c.h.b16 %v327
    %v1068 = vunpack.c.l.b16 %v328
    %v1069 = vunpack.c.h.b16 %v328
    %v1070 = vunpack.c.l.b16 %v329
    %v1071 = vunpack.c.h.b16 %v329
    %v1072 = vunpack.c.l.b16 %v330
    %v1073 = vunpack.c.h.b16 %v330
    %v1074 = vunpack.c.l.b16 %v331
    %v1075 = vunpack.c.h.b16 %v331
    %v1076 = vunpack.c.l.b16 %v332
    %v1077 = vunpack.c.h.b16 %v332
    %v1078 = vunpack.c.l.b16 %v333
    %v1079 = vunpack.c.h.b16 %v333
    %v1080 = vunpack.c.l.b16 %v334
    %v1081 = vunpack.c.h.b16 %v334
    %v1082 = vunpack.c.l.b16 %v335
    %v1083 = vunpack.c.h.b16 %v335
    %v1084 = vunpack.c.l.b16 %v336
    %v1085 = vunpack.c.h.b16 %v336
    %v1086 = vunpack.c.l.b16 %v337
    %v1087 = vunpack.c.h.b16 %v337
    %v1088 = vunpack.c.l.b16 %v338
    %v1089 = vunpack.c.h.b16 %v338
    %v1090 = vunpack.c.l.b16 %v339
    %v1091 = vunpack.c.h.b16 %v339
    %v1092 = vunpack.c.l.b16 %v340
    %v1093 = vunpack.c.h.b16 %v340
    %v1094 = vunpack.c.l.b16 %v341
    %v1095 = vunpack.c.h.b16 %v341
    %v1096 = vunpack.c.l.b16 %v342
    %v1097 = vunpack.c.h.b16 %v342
    %v1098 = vunpack.c.l.b16 %v343
    %v1099 = vunpack.c.h.b16 %v343
    %v1100 = vunpack.c.l.b16 %v344
    %v1101 = vunpack.c.h.b16 %v344
    %v1102 = vunpack.c.l.b16 %v345
    %v1103 = vunpack.c.h.b16 %v345
    %v1104 = vunpack.c.l.b16 %v346
    %v1105 = vunpack.c.h.b16 %v346
    %v1106 = vunpack.c.l.b16 %v347
    %v1107 = vunpack.c.h.b16 %v347
    %v1108 = vunpack.c.l.b16 %v348
    %v1109 = vunpack.c.h.b16 %v348
    %v1110 = vunpack.c.l.b16 %v349
    %v1111 = vunpack.c.h.b16 %v349
    %v1112 = vunpack.c.l.b16 %v350
    %v1113 = vunpack.c.h.b16 %v350
    %v1114 = vunpack.c.l.b16 %v351
    %v1115 = vunpack.c.h.b16 %v351
    %v1116 = vunpack.c.l.b16 %v352
    %v1117 = vunpack.c.h.b16 %v352
    %v1118 = vunpack.c.l.b16 %v353
    %v1119 = vunpack.c.h.b16 %v353
    %v1120 = vunpack.c.l.b16 %v354
    %v1121 = vunpack.c.h.b16 %v354
    %v1122 = vunpack.c.l.b16 %v355
    %v1123 = vunpack.c.h.b16 %v355
    %v1124 = vunpack.c.l.b16 %v356
    %v1125 = vunpack.c.h.b16 %v356
    %v1126 = vunpack.c.l.b16 %v357
    %v1127 = vunpack.c.h.b16 %v357
    %v1128 = vunpack.c.l.b16 %v358
    %v1129 = vunpack.c.h.b16 %v358
    %v1130 = vunpack.c.l.b16 %v359
    %v1131 = vunpack.c.h.b16 %v359
    %v1132 = vunpack.c.l.b16 %v360
    %v1133 = vunpack.c.h.b16 %v360
    %v1134 = vunpack.c.l.b16 %v361
    %v1135 = vunpack.c.h.b16 %v361
    %v1136 = vunpack.c.l.b16 %v362
    %v1137 = vunpack.c.h.b16 %v362
    %v1138 = vunpack.c.l.b16 %v363
    %v1139 = vunpack.c.h.b16 %v363
    %v1140 = vunpack.c.l.b16 %v364
    %v1141 = vunpack.c.h.b16 %v364
    %v1142 = vunpack.c.l.b16 %v365
    %v1143 = vunpack.c.h.b16 %v365
    %v1144 = vunpack.c.l.b16 %v366
    %v1145 = vunpack.c.h.b16 %v366
    %v1146 = vunpack.c.l.b16 %v367
    %v1147 = vunpack.c.h.b16 %v367
    %v1148 = vunpack.c.l.b16 %v368
    %v1149 = vunpack.c.h.b16 %v368
    %v1150 = vunpack.c.l.b16 %v369
    %v1151 = vunpack.c.h.b16 %v369
    %v1152 = vunpack.c.l.b16 %v370
    %v1153 = vunpack.c.h.b16 %v370
    %v1154 = vunpack.c.l.b16 %v371
    %v1155 = vunpack.c.h.b16 %v371
    %v1156 = vunpack.c.l.b16 %v372
    %v1157 = vunpack.c.h.b16 %v372
    %v1158 = vunpack.c.l.b16 %v373
    %v1159 = vunpack.c.h.b16 %v373
    %v1160 = vunpack.c.l.b16 %v374
    %v1161 = vunpack.c.h.b16 %v374
    %v1162 = vunpack.c.l.b16 %v375
    %v1163 = vunpack.c.h.b16 %v375
    %v1164 = vunpack.c.l.b16 %v376
    %v1165 = vunpack.c.h.b16 %v376
    %v1166 = vunpack.c.l.b16 %v377
    %v1167 = vunpack.c.h.b16 %v377
    %v1168 = vunpack.c.l.b16 %v378
    %v1169 = vunpack.c.h.b16 %v378
    %v1170 = vunpack.c.l.b16 %v379
    %v1171 = vunpack.c.h.b16 %v379
    %v1172 = vunpack.c.l.b16 %v380
    %v1173 = vunpack.c.h.b16 %v380
    %v1174 = vunpack.c.l.b16 %v381
    %v1175 = vunpack.c.h.b16 %v381
    %v1176 = vunpack.c.l.b16 %v382
    %v1177 = vunpack.c.h.b16 %v382
    %v1178 = vunpack.c.l.b16 %v383
    %v1179 = vunpack.c.h.b16 %v383
    %v1180 = vunpack.c.l.b16 %v384
    %v1181 = vunpack.c.h.b16 %v384
    %v1182 = vunpack.c.l.b16 %v385
    %v1183 = vunpack.c.h.b16 %v385
    %v1184 = vunpack.c.l.b16 %v386
    %v1185 = vunpack.c.h.b16 %v386
    %v1186 = vunpack.c.l.b16 %v387
    %v1187 = vunpack.c.h.b16 %v387
    %v1188 = vunpack.c.l.b16 %v388
    %v1189 = vunpack.c.h.b16 %v388
    %v1190 = vunpack.c.l.b16 %v389
    %v1191 = vunpack.c.h.b16 %v389
    %v1192 = vunpack.c.l.b16 %v390
    %v1193 = vunpack.c.h.b16 %v390
    %v1194 = vunpack.c.l.b16 %v391
    %v1195 = vunpack.c.h.b16 %v391
    %v1196 = vunpack.c.l.b16 %v392
    %v1197 = vunpack.c.h.b16 %v392
    %v1198 = vunpack.c.l.b16 %v393
    %v1199 = vunpack.c.h.b16 %v393
    %v1200 = vunpack.c.l.b16 %v394
    %v1201 = vunpack.c.h.b16 %v394
    %v1202 = vunpack.c.l.b16 %v395
    %v1203 = vunpack.c.h.b16 %v395
    %v1204 = vunpack.c.l.b16 %v396
    %v1205 = vunpack.c.h.b16 %v396
    %v1206 = vunpack.c.l.b16 %v397
    %v1207 = vunpack.c.h.b16 %v397
    %v1208 = vunpack.c.l.b16 %v398
    %v1209 = vunpack.c.h.b16 %v398
    %v1210 = vunpack.c.l.b16 %v399
    %v1211 = vunpack.c.h.b16 %v399
    %v1212 = vunpack.c.l.b16 %v400
    %v1213 = vunpack.c.h.b16 %v400
    %v1214 = vunpack.c.l.b16 %v401
    %v1215 = vunpack.c.h.b16 %v401
    %v1216 = vunpack.c.l.b16 %v402
    %v1217 = vunpack.c.h.b16 %v402
    %v1218 = vunpack.c.l.b16 %v403
    %v1219 = vunpack.c.h.b16 %v403
    %v1220 = vunpack.c.l.b16 %v404
    %v1221 = vunpack.c.h.b16 %v404
    %v1222 = vunpack.c.l.b16 %v405
    %v1223 = vunpack.c.h.b16 %v405
    %v1224 = vunpack.c.l.b16 %v406
    %v1225 = vunpack.c.h.b16 %v406
    %v1226 = vunpack.c.l.b16 %v407
    %v1227 = vunpack.c.h.b16 %v407
    %v1228 = vunpack.c.l.b16 %v408
    %v1229 = vunpack.c.h.b16 %v408
    %v1230 = vunpack.c.l.b16 %v409
    %v1231 = vunpack.c.h.b16 %v409
    %v1232 = vunpack.c.l.b16 %v410
    %v1233 = vunpack.c.h.b16 %v410
    %v1234 = vunpack.c.l.b16 %v411
    %v1235 = vunpack.c.h.b16 %v411
    %v1236 = vunpack.c.l.b16 %v412
    %v1237 = vunpack.c.h.b16 %v412
    %v1238 = vunpack.c.l.b16 %v413
    %v1239 = vunpack.c.h.b16 %v413
    %v1240 = vunpack.c.l.b16 %v414
    %v1241 = vunpack.c.h.b16 %v414
    %v1242 = vunpack.c.l.b16 %v415
    %v1243 = vunpack.c.h.b16 %v415
    %v1244 = vunpack.c.l.b16 %v416
    %v1245 = vunpack.c.h.b16 %v416
    %v1246 = vunpack.c.l.b16 %v417
    %v1247 = vunpack.c.h.b16 %v417
    %v1248 = vunpack.c.l.b16 %v418
    %v1249 = vunpack.c.h.b16 %v418
    %v1250 = vunpack.c.l.b16 %v419
    %v1251 = vunpack.c.h.b16 %v419
    %v1252 = vunpack.c.l.b16 %v420
    %v1253 = vunpack.c.h.b16 %v420
    %v1254 = vunpack.c.l.b16 %v421
    %v1255 = vunpack.c.h.b16 %v421
    %v1256 = vunpack.c.l.b16 %v422
    %v1257 = vunpack.c.h.b16 %v422
    %v1258 = vunpack.c.l.b16 %v423
    %v1259 = vunpack.c.h.b16 %v423
    %v1260 = vunpack.c.l.b16 %v424
    %v1261 = vunpack.c.h.b16 %v424
    %v1262 = vunpack.c.l.b16 %v425
    %v1263 = vunpack.c.h.b16 %v425
    %v1264 = vunpack.c.l.b16 %v426
    %v1265 = vunpack.c.h.b16 %v426
    %v1266 = vunpack.c.l.b16 %v427
    %v1267 = vunpack.c.h.b16 %v427
    %v1268 = vunpack.c.l.b16 %v428
    %v1269 = vunpack.c.h.b16 %v428
    %v1270 = vunpack.c.l.b16 %v429
    %v1271 = vunpack.c.h.b16 %v429
    %v1272 = vunpack.c.l.b16 %v430
    %v1273 = vunpack.c.h.b16 %v430
    %v1274 = vunpack.c.l.b16 %v431
    %v1275 = vunpack.c.h.b16 %v431
    %v1276 = vunpack.c.l.b16 %v432
    %v1277 = vunpack.c.h.b16 %v432
    %v1278 = vunpack.c.l.b16 %v433
    %v1279 = vunpack.c.h.b16 %v433
    %v1280 = vunpack.c.l.b16 %v434
    %v1281 = vunpack.c.h.b16 %v434
    %v1282 = vunpack.c.l.b16 %v435
    %v1283 = vunpack.c.h.b16 %v435
    %v1284 = vunpack.c.l.b16 %v436
    %v1285 = vunpack.c.h.b16 %v436
    %v1286 = vunpack.c.l.b16 %v437
    %v1287 = vunpack.c.h.b16 %v437
    %v1288 = vunpack.c.l.b16 %v438
    %v1289 = vunpack.c.h.b16 %v438
    %v1290 = vunpack.c.l.b16 %v439
    %v1291 = vunpack.c.h.b16 %v439
    %v1292 = vunpack.c.l.b16 %v440
    %v1293 = vunpack.c.h.b16 %v440
    %v1294 = vunpack.c.l.b16 %v441
    %v1295 = vunpack.c.h.b16 %v441
    %v1296 = vunpack.c.l.b16 %v442
    %v1297 = vunpack.c.h.b16 %v442
    %v1298 = vunpack.c.l.b16 %v443
    %v1299 = vunpack.c.h.b16 %v443
    %v1300 = vunpack.c.l.b16 %v444
    %v1301 = vunpack.c.h.b16 %v444
    %v1302 = vunpack.c.l.b16 %v445
    %v1303 = vunpack.c.h.b16 %v445
    %v1304 = vunpack.c.l.b16 %v446
    %v1305 = vunpack.c.h.b16 %v446
    %v1306 = vunpack.c.l.b16 %v447
    %v1307 = vunpack.c.h.b16 %v447
    %v1308 = vunpack.c.l.b16 %v448
    %v1309 = vunpack.c.h.b16 %v448
    %v1310 = vunpack.c.l.b16 %v449
    %v1311 = vunpack.c.h.b16 %v449
    %v1312 = vunpack.c.l.b16 %v450
    %v1313 = vunpack.c.h.b16 %v450
    %v1314 = vunpack.c.l.b16 %v451
    %v1315 = vunpack.c.h.b16 %v451
    %v1316 = vunpack.c.l.b16 %v452
    %v1317 = vunpack.c.h.b16 %v452
    %v1318 = vunpack.c.l.b16 %v453
    %v1319 = vunpack.c.h.b16 %v453
    %v1320 = vunpack.c.l.b16 %v454
    %v1321 = vunpack.c.h.b16 %v454
    %v1322 = vunpack.c.l.b16 %v455
    %v1323 = vunpack.c.h.b16 %v455
    %v1324 = vunpack.c.l.b16 %v456
    %v1325 = vunpack.c.h.b16 %v456
    %v1326 = vunpack.c.l.b16 %v457
    %v1327 = vunpack.c.h.b16 %v457
    %v1328 = vunpack.c.l.b16 %v458
    %v1329 = vunpack.c.h.b16 %v458
    %v1330 = vunpack.c.l.b16 %v459
    %v1331 = vunpack.c.h.b16 %v459
    %v1332 = vunpack.c.l.b16 %v460
    %v1333 = vunpack.c.h.b16 %v460
    %v1334 = vunpack.c.l.b16 %v461
    %v1335 = vunpack.c.h.b16 %v461
    %v1336 = vunpack.c.l.b16 %v462
    %v1337 = vunpack.c.h.b16 %v462
    %v1338 = vunpack.c.l.b16 %v463
    %v1339 = vunpack.c.h.b16 %v463
    %v1340 = vunpack.c.l.b16 %v464
    %v1341 = vunpack.c.h.b16 %v464
    %v1342 = vunpack.c.l.b16 %v465
    %v1343 = vunpack.c.h.b16 %v465
    %v1344 = vunpack.c.l.b16 %v466
    %v1345 = vunpack.c.h.b16 %v466
    %v1346 = vunpack.c.l.b16 %v467
    %v1347 = vunpack.c.h.b16 %v467
    %v1348 = vunpack.c.l.b16 %v468
    %v1349 = vunpack.c.h.b16 %v468
    %v1350 = vunpack.c.l.b16 %v469
    %v1351 = vunpack.c.h.b16 %v469
    %v1352 = vunpack.c.l.b16 %v470
    %v1353 = vunpack.c.h.b16 %v470
    %v1354 = vunpack.c.l.b16 %v471
    %v1355 = vunpack.c.h.b16 %v471
    %v1356 = vunpack.c.l.b16 %v472
    %v1357 = vunpack.c.h.b16 %v472
    %v1358 = vunpack.c.l.b16 %v473
    %v1359 = vunpack.c.h.b16 %v473
    %v1360 = vunpack.c.l.b16 %v474
    %v1361 = vunpack.c.h.b16 %v474
    %v1362 = vunpack.c.l.b16 %v475
    %v1363 = vunpack.c.h.b16 %v475
    %v1364 = vunpack.c.l.b16 %v476
    %v1365 = vunpack.c.h.b16 %v476
    %v1366 = vunpack.c.l.b16 %v477
    %v1367 = vunpack.c.h.b16 %v477
    %v1368 = vunpack.c.l.b16 %v478
    %v1369 = vunpack.c.h.b16 %v478
    %v1370 = vunpack.c.l.b16 %v479
    %v1371 = vunpack.c.h.b16 %v479
    %v1372 = vunpack.c.l.b16 %v480
    %v1373 = vunpack.c.h.b16 %v480
    %v1374 = vunpack.c.l.b16 %v481
    %v1375 = vunpack.c.h.b16 %v481
    %v1376 = vunpack.c.l.b16 %v482
    %v1377 = vunpack.c.h.b16 %v482
    %v1378 = vunpack.c.l.b16 %v483
    %v1379 = vunpack.c.h.b16 %v483
    %v1380 = vunpack.c.l.b16 %v484
    %v1381 = vunpack.c.h.b16 %v484
    %v1382 = vunpack.c.l.b16 %v485
    %v1383 = vunpack.c.h.b16 %v485
    %v1384 = vunpack.c.l.b16 %v486
    %v1385 = vunpack.c.h.b16 %v486
    %v1386 = vunpack.c.l.b16 %v487
    %v1387 = vunpack.c.h.b16 %v487
    %v1388 = vunpack.c.l.b16 %v488
    %v1389 = vunpack.c.h.b16 %v488
    %v1390 = vunpack.c.l.b16 %v489
    %v1391 = vunpack.c.h.b16 %v489
    %v1392 = vunpack.c.l.b16 %v490
    %v1393 = vunpack.c.h.b16 %v490
    %v1394 = vunpack.c.l.b16 %v491
    %v1395 = vunpack.c.h.b16 %v491
    %v1396 = vunpack.c.l.b16 %v492
    %v1397 = vunpack.c.h.b16 %v492
    %v1398 = vunpack.c.l.b16 %v493
    %v1399 = vunpack.c.h.b16 %v493
    %v1400 = vunpack.c.l.b16 %v494
    %v1401 = vunpack.c.h.b16 %v494
    %v1402 = vunpack.c.l.b16 %v495
    %v1403 = vunpack.c.h.b16 %v495
    %v1404 = vpack.c.b16 %v834, %v828
    %v1405 = vpack.c.b16 %v835, %v829
    %v1406 = vpack.c.b16 %v836, %v830
    %v1407 = vpack.c.b16 %v837, %v831
    %v1408 = vpack.c.b16 %v838, %v832
    %v1409 = vpack.c.b16 %v839, %v833
    %v1410 = vpack.c.b16 %v846, %v840
    %v1411 = vpack.c.b16 %v847, %v841
    %v1412 = vpack.c.b16 %v848, %v842
    %v1413 = vpack.c.b16 %v849, %v843
    %v1414 = vpack.c.b16 %v850, %v844
    %v1415 = vpack.c.b16 %v851, %v845
    %v1416 = vpack.c.b16 %v858, %v852
    %v1417 = vpack.c.b16 %v859, %v853
    %v1418 = vpack.c.b16 %v860, %v854
    %v1419 = vpack.c.b16 %v861, %v855
    %v1420 = vpack.c.b16 %v862, %v856
    %v1421 = vpack.c.b16 %v863, %v857
    %v1422 = vpack.c.b16 %v870, %v864
    %v1423 = vpack.c.b16 %v871, %v865
    %v1424 = vpack.c.b16 %v872, %v866
    %v1425 = vpack.c.b16 %v873, %v867
    %v1426 = vpack.c.b16 %v874, %v868
    %v1427 = vpack.c.b16 %v875, %v869
    %v1428 = vpack.c.b16 %v882, %v876
    %v1429 = vpack.c.b16 %v883, %v877
    %v1430 = vpack.c.b16 %v884, %v878
    %v1431 = vpack.c.b16 %v885, %v879
    %v1432 = vpack.c.b16 %v886, %v880
    %v1433 = vpack.c.b16 %v887, %v881
    %v1434 = vpack.c.b16 %v894, %v888
    %v1435 = vpack.c.b16 %v895, %v889
    %v1436 = vpack.c.b16 %v896, %v890
    %v1437 = vpack.c.b16 %v897, %v891
    %v1438 = vpack.c.b16 %v898, %v892
    %v1439 = vpack.c.b16 %v899, %v893
    %v1440 = vpack.c.b16 %v906, %v900
    %v1441 = vpack.c.b16 %v907, %v901
    %v1442 = vpack.c.b16 %v908, %v902
    %v1443 = vpack.c.b16 %v909, %v903
    %v1444 = vpack.c.b16 %v910, %v904
    %v1445 = vpack.c.b16 %v911, %v905
    %v1446 = vpack.c.b16 %v918, %v912
    %v1447 = vpack.c.b16 %v919, %v913
    %v1448 = vpack.c.b16 %v920, %v914
    %v1449 = vpack.c.b16 %v921, %v915
    %v1450 = vpack.c.b16 %v922, %v916
    %v1451 = vpack.c.b16 %v923, %v917
    %v1452 = vpack.c.b16 %v930, %v924
    %v1453 = vpack.c.b16 %v931, %v925
    %v1454 = vpack.c.b16 %v932, %v926
    %v1455 = vpack.c.b16 %v933, %v927
    %v1456 = vpack.c.b16 %v934, %v928
    %v1457 = vpack.c.b16 %v935, %v929
    %v1458 = vpack.c.b16 %v942, %v936
    %v1459 = vpack.c.b16 %v943, %v937
    %v1460 = vpack.c.b16 %v944, %v938
    %v1461 = vpack.c.b16 %v945, %v939
    %v1462 = vpack.c.b16 %v946, %v940
    %v1463 = vpack.c.b16 %v947, %v941
    %v1464 = vpack.c.b16 %v954, %v948
    %v1465 = vpack.c.b16 %v955, %v949
    %v1466 = vpack.c.b16 %v956, %v950
    %v1467 = vpack.c.b16 %v957, %v951
    %v1468 = vpack.c.b16 %v958, %v952
    %v1469 = vpack.c.b16 %v959, %v953
    %v1470 = vpack.c.b16 %v966, %v960
    %v1471 = vpack.c.b16 %v967, %v961
    %v1472 = vpack.c.b16 %v968, %v962
    %v1473 = vpack.c.b16 %v969, %v963
    %v1474 = vpack.c.b16 %v970, %v964
    %v1475 = vpack.c.b16 %v971, %v965
    %v1476 = vpack.c.b16 %v978, %v972
    %v1477 = vpack.c.b16 %v979, %v973
    %v1478 = vpack.c.b16 %v980, %v974
    %v1479 = vpack.c.b16 %v981, %v975
    %v1480 = vpack.c.b16 %v982, %v976
    %v1481 = vpack.c.b16 %v983, %v977
    %v1482 = vpack.c.b16 %v990, %v984
    %v1483 = vpack.c.b16 %v991, %v985
    %v1484 = vpack.c.b16 %v992, %v986
    %v1485 = vpack.c.b16 %v993, %v987
    %v1486 = vpack.c.b16 %v994, %v988
    %v1487 = vpack.c.b16 %v995, %v989
    %v1488 = vpack.c.b16 %v1002, %v996
    %v1489 = vpack.c.b16 %v1003, %v997
    %v1490 = vpack.c.b16 %v1004, %v998
    %v1491 = vpack.c.b16 %v1005, %v999
    %v1492 = vpack.c.b16 %v1006, %v1000
    %v1493 = vpack.c.b16 %v1007, %v1001
    %v1494 = vpack.c.b16 %v1014, %v1008
    %v1495 = vpack.c.b16 %v1015, %v1009
    %v1496 = vpack.c.b16 %v1016, %v1010
    %v1497 = vpack.c.b16 %v1017, %v1011
    %v1498 = vpack.c.b16 %v1018, %v1012
    %v1499 = vpack.c.b16 %v1019, %v1013
    %v1500 = vpack.c.b16 %v1026, %v1020
    %v1501 = vpack.c.b16 %v1027, %v1021
    %v1502 = vpack.c.b16 %v1028, %v1022
    %v1503 = vpack.c.b16 %v1029, %v1023
    %v1504 = vpack.c.b16 %v1030, %v1024
    %v1505 = vpack.c.b16 %v1031, %v1025
    %v1506 = vpack.c.b16 %v1038, %v1032
    %v1507 = vpack.c.b16 %v1039, %v1033
    %v1508 = vpack.c.b16 %v1040, %v1034
    %v1509 = vpack.c.b16 %v1041, %v1035
    %v1510 = vpack.c.b16 %v1042, %v1036
    %v1511 = vpack.c.b16 %v1043, %v1037
    %v1512 = vpack.c.b16 %v1050, %v1044
    %v1513 = vpack.c.b16 %v1051, %v1045
    %v1514 = vpack.c.b16 %v1052, %v1046
    %v1515 = vpack.c.b16 %v1053, %v1047
    %v1516 = vpack.c.b16 %v1054, %v1048
    %v1517 = vpack.c.b16 %v1055, %v1049
    %v1518 = vpack.c.b16 %v1062, %v1056
    %v1519 = vpack.c.b16 %v1063, %v1057
    %v1520 = vpack.c.b16 %v1064, %v1058
    %v1521 = vpack.c.b16 %v1065, %v1059
    %v1522 = vpack.c.b16 %v1066, %v1060
    %v1523 = vpack.c.b16 %v1067, %v1061
    %v1524 = vpack.c.b16 %v1074, %v1068
    %v1525 = vpack.c.b16 %v1075, %v1069
    %v1526 = vpack.c.b16 %v1076, %v1070
    %v1527 = vpack.c.b16 %v1077, %v1071
    %v1528 = vpack.c.b16 %v1078, %v1072
    %v1529 = vpack.c.b16 %v1079, %v1073
    %v1530 = vpack.c.b16 %v1086, %v1080
    %v1531 = vpack.c.b16 %v1087, %v1081
    %v1532 = vpack.c.b16 %v1088, %v1082
    %v1533 = vpack.c.b16 %v1089, %v1083
    %v1534 = vpack.c.b16 %v1090, %v1084
    %v1535 = vpack.c.b16 %v1091, %v1085
    %v1536 = vpack.c.b16 %v1098, %v1092
    %v1537 = vpack.c.b16 %v1099, %v1093
    %v1538 = vpack.c.b16 %v1100, %v1094
    %v1539 = vpack.c.b16 %v1101, %v1095
    %v1540 = vpack.c.b16 %v1102, %v1096
    %v1541 = vpack.c.b16 %v1103, %v1097
    %v1542 = vpack.c.b16 %v1110, %v1104
    %v1543 = vpack.c.b16 %v1111, %v1105
    %v1544 = vpack.c.b16 %v1112, %v1106
    %v1545 = vpack.c.b16 %v1113, %v1107
    %v1546 = vpack.c.b16 %v1114, %v1108
    %v1547 = vpack.c.b16 %v1115, %v1109
    %v1548 = vpack.c.b16 %v1122, %v1116
    %v1549 = vpack.c.b16 %v1123, %v1117
    %v1550 = vpack.c.b16 %v1124, %v1118
    %v1551 = vpack.c.b16 %v1125, %v1119
    %v1552 = vpack.c.b16 %v1126, %v1120
    %v1553 = vpack.c.b16 %v1127, %v1121
    %v1554 = vpack.c.b16 %v1134, %v1128
    %v1555 = vpack.c.b16 %v1135, %v1129
    %v1556 = vpack.c.b16 %v1136, %v1130
    %v1557 = vpack.c.b16 %v1137, %v1131
    %v1558 = vpack.c.b16 %v1138, %v1132
    %v1559 = vpack.c.b16 %v1139, %v1133
    %v1560 = vpack.c.b16 %v1146, %v1140
    %v1561 = vpack.c.b16 %v1147, %v1141
    %v1562 = vpack.c.b16 %v1148, %v1142
    %v1563 = vpack.c.b16 %v1149, %v1143
    %v1564 = vpack.c.b16 %v1150, %v1144
    %v1565 = vpack.c.b16 %v1151, %v1145
    %v1566 = vpack.c.b16 %v1158, %v1152
    %v1567 = vpack.c.b16 %v1159, %v1153
    %v1568 = vpack.c.b16 %v1160, %v1154
    %v1569 = vpack.c.b16 %v1161, %v1155
    %v1570 = vpack.c.b16 %v1162, %v1156
    %v1571 = vpack.c.b16 %v1163, %v1157
    %v1572 = vpack.c.b16 %v1170, %v1164
    %v1573 = vpack.c.b16 %v1171, %v1165
    %v1574 = vpack.c.b16 %v1172, %v1166
    %v1575 = vpack.c.b16 %v1173, %v1167
    %v1576 = vpack.c.b16 %v1174, %v1168
    %v1577 = vpack.c.b16 %v1175, %v1169
    %v1578 = vpack.c.b16 %v1182, %v1176
    %v1579 = vpack.c.b16 %v1183, %v1177
    %v1580 = vpack.c.b16 %v1184, %v1178
    %v1581 = vpack.c.b16 %v1185, %v1179
    %v1582 = vpack.c.b16 %v1186, %v1180
    %v1583 = vpack.c.b16 %v1187, %v1181
    %v1584 = vpack.c.b16 %v1194, %v1188
    %v1585 = vpack.c.b16 %v1195, %v1189
    %v1586 = vpack.c.b16 %v1196, %v1190
    %v1587 = vpack.c.b16 %v1197, %v1191
    %v1588 = vpack.c.b16 %v1198, %v1192
    %v1589 = vpack.c.b16 %v1199, %v1193
    %v1590 = vpack.c.b16 %v1206, %v1200
    %v1591 = vpack.c.b16 %v1207, %v1201
    %v1592 = vpack.c.b16 %v1208, %v1202
    %v1593 = vpack.c.b16 %v1209, %v1203
    %v1594 = vpack.c.b16 %v1210, %v1204
    %v1595 = vpack.c.b16 %v1211, %v1205
    %v1596 = vpack.c.b16 %v1218, %v1212
    %v1597 = vpack.c.b16 %v1219, %v1213
    %v1598 = vpack.c.b16 %v1220, %v1214
    %v1599 = vpack.c.b16 %v1221, %v1215
    %v1600 = vpack.c.b16 %v1222, %v1216
    %v1601 = vpack.c.b16 %v1223, %v1217
    %v1602 = vpack.c.b16 %v1230, %v1224
    %v1603 = vpack.c.b16 %v1231, %v1225
    %v1604 = vpack.c.b16 %v1232, %v1226
    %v1605 = vpack.c.b16 %v1233, %v1227
    %v1606 = vpack.c.b16 %v1234, %v1228
    %v1607 = vpack.c.b16 %v1235, %v1229
    %v1608 = vpack.c.b16 %v1242, %v1236
    %v1609 = vpack.c.b16 %v1243, %v1237
    %v1610 = vpack.c.b16 %v1244, %v1238
    %v1611 = vpack.c.b16 %v1245, %v1239
    %v1612 = vpack.c.b16 %v1246, %v1240
    %v1613 = vpack.c.b16 %v1247, %v1241
    %v1614 = vpack.c.b16 %v1254, %v1248
    %v1615 = vpack.c.b16 %v1255, %v1249
    %v1616 = vpack.c.b16 %v1256, %v1250
    %v1617 = vpack.c.b16 %v1257, %v1251
    %v1618 = vpack.c.b16 %v1258, %v1252
    %v1619 = vpack.c.b16 %v1259, %v1253
    %v1620 = vpack.c.b16 %v1266, %v1260
    %v1621 = vpack.c.b16 %v1267, %v1261
    %v1622 = vpack.c.b16 %v1268, %v1262
    %v1623 = vpack.c.b16 %v1269, %v1263
    %v1624 = vpack.c.b16 %v1270, %v1264
    %v1625 = vpack.c.b16 %v1271, %v1265
    %v1626 = vpack.c.b16 %v1278, %v1272
    %v1627 = vpack.c.b16 %v1279, %v1273
    %v1628 = vpack.c.b16 %v1280, %v1274
    %v1629 = vpack.c.b16 %v1281, %v1275
    %v1630 = vpack.c.b16 %v1282, %v1276
    %v1631 = vpack.c.b16 %v1283, %v1277
    %v1632 = vpack.c.b16 %v1290, %v1284
    %v1633 = vpack.c.b16 %v1291, %v1285
    %v1634 = vpack.c.b16 %v1292, %v1286
    %v1635 = vpack.c.b16 %v1293, %v1287
    %v1636 = vpack.c.b16 %v1294, %v1288
    %v1637 = vpack.c.b16 %v1295, %v1289
    %v1638 = vpack.c.b16 %v1302, %v1296
    %v1639 = vpack.c.b16 %v1303, %v1297
    %v1640 = vpack.c.b16 %v1304, %v1298
    %v1641 = vpack.c.b16 %v1305, %v1299
    %v1642 = vpack.c.b16 %v1306, %v1300
    %v1643 = vpack.c.b16 %v1307, %v1301
    %v1644 = vpack.c.b16 %v1314, %v1308
    %v1645 = vpack.c.b16 %v1315, %v1309
    %v1646 = vpack.c.b16 %v1316, %v1310
    %v1647 = vpack.c.b16 %v1317, %v1311
    %v1648 = vpack.c.b16 %v1318, %v1312
    %v1649 = vpack.c.b16 %v1319, %v1313
    %v1650 = vpack.c.b16 %v1326, %v1320
    %v1651 = vpack.c.b16 %v1327, %v1321
    %v1652 = vpack.c.b16 %v1328, %v1322
    %v1653 = vpack.c.b16 %v1329, %v1323
    %v1654 = vpack.c.b16 %v1330, %v1324
    %v1655 = vpack.c.b16 %v1331, %v1325
    %v1656 = vpack.c.b16 %v1338, %v1332
    %v1657 = vpack.c.b16 %v1339, %v1333
    %v1658 = vpack.c.b16 %v1340, %v1334
    %v1659 = vpack.c.b16 %v1341, %v1335
    %v1660 = vpack.c.b16 %v1342, %v1336
    %v1661 = vpack.c.b16 %v1343, %v1337
    %v1662 = vpack.c.b16 %v1350, %v1344
    %v1663 = vpack.c.b16 %v1351, %v1345
    %v1664 = vpack.c.b16 %v1352, %v1346
    %v1665 = vpack.c.b16 %v1353, %v1347
    %v1666 = vpack.c.b16 %v1354, %v1348
    %v1667 = vpack.c.b16 %v1355, %v1349
    %v1668 = vpack.c.b16 %v1362, %v1356
    %v1669 = vpack.c.b16 %v1363, %v1357
    %v1670 = vpack.c.b16 %v1364, %v1358
    %v1671 = vpack.c.b16 %v1365, %v1359
    %v1672 = vpack.c.b16 %v1366, %v1360
    %v1673 = vpack.c.b16 %v1367, %v1361
    %v1674 = vpack.c.b16 %v1374, %v1368
    %v1675 = vpack.c.b16 %v1375, %v1369
    %v1676 = vpack.c.b16 %v1376, %v1370
    %v1677 = vpack.c.b16 %v1377, %v1371
    %v1678 = vpack.c.b16 %v1378, %v1372
    %v1679 = vpack.c.b16 %v1379, %v1373
    %v1680 = vpack.c.b16 %v1386, %v1380
    %v1681 = vpack.c.b16 %v1387, %v1381
    %v1682 = vpack.c.b16 %v1388, %v1382
    %v1683 = vpack.c.b16 %v1389, %v1383
    %v1684 = vpack.c.b16 %v1390, %v1384
    %v1685 = vpack.c.b16 %v1391, %v1385
    %v1686 = vpack.c.b16 %v1398, %v1392
    %v1687 = vpack.c.b16 %v1399, %v1393
    %v1688 = vpack.c.b16 %v1400, %v1394
    %v1689 = vpack.c.b16 %v1401, %v1395
    %v1690 = vpack.c.b16 %v1402, %v1396
    %v1691 = vpack.c.b16 %v1403, %v1397
    %1980 = vmatpush.bf16.msra.mxu0 %v1446
    %1981 = vmatpush.bf16.msra.mxu0 %v1440
    %1982 = vmatpush.bf16.msra.mxu0 %v1434
    %1983 = vmatpush.bf16.msra.mxu0 %v1428
    %1984 = vmatpush.bf16.msra.mxu0 %v1422
    %1985 = vmatpush.bf16.msra.mxu0 %v1416
    %1986 = vmatpush.bf16.msra.mxu0 %v1410
    %1987 = vmatpush.bf16.msra.mxu0 %v1404
    %1988 = vmatmul.bf16.gmra.mxu0 %v528
    %v1989 = vpop.f32.mrf.mxu0
    %v1990 = vadd.f32 %v498, %v1989
    %v1991 = vpop.f32.mrf.mxu0
    %v1992 = vadd.f32 %v498, %v1991
    %1993 = vdwg.mxu0
    %1994 = vmatpush.bf16.msra.mxu0 %v1494
    %1995 = vmatpush.bf16.msra.mxu0 %v1488
    %1996 = vmatpush.bf16.msra.mxu0 %v1482
    %1997 = vmatpush.bf16.msra.mxu0 %v1476
    %1998 = vmatpush.bf16.msra.mxu0 %v1470
    %1999 = vmatpush.bf16.msra.mxu0 %v1464
    %2000 = vmatpush.bf16.msra.mxu0 %v1458
    %2001 = vmatpush.bf16.msra.mxu0 %v1452
    %2002 = vmatmul.bf16.gmra.mxu0 %v529
    %v2003 = vpop.f32.mrf.mxu0
    %v2004 = vadd.f32 %v1990, %v2003
    %v2005 = vpop.f32.mrf.mxu0
    %v2006 = vadd.f32 %v1992, %v2005
    %2007 = vdwg.mxu0
    %2008 = vmatpush.bf16.msra.mxu0 %v1542
    %2009 = vmatpush.bf16.msra.mxu0 %v1536
    %2010 = vmatpush.bf16.msra.mxu0 %v1530
    %2011 = vmatpush.bf16.msra.mxu0 %v1524
    %2012 = vmatpush.bf16.msra.mxu0 %v1518
    %2013 = vmatpush.bf16.msra.mxu0 %v1512
    %2014 = vmatpush.bf16.msra.mxu0 %v1506
    %2015 = vmatpush.bf16.msra.mxu0 %v1500
    %2016 = vmatmul.bf16.gmra.mxu0 %v530
    %v2017 = vpop.f32.mrf.mxu0
    %v2018 = vadd.f32 %v2004, %v2017
    %v2019 = vpop.f32.mrf.mxu0
    %v2020 = vadd.f32 %v2006, %v2019
    %2021 = vdwg.mxu0
    %2022 = vmatpush.bf16.msra.mxu0 %v1590
    %2023 = vmatpush.bf16.msra.mxu0 %v1584
    %2024 = vmatpush.bf16.msra.mxu0 %v1578
    %2025 = vmatpush.bf16.msra.mxu0 %v1572
    %2026 = vmatpush.bf16.msra.mxu0 %v1566
    %2027 = vmatpush.bf16.msra.mxu0 %v1560
    %2028 = vmatpush.bf16.msra.mxu0 %v1554
    %2029 = vmatpush.bf16.msra.mxu0 %v1548
    %2030 = vmatmul.bf16.gmra.mxu0 %v531
    %v2031 = vpop.f32.mrf.mxu0
    %v2032 = vadd.f32 %v2018, %v2031
    %v2033 = vpop.f32.mrf.mxu0
    %v2034 = vadd.f32 %v2020, %v2033
    %2035 = vdwg.mxu0
    %2036 = vmatpush.bf16.msra.mxu0 %v1638
    %2037 = vmatpush.bf16.msra.mxu0 %v1632
    %2038 = vmatpush.bf16.msra.mxu0 %v1626
    %2039 = vmatpush.bf16.msra.mxu0 %v1620
    %2040 = vmatpush.bf16.msra.mxu0 %v1614
    %2041 = vmatpush.bf16.msra.mxu0 %v1608
    %2042 = vmatpush.bf16.msra.mxu0 %v1602
    %2043 = vmatpush.bf16.msra.mxu0 %v1596
    %2044 = vmatmul.bf16.gmra.mxu0 %v532
    %v2045 = vpop.f32.mrf.mxu0
    %v2046 = vadd.f32 %v2032, %v2045
    %v2047 = vpop.f32.mrf.mxu0
    %v2048 = vadd.f32 %v2034, %v2047
    %2049 = vdwg.mxu0
    %2050 = vmatpush.bf16.msra.mxu0 %v1686
    %2051 = vmatpush.bf16.msra.mxu0 %v1680
    %2052 = vmatpush.bf16.msra.mxu0 %v1674
    %2053 = vmatpush.bf16.msra.mxu0 %v1668
    %2054 = vmatpush.bf16.msra.mxu0 %v1662
    %2055 = vmatpush.bf16.msra.mxu0 %v1656
    %2056 = vmatpush.bf16.msra.mxu0 %v1650
    %2057 = vmatpush.bf16.msra.mxu0 %v1644
    %2058 = vmatmul.bf16.gmra.mxu0 %v533
    %v2059 = vpop.f32.mrf.mxu0
    %v2060 = vadd.f32 %v2046, %v2059
    %v2061 = vpop.f32.mrf.mxu0
    %v2062 = vadd.f32 %v2048, %v2061
    %2063 = vdwg.mxu0
    %2064 = vmatpush.bf16.msra.mxu0 %v1447
    %2065 = vmatpush.bf16.msra.mxu0 %v1441
    %2066 = vmatpush.bf16.msra.mxu0 %v1435
    %2067 = vmatpush.bf16.msra.mxu0 %v1429
    %2068 = vmatpush.bf16.msra.mxu0 %v1423
    %2069 = vmatpush.bf16.msra.mxu0 %v1417
    %2070 = vmatpush.bf16.msra.mxu0 %v1411
    %2071 = vmatpush.bf16.msra.mxu0 %v1405
    %2072 = vmatmul.bf16.gmra.mxu0 %v528
    %v2073 = vpop.f32.mrf.mxu0
    %v2074 = vadd.f32 %v499, %v2073
    %v2075 = vpop.f32.mrf.mxu0
    %v2076 = vadd.f32 %v499, %v2075
    %2077 = vdwg.mxu0
    %2078 = vmatpush.bf16.msra.mxu0 %v1495
    %2079 = vmatpush.bf16.msra.mxu0 %v1489
    %2080 = vmatpush.bf16.msra.mxu0 %v1483
    %2081 = vmatpush.bf16.msra.mxu0 %v1477
    %2082 = vmatpush.bf16.msra.mxu0 %v1471
    %2083 = vmatpush.bf16.msra.mxu0 %v1465
    %2084 = vmatpush.bf16.msra.mxu0 %v1459
    %2085 = vmatpush.bf16.msra.mxu0 %v1453
    %2086 = vmatmul.bf16.gmra.mxu0 %v529
    %v2087 = vpop.f32.mrf.mxu0
    %v2088 = vadd.f32 %v2074, %v2087
    %v2089 = vpop.f32.mrf.mxu0
    %v2090 = vadd.f32 %v2076, %v2089
    %2091 = vdwg.mxu0
    %2092 = vmatpush.bf16.msra.mxu0 %v1543
    %2093 = vmatpush.bf16.msra.mxu0 %v1537
    %2094 = vmatpush.bf16.msra.mxu0 %v1531
    %2095 = vmatpush.bf16.msra.mxu0 %v1525
    %2096 = vmatpush.bf16.msra.mxu0 %v1519
    %2097 = vmatpush.bf16.msra.mxu0 %v1513
    %2098 = vmatpush.bf16.msra.mxu0 %v1507
    %2099 = vmatpush.bf16.msra.mxu0 %v1501
    %2100 = vmatmul.bf16.gmra.mxu0 %v530
    %v2101 = vpop.f32.mrf.mxu0
    %v2102 = vadd.f32 %v2088, %v2101
    %v2103 = vpop.f32.mrf.mxu0
    %v2104 = vadd.f32 %v2090, %v2103
    %2105 = vdwg.mxu0
    %2106 = vmatpush.bf16.msra.mxu0 %v1591
    %2107 = vmatpush.bf16.msra.mxu0 %v1585
    %2108 = vmatpush.bf16.msra.mxu0 %v1579
    %2109 = vmatpush.bf16.msra.mxu0 %v1573
    %2110 = vmatpush.bf16.msra.mxu0 %v1567
    %2111 = vmatpush.bf16.msra.mxu0 %v1561
    %2112 = vmatpush.bf16.msra.mxu0 %v1555
    %2113 = vmatpush.bf16.msra.mxu0 %v1549
    %2114 = vmatmul.bf16.gmra.mxu0 %v531
    %v2115 = vpop.f32.mrf.mxu0
    %v2116 = vadd.f32 %v2102, %v2115
    %v2117 = vpop.f32.mrf.mxu0
    %v2118 = vadd.f32 %v2104, %v2117
    %2119 = vdwg.mxu0
    %2120 = vmatpush.bf16.msra.mxu0 %v1639
    %2121 = vmatpush.bf16.msra.mxu0 %v1633
    %2122 = vmatpush.bf16.msra.mxu0 %v1627
    %2123 = vmatpush.bf16.msra.mxu0 %v1621
    %2124 = vmatpush.bf16.msra.mxu0 %v1615
    %2125 = vmatpush.bf16.msra.mxu0 %v1609
    %2126 = vmatpush.bf16.msra.mxu0 %v1603
    %2127 = vmatpush.bf16.msra.mxu0 %v1597
    %2128 = vmatmul.bf16.gmra.mxu0 %v532
    %v2129 = vpop.f32.mrf.mxu0
    %v2130 = vadd.f32 %v2116, %v2129
    %v2131 = vpop.f32.mrf.mxu0
    %v2132 = vadd.f32 %v2118, %v2131
    %2133 = vdwg.mxu0
    %2134 = vmatpush.bf16.msra.mxu0 %v1687
    %2135 = vmatpush.bf16.msra.mxu0 %v1681
    %2136 = vmatpush.bf16.msra.mxu0 %v1675
    %2137 = vmatpush.bf16.msra.mxu0 %v1669
    %2138 = vmatpush.bf16.msra.mxu0 %v1663
    %2139 = vmatpush.bf16.msra.mxu0 %v1657
    %2140 = vmatpush.bf16.msra.mxu0 %v1651
    %2141 = vmatpush.bf16.msra.mxu0 %v1645
    %2142 = vmatmul.bf16.gmra.mxu0 %v533
    %v2143 = vpop.f32.mrf.mxu0
    %v2144 = vadd.f32 %v2130, %v2143
    %v2145 = vpop.f32.mrf.mxu0
    %v2146 = vadd.f32 %v2132, %v2145
    %2147 = vdwg.mxu0
    %2148 = vmatpush.bf16.msra.mxu0 %v1448
    %2149 = vmatpush.bf16.msra.mxu0 %v1442
    %2150 = vmatpush.bf16.msra.mxu0 %v1436
    %2151 = vmatpush.bf16.msra.mxu0 %v1430
    %2152 = vmatpush.bf16.msra.mxu0 %v1424
    %2153 = vmatpush.bf16.msra.mxu0 %v1418
    %2154 = vmatpush.bf16.msra.mxu0 %v1412
    %2155 = vmatpush.bf16.msra.mxu0 %v1406
    %2156 = vmatmul.bf16.gmra.mxu0 %v528
    %v2157 = vpop.f32.mrf.mxu0
    %v2158 = vadd.f32 %v500, %v2157
    %v2159 = vpop.f32.mrf.mxu0
    %v2160 = vadd.f32 %v500, %v2159
    %2161 = vdwg.mxu0
    %2162 = vmatpush.bf16.msra.mxu0 %v1496
    %2163 = vmatpush.bf16.msra.mxu0 %v1490
    %2164 = vmatpush.bf16.msra.mxu0 %v1484
    %2165 = vmatpush.bf16.msra.mxu0 %v1478
    %2166 = vmatpush.bf16.msra.mxu0 %v1472
    %2167 = vmatpush.bf16.msra.mxu0 %v1466
    %2168 = vmatpush.bf16.msra.mxu0 %v1460
    %2169 = vmatpush.bf16.msra.mxu0 %v1454
    %2170 = vmatmul.bf16.gmra.mxu0 %v529
    %v2171 = vpop.f32.mrf.mxu0
    %v2172 = vadd.f32 %v2158, %v2171
    %v2173 = vpop.f32.mrf.mxu0
    %v2174 = vadd.f32 %v2160, %v2173
    %2175 = vdwg.mxu0
    %2176 = vmatpush.bf16.msra.mxu0 %v1544
    %2177 = vmatpush.bf16.msra.mxu0 %v1538
    %2178 = vmatpush.bf16.msra.mxu0 %v1532
    %2179 = vmatpush.bf16.msra.mxu0 %v1526
    %2180 = vmatpush.bf16.msra.mxu0 %v1520
    %2181 = vmatpush.bf16.msra.mxu0 %v1514
    %2182 = vmatpush.bf16.msra.mxu0 %v1508
    %2183 = vmatpush.bf16.msra.mxu0 %v1502
    %2184 = vmatmul.bf16.gmra.mxu0 %v530
    %v2185 = vpop.f32.mrf.mxu0
    %v2186 = vadd.f32 %v2172, %v2185
    %v2187 = vpop.f32.mrf.mxu0
    %v2188 = vadd.f32 %v2174, %v2187
    %2189 = vdwg.mxu0
    %2190 = vmatpush.bf16.msra.mxu0 %v1592
    %2191 = vmatpush.bf16.msra.mxu0 %v1586
    %2192 = vmatpush.bf16.msra.mxu0 %v1580
    %2193 = vmatpush.bf16.msra.mxu0 %v1574
    %2194 = vmatpush.bf16.msra.mxu0 %v1568
    %2195 = vmatpush.bf16.msra.mxu0 %v1562
    %2196 = vmatpush.bf16.msra.mxu0 %v1556
    %2197 = vmatpush.bf16.msra.mxu0 %v1550
    %2198 = vmatmul.bf16.gmra.mxu0 %v531
    %v2199 = vpop.f32.mrf.mxu0
    %v2200 = vadd.f32 %v2186, %v2199
    %v2201 = vpop.f32.mrf.mxu0
    %v2202 = vadd.f32 %v2188, %v2201
    %2203 = vdwg.mxu0
    %2204 = vmatpush.bf16.msra.mxu0 %v1640
    %2205 = vmatpush.bf16.msra.mxu0 %v1634
    %2206 = vmatpush.bf16.msra.mxu0 %v1628
    %2207 = vmatpush.bf16.msra.mxu0 %v1622
    %2208 = vmatpush.bf16.msra.mxu0 %v1616
    %2209 = vmatpush.bf16.msra.mxu0 %v1610
    %2210 = vmatpush.bf16.msra.mxu0 %v1604
    %2211 = vmatpush.bf16.msra.mxu0 %v1598
    %2212 = vmatmul.bf16.gmra.mxu0 %v532
    %v2213 = vpop.f32.mrf.mxu0
    %v2214 = vadd.f32 %v2200, %v2213
    %v2215 = vpop.f32.mrf.mxu0
    %v2216 = vadd.f32 %v2202, %v2215
    %2217 = vdwg.mxu0
    %2218 = vmatpush.bf16.msra.mxu0 %v1688
    %2219 = vmatpush.bf16.msra.mxu0 %v1682
    %2220 = vmatpush.bf16.msra.mxu0 %v1676
    %2221 = vmatpush.bf16.msra.mxu0 %v1670
    %2222 = vmatpush.bf16.msra.mxu0 %v1664
    %2223 = vmatpush.bf16.msra.mxu0 %v1658
    %2224 = vmatpush.bf16.msra.mxu0 %v1652
    %2225 = vmatpush.bf16.msra.mxu0 %v1646
    %2226 = vmatmul.bf16.gmra.mxu0 %v533
    %v2227 = vpop.f32.mrf.mxu0
    %v2228 = vadd.f32 %v2214, %v2227
    %v2229 = vpop.f32.mrf.mxu0
    %v2230 = vadd.f32 %v2216, %v2229
    %2231 = vdwg.mxu0
    %2232 = vmatpush.bf16.msra.mxu0 %v1449
    %2233 = vmatpush.bf16.msra.mxu0 %v1443
    %2234 = vmatpush.bf16.msra.mxu0 %v1437
    %2235 = vmatpush.bf16.msra.mxu0 %v1431
    %2236 = vmatpush.bf16.msra.mxu0 %v1425
    %2237 = vmatpush.bf16.msra.mxu0 %v1419
    %2238 = vmatpush.bf16.msra.mxu0 %v1413
    %2239 = vmatpush.bf16.msra.mxu0 %v1407
    %2240 = vmatmul.bf16.gmra.mxu0 %v528
    %v2241 = vpop.f32.mrf.mxu0
    %v2242 = vadd.f32 %v501, %v2241
    %v2243 = vpop.f32.mrf.mxu0
    %v2244 = vadd.f32 %v501, %v2243
    %2245 = vdwg.mxu0
    %2246 = vmatpush.bf16.msra.mxu0 %v1497
    %2247 = vmatpush.bf16.msra.mxu0 %v1491
    %2248 = vmatpush.bf16.msra.mxu0 %v1485
    %2249 = vmatpush.bf16.msra.mxu0 %v1479
    %2250 = vmatpush.bf16.msra.mxu0 %v1473
    %2251 = vmatpush.bf16.msra.mxu0 %v1467
    %2252 = vmatpush.bf16.msra.mxu0 %v1461
    %2253 = vmatpush.bf16.msra.mxu0 %v1455
    %2254 = vmatmul.bf16.gmra.mxu0 %v529
    %v2255 = vpop.f32.mrf.mxu0
    %v2256 = vadd.f32 %v2242, %v2255
    %v2257 = vpop.f32.mrf.mxu0
    %v2258 = vadd.f32 %v2244, %v2257
    %2259 = vdwg.mxu0
    %2260 = vmatpush.bf16.msra.mxu0 %v1545
    %2261 = vmatpush.bf16.msra.mxu0 %v1539
    %2262 = vmatpush.bf16.msra.mxu0 %v1533
    %2263 = vmatpush.bf16.msra.mxu0 %v1527
    %2264 = vmatpush.bf16.msra.mxu0 %v1521
    %2265 = vmatpush.bf16.msra.mxu0 %v1515
    %2266 = vmatpush.bf16.msra.mxu0 %v1509
    %2267 = vmatpush.bf16.msra.mxu0 %v1503
    %2268 = vmatmul.bf16.gmra.mxu0 %v530
    %v2269 = vpop.f32.mrf.mxu0
    %v2270 = vadd.f32 %v2256, %v2269
    %v2271 = vpop.f32.mrf.mxu0
    %v2272 = vadd.f32 %v2258, %v2271
    %2273 = vdwg.mxu0
    %2274 = vmatpush.bf16.msra.mxu0 %v1593
    %2275 = vmatpush.bf16.msra.mxu0 %v1587
    %2276 = vmatpush.bf16.msra.mxu0 %v1581
    %2277 = vmatpush.bf16.msra.mxu0 %v1575
    %2278 = vmatpush.bf16.msra.mxu0 %v1569
    %2279 = vmatpush.bf16.msra.mxu0 %v1563
    %2280 = vmatpush.bf16.msra.mxu0 %v1557
    %2281 = vmatpush.bf16.msra.mxu0 %v1551
    %2282 = vmatmul.bf16.gmra.mxu0 %v531
    %v2283 = vpop.f32.mrf.mxu0
    %v2284 = vadd.f32 %v2270, %v2283
    %v2285 = vpop.f32.mrf.mxu0
    %v2286 = vadd.f32 %v2272, %v2285
    %2287 = vdwg.mxu0
    %2288 = vmatpush.bf16.msra.mxu0 %v1641
    %2289 = vmatpush.bf16.msra.mxu0 %v1635
    %2290 = vmatpush.bf16.msra.mxu0 %v1629
    %2291 = vmatpush.bf16.msra.mxu0 %v1623
    %2292 = vmatpush.bf16.msra.mxu0 %v1617
    %2293 = vmatpush.bf16.msra.mxu0 %v1611
    %2294 = vmatpush.bf16.msra.mxu0 %v1605
    %2295 = vmatpush.bf16.msra.mxu0 %v1599
    %2296 = vmatmul.bf16.gmra.mxu0 %v532
    %v2297 = vpop.f32.mrf.mxu0
    %v2298 = vadd.f32 %v2284, %v2297
    %v2299 = vpop.f32.mrf.mxu0
    %v2300 = vadd.f32 %v2286, %v2299
    %2301 = vdwg.mxu0
    %2302 = vmatpush.bf16.msra.mxu0 %v1689
    %2303 = vmatpush.bf16.msra.mxu0 %v1683
    %2304 = vmatpush.bf16.msra.mxu0 %v1677
    %2305 = vmatpush.bf16.msra.mxu0 %v1671
    %2306 = vmatpush.bf16.msra.mxu0 %v1665
    %2307 = vmatpush.bf16.msra.mxu0 %v1659
    %2308 = vmatpush.bf16.msra.mxu0 %v1653
    %2309 = vmatpush.bf16.msra.mxu0 %v1647
    %2310 = vmatmul.bf16.gmra.mxu0 %v533
    %v2311 = vpop.f32.mrf.mxu0
    %v2312 = vadd.f32 %v2298, %v2311
    %v2313 = vpop.f32.mrf.mxu0
    %v2314 = vadd.f32 %v2300, %v2313
    %2315 = vdwg.mxu0
    %2316 = vmatpush.bf16.msra.mxu0 %v1450
    %2317 = vmatpush.bf16.msra.mxu0 %v1444
    %2318 = vmatpush.bf16.msra.mxu0 %v1438
    %2319 = vmatpush.bf16.msra.mxu0 %v1432
    %2320 = vmatpush.bf16.msra.mxu0 %v1426
    %2321 = vmatpush.bf16.msra.mxu0 %v1420
    %2322 = vmatpush.bf16.msra.mxu0 %v1414
    %2323 = vmatpush.bf16.msra.mxu0 %v1408
    %2324 = vmatmul.bf16.gmra.mxu0 %v528
    %v2325 = vpop.f32.mrf.mxu0
    %v2326 = vadd.f32 %v502, %v2325
    %v2327 = vpop.f32.mrf.mxu0
    %v2328 = vadd.f32 %v502, %v2327
    %2329 = vdwg.mxu0
    %2330 = vmatpush.bf16.msra.mxu0 %v1498
    %2331 = vmatpush.bf16.msra.mxu0 %v1492
    %2332 = vmatpush.bf16.msra.mxu0 %v1486
    %2333 = vmatpush.bf16.msra.mxu0 %v1480
    %2334 = vmatpush.bf16.msra.mxu0 %v1474
    %2335 = vmatpush.bf16.msra.mxu0 %v1468
    %2336 = vmatpush.bf16.msra.mxu0 %v1462
    %2337 = vmatpush.bf16.msra.mxu0 %v1456
    %2338 = vmatmul.bf16.gmra.mxu0 %v529
    %v2339 = vpop.f32.mrf.mxu0
    %v2340 = vadd.f32 %v2326, %v2339
    %v2341 = vpop.f32.mrf.mxu0
    %v2342 = vadd.f32 %v2328, %v2341
    %2343 = vdwg.mxu0
    %2344 = vmatpush.bf16.msra.mxu0 %v1546
    %2345 = vmatpush.bf16.msra.mxu0 %v1540
    %2346 = vmatpush.bf16.msra.mxu0 %v1534
    %2347 = vmatpush.bf16.msra.mxu0 %v1528
    %2348 = vmatpush.bf16.msra.mxu0 %v1522
    %2349 = vmatpush.bf16.msra.mxu0 %v1516
    %2350 = vmatpush.bf16.msra.mxu0 %v1510
    %2351 = vmatpush.bf16.msra.mxu0 %v1504
    %2352 = vmatmul.bf16.gmra.mxu0 %v530
    %v2353 = vpop.f32.mrf.mxu0
    %v2354 = vadd.f32 %v2340, %v2353
    %v2355 = vpop.f32.mrf.mxu0
    %v2356 = vadd.f32 %v2342, %v2355
    %2357 = vdwg.mxu0
    %2358 = vmatpush.bf16.msra.mxu0 %v1594
    %2359 = vmatpush.bf16.msra.mxu0 %v1588
    %2360 = vmatpush.bf16.msra.mxu0 %v1582
    %2361 = vmatpush.bf16.msra.mxu0 %v1576
    %2362 = vmatpush.bf16.msra.mxu0 %v1570
    %2363 = vmatpush.bf16.msra.mxu0 %v1564
    %2364 = vmatpush.bf16.msra.mxu0 %v1558
    %2365 = vmatpush.bf16.msra.mxu0 %v1552
    %2366 = vmatmul.bf16.gmra.mxu0 %v531
    %v2367 = vpop.f32.mrf.mxu0
    %v2368 = vadd.f32 %v2354, %v2367
    %v2369 = vpop.f32.mrf.mxu0
    %v2370 = vadd.f32 %v2356, %v2369
    %2371 = vdwg.mxu0
    %2372 = vmatpush.bf16.msra.mxu0 %v1642
    %2373 = vmatpush.bf16.msra.mxu0 %v1636
    %2374 = vmatpush.bf16.msra.mxu0 %v1630
    %2375 = vmatpush.bf16.msra.mxu0 %v1624
    %2376 = vmatpush.bf16.msra.mxu0 %v1618
    %2377 = vmatpush.bf16.msra.mxu0 %v1612
    %2378 = vmatpush.bf16.msra.mxu0 %v1606
    %2379 = vmatpush.bf16.msra.mxu0 %v1600
    %2380 = vmatmul.bf16.gmra.mxu0 %v532
    %v2381 = vpop.f32.mrf.mxu0
    %v2382 = vadd.f32 %v2368, %v2381
    %v2383 = vpop.f32.mrf.mxu0
    %v2384 = vadd.f32 %v2370, %v2383
    %2385 = vdwg.mxu0
    %2386 = vmatpush.bf16.msra.mxu0 %v1690
    %2387 = vmatpush.bf16.msra.mxu0 %v1684
    %2388 = vmatpush.bf16.msra.mxu0 %v1678
    %2389 = vmatpush.bf16.msra.mxu0 %v1672
    %2390 = vmatpush.bf16.msra.mxu0 %v1666
    %2391 = vmatpush.bf16.msra.mxu0 %v1660
    %2392 = vmatpush.bf16.msra.mxu0 %v1654
    %2393 = vmatpush.bf16.msra.mxu0 %v1648
    %2394 = vmatmul.bf16.gmra.mxu0 %v533
    %v2395 = vpop.f32.mrf.mxu0
    %v2396 = vadd.f32 %v2382, %v2395
    %v2397 = vpop.f32.mrf.mxu0
    %v2398 = vadd.f32 %v2384, %v2397
    %2399 = vdwg.mxu0
    %2400 = vmatpush.bf16.msra.mxu0 %v1451
    %2401 = vmatpush.bf16.msra.mxu0 %v1445
    %2402 = vmatpush.bf16.msra.mxu0 %v1439
    %2403 = vmatpush.bf16.msra.mxu0 %v1433
    %2404 = vmatpush.bf16.msra.mxu0 %v1427
    %2405 = vmatpush.bf16.msra.mxu0 %v1421
    %2406 = vmatpush.bf16.msra.mxu0 %v1415
    %2407 = vmatpush.bf16.msra.mxu0 %v1409
    %2408 = vmatmul.bf16.gmra.mxu0 %v528
    %v2409 = vpop.f32.mrf.mxu0
    %v2410 = vadd.f32 %v503, %v2409
    %v2411 = vpop.f32.mrf.mxu0
    %v2412 = vadd.f32 %v503, %v2411
    %2413 = vdwg.mxu0
    %2414 = vmatpush.bf16.msra.mxu0 %v1499
    %2415 = vmatpush.bf16.msra.mxu0 %v1493
    %2416 = vmatpush.bf16.msra.mxu0 %v1487
    %2417 = vmatpush.bf16.msra.mxu0 %v1481
    %2418 = vmatpush.bf16.msra.mxu0 %v1475
    %2419 = vmatpush.bf16.msra.mxu0 %v1469
    %2420 = vmatpush.bf16.msra.mxu0 %v1463
    %2421 = vmatpush.bf16.msra.mxu0 %v1457
    %2422 = vmatmul.bf16.gmra.mxu0 %v529
    %v2423 = vpop.f32.mrf.mxu0
    %v2424 = vadd.f32 %v2410, %v2423
    %v2425 = vpop.f32.mrf.mxu0
    %v2426 = vadd.f32 %v2412, %v2425
    %2427 = vdwg.mxu0
    %2428 = vmatpush.bf16.msra.mxu0 %v1547
    %2429 = vmatpush.bf16.msra.mxu0 %v1541
    %2430 = vmatpush.bf16.msra.mxu0 %v1535
    %2431 = vmatpush.bf16.msra.mxu0 %v1529
    %2432 = vmatpush.bf16.msra.mxu0 %v1523
    %2433 = vmatpush.bf16.msra.mxu0 %v1517
    %2434 = vmatpush.bf16.msra.mxu0 %v1511
    %2435 = vmatpush.bf16.msra.mxu0 %v1505
    %2436 = vmatmul.bf16.gmra.mxu0 %v530
    %v2437 = vpop.f32.mrf.mxu0
    %v2438 = vadd.f32 %v2424, %v2437
    %v2439 = vpop.f32.mrf.mxu0
    %v2440 = vadd.f32 %v2426, %v2439
    %2441 = vdwg.mxu0
    %2442 = vmatpush.bf16.msra.mxu0 %v1595
    %2443 = vmatpush.bf16.msra.mxu0 %v1589
    %2444 = vmatpush.bf16.msra.mxu0 %v1583
    %2445 = vmatpush.bf16.msra.mxu0 %v1577
    %2446 = vmatpush.bf16.msra.mxu0 %v1571
    %2447 = vmatpush.bf16.msra.mxu0 %v1565
    %2448 = vmatpush.bf16.msra.mxu0 %v1559
    %2449 = vmatpush.bf16.msra.mxu0 %v1553
    %2450 = vmatmul.bf16.gmra.mxu0 %v531
    %v2451 = vpop.f32.mrf.mxu0
    %v2452 = vadd.f32 %v2438, %v2451
    %v2453 = vpop.f32.mrf.mxu0
    %v2454 = vadd.f32 %v2440, %v2453
    %2455 = vdwg.mxu0
    %2456 = vmatpush.bf16.msra.mxu0 %v1643
    %2457 = vmatpush.bf16.msra.mxu0 %v1637
    %2458 = vmatpush.bf16.msra.mxu0 %v1631
    %2459 = vmatpush.bf16.msra.mxu0 %v1625
    %2460 = vmatpush.bf16.msra.mxu0 %v1619
    %2461 = vmatpush.bf16.msra.mxu0 %v1613
    %2462 = vmatpush.bf16.msra.mxu0 %v1607
    %2463 = vmatpush.bf16.msra.mxu0 %v1601
    %2464 = vmatmul.bf16.gmra.mxu0 %v532
    %v2465 = vpop.f32.mrf.mxu0
    %v2466 = vadd.f32 %v2452, %v2465
    %v2467 = vpop.f32.mrf.mxu0
    %v2468 = vadd.f32 %v2454, %v2467
    %2469 = vdwg.mxu0
    %2470 = vmatpush.bf16.msra.mxu0 %v1691
    %2471 = vmatpush.bf16.msra.mxu0 %v1685
    %2472 = vmatpush.bf16.msra.mxu0 %v1679
    %2473 = vmatpush.bf16.msra.mxu0 %v1673
    %2474 = vmatpush.bf16.msra.mxu0 %v1667
    %2475 = vmatpush.bf16.msra.mxu0 %v1661
    %2476 = vmatpush.bf16.msra.mxu0 %v1655
    %2477 = vmatpush.bf16.msra.mxu0 %v1649
    %2478 = vmatmul.bf16.gmra.mxu0 %v533
    %v2479 = vpop.f32.mrf.mxu0
    %v2480 = vadd.f32 %v2466, %v2479
    %v2481 = vpop.f32.mrf.mxu0
    %v2482 = vadd.f32 %v2468, %v2481
    %2483 = vdwg.mxu0
    %v2484 = vpack.c.bf16 %v2062, %v2060
    %v2485 = vpack.c.bf16 %v2146, %v2144
    %v2486 = vpack.c.bf16 %v2230, %v2228
    %v2487 = vpack.c.bf16 %v2314, %v2312
    %v2488 = vpack.c.bf16 %v2398, %v2396
    %v2489 = vpack.c.bf16 %v2482, %v2480
    %v2490 = vunpack.c.l.bf16 %v2484
    %v2491 = vunpack.c.l.bf16 %v2485
    %v2492 = vunpack.c.l.bf16 %v2486
    %v2493 = vunpack.c.l.bf16 %v2487
    %v2494 = vunpack.c.l.bf16 %v2488
    %v2495 = vunpack.c.l.bf16 %v2489
    %v2496 = vunpack.c.h.bf16 %v2484
    %v2497 = vunpack.c.h.bf16 %v2485
    %v2498 = vunpack.c.h.bf16 %v2486
    %v2499 = vunpack.c.h.bf16 %v2487
    %v2500 = vunpack.c.h.bf16 %v2488
    %v2501 = vunpack.c.h.bf16 %v2489
    %v2502 = vtanh.pop %v2490
    %v2503 = vtanh.pop %v2491
    %v2504 = vtanh.pop %v2492
    %v2505 = vtanh.pop %v2493
    %v2506 = vtanh.pop %v2494
    %v2507 = vtanh.pop %v2495
    %v2508 = vtanh.pop %v2496
    %v2509 = vtanh.pop %v2497
    %v2510 = vtanh.pop %v2498
    %v2511 = vtanh.pop %v2499
    %v2512 = vtanh.pop %v2500
    %v2513 = vtanh.pop %v2501
    %v2514 = vpack.c.bf16 %v2508, %v2502
    %v2515 = vpack.c.bf16 %v2509, %v2503
    %v2516 = vpack.c.bf16 %v2510, %v2504
    %v2517 = vpack.c.bf16 %v2511, %v2505
    %v2518 = vpack.c.bf16 %v2512, %v2506
    %v2519 = vpack.c.bf16 %v2513, %v2507
    %v2520 = vld [vmem:[#allocation10] sm:$0xff]
    %v2521 = vld [vmem:[#allocation10 + $0x8] sm:$0xff]
    %v2522 = vld [vmem:[#allocation10 + $0x10] sm:$0xff]
    %v2523 = vld [vmem:[#allocation10 + $0x18] sm:$0xff]
    %v2524 = vld [vmem:[#allocation10 + $0x20] sm:$0xff]
    %v2525 = vld [vmem:[#allocation10 + $0x28] sm:$0xff]
    %v2526 = vld [vmem:[#allocation10 + $0x30] sm:$0xff]
    %v2527 = vld [vmem:[#allocation10 + $0x38] sm:$0xff]
    %v2528 = vld [vmem:[#allocation10 + $0x40] sm:$0xff]
    %v2529 = vld [vmem:[#allocation10 + $0x48] sm:$0xff]
    %v2530 = vld [vmem:[#allocation10 + $0x50] sm:$0xff]
    %v2531 = vld [vmem:[#allocation10 + $0x58] sm:$0xff]
    %v2532 = vld [vmem:[#allocation10 + $0x60] sm:$0xff]
    %v2533 = vld [vmem:[#allocation10 + $0x68] sm:$0xff]
    %v2534 = vld [vmem:[#allocation10 + $0x70] sm:$0xff]
    %v2535 = vld [vmem:[#allocation10 + $0x78] sm:$0xff]
    %v2536 = vld [vmem:[#allocation10 + $0x80] sm:$0xff]
    %v2537 = vld [vmem:[#allocation10 + $0x88] sm:$0xff]
    %v2538 = vld [vmem:[#allocation10 + $0x90] sm:$0xff]
    %v2539 = vld [vmem:[#allocation10 + $0x98] sm:$0xff]
    %v2540 = vld [vmem:[#allocation10 + $0xa0] sm:$0xff]
    %v2541 = vld [vmem:[#allocation10 + $0xa8] sm:$0xff]
    %v2542 = vld [vmem:[#allocation10 + $0xb0] sm:$0xff]
    %v2543 = vld [vmem:[#allocation10 + $0xb8] sm:$0xff]
    %v2544 = vld [vmem:[#allocation10 + $0xc0] sm:$0xff]
    %v2545 = vld [vmem:[#allocation10 + $0xc8] sm:$0xff]
    %v2546 = vld [vmem:[#allocation10 + $0xd0] sm:$0xff]
    %v2547 = vld [vmem:[#allocation10 + $0xd8] sm:$0xff]
    %v2548 = vld [vmem:[#allocation10 + $0xe0] sm:$0xff]
    %v2549 = vld [vmem:[#allocation10 + $0xe8] sm:$0xff]
    %v2550 = vld [vmem:[#allocation10 + $0xf0] sm:$0xff]
    %v2551 = vld [vmem:[#allocation10 + $0xf8] sm:$0xff]
    %v2552 = vld [vmem:[#allocation10 + $0x100] sm:$0xff]
    %v2553 = vld [vmem:[#allocation10 + $0x108] sm:$0xff]
    %v2554 = vld [vmem:[#allocation10 + $0x110] sm:$0xff]
    %v2555 = vld [vmem:[#allocation10 + $0x118] sm:$0xff]
    %v2556 = vld [vmem:[#allocation10 + $0x120] sm:$0xff]
    %v2557 = vld [vmem:[#allocation10 + $0x128] sm:$0xff]
    %v2558 = vld [vmem:[#allocation10 + $0x130] sm:$0xff]
    %v2559 = vld [vmem:[#allocation10 + $0x138] sm:$0xff]
    %v2560 = vld [vmem:[#allocation10 + $0x140] sm:$0xff]
    %v2561 = vld [vmem:[#allocation10 + $0x148] sm:$0xff]
    %v2562 = vld [vmem:[#allocation10 + $0x150] sm:$0xff]
    %v2563 = vld [vmem:[#allocation10 + $0x158] sm:$0xff]
    %v2564 = vld [vmem:[#allocation10 + $0x160] sm:$0xff]
    %v2565 = vld [vmem:[#allocation10 + $0x168] sm:$0xff]
    %v2566 = vld [vmem:[#allocation10 + $0x170] sm:$0xff]
    %v2567 = vld [vmem:[#allocation10 + $0x178] sm:$0xff]
    %v2568 = vld [vmem:[#allocation10 + $0x180] sm:$0xff]
    %v2569 = vld [vmem:[#allocation10 + $0x188] sm:$0xff]
    %v2570 = vld [vmem:[#allocation10 + $0x190] sm:$0xff]
    %v2571 = vld [vmem:[#allocation10 + $0x198] sm:$0xff]
    %v2572 = vld [vmem:[#allocation10 + $0x1a0] sm:$0xff]
    %v2573 = vld [vmem:[#allocation10 + $0x1a8] sm:$0xff]
    %v2574 = vld [vmem:[#allocation10 + $0x1b0] sm:$0xff]
    %v2575 = vld [vmem:[#allocation10 + $0x1b8] sm:$0xff]
    %v2576 = vld [vmem:[#allocation10 + $0x1c0] sm:$0xff]
    %v2577 = vld [vmem:[#allocation10 + $0x1c8] sm:$0xff]
    %v2578 = vld [vmem:[#allocation10 + $0x1d0] sm:$0xff]
    %v2579 = vld [vmem:[#allocation10 + $0x1d8] sm:$0xff]
    %v2580 = vld [vmem:[#allocation10 + $0x1e0] sm:$0xff]
    %v2581 = vld [vmem:[#allocation10 + $0x1e8] sm:$0xff]
    %v2582 = vld [vmem:[#allocation10 + $0x1f0] sm:$0xff]
    %v2583 = vld [vmem:[#allocation10 + $0x1f8] sm:$0xff]
    %v2584 = vld [vmem:[#allocation10 + $0x200] sm:$0xff]
    %v2585 = vld [vmem:[#allocation10 + $0x208] sm:$0xff]
    %v2586 = vld [vmem:[#allocation10 + $0x210] sm:$0xff]
    %v2587 = vld [vmem:[#allocation10 + $0x218] sm:$0xff]
    %v2588 = vld [vmem:[#allocation10 + $0x220] sm:$0xff]
    %v2589 = vld [vmem:[#allocation10 + $0x228] sm:$0xff]
    %v2590 = vld [vmem:[#allocation10 + $0x230] sm:$0xff]
    %v2591 = vld [vmem:[#allocation10 + $0x238] sm:$0xff]
    %v2592 = vld [vmem:[#allocation10 + $0x240] sm:$0xff]
    %v2593 = vld [vmem:[#allocation10 + $0x248] sm:$0xff]
    %v2594 = vld [vmem:[#allocation10 + $0x250] sm:$0xff]
    %v2595 = vld [vmem:[#allocation10 + $0x258] sm:$0xff]
    %v2596 = vld [vmem:[#allocation10 + $0x260] sm:$0xff]
    %v2597 = vld [vmem:[#allocation10 + $0x268] sm:$0xff]
    %v2598 = vld [vmem:[#allocation10 + $0x270] sm:$0xff]
    %v2599 = vld [vmem:[#allocation10 + $0x278] sm:$0xff]
    %v2600 = vld [vmem:[#allocation10 + $0x280] sm:$0xff]
    %v2601 = vld [vmem:[#allocation10 + $0x288] sm:$0xff]
    %v2602 = vld [vmem:[#allocation10 + $0x290] sm:$0xff]
    %v2603 = vld [vmem:[#allocation10 + $0x298] sm:$0xff]
    %v2604 = vld [vmem:[#allocation10 + $0x2a0] sm:$0xff]
    %v2605 = vld [vmem:[#allocation10 + $0x2a8] sm:$0xff]
    %v2606 = vld [vmem:[#allocation10 + $0x2b0] sm:$0xff]
    %v2607 = vld [vmem:[#allocation10 + $0x2b8] sm:$0xff]
    %v2608 = vld [vmem:[#allocation10 + $0x2c0] sm:$0xff]
    %v2609 = vld [vmem:[#allocation10 + $0x2c8] sm:$0xff]
    %v2610 = vld [vmem:[#allocation10 + $0x2d0] sm:$0xff]
    %v2611 = vld [vmem:[#allocation10 + $0x2d8] sm:$0xff]
    %v2612 = vld [vmem:[#allocation10 + $0x2e0] sm:$0xff]
    %v2613 = vld [vmem:[#allocation10 + $0x2e8] sm:$0xff]
    %v2614 = vld [vmem:[#allocation10 + $0x2f0] sm:$0xff]
    %v2615 = vld [vmem:[#allocation10 + $0x2f8] sm:$0xff]
    %v2616 = vld [vmem:[#allocation10 + $0x300] sm:$0xff]
    %v2617 = vld [vmem:[#allocation10 + $0x308] sm:$0xff]
    %v2618 = vld [vmem:[#allocation10 + $0x310] sm:$0xff]
    %v2619 = vld [vmem:[#allocation10 + $0x318] sm:$0xff]
    %v2620 = vld [vmem:[#allocation10 + $0x320] sm:$0xff]
    %v2621 = vld [vmem:[#allocation10 + $0x328] sm:$0xff]
    %v2622 = vld [vmem:[#allocation10 + $0x330] sm:$0xff]
    %v2623 = vld [vmem:[#allocation10 + $0x338] sm:$0xff]
    %v2624 = vld [vmem:[#allocation10 + $0x340] sm:$0xff]
    %v2625 = vld [vmem:[#allocation10 + $0x348] sm:$0xff]
    %v2626 = vld [vmem:[#allocation10 + $0x350] sm:$0xff]
    %v2627 = vld [vmem:[#allocation10 + $0x358] sm:$0xff]
    %v2628 = vld [vmem:[#allocation10 + $0x360] sm:$0xff]
    %v2629 = vld [vmem:[#allocation10 + $0x368] sm:$0xff]
    %v2630 = vld [vmem:[#allocation10 + $0x370] sm:$0xff]
    %v2631 = vld [vmem:[#allocation10 + $0x378] sm:$0xff]
    %v2632 = vld [vmem:[#allocation10 + $0x380] sm:$0xff]
    %v2633 = vld [vmem:[#allocation10 + $0x388] sm:$0xff]
    %v2634 = vld [vmem:[#allocation10 + $0x390] sm:$0xff]
    %v2635 = vld [vmem:[#allocation10 + $0x398] sm:$0xff]
    %v2636 = vld [vmem:[#allocation10 + $0x3a0] sm:$0xff]
    %v2637 = vld [vmem:[#allocation10 + $0x3a8] sm:$0xff]
    %v2638 = vld [vmem:[#allocation10 + $0x3b0] sm:$0xff]
    %v2639 = vld [vmem:[#allocation10 + $0x3b8] sm:$0xff]
    %v2640 = vld [vmem:[#allocation10 + $0x3c0] sm:$0xff]
    %v2641 = vld [vmem:[#allocation10 + $0x3c8] sm:$0xff]
    %v2642 = vld [vmem:[#allocation10 + $0x3d0] sm:$0xff]
    %v2643 = vld [vmem:[#allocation10 + $0x3d8] sm:$0xff]
    %v2644 = vld [vmem:[#allocation10 + $0x3e0] sm:$0xff]
    %v2645 = vld [vmem:[#allocation10 + $0x3e8] sm:$0xff]
    %v2646 = vld [vmem:[#allocation10 + $0x3f0] sm:$0xff]
    %v2647 = vld [vmem:[#allocation10 + $0x3f8] sm:$0xff]
    %v2648 = vld [vmem:[#allocation10 + $0x400] sm:$0xff]
    %v2649 = vld [vmem:[#allocation10 + $0x408] sm:$0xff]
    %v2650 = vld [vmem:[#allocation10 + $0x410] sm:$0xff]
    %v2651 = vld [vmem:[#allocation10 + $0x418] sm:$0xff]
    %v2652 = vld [vmem:[#allocation10 + $0x420] sm:$0xff]
    %v2653 = vld [vmem:[#allocation10 + $0x428] sm:$0xff]
    %v2654 = vld [vmem:[#allocation10 + $0x430] sm:$0xff]
    %v2655 = vld [vmem:[#allocation10 + $0x438] sm:$0xff]
    %v2656 = vld [vmem:[#allocation10 + $0x440] sm:$0xff]
    %v2657 = vld [vmem:[#allocation10 + $0x448] sm:$0xff]
    %v2658 = vld [vmem:[#allocation10 + $0x450] sm:$0xff]
    %v2659 = vld [vmem:[#allocation10 + $0x458] sm:$0xff]
    %v2660 = vld [vmem:[#allocation10 + $0x460] sm:$0xff]
    %v2661 = vld [vmem:[#allocation10 + $0x468] sm:$0xff]
    %v2662 = vld [vmem:[#allocation10 + $0x470] sm:$0xff]
    %v2663 = vld [vmem:[#allocation10 + $0x478] sm:$0xff]
    %v2664 = vld [vmem:[#allocation10 + $0x480] sm:$0xff]
    %v2665 = vld [vmem:[#allocation10 + $0x488] sm:$0xff]
    %v2666 = vld [vmem:[#allocation10 + $0x490] sm:$0xff]
    %v2667 = vld [vmem:[#allocation10 + $0x498] sm:$0xff]
    %v2668 = vld [vmem:[#allocation10 + $0x4a0] sm:$0xff]
    %v2669 = vld [vmem:[#allocation10 + $0x4a8] sm:$0xff]
    %v2670 = vld [vmem:[#allocation10 + $0x4b0] sm:$0xff]
    %v2671 = vld [vmem:[#allocation10 + $0x4b8] sm:$0xff]
    %v2672 = vld [vmem:[#allocation10 + $0x4c0] sm:$0xff]
    %v2673 = vld [vmem:[#allocation10 + $0x4c8] sm:$0xff]
    %v2674 = vld [vmem:[#allocation10 + $0x4d0] sm:$0xff]
    %v2675 = vld [vmem:[#allocation10 + $0x4d8] sm:$0xff]
    %v2676 = vld [vmem:[#allocation10 + $0x4e0] sm:$0xff]
    %v2677 = vld [vmem:[#allocation10 + $0x4e8] sm:$0xff]
    %v2678 = vld [vmem:[#allocation10 + $0x4f0] sm:$0xff]
    %v2679 = vld [vmem:[#allocation10 + $0x4f8] sm:$0xff]
    %v2680 = vld [vmem:[#allocation10 + $0x500] sm:$0xff]
    %v2681 = vld [vmem:[#allocation10 + $0x508] sm:$0xff]
    %v2682 = vld [vmem:[#allocation10 + $0x510] sm:$0xff]
    %v2683 = vld [vmem:[#allocation10 + $0x518] sm:$0xff]
    %v2684 = vld [vmem:[#allocation10 + $0x520] sm:$0xff]
    %v2685 = vld [vmem:[#allocation10 + $0x528] sm:$0xff]
    %v2686 = vld [vmem:[#allocation10 + $0x530] sm:$0xff]
    %v2687 = vld [vmem:[#allocation10 + $0x538] sm:$0xff]
    %v2688 = vld [vmem:[#allocation10 + $0x540] sm:$0xff]
    %v2689 = vld [vmem:[#allocation10 + $0x548] sm:$0xff]
    %v2690 = vld [vmem:[#allocation10 + $0x550] sm:$0xff]
    %v2691 = vld [vmem:[#allocation10 + $0x558] sm:$0xff]
    %v2692 = vld [vmem:[#allocation10 + $0x560] sm:$0xff]
    %v2693 = vld [vmem:[#allocation10 + $0x568] sm:$0xff]
    %v2694 = vld [vmem:[#allocation10 + $0x570] sm:$0xff]
    %v2695 = vld [vmem:[#allocation10 + $0x578] sm:$0xff]
    %v2696 = vld [vmem:[#allocation10 + $0x580] sm:$0xff]
    %v2697 = vld [vmem:[#allocation10 + $0x588] sm:$0xff]
    %v2698 = vld [vmem:[#allocation10 + $0x590] sm:$0xff]
    %v2699 = vld [vmem:[#allocation10 + $0x598] sm:$0xff]
    %v2700 = vld [vmem:[#allocation10 + $0x5a0] sm:$0xff]
    %v2701 = vld [vmem:[#allocation10 + $0x5a8] sm:$0xff]
    %v2702 = vld [vmem:[#allocation10 + $0x5b0] sm:$0xff]
    %v2703 = vld [vmem:[#allocation10 + $0x5b8] sm:$0xff]
    %v2704 = vld [vmem:[#allocation10 + $0x5c0] sm:$0xff]
    %v2705 = vld [vmem:[#allocation10 + $0x5c8] sm:$0xff]
    %v2706 = vld [vmem:[#allocation10 + $0x5d0] sm:$0xff]
    %v2707 = vld [vmem:[#allocation10 + $0x5d8] sm:$0xff]
    %v2708 = vld [vmem:[#allocation10 + $0x5e0] sm:$0xff]
    %v2709 = vld [vmem:[#allocation10 + $0x5e8] sm:$0xff]
    %v2710 = vld [vmem:[#allocation10 + $0x5f0] sm:$0xff]
    %v2711 = vld [vmem:[#allocation10 + $0x5f8] sm:$0xff]
    %v2712 = vld [vmem:[#allocation11] sm:$0xf]
    %v2714 = vperm.slane %v2712, 0
    %v2715 = vperm.slane %v2712, 1
    %v2716 = vperm.slane %v2712, 2
    %v2717 = vperm.slane %v2712, 3
    %v2914 = vunpack.c.l.b16 %v2520
    %v2915 = vunpack.c.h.b16 %v2520
    %v2916 = vunpack.c.l.b16 %v2521
    %v2917 = vunpack.c.h.b16 %v2521
    %v2918 = vunpack.c.l.b16 %v2522
    %v2919 = vunpack.c.h.b16 %v2522
    %v2920 = vunpack.c.l.b16 %v2523
    %v2921 = vunpack.c.h.b16 %v2523
    %v2922 = vunpack.c.l.b16 %v2524
    %v2923 = vunpack.c.h.b16 %v2524
    %v2924 = vunpack.c.l.b16 %v2525
    %v2925 = vunpack.c.h.b16 %v2525
    %v2926 = vunpack.c.l.b16 %v2526
    %v2927 = vunpack.c.h.b16 %v2526
    %v2928 = vunpack.c.l.b16 %v2527
    %v2929 = vunpack.c.h.b16 %v2527
    %v2930 = vunpack.c.l.b16 %v2528
    %v2931 = vunpack.c.h.b16 %v2528
    %v2932 = vunpack.c.l.b16 %v2529
    %v2933 = vunpack.c.h.b16 %v2529
    %v2934 = vunpack.c.l.b16 %v2530
    %v2935 = vunpack.c.h.b16 %v2530
    %v2936 = vunpack.c.l.b16 %v2531
    %v2937 = vunpack.c.h.b16 %v2531
    %v2938 = vunpack.c.l.b16 %v2532
    %v2939 = vunpack.c.h.b16 %v2532
    %v2940 = vunpack.c.l.b16 %v2533
    %v2941 = vunpack.c.h.b16 %v2533
    %v2942 = vunpack.c.l.b16 %v2534
    %v2943 = vunpack.c.h.b16 %v2534
    %v2944 = vunpack.c.l.b16 %v2535
    %v2945 = vunpack.c.h.b16 %v2535
    %v2946 = vunpack.c.l.b16 %v2536
    %v2947 = vunpack.c.h.b16 %v2536
    %v2948 = vunpack.c.l.b16 %v2537
    %v2949 = vunpack.c.h.b16 %v2537
    %v2950 = vunpack.c.l.b16 %v2538
    %v2951 = vunpack.c.h.b16 %v2538
    %v2952 = vunpack.c.l.b16 %v2539
    %v2953 = vunpack.c.h.b16 %v2539
    %v2954 = vunpack.c.l.b16 %v2540
    %v2955 = vunpack.c.h.b16 %v2540
    %v2956 = vunpack.c.l.b16 %v2541
    %v2957 = vunpack.c.h.b16 %v2541
    %v2958 = vunpack.c.l.b16 %v2542
    %v2959 = vunpack.c.h.b16 %v2542
    %v2960 = vunpack.c.l.b16 %v2543
    %v2961 = vunpack.c.h.b16 %v2543
    %v2962 = vunpack.c.l.b16 %v2544
    %v2963 = vunpack.c.h.b16 %v2544
    %v2964 = vunpack.c.l.b16 %v2545
    %v2965 = vunpack.c.h.b16 %v2545
    %v2966 = vunpack.c.l.b16 %v2546
    %v2967 = vunpack.c.h.b16 %v2546
    %v2968 = vunpack.c.l.b16 %v2547
    %v2969 = vunpack.c.h.b16 %v2547
    %v2970 = vunpack.c.l.b16 %v2548
    %v2971 = vunpack.c.h.b16 %v2548
    %v2972 = vunpack.c.l.b16 %v2549
    %v2973 = vunpack.c.h.b16 %v2549
    %v2974 = vunpack.c.l.b16 %v2550
    %v2975 = vunpack.c.h.b16 %v2550
    %v2976 = vunpack.c.l.b16 %v2551
    %v2977 = vunpack.c.h.b16 %v2551
    %v2978 = vunpack.c.l.b16 %v2552
    %v2979 = vunpack.c.h.b16 %v2552
    %v2980 = vunpack.c.l.b16 %v2553
    %v2981 = vunpack.c.h.b16 %v2553
    %v2982 = vunpack.c.l.b16 %v2554
    %v2983 = vunpack.c.h.b16 %v2554
    %v2984 = vunpack.c.l.b16 %v2555
    %v2985 = vunpack.c.h.b16 %v2555
    %v2986 = vunpack.c.l.b16 %v2556
    %v2987 = vunpack.c.h.b16 %v2556
    %v2988 = vunpack.c.l.b16 %v2557
    %v2989 = vunpack.c.h.b16 %v2557
    %v2990 = vunpack.c.l.b16 %v2558
    %v2991 = vunpack.c.h.b16 %v2558
    %v2992 = vunpack.c.l.b16 %v2559
    %v2993 = vunpack.c.h.b16 %v2559
    %v2994 = vunpack.c.l.b16 %v2560
    %v2995 = vunpack.c.h.b16 %v2560
    %v2996 = vunpack.c.l.b16 %v2561
    %v2997 = vunpack.c.h.b16 %v2561
    %v2998 = vunpack.c.l.b16 %v2562
    %v2999 = vunpack.c.h.b16 %v2562
    %v3000 = vunpack.c.l.b16 %v2563
    %v3001 = vunpack.c.h.b16 %v2563
    %v3002 = vunpack.c.l.b16 %v2564
    %v3003 = vunpack.c.h.b16 %v2564
    %v3004 = vunpack.c.l.b16 %v2565
    %v3005 = vunpack.c.h.b16 %v2565
    %v3006 = vunpack.c.l.b16 %v2566
    %v3007 = vunpack.c.h.b16 %v2566
    %v3008 = vunpack.c.l.b16 %v2567
    %v3009 = vunpack.c.h.b16 %v2567
    %v3010 = vunpack.c.l.b16 %v2568
    %v3011 = vunpack.c.h.b16 %v2568
    %v3012 = vunpack.c.l.b16 %v2569
    %v3013 = vunpack.c.h.b16 %v2569
    %v3014 = vunpack.c.l.b16 %v2570
    %v3015 = vunpack.c.h.b16 %v2570
    %v3016 = vunpack.c.l.b16 %v2571
    %v3017 = vunpack.c.h.b16 %v2571
    %v3018 = vunpack.c.l.b16 %v2572
    %v3019 = vunpack.c.h.b16 %v2572
    %v3020 = vunpack.c.l.b16 %v2573
    %v3021 = vunpack.c.h.b16 %v2573
    %v3022 = vunpack.c.l.b16 %v2574
    %v3023 = vunpack.c.h.b16 %v2574
    %v3024 = vunpack.c.l.b16 %v2575
    %v3025 = vunpack.c.h.b16 %v2575
    %v3026 = vunpack.c.l.b16 %v2576
    %v3027 = vunpack.c.h.b16 %v2576
    %v3028 = vunpack.c.l.b16 %v2577
    %v3029 = vunpack.c.h.b16 %v2577
    %v3030 = vunpack.c.l.b16 %v2578
    %v3031 = vunpack.c.h.b16 %v2578
    %v3032 = vunpack.c.l.b16 %v2579
    %v3033 = vunpack.c.h.b16 %v2579
    %v3034 = vunpack.c.l.b16 %v2580
    %v3035 = vunpack.c.h.b16 %v2580
    %v3036 = vunpack.c.l.b16 %v2581
    %v3037 = vunpack.c.h.b16 %v2581
    %v3038 = vunpack.c.l.b16 %v2582
    %v3039 = vunpack.c.h.b16 %v2582
    %v3040 = vunpack.c.l.b16 %v2583
    %v3041 = vunpack.c.h.b16 %v2583
    %v3042 = vunpack.c.l.b16 %v2584
    %v3043 = vunpack.c.h.b16 %v2584
    %v3044 = vunpack.c.l.b16 %v2585
    %v3045 = vunpack.c.h.b16 %v2585
    %v3046 = vunpack.c.l.b16 %v2586
    %v3047 = vunpack.c.h.b16 %v2586
    %v3048 = vunpack.c.l.b16 %v2587
    %v3049 = vunpack.c.h.b16 %v2587
    %v3050 = vunpack.c.l.b16 %v2588
    %v3051 = vunpack.c.h.b16 %v2588
    %v3052 = vunpack.c.l.b16 %v2589
    %v3053 = vunpack.c.h.b16 %v2589
    %v3054 = vunpack.c.l.b16 %v2590
    %v3055 = vunpack.c.h.b16 %v2590
    %v3056 = vunpack.c.l.b16 %v2591
    %v3057 = vunpack.c.h.b16 %v2591
    %v3058 = vunpack.c.l.b16 %v2592
    %v3059 = vunpack.c.h.b16 %v2592
    %v3060 = vunpack.c.l.b16 %v2593
    %v3061 = vunpack.c.h.b16 %v2593
    %v3062 = vunpack.c.l.b16 %v2594
    %v3063 = vunpack.c.h.b16 %v2594
    %v3064 = vunpack.c.l.b16 %v2595
    %v3065 = vunpack.c.h.b16 %v2595
    %v3066 = vunpack.c.l.b16 %v2596
    %v3067 = vunpack.c.h.b16 %v2596
    %v3068 = vunpack.c.l.b16 %v2597
    %v3069 = vunpack.c.h.b16 %v2597
    %v3070 = vunpack.c.l.b16 %v2598
    %v3071 = vunpack.c.h.b16 %v2598
    %v3072 = vunpack.c.l.b16 %v2599
    %v3073 = vunpack.c.h.b16 %v2599
    %v3074 = vunpack.c.l.b16 %v2600
    %v3075 = vunpack.c.h.b16 %v2600
    %v3076 = vunpack.c.l.b16 %v2601
    %v3077 = vunpack.c.h.b16 %v2601
    %v3078 = vunpack.c.l.b16 %v2602
    %v3079 = vunpack.c.h.b16 %v2602
    %v3080 = vunpack.c.l.b16 %v2603
    %v3081 = vunpack.c.h.b16 %v2603
    %v3082 = vunpack.c.l.b16 %v2604
    %v3083 = vunpack.c.h.b16 %v2604
    %v3084 = vunpack.c.l.b16 %v2605
    %v3085 = vunpack.c.h.b16 %v2605
    %v3086 = vunpack.c.l.b16 %v2606
    %v3087 = vunpack.c.h.b16 %v2606
    %v3088 = vunpack.c.l.b16 %v2607
    %v3089 = vunpack.c.h.b16 %v2607
    %v3090 = vunpack.c.l.b16 %v2608
    %v3091 = vunpack.c.h.b16 %v2608
    %v3092 = vunpack.c.l.b16 %v2609
    %v3093 = vunpack.c.h.b16 %v2609
    %v3094 = vunpack.c.l.b16 %v2610
    %v3095 = vunpack.c.h.b16 %v2610
    %v3096 = vunpack.c.l.b16 %v2611
    %v3097 = vunpack.c.h.b16 %v2611
    %v3098 = vunpack.c.l.b16 %v2612
    %v3099 = vunpack.c.h.b16 %v2612
    %v3100 = vunpack.c.l.b16 %v2613
    %v3101 = vunpack.c.h.b16 %v2613
    %v3102 = vunpack.c.l.b16 %v2614
    %v3103 = vunpack.c.h.b16 %v2614
    %v3104 = vunpack.c.l.b16 %v2615
    %v3105 = vunpack.c.h.b16 %v2615
    %v3106 = vunpack.c.l.b16 %v2616
    %v3107 = vunpack.c.h.b16 %v2616
    %v3108 = vunpack.c.l.b16 %v2617
    %v3109 = vunpack.c.h.b16 %v2617
    %v3110 = vunpack.c.l.b16 %v2618
    %v3111 = vunpack.c.h.b16 %v2618
    %v3112 = vunpack.c.l.b16 %v2619
    %v3113 = vunpack.c.h.b16 %v2619
    %v3114 = vunpack.c.l.b16 %v2620
    %v3115 = vunpack.c.h.b16 %v2620
    %v3116 = vunpack.c.l.b16 %v2621
    %v3117 = vunpack.c.h.b16 %v2621
    %v3118 = vunpack.c.l.b16 %v2622
    %v3119 = vunpack.c.h.b16 %v2622
    %v3120 = vunpack.c.l.b16 %v2623
    %v3121 = vunpack.c.h.b16 %v2623
    %v3122 = vunpack.c.l.b16 %v2624
    %v3123 = vunpack.c.h.b16 %v2624
    %v3124 = vunpack.c.l.b16 %v2625
    %v3125 = vunpack.c.h.b16 %v2625
    %v3126 = vunpack.c.l.b16 %v2626
    %v3127 = vunpack.c.h.b16 %v2626
    %v3128 = vunpack.c.l.b16 %v2627
    %v3129 = vunpack.c.h.b16 %v2627
    %v3130 = vunpack.c.l.b16 %v2628
    %v3131 = vunpack.c.h.b16 %v2628
    %v3132 = vunpack.c.l.b16 %v2629
    %v3133 = vunpack.c.h.b16 %v2629
    %v3134 = vunpack.c.l.b16 %v2630
    %v3135 = vunpack.c.h.b16 %v2630
    %v3136 = vunpack.c.l.b16 %v2631
    %v3137 = vunpack.c.h.b16 %v2631
    %v3138 = vunpack.c.l.b16 %v2632
    %v3139 = vunpack.c.h.b16 %v2632
    %v3140 = vunpack.c.l.b16 %v2633
    %v3141 = vunpack.c.h.b16 %v2633
    %v3142 = vunpack.c.l.b16 %v2634
    %v3143 = vunpack.c.h.b16 %v2634
    %v3144 = vunpack.c.l.b16 %v2635
    %v3145 = vunpack.c.h.b16 %v2635
    %v3146 = vunpack.c.l.b16 %v2636
    %v3147 = vunpack.c.h.b16 %v2636
    %v3148 = vunpack.c.l.b16 %v2637
    %v3149 = vunpack.c.h.b16 %v2637
    %v3150 = vunpack.c.l.b16 %v2638
    %v3151 = vunpack.c.h.b16 %v2638
    %v3152 = vunpack.c.l.b16 %v2639
    %v3153 = vunpack.c.h.b16 %v2639
    %v3154 = vunpack.c.l.b16 %v2640
    %v3155 = vunpack.c.h.b16 %v2640
    %v3156 = vunpack.c.l.b16 %v2641
    %v3157 = vunpack.c.h.b16 %v2641
    %v3158 = vunpack.c.l.b16 %v2642
    %v3159 = vunpack.c.h.b16 %v2642
    %v3160 = vunpack.c.l.b16 %v2643
    %v3161 = vunpack.c.h.b16 %v2643
    %v3162 = vunpack.c.l.b16 %v2644
    %v3163 = vunpack.c.h.b16 %v2644
    %v3164 = vunpack.c.l.b16 %v2645
    %v3165 = vunpack.c.h.b16 %v2645
    %v3166 = vunpack.c.l.b16 %v2646
    %v3167 = vunpack.c.h.b16 %v2646
    %v3168 = vunpack.c.l.b16 %v2647
    %v3169 = vunpack.c.h.b16 %v2647
    %v3170 = vunpack.c.l.b16 %v2648
    %v3171 = vunpack.c.h.b16 %v2648
    %v3172 = vunpack.c.l.b16 %v2649
    %v3173 = vunpack.c.h.b16 %v2649
    %v3174 = vunpack.c.l.b16 %v2650
    %v3175 = vunpack.c.h.b16 %v2650
    %v3176 = vunpack.c.l.b16 %v2651
    %v3177 = vunpack.c.h.b16 %v2651
    %v3178 = vunpack.c.l.b16 %v2652
    %v3179 = vunpack.c.h.b16 %v2652
    %v3180 = vunpack.c.l.b16 %v2653
    %v3181 = vunpack.c.h.b16 %v2653
    %v3182 = vunpack.c.l.b16 %v2654
    %v3183 = vunpack.c.h.b16 %v2654
    %v3184 = vunpack.c.l.b16 %v2655
    %v3185 = vunpack.c.h.b16 %v2655
    %v3186 = vunpack.c.l.b16 %v2656
    %v3187 = vunpack.c.h.b16 %v2656
    %v3188 = vunpack.c.l.b16 %v2657
    %v3189 = vunpack.c.h.b16 %v2657
    %v3190 = vunpack.c.l.b16 %v2658
    %v3191 = vunpack.c.h.b16 %v2658
    %v3192 = vunpack.c.l.b16 %v2659
    %v3193 = vunpack.c.h.b16 %v2659
    %v3194 = vunpack.c.l.b16 %v2660
    %v3195 = vunpack.c.h.b16 %v2660
    %v3196 = vunpack.c.l.b16 %v2661
    %v3197 = vunpack.c.h.b16 %v2661
    %v3198 = vunpack.c.l.b16 %v2662
    %v3199 = vunpack.c.h.b16 %v2662
    %v3200 = vunpack.c.l.b16 %v2663
    %v3201 = vunpack.c.h.b16 %v2663
    %v3202 = vunpack.c.l.b16 %v2664
    %v3203 = vunpack.c.h.b16 %v2664
    %v3204 = vunpack.c.l.b16 %v2665
    %v3205 = vunpack.c.h.b16 %v2665
    %v3206 = vunpack.c.l.b16 %v2666
    %v3207 = vunpack.c.h.b16 %v2666
    %v3208 = vunpack.c.l.b16 %v2667
    %v3209 = vunpack.c.h.b16 %v2667
    %v3210 = vunpack.c.l.b16 %v2668
    %v3211 = vunpack.c.h.b16 %v2668
    %v3212 = vunpack.c.l.b16 %v2669
    %v3213 = vunpack.c.h.b16 %v2669
    %v3214 = vunpack.c.l.b16 %v2670
    %v3215 = vunpack.c.h.b16 %v2670
    %v3216 = vunpack.c.l.b16 %v2671
    %v3217 = vunpack.c.h.b16 %v2671
    %v3218 = vunpack.c.l.b16 %v2672
    %v3219 = vunpack.c.h.b16 %v2672
    %v3220 = vunpack.c.l.b16 %v2673
    %v3221 = vunpack.c.h.b16 %v2673
    %v3222 = vunpack.c.l.b16 %v2674
    %v3223 = vunpack.c.h.b16 %v2674
    %v3224 = vunpack.c.l.b16 %v2675
    %v3225 = vunpack.c.h.b16 %v2675
    %v3226 = vunpack.c.l.b16 %v2676
    %v3227 = vunpack.c.h.b16 %v2676
    %v3228 = vunpack.c.l.b16 %v2677
    %v3229 = vunpack.c.h.b16 %v2677
    %v3230 = vunpack.c.l.b16 %v2678
    %v3231 = vunpack.c.h.b16 %v2678
    %v3232 = vunpack.c.l.b16 %v2679
    %v3233 = vunpack.c.h.b16 %v2679
    %v3234 = vunpack.c.l.b16 %v2680
    %v3235 = vunpack.c.h.b16 %v2680
    %v3236 = vunpack.c.l.b16 %v2681
    %v3237 = vunpack.c.h.b16 %v2681
    %v3238 = vunpack.c.l.b16 %v2682
    %v3239 = vunpack.c.h.b16 %v2682
    %v3240 = vunpack.c.l.b16 %v2683
    %v3241 = vunpack.c.h.b16 %v2683
    %v3242 = vunpack.c.l.b16 %v2684
    %v3243 = vunpack.c.h.b16 %v2684
    %v3244 = vunpack.c.l.b16 %v2685
    %v3245 = vunpack.c.h.b16 %v2685
    %v3246 = vunpack.c.l.b16 %v2686
    %v3247 = vunpack.c.h.b16 %v2686
    %v3248 = vunpack.c.l.b16 %v2687
    %v3249 = vunpack.c.h.b16 %v2687
    %v3250 = vunpack.c.l.b16 %v2688
    %v3251 = vunpack.c.h.b16 %v2688
    %v3252 = vunpack.c.l.b16 %v2689
    %v3253 = vunpack.c.h.b16 %v2689
    %v3254 = vunpack.c.l.b16 %v2690
    %v3255 = vunpack.c.h.b16 %v2690
    %v3256 = vunpack.c.l.b16 %v2691
    %v3257 = vunpack.c.h.b16 %v2691
    %v3258 = vunpack.c.l.b16 %v2692
    %v3259 = vunpack.c.h.b16 %v2692
    %v3260 = vunpack.c.l.b16 %v2693
    %v3261 = vunpack.c.h.b16 %v2693
    %v3262 = vunpack.c.l.b16 %v2694
    %v3263 = vunpack.c.h.b16 %v2694
    %v3264 = vunpack.c.l.b16 %v2695
    %v3265 = vunpack.c.h.b16 %v2695
    %v3266 = vunpack.c.l.b16 %v2696
    %v3267 = vunpack.c.h.b16 %v2696
    %v3268 = vunpack.c.l.b16 %v2697
    %v3269 = vunpack.c.h.b16 %v2697
    %v3270 = vunpack.c.l.b16 %v2698
    %v3271 = vunpack.c.h.b16 %v2698
    %v3272 = vunpack.c.l.b16 %v2699
    %v3273 = vunpack.c.h.b16 %v2699
    %v3274 = vunpack.c.l.b16 %v2700
    %v3275 = vunpack.c.h.b16 %v2700
    %v3276 = vunpack.c.l.b16 %v2701
    %v3277 = vunpack.c.h.b16 %v2701
    %v3278 = vunpack.c.l.b16 %v2702
    %v3279 = vunpack.c.h.b16 %v2702
    %v3280 = vunpack.c.l.b16 %v2703
    %v3281 = vunpack.c.h.b16 %v2703
    %v3282 = vunpack.c.l.b16 %v2704
    %v3283 = vunpack.c.h.b16 %v2704
    %v3284 = vunpack.c.l.b16 %v2705
    %v3285 = vunpack.c.h.b16 %v2705
    %v3286 = vunpack.c.l.b16 %v2706
    %v3287 = vunpack.c.h.b16 %v2706
    %v3288 = vunpack.c.l.b16 %v2707
    %v3289 = vunpack.c.h.b16 %v2707
    %v3290 = vunpack.c.l.b16 %v2708
    %v3291 = vunpack.c.h.b16 %v2708
    %v3292 = vunpack.c.l.b16 %v2709
    %v3293 = vunpack.c.h.b16 %v2709
    %v3294 = vunpack.c.l.b16 %v2710
    %v3295 = vunpack.c.h.b16 %v2710
    %v3296 = vunpack.c.l.b16 %v2711
    %v3297 = vunpack.c.h.b16 %v2711
    %v3298 = vpack.c.b16 %v2918, %v2914
    %v3299 = vpack.c.b16 %v2919, %v2915
    %v3300 = vpack.c.b16 %v2920, %v2916
    %v3301 = vpack.c.b16 %v2921, %v2917
    %v3302 = vpack.c.b16 %v2926, %v2922
    %v3303 = vpack.c.b16 %v2927, %v2923
    %v3304 = vpack.c.b16 %v2928, %v2924
    %v3305 = vpack.c.b16 %v2929, %v2925
    %v3306 = vpack.c.b16 %v2934, %v2930
    %v3307 = vpack.c.b16 %v2935, %v2931
    %v3308 = vpack.c.b16 %v2936, %v2932
    %v3309 = vpack.c.b16 %v2937, %v2933
    %v3310 = vpack.c.b16 %v2942, %v2938
    %v3311 = vpack.c.b16 %v2943, %v2939
    %v3312 = vpack.c.b16 %v2944, %v2940
    %v3313 = vpack.c.b16 %v2945, %v2941
    %v3314 = vpack.c.b16 %v2950, %v2946
    %v3315 = vpack.c.b16 %v2951, %v2947
    %v3316 = vpack.c.b16 %v2952, %v2948
    %v3317 = vpack.c.b16 %v2953, %v2949
    %v3318 = vpack.c.b16 %v2958, %v2954
    %v3319 = vpack.c.b16 %v2959, %v2955
    %v3320 = vpack.c.b16 %v2960, %v2956
    %v3321 = vpack.c.b16 %v2961, %v2957
    %v3322 = vpack.c.b16 %v2966, %v2962
    %v3323 = vpack.c.b16 %v2967, %v2963
    %v3324 = vpack.c.b16 %v2968, %v2964
    %v3325 = vpack.c.b16 %v2969, %v2965
    %v3326 = vpack.c.b16 %v2974, %v2970
    %v3327 = vpack.c.b16 %v2975, %v2971
    %v3328 = vpack.c.b16 %v2976, %v2972
    %v3329 = vpack.c.b16 %v2977, %v2973
    %v3330 = vpack.c.b16 %v2982, %v2978
    %v3331 = vpack.c.b16 %v2983, %v2979
    %v3332 = vpack.c.b16 %v2984, %v2980
    %v3333 = vpack.c.b16 %v2985, %v2981
    %v3334 = vpack.c.b16 %v2990, %v2986
    %v3335 = vpack.c.b16 %v2991, %v2987
    %v3336 = vpack.c.b16 %v2992, %v2988
    %v3337 = vpack.c.b16 %v2993, %v2989
    %v3338 = vpack.c.b16 %v2998, %v2994
    %v3339 = vpack.c.b16 %v2999, %v2995
    %v3340 = vpack.c.b16 %v3000, %v2996
    %v3341 = vpack.c.b16 %v3001, %v2997
    %v3342 = vpack.c.b16 %v3006, %v3002
    %v3343 = vpack.c.b16 %v3007, %v3003
    %v3344 = vpack.c.b16 %v3008, %v3004
    %v3345 = vpack.c.b16 %v3009, %v3005
    %v3346 = vpack.c.b16 %v3014, %v3010
    %v3347 = vpack.c.b16 %v3015, %v3011
    %v3348 = vpack.c.b16 %v3016, %v3012
    %v3349 = vpack.c.b16 %v3017, %v3013
    %v3350 = vpack.c.b16 %v3022, %v3018
    %v3351 = vpack.c.b16 %v3023, %v3019
    %v3352 = vpack.c.b16 %v3024, %v3020
    %v3353 = vpack.c.b16 %v3025, %v3021
    %v3354 = vpack.c.b16 %v3030, %v3026
    %v3355 = vpack.c.b16 %v3031, %v3027
    %v3356 = vpack.c.b16 %v3032, %v3028
    %v3357 = vpack.c.b16 %v3033, %v3029
    %v3358 = vpack.c.b16 %v3038, %v3034
    %v3359 = vpack.c.b16 %v3039, %v3035
    %v3360 = vpack.c.b16 %v3040, %v3036
    %v3361 = vpack.c.b16 %v3041, %v3037
    %v3362 = vpack.c.b16 %v3046, %v3042
    %v3363 = vpack.c.b16 %v3047, %v3043
    %v3364 = vpack.c.b16 %v3048, %v3044
    %v3365 = vpack.c.b16 %v3049, %v3045
    %v3366 = vpack.c.b16 %v3054, %v3050
    %v3367 = vpack.c.b16 %v3055, %v3051
    %v3368 = vpack.c.b16 %v3056, %v3052
    %v3369 = vpack.c.b16 %v3057, %v3053
    %v3370 = vpack.c.b16 %v3062, %v3058
    %v3371 = vpack.c.b16 %v3063, %v3059
    %v3372 = vpack.c.b16 %v3064, %v3060
    %v3373 = vpack.c.b16 %v3065, %v3061
    %v3374 = vpack.c.b16 %v3070, %v3066
    %v3375 = vpack.c.b16 %v3071, %v3067
    %v3376 = vpack.c.b16 %v3072, %v3068
    %v3377 = vpack.c.b16 %v3073, %v3069
    %v3378 = vpack.c.b16 %v3078, %v3074
    %v3379 = vpack.c.b16 %v3079, %v3075
    %v3380 = vpack.c.b16 %v3080, %v3076
    %v3381 = vpack.c.b16 %v3081, %v3077
    %v3382 = vpack.c.b16 %v3086, %v3082
    %v3383 = vpack.c.b16 %v3087, %v3083
    %v3384 = vpack.c.b16 %v3088, %v3084
    %v3385 = vpack.c.b16 %v3089, %v3085
    %v3386 = vpack.c.b16 %v3094, %v3090
    %v3387 = vpack.c.b16 %v3095, %v3091
    %v3388 = vpack.c.b16 %v3096, %v3092
    %v3389 = vpack.c.b16 %v3097, %v3093
    %v3390 = vpack.c.b16 %v3102, %v3098
    %v3391 = vpack.c.b16 %v3103, %v3099
    %v3392 = vpack.c.b16 %v3104, %v3100
    %v3393 = vpack.c.b16 %v3105, %v3101
    %v3394 = vpack.c.b16 %v3110, %v3106
    %v3395 = vpack.c.b16 %v3111, %v3107
    %v3396 = vpack.c.b16 %v3112, %v3108
    %v3397 = vpack.c.b16 %v3113, %v3109
    %v3398 = vpack.c.b16 %v3118, %v3114
    %v3399 = vpack.c.b16 %v3119, %v3115
    %v3400 = vpack.c.b16 %v3120, %v3116
    %v3401 = vpack.c.b16 %v3121, %v3117
    %v3402 = vpack.c.b16 %v3126, %v3122
    %v3403 = vpack.c.b16 %v3127, %v3123
    %v3404 = vpack.c.b16 %v3128, %v3124
    %v3405 = vpack.c.b16 %v3129, %v3125
    %v3406 = vpack.c.b16 %v3134, %v3130
    %v3407 = vpack.c.b16 %v3135, %v3131
    %v3408 = vpack.c.b16 %v3136, %v3132
    %v3409 = vpack.c.b16 %v3137, %v3133
    %v3410 = vpack.c.b16 %v3142, %v3138
    %v3411 = vpack.c.b16 %v3143, %v3139
    %v3412 = vpack.c.b16 %v3144, %v3140
    %v3413 = vpack.c.b16 %v3145, %v3141
    %v3414 = vpack.c.b16 %v3150, %v3146
    %v3415 = vpack.c.b16 %v3151, %v3147
    %v3416 = vpack.c.b16 %v3152, %v3148
    %v3417 = vpack.c.b16 %v3153, %v3149
    %v3418 = vpack.c.b16 %v3158, %v3154
    %v3419 = vpack.c.b16 %v3159, %v3155
    %v3420 = vpack.c.b16 %v3160, %v3156
    %v3421 = vpack.c.b16 %v3161, %v3157
    %v3422 = vpack.c.b16 %v3166, %v3162
    %v3423 = vpack.c.b16 %v3167, %v3163
    %v3424 = vpack.c.b16 %v3168, %v3164
    %v3425 = vpack.c.b16 %v3169, %v3165
    %v3426 = vpack.c.b16 %v3174, %v3170
    %v3427 = vpack.c.b16 %v3175, %v3171
    %v3428 = vpack.c.b16 %v3176, %v3172
    %v3429 = vpack.c.b16 %v3177, %v3173
    %v3430 = vpack.c.b16 %v3182, %v3178
    %v3431 = vpack.c.b16 %v3183, %v3179
    %v3432 = vpack.c.b16 %v3184, %v3180
    %v3433 = vpack.c.b16 %v3185, %v3181
    %v3434 = vpack.c.b16 %v3190, %v3186
    %v3435 = vpack.c.b16 %v3191, %v3187
    %v3436 = vpack.c.b16 %v3192, %v3188
    %v3437 = vpack.c.b16 %v3193, %v3189
    %v3438 = vpack.c.b16 %v3198, %v3194
    %v3439 = vpack.c.b16 %v3199, %v3195
    %v3440 = vpack.c.b16 %v3200, %v3196
    %v3441 = vpack.c.b16 %v3201, %v3197
    %v3442 = vpack.c.b16 %v3206, %v3202
    %v3443 = vpack.c.b16 %v3207, %v3203
    %v3444 = vpack.c.b16 %v3208, %v3204
    %v3445 = vpack.c.b16 %v3209, %v3205
    %v3446 = vpack.c.b16 %v3214, %v3210
    %v3447 = vpack.c.b16 %v3215, %v3211
    %v3448 = vpack.c.b16 %v3216, %v3212
    %v3449 = vpack.c.b16 %v3217, %v3213
    %v3450 = vpack.c.b16 %v3222, %v3218
    %v3451 = vpack.c.b16 %v3223, %v3219
    %v3452 = vpack.c.b16 %v3224, %v3220
    %v3453 = vpack.c.b16 %v3225, %v3221
    %v3454 = vpack.c.b16 %v3230, %v3226
    %v3455 = vpack.c.b16 %v3231, %v3227
    %v3456 = vpack.c.b16 %v3232, %v3228
    %v3457 = vpack.c.b16 %v3233, %v3229
    %v3458 = vpack.c.b16 %v3238, %v3234
    %v3459 = vpack.c.b16 %v3239, %v3235
    %v3460 = vpack.c.b16 %v3240, %v3236
    %v3461 = vpack.c.b16 %v3241, %v3237
    %v3462 = vpack.c.b16 %v3246, %v3242
    %v3463 = vpack.c.b16 %v3247, %v3243
    %v3464 = vpack.c.b16 %v3248, %v3244
    %v3465 = vpack.c.b16 %v3249, %v3245
    %v3466 = vpack.c.b16 %v3254, %v3250
    %v3467 = vpack.c.b16 %v3255, %v3251
    %v3468 = vpack.c.b16 %v3256, %v3252
    %v3469 = vpack.c.b16 %v3257, %v3253
    %v3470 = vpack.c.b16 %v3262, %v3258
    %v3471 = vpack.c.b16 %v3263, %v3259
    %v3472 = vpack.c.b16 %v3264, %v3260
    %v3473 = vpack.c.b16 %v3265, %v3261
    %v3474 = vpack.c.b16 %v3270, %v3266
    %v3475 = vpack.c.b16 %v3271, %v3267
    %v3476 = vpack.c.b16 %v3272, %v3268
    %v3477 = vpack.c.b16 %v3273, %v3269
    %v3478 = vpack.c.b16 %v3278, %v3274
    %v3479 = vpack.c.b16 %v3279, %v3275
    %v3480 = vpack.c.b16 %v3280, %v3276
    %v3481 = vpack.c.b16 %v3281, %v3277
    %v3482 = vpack.c.b16 %v3286, %v3282
    %v3483 = vpack.c.b16 %v3287, %v3283
    %v3484 = vpack.c.b16 %v3288, %v3284
    %v3485 = vpack.c.b16 %v3289, %v3285
    %v3486 = vpack.c.b16 %v3294, %v3290
    %v3487 = vpack.c.b16 %v3295, %v3291
    %v3488 = vpack.c.b16 %v3296, %v3292
    %v3489 = vpack.c.b16 %v3297, %v3293
    %3682 = vmatpush.bf16.msra.mxu0 %v3326
    %3683 = vmatpush.bf16.msra.mxu0 %v3322
    %3684 = vmatpush.bf16.msra.mxu0 %v3318
    %3685 = vmatpush.bf16.msra.mxu0 %v3314
    %3686 = vmatpush.bf16.msra.mxu0 %v3310
    %3687 = vmatpush.bf16.msra.mxu0 %v3306
    %3688 = vmatpush.bf16.msra.mxu0 %v3302
    %3689 = vmatpush.bf16.msra.mxu0 %v3298
    %3690 = vmatmul.bf16.gmra.mxu0 %v2514
    %v3691 = vpop.f32.mrf.mxu0
    %v3692 = vadd.f32 %v2714, %v3691
    %v3693 = vpop.f32.mrf.mxu0
    %v3694 = vadd.f32 %v2714, %v3693
    %3695 = vdwg.mxu0
    %3696 = vmatpush.bf16.msra.mxu0 %v3358
    %3697 = vmatpush.bf16.msra.mxu0 %v3354
    %3698 = vmatpush.bf16.msra.mxu0 %v3350
    %3699 = vmatpush.bf16.msra.mxu0 %v3346
    %3700 = vmatpush.bf16.msra.mxu0 %v3342
    %3701 = vmatpush.bf16.msra.mxu0 %v3338
    %3702 = vmatpush.bf16.msra.mxu0 %v3334
    %3703 = vmatpush.bf16.msra.mxu0 %v3330
    %3704 = vmatmul.bf16.gmra.mxu0 %v2515
    %v3705 = vpop.f32.mrf.mxu0
    %v3706 = vadd.f32 %v3692, %v3705
    %v3707 = vpop.f32.mrf.mxu0
    %v3708 = vadd.f32 %v3694, %v3707
    %3709 = vdwg.mxu0
    %3710 = vmatpush.bf16.msra.mxu0 %v3390
    %3711 = vmatpush.bf16.msra.mxu0 %v3386
    %3712 = vmatpush.bf16.msra.mxu0 %v3382
    %3713 = vmatpush.bf16.msra.mxu0 %v3378
    %3714 = vmatpush.bf16.msra.mxu0 %v3374
    %3715 = vmatpush.bf16.msra.mxu0 %v3370
    %3716 = vmatpush.bf16.msra.mxu0 %v3366
    %3717 = vmatpush.bf16.msra.mxu0 %v3362
    %3718 = vmatmul.bf16.gmra.mxu0 %v2516
    %v3719 = vpop.f32.mrf.mxu0
    %v3720 = vadd.f32 %v3706, %v3719
    %v3721 = vpop.f32.mrf.mxu0
    %v3722 = vadd.f32 %v3708, %v3721
    %3723 = vdwg.mxu0
    %3724 = vmatpush.bf16.msra.mxu0 %v3422
    %3725 = vmatpush.bf16.msra.mxu0 %v3418
    %3726 = vmatpush.bf16.msra.mxu0 %v3414
    %3727 = vmatpush.bf16.msra.mxu0 %v3410
    %3728 = vmatpush.bf16.msra.mxu0 %v3406
    %3729 = vmatpush.bf16.msra.mxu0 %v3402
    %3730 = vmatpush.bf16.msra.mxu0 %v3398
    %3731 = vmatpush.bf16.msra.mxu0 %v3394
    %3732 = vmatmul.bf16.gmra.mxu0 %v2517
    %v3733 = vpop.f32.mrf.mxu0
    %v3734 = vadd.f32 %v3720, %v3733
    %v3735 = vpop.f32.mrf.mxu0
    %v3736 = vadd.f32 %v3722, %v3735
    %3737 = vdwg.mxu0
    %3738 = vmatpush.bf16.msra.mxu0 %v3454
    %3739 = vmatpush.bf16.msra.mxu0 %v3450
    %3740 = vmatpush.bf16.msra.mxu0 %v3446
    %3741 = vmatpush.bf16.msra.mxu0 %v3442
    %3742 = vmatpush.bf16.msra.mxu0 %v3438
    %3743 = vmatpush.bf16.msra.mxu0 %v3434
    %3744 = vmatpush.bf16.msra.mxu0 %v3430
    %3745 = vmatpush.bf16.msra.mxu0 %v3426
    %3746 = vmatmul.bf16.gmra.mxu0 %v2518
    %v3747 = vpop.f32.mrf.mxu0
    %v3748 = vadd.f32 %v3734, %v3747
    %v3749 = vpop.f32.mrf.mxu0
    %v3750 = vadd.f32 %v3736, %v3749
    %3751 = vdwg.mxu0
    %3752 = vmatpush.bf16.msra.mxu0 %v3486
    %3753 = vmatpush.bf16.msra.mxu0 %v3482
    %3754 = vmatpush.bf16.msra.mxu0 %v3478
    %3755 = vmatpush.bf16.msra.mxu0 %v3474
    %3756 = vmatpush.bf16.msra.mxu0 %v3470
    %3757 = vmatpush.bf16.msra.mxu0 %v3466
    %3758 = vmatpush.bf16.msra.mxu0 %v3462
    %3759 = vmatpush.bf16.msra.mxu0 %v3458
    %3760 = vmatmul.bf16.gmra.mxu0 %v2519
    %v3761 = vpop.f32.mrf.mxu0
    %v3762 = vadd.f32 %v3748, %v3761
    %v3763 = vpop.f32.mrf.mxu0
    %v3764 = vadd.f32 %v3750, %v3763
    %3765 = vdwg.mxu0
    %3766 = vmatpush.bf16.msra.mxu0 %v3327
    %3767 = vmatpush.bf16.msra.mxu0 %v3323
    %3768 = vmatpush.bf16.msra.mxu0 %v3319
    %3769 = vmatpush.bf16.msra.mxu0 %v3315
    %3770 = vmatpush.bf16.msra.mxu0 %v3311
    %3771 = vmatpush.bf16.msra.mxu0 %v3307
    %3772 = vmatpush.bf16.msra.mxu0 %v3303
    %3773 = vmatpush.bf16.msra.mxu0 %v3299
    %3774 = vmatmul.bf16.gmra.mxu0 %v2514
    %v3775 = vpop.f32.mrf.mxu0
    %v3776 = vadd.f32 %v2715, %v3775
    %v3777 = vpop.f32.mrf.mxu0
    %v3778 = vadd.f32 %v2715, %v3777
    %3779 = vdwg.mxu0
    %3780 = vmatpush.bf16.msra.mxu0 %v3359
    %3781 = vmatpush.bf16.msra.mxu0 %v3355
    %3782 = vmatpush.bf16.msra.mxu0 %v3351
    %3783 = vmatpush.bf16.msra.mxu0 %v3347
    %3784 = vmatpush.bf16.msra.mxu0 %v3343
    %3785 = vmatpush.bf16.msra.mxu0 %v3339
    %3786 = vmatpush.bf16.msra.mxu0 %v3335
    %3787 = vmatpush.bf16.msra.mxu0 %v3331
    %3788 = vmatmul.bf16.gmra.mxu0 %v2515
    %v3789 = vpop.f32.mrf.mxu0
    %v3790 = vadd.f32 %v3776, %v3789
    %v3791 = vpop.f32.mrf.mxu0
    %v3792 = vadd.f32 %v3778, %v3791
    %3793 = vdwg.mxu0
    %3794 = vmatpush.bf16.msra.mxu0 %v3391
    %3795 = vmatpush.bf16.msra.mxu0 %v3387
    %3796 = vmatpush.bf16.msra.mxu0 %v3383
    %3797 = vmatpush.bf16.msra.mxu0 %v3379
    %3798 = vmatpush.bf16.msra.mxu0 %v3375
    %3799 = vmatpush.bf16.msra.mxu0 %v3371
    %3800 = vmatpush.bf16.msra.mxu0 %v3367
    %3801 = vmatpush.bf16.msra.mxu0 %v3363
    %3802 = vmatmul.bf16.gmra.mxu0 %v2516
    %v3803 = vpop.f32.mrf.mxu0
    %v3804 = vadd.f32 %v3790, %v3803
    %v3805 = vpop.f32.mrf.mxu0
    %v3806 = vadd.f32 %v3792, %v3805
    %3807 = vdwg.mxu0
    %3808 = vmatpush.bf16.msra.mxu0 %v3423
    %3809 = vmatpush.bf16.msra.mxu0 %v3419
    %3810 = vmatpush.bf16.msra.mxu0 %v3415
    %3811 = vmatpush.bf16.msra.mxu0 %v3411
    %3812 = vmatpush.bf16.msra.mxu0 %v3407
    %3813 = vmatpush.bf16.msra.mxu0 %v3403
    %3814 = vmatpush.bf16.msra.mxu0 %v3399
    %3815 = vmatpush.bf16.msra.mxu0 %v3395
    %3816 = vmatmul.bf16.gmra.mxu0 %v2517
    %v3817 = vpop.f32.mrf.mxu0
    %v3818 = vadd.f32 %v3804, %v3817
    %v3819 = vpop.f32.mrf.mxu0
    %v3820 = vadd.f32 %v3806, %v3819
    %3821 = vdwg.mxu0
    %3822 = vmatpush.bf16.msra.mxu0 %v3455
    %3823 = vmatpush.bf16.msra.mxu0 %v3451
    %3824 = vmatpush.bf16.msra.mxu0 %v3447
    %3825 = vmatpush.bf16.msra.mxu0 %v3443
    %3826 = vmatpush.bf16.msra.mxu0 %v3439
    %3827 = vmatpush.bf16.msra.mxu0 %v3435
    %3828 = vmatpush.bf16.msra.mxu0 %v3431
    %3829 = vmatpush.bf16.msra.mxu0 %v3427
    %3830 = vmatmul.bf16.gmra.mxu0 %v2518
    %v3831 = vpop.f32.mrf.mxu0
    %v3832 = vadd.f32 %v3818, %v3831
    %v3833 = vpop.f32.mrf.mxu0
    %v3834 = vadd.f32 %v3820, %v3833
    %3835 = vdwg.mxu0
    %3836 = vmatpush.bf16.msra.mxu0 %v3487
    %3837 = vmatpush.bf16.msra.mxu0 %v3483
    %3838 = vmatpush.bf16.msra.mxu0 %v3479
    %3839 = vmatpush.bf16.msra.mxu0 %v3475
    %3840 = vmatpush.bf16.msra.mxu0 %v3471
    %3841 = vmatpush.bf16.msra.mxu0 %v3467
    %3842 = vmatpush.bf16.msra.mxu0 %v3463
    %3843 = vmatpush.bf16.msra.mxu0 %v3459
    %3844 = vmatmul.bf16.gmra.mxu0 %v2519
    %v3845 = vpop.f32.mrf.mxu0
    %v3846 = vadd.f32 %v3832, %v3845
    %v3847 = vpop.f32.mrf.mxu0
    %v3848 = vadd.f32 %v3834, %v3847
    %3849 = vdwg.mxu0
    %3850 = vmatpush.bf16.msra.mxu0 %v3328
    %3851 = vmatpush.bf16.msra.mxu0 %v3324
    %3852 = vmatpush.bf16.msra.mxu0 %v3320
    %3853 = vmatpush.bf16.msra.mxu0 %v3316
    %3854 = vmatpush.bf16.msra.mxu0 %v3312
    %3855 = vmatpush.bf16.msra.mxu0 %v3308
    %3856 = vmatpush.bf16.msra.mxu0 %v3304
    %3857 = vmatpush.bf16.msra.mxu0 %v3300
    %3858 = vmatmul.bf16.gmra.mxu0 %v2514
    %v3859 = vpop.f32.mrf.mxu0
    %v3860 = vadd.f32 %v2716, %v3859
    %v3861 = vpop.f32.mrf.mxu0
    %v3862 = vadd.f32 %v2716, %v3861
    %3863 = vdwg.mxu0
    %3864 = vmatpush.bf16.msra.mxu0 %v3360
    %3865 = vmatpush.bf16.msra.mxu0 %v3356
    %3866 = vmatpush.bf16.msra.mxu0 %v3352
    %3867 = vmatpush.bf16.msra.mxu0 %v3348
    %3868 = vmatpush.bf16.msra.mxu0 %v3344
    %3869 = vmatpush.bf16.msra.mxu0 %v3340
    %3870 = vmatpush.bf16.msra.mxu0 %v3336
    %3871 = vmatpush.bf16.msra.mxu0 %v3332
    %3872 = vmatmul.bf16.gmra.mxu0 %v2515
    %v3873 = vpop.f32.mrf.mxu0
    %v3874 = vadd.f32 %v3860, %v3873
    %v3875 = vpop.f32.mrf.mxu0
    %v3876 = vadd.f32 %v3862, %v3875
    %3877 = vdwg.mxu0
    %3878 = vmatpush.bf16.msra.mxu0 %v3392
    %3879 = vmatpush.bf16.msra.mxu0 %v3388
    %3880 = vmatpush.bf16.msra.mxu0 %v3384
    %3881 = vmatpush.bf16.msra.mxu0 %v3380
    %3882 = vmatpush.bf16.msra.mxu0 %v3376
    %3883 = vmatpush.bf16.msra.mxu0 %v3372
    %3884 = vmatpush.bf16.msra.mxu0 %v3368
    %3885 = vmatpush.bf16.msra.mxu0 %v3364
    %3886 = vmatmul.bf16.gmra.mxu0 %v2516
    %v3887 = vpop.f32.mrf.mxu0
    %v3888 = vadd.f32 %v3874, %v3887
    %v3889 = vpop.f32.mrf.mxu0
    %v3890 = vadd.f32 %v3876, %v3889
    %3891 = vdwg.mxu0
    %3892 = vmatpush.bf16.msra.mxu0 %v3424
    %3893 = vmatpush.bf16.msra.mxu0 %v3420
    %3894 = vmatpush.bf16.msra.mxu0 %v3416
    %3895 = vmatpush.bf16.msra.mxu0 %v3412
    %3896 = vmatpush.bf16.msra.mxu0 %v3408
    %3897 = vmatpush.bf16.msra.mxu0 %v3404
    %3898 = vmatpush.bf16.msra.mxu0 %v3400
    %3899 = vmatpush.bf16.msra.mxu0 %v3396
    %3900 = vmatmul.bf16.gmra.mxu0 %v2517
    %v3901 = vpop.f32.mrf.mxu0
    %v3902 = vadd.f32 %v3888, %v3901
    %v3903 = vpop.f32.mrf.mxu0
    %v3904 = vadd.f32 %v3890, %v3903
    %3905 = vdwg.mxu0
    %3906 = vmatpush.bf16.msra.mxu0 %v3456
    %3907 = vmatpush.bf16.msra.mxu0 %v3452
    %3908 = vmatpush.bf16.msra.mxu0 %v3448
    %3909 = vmatpush.bf16.msra.mxu0 %v3444
    %3910 = vmatpush.bf16.msra.mxu0 %v3440
    %3911 = vmatpush.bf16.msra.mxu0 %v3436
    %3912 = vmatpush.bf16.msra.mxu0 %v3432
    %3913 = vmatpush.bf16.msra.mxu0 %v3428
    %3914 = vmatmul.bf16.gmra.mxu0 %v2518
    %v3915 = vpop.f32.mrf.mxu0
    %v3916 = vadd.f32 %v3902, %v3915
    %v3917 = vpop.f32.mrf.mxu0
    %v3918 = vadd.f32 %v3904, %v3917
    %3919 = vdwg.mxu0
    %3920 = vmatpush.bf16.msra.mxu0 %v3488
    %3921 = vmatpush.bf16.msra.mxu0 %v3484
    %3922 = vmatpush.bf16.msra.mxu0 %v3480
    %3923 = vmatpush.bf16.msra.mxu0 %v3476
    %3924 = vmatpush.bf16.msra.mxu0 %v3472
    %3925 = vmatpush.bf16.msra.mxu0 %v3468
    %3926 = vmatpush.bf16.msra.mxu0 %v3464
    %3927 = vmatpush.bf16.msra.mxu0 %v3460
    %3928 = vmatmul.bf16.gmra.mxu0 %v2519
    %v3929 = vpop.f32.mrf.mxu0
    %v3930 = vadd.f32 %v3916, %v3929
    %v3931 = vpop.f32.mrf.mxu0
    %v3932 = vadd.f32 %v3918, %v3931
    %3933 = vdwg.mxu0
    %3934 = vmatpush.bf16.msra.mxu0 %v3329
    %3935 = vmatpush.bf16.msra.mxu0 %v3325
    %3936 = vmatpush.bf16.msra.mxu0 %v3321
    %3937 = vmatpush.bf16.msra.mxu0 %v3317
    %3938 = vmatpush.bf16.msra.mxu0 %v3313
    %3939 = vmatpush.bf16.msra.mxu0 %v3309
    %3940 = vmatpush.bf16.msra.mxu0 %v3305
    %3941 = vmatpush.bf16.msra.mxu0 %v3301
    %3942 = vmatmul.bf16.gmra.mxu0 %v2514
    %v3943 = vpop.f32.mrf.mxu0
    %v3944 = vadd.f32 %v2717, %v3943
    %v3945 = vpop.f32.mrf.mxu0
    %v3946 = vadd.f32 %v2717, %v3945
    %3947 = vdwg.mxu0
    %3948 = vmatpush.bf16.msra.mxu0 %v3361
    %3949 = vmatpush.bf16.msra.mxu0 %v3357
    %3950 = vmatpush.bf16.msra.mxu0 %v3353
    %3951 = vmatpush.bf16.msra.mxu0 %v3349
    %3952 = vmatpush.bf16.msra.mxu0 %v3345
    %3953 = vmatpush.bf16.msra.mxu0 %v3341
    %3954 = vmatpush.bf16.msra.mxu0 %v3337
    %3955 = vmatpush.bf16.msra.mxu0 %v3333
    %3956 = vmatmul.bf16.gmra.mxu0 %v2515
    %v3957 = vpop.f32.mrf.mxu0
    %v3958 = vadd.f32 %v3944, %v3957
    %v3959 = vpop.f32.mrf.mxu0
    %v3960 = vadd.f32 %v3946, %v3959
    %3961 = vdwg.mxu0
    %3962 = vmatpush.bf16.msra.mxu0 %v3393
    %3963 = vmatpush.bf16.msra.mxu0 %v3389
    %3964 = vmatpush.bf16.msra.mxu0 %v3385
    %3965 = vmatpush.bf16.msra.mxu0 %v3381
    %3966 = vmatpush.bf16.msra.mxu0 %v3377
    %3967 = vmatpush.bf16.msra.mxu0 %v3373
    %3968 = vmatpush.bf16.msra.mxu0 %v3369
    %3969 = vmatpush.bf16.msra.mxu0 %v3365
    %3970 = vmatmul.bf16.gmra.mxu0 %v2516
    %v3971 = vpop.f32.mrf.mxu0
    %v3972 = vadd.f32 %v3958, %v3971
    %v3973 = vpop.f32.mrf.mxu0
    %v3974 = vadd.f32 %v3960, %v3973
    %3975 = vdwg.mxu0
    %3976 = vmatpush.bf16.msra.mxu0 %v3425
    %3977 = vmatpush.bf16.msra.mxu0 %v3421
    %3978 = vmatpush.bf16.msra.mxu0 %v3417
    %3979 = vmatpush.bf16.msra.mxu0 %v3413
    %3980 = vmatpush.bf16.msra.mxu0 %v3409
    %3981 = vmatpush.bf16.msra.mxu0 %v3405
    %3982 = vmatpush.bf16.msra.mxu0 %v3401
    %3983 = vmatpush.bf16.msra.mxu0 %v3397
    %3984 = vmatmul.bf16.gmra.mxu0 %v2517
    %v3985 = vpop.f32.mrf.mxu0
    %v3986 = vadd.f32 %v3972, %v3985
    %v3987 = vpop.f32.mrf.mxu0
    %v3988 = vadd.f32 %v3974, %v3987
    %3989 = vdwg.mxu0
    %3990 = vmatpush.bf16.msra.mxu0 %v3457
    %3991 = vmatpush.bf16.msra.mxu0 %v3453
    %3992 = vmatpush.bf16.msra.mxu0 %v3449
    %3993 = vmatpush.bf16.msra.mxu0 %v3445
    %3994 = vmatpush.bf16.msra.mxu0 %v3441
    %3995 = vmatpush.bf16.msra.mxu0 %v3437
    %3996 = vmatpush.bf16.msra.mxu0 %v3433
    %3997 = vmatpush.bf16.msra.mxu0 %v3429
    %3998 = vmatmul.bf16.gmra.mxu0 %v2518
    %v3999 = vpop.f32.mrf.mxu0
    %v4000 = vadd.f32 %v3986, %v3999
    %v4001 = vpop.f32.mrf.mxu0
    %v4002 = vadd.f32 %v3988, %v4001
    %4003 = vdwg.mxu0
    %4004 = vmatpush.bf16.msra.mxu0 %v3489
    %4005 = vmatpush.bf16.msra.mxu0 %v3485
    %4006 = vmatpush.bf16.msra.mxu0 %v3481
    %4007 = vmatpush.bf16.msra.mxu0 %v3477
    %4008 = vmatpush.bf16.msra.mxu0 %v3473
    %4009 = vmatpush.bf16.msra.mxu0 %v3469
    %4010 = vmatpush.bf16.msra.mxu0 %v3465
    %4011 = vmatpush.bf16.msra.mxu0 %v3461
    %4012 = vmatmul.bf16.gmra.mxu0 %v2519
    %v4013 = vpop.f32.mrf.mxu0
    %v4014 = vadd.f32 %v4000, %v4013
    %v4015 = vpop.f32.mrf.mxu0
    %v4016 = vadd.f32 %v4002, %v4015
    %4017 = vdwg.mxu0
    %v4018 = vmax.f32 %v3762, 0.0
    %v4019 = vmax.f32 %v3846, 0.0
    %v4020 = vmax.f32 %v3930, 0.0
    %v4021 = vmax.f32 %v4014, 0.0
    %v4022 = vmax.f32 %v3764, 0.0
    %v4023 = vmax.f32 %v3848, 0.0
    %v4024 = vmax.f32 %v3932, 0.0
    %v4025 = vmax.f32 %v4016, 0.0
    %v4026 = vld [vmem:[#allocation5] sm:$0xf]
    %v4027 = vld [vmem:[#allocation5 + $0x4] sm:$0xf]
    %v4028 = vld [vmem:[#allocation13] sm:$0xf]
    %v4029 = vld [vmem:[#allocation13 + $0x4] sm:$0xf]
    %v4030 = vld [vmem:[#allocation13 + $0x8] sm:$0xf]
    %v4031 = vld [vmem:[#allocation13 + $0xc] sm:$0xf]
    %v4032 = vld [vmem:[#allocation13 + $0x10] sm:$0xf]
    %v4033 = vld [vmem:[#allocation13 + $0x14] sm:$0xf]
    %v4034 = vld [vmem:[#allocation13 + $0x18] sm:$0xf]
    %v4035 = vld [vmem:[#allocation13 + $0x1c] sm:$0xf]
    %v4036 = vld [vmem:[#allocation13 + $0x20] sm:$0xf]
    %v4037 = vld [vmem:[#allocation13 + $0x24] sm:$0xf]
    %v4038 = vld [vmem:[#allocation13 + $0x28] sm:$0xf]
    %v4039 = vld [vmem:[#allocation13 + $0x2c] sm:$0xf]
    %v4040 = vld [vmem:[#allocation13 + $0x30] sm:$0xf]
    %v4041 = vld [vmem:[#allocation13 + $0x34] sm:$0xf]
    %v4042 = vld [vmem:[#allocation13 + $0x38] sm:$0xf]
    %v4043 = vld [vmem:[#allocation13 + $0x3c] sm:$0xf]
    %v4044 = vld [vmem:[#allocation14] sm:$0x1]
    %v4046 = vperm.slane %v4044, 0
    %v4050 = vunpack.c.l.b16 %v4026
    %v4051 = vunpack.c.l.b16 %v4027
    %v4052 = vpack.c.b16 %v4051, %v4050
    %v4070 = vunpack.c.l.b16 %v4028
    %v4071 = vunpack.c.l.b16 %v4029
    %v4072 = vunpack.c.l.b16 %v4030
    %v4073 = vunpack.c.l.b16 %v4031
    %v4074 = vunpack.c.l.b16 %v4032
    %v4075 = vunpack.c.l.b16 %v4033
    %v4076 = vunpack.c.l.b16 %v4034
    %v4077 = vunpack.c.l.b16 %v4035
    %v4078 = vunpack.c.l.b16 %v4036
    %v4079 = vunpack.c.l.b16 %v4037
    %v4080 = vunpack.c.l.b16 %v4038
    %v4081 = vunpack.c.l.b16 %v4039
    %v4082 = vunpack.c.l.b16 %v4040
    %v4083 = vunpack.c.l.b16 %v4041
    %v4084 = vunpack.c.l.b16 %v4042
    %v4085 = vunpack.c.l.b16 %v4043
    %v4086 = vpack.c.b16 %v4071, %v4070
    %v4087 = vpack.c.b16 %v4073, %v4072
    %v4088 = vpack.c.b16 %v4075, %v4074
    %v4089 = vpack.c.b16 %v4077, %v4076
    %v4090 = vpack.c.b16 %v4079, %v4078
    %v4091 = vpack.c.b16 %v4081, %v4080
    %v4092 = vpack.c.b16 %v4083, %v4082
    %v4093 = vpack.c.b16 %v4085, %v4084
    %4102 = vmatpush.bf16.msra.mxu0 %v4093
    %4103 = vmatpush.bf16.msra.mxu0 %v4092
    %4104 = vmatpush.bf16.msra.mxu0 %v4091
    %4105 = vmatpush.bf16.msra.mxu0 %v4090
    %4106 = vmatpush.bf16.msra.mxu0 %v4089
    %4107 = vmatpush.bf16.msra.mxu0 %v4088
    %4108 = vmatpush.bf16.msra.mxu0 %v4087
    %4109 = vmatpush.bf16.msra.mxu0 %v4086
    %4110 = vmatmul.bf16.gmra.mxu0 %v4052
    %v4111 = vpop.f32.mrf.mxu0
    %v4112 = vadd.f32 %v4046, %v4111
    %v4113 = vpop.f32.mrf.mxu0
    %v4114 = vadd.f32 %v4046, %v4113
    %4115 = vdwg.mxu0
    %v4116 = vmax.f32 %v4112, 0.0
    %v4117 = vmax.f32 %v4114, 0.0
    %v4118 = vpack.c.bf16 %v4022, %v4018
    %v4119 = vpack.c.bf16 %v4023, %v4019
    %v4120 = vpack.c.bf16 %v4024, %v4020
    %v4121 = vpack.c.bf16 %v4025, %v4021
    %v4122 = vld [vmem:[#allocation16] sm:$0xf]
    %v4123 = vld [vmem:[#allocation16 + $0x4] sm:$0xf]
    %v4124 = vld [vmem:[#allocation16 + $0x8] sm:$0xf]
    %v4125 = vld [vmem:[#allocation16 + $0xc] sm:$0xf]
    %v4126 = vld [vmem:[#allocation16 + $0x10] sm:$0xf]
    %v4127 = vld [vmem:[#allocation16 + $0x14] sm:$0xf]
    %v4128 = vld [vmem:[#allocation16 + $0x18] sm:$0xf]
    %v4129 = vld [vmem:[#allocation16 + $0x1c] sm:$0xf]
    %v4130 = vld [vmem:[#allocation16 + $0x20] sm:$0xf]
    %v4131 = vld [vmem:[#allocation16 + $0x24] sm:$0xf]
    %v4132 = vld [vmem:[#allocation16 + $0x28] sm:$0xf]
    %v4133 = vld [vmem:[#allocation16 + $0x2c] sm:$0xf]
    %v4134 = vld [vmem:[#allocation16 + $0x30] sm:$0xf]
    %v4135 = vld [vmem:[#allocation16 + $0x34] sm:$0xf]
    %v4136 = vld [vmem:[#allocation16 + $0x38] sm:$0xf]
    %v4137 = vld [vmem:[#allocation16 + $0x3c] sm:$0xf]
    %v4138 = vld [vmem:[#allocation16 + $0x40] sm:$0xf]
    %v4139 = vld [vmem:[#allocation16 + $0x44] sm:$0xf]
    %v4140 = vld [vmem:[#allocation16 + $0x48] sm:$0xf]
    %v4141 = vld [vmem:[#allocation16 + $0x4c] sm:$0xf]
    %v4142 = vld [vmem:[#allocation16 + $0x50] sm:$0xf]
    %v4143 = vld [vmem:[#allocation16 + $0x54] sm:$0xf]
    %v4144 = vld [vmem:[#allocation16 + $0x58] sm:$0xf]
    %v4145 = vld [vmem:[#allocation16 + $0x5c] sm:$0xf]
    %v4146 = vld [vmem:[#allocation16 + $0x60] sm:$0xf]
    %v4147 = vld [vmem:[#allocation16 + $0x64] sm:$0xf]
    %v4148 = vld [vmem:[#allocation16 + $0x68] sm:$0xf]
    %v4149 = vld [vmem:[#allocation16 + $0x6c] sm:$0xf]
    %v4150 = vld [vmem:[#allocation16 + $0x70] sm:$0xf]
    %v4151 = vld [vmem:[#allocation16 + $0x74] sm:$0xf]
    %v4152 = vld [vmem:[#allocation16 + $0x78] sm:$0xf]
    %v4153 = vld [vmem:[#allocation16 + $0x7c] sm:$0xf]
    %v4154 = vld [vmem:[#allocation16 + $0x80] sm:$0xf]
    %v4155 = vld [vmem:[#allocation16 + $0x84] sm:$0xf]
    %v4156 = vld [vmem:[#allocation16 + $0x88] sm:$0xf]
    %v4157 = vld [vmem:[#allocation16 + $0x8c] sm:$0xf]
    %v4158 = vld [vmem:[#allocation16 + $0x90] sm:$0xf]
    %v4159 = vld [vmem:[#allocation16 + $0x94] sm:$0xf]
    %v4160 = vld [vmem:[#allocation16 + $0x98] sm:$0xf]
    %v4161 = vld [vmem:[#allocation16 + $0x9c] sm:$0xf]
    %v4162 = vld [vmem:[#allocation16 + $0xa0] sm:$0xf]
    %v4163 = vld [vmem:[#allocation16 + $0xa4] sm:$0xf]
    %v4164 = vld [vmem:[#allocation16 + $0xa8] sm:$0xf]
    %v4165 = vld [vmem:[#allocation16 + $0xac] sm:$0xf]
    %v4166 = vld [vmem:[#allocation16 + $0xb0] sm:$0xf]
    %v4167 = vld [vmem:[#allocation16 + $0xb4] sm:$0xf]
    %v4168 = vld [vmem:[#allocation16 + $0xb8] sm:$0xf]
    %v4169 = vld [vmem:[#allocation16 + $0xbc] sm:$0xf]
    %v4170 = vld [vmem:[#allocation16 + $0xc0] sm:$0xf]
    %v4171 = vld [vmem:[#allocation16 + $0xc4] sm:$0xf]
    %v4172 = vld [vmem:[#allocation16 + $0xc8] sm:$0xf]
    %v4173 = vld [vmem:[#allocation16 + $0xcc] sm:$0xf]
    %v4174 = vld [vmem:[#allocation16 + $0xd0] sm:$0xf]
    %v4175 = vld [vmem:[#allocation16 + $0xd4] sm:$0xf]
    %v4176 = vld [vmem:[#allocation16 + $0xd8] sm:$0xf]
    %v4177 = vld [vmem:[#allocation16 + $0xdc] sm:$0xf]
    %v4178 = vld [vmem:[#allocation16 + $0xe0] sm:$0xf]
    %v4179 = vld [vmem:[#allocation16 + $0xe4] sm:$0xf]
    %v4180 = vld [vmem:[#allocation16 + $0xe8] sm:$0xf]
    %v4181 = vld [vmem:[#allocation16 + $0xec] sm:$0xf]
    %v4182 = vld [vmem:[#allocation16 + $0xf0] sm:$0xf]
    %v4183 = vld [vmem:[#allocation16 + $0xf4] sm:$0xf]
    %v4184 = vld [vmem:[#allocation16 + $0xf8] sm:$0xf]
    %v4185 = vld [vmem:[#allocation16 + $0xfc] sm:$0xf]
    %v4186 = vpack.c.bf16 %v4117, %v4116
    %v4187 = vld [vmem:[#allocation17] sm:$0xf]
    %v4188 = vld [vmem:[#allocation17 + $0x4] sm:$0xf]
    %v4189 = vld [vmem:[#allocation17 + $0x8] sm:$0xf]
    %v4190 = vld [vmem:[#allocation17 + $0xc] sm:$0xf]
    %v4191 = vld [vmem:[#allocation17 + $0x10] sm:$0xf]
    %v4192 = vld [vmem:[#allocation17 + $0x14] sm:$0xf]
    %v4193 = vld [vmem:[#allocation17 + $0x18] sm:$0xf]
    %v4194 = vld [vmem:[#allocation17 + $0x1c] sm:$0xf]
    %v4195 = vld [vmem:[#allocation17 + $0x20] sm:$0xf]
    %v4196 = vld [vmem:[#allocation17 + $0x24] sm:$0xf]
    %v4197 = vld [vmem:[#allocation17 + $0x28] sm:$0xf]
    %v4198 = vld [vmem:[#allocation17 + $0x2c] sm:$0xf]
    %v4199 = vld [vmem:[#allocation17 + $0x30] sm:$0xf]
    %v4200 = vld [vmem:[#allocation17 + $0x34] sm:$0xf]
    %v4201 = vld [vmem:[#allocation17 + $0x38] sm:$0xf]
    %v4202 = vld [vmem:[#allocation17 + $0x3c] sm:$0xf]
    %v4219 = vunpack.c.l.b16 %v4187
    %v4220 = vunpack.c.l.b16 %v4188
    %v4221 = vunpack.c.l.b16 %v4189
    %v4222 = vunpack.c.l.b16 %v4190
    %v4223 = vunpack.c.l.b16 %v4191
    %v4224 = vunpack.c.l.b16 %v4192
    %v4225 = vunpack.c.l.b16 %v4193
    %v4226 = vunpack.c.l.b16 %v4194
    %v4227 = vunpack.c.l.b16 %v4195
    %v4228 = vunpack.c.l.b16 %v4196
    %v4229 = vunpack.c.l.b16 %v4197
    %v4230 = vunpack.c.l.b16 %v4198
    %v4231 = vunpack.c.l.b16 %v4199
    %v4232 = vunpack.c.l.b16 %v4200
    %v4233 = vunpack.c.l.b16 %v4201
    %v4234 = vunpack.c.l.b16 %v4202
    %v4235 = vpack.c.b16 %v4220, %v4219
    %v4236 = vpack.c.b16 %v4222, %v4221
    %v4237 = vpack.c.b16 %v4224, %v4223
    %v4238 = vpack.c.b16 %v4226, %v4225
    %v4239 = vpack.c.b16 %v4228, %v4227
    %v4240 = vpack.c.b16 %v4230, %v4229
    %v4241 = vpack.c.b16 %v4232, %v4231
    %v4242 = vpack.c.b16 %v4234, %v4233
    %4251 = vmatpush.bf16.msra.mxu0 %v4242
    %4252 = vmatpush.bf16.msra.mxu0 %v4241
    %4253 = vmatpush.bf16.msra.mxu0 %v4240
    %4254 = vmatpush.bf16.msra.mxu0 %v4239
    %4255 = vmatpush.bf16.msra.mxu0 %v4238
    %4256 = vmatpush.bf16.msra.mxu0 %v4237
    %4257 = vmatpush.bf16.msra.mxu0 %v4236
    %4258 = vmatpush.bf16.msra.mxu0 %v4235
    %4259 = vmatmul.bf16.gmra.mxu0 %v4186
    %v4260 = vpop.f32.mrf.mxu0
    %v4261 = vadd.f32 0.0, %v4260
    %v4262 = vpop.f32.mrf.mxu0
    %v4263 = vadd.f32 0.0, %v4262
    %4264 = vdwg.mxu0
    %v4329 = vunpack.c.l.b16 %v4122
    %v4330 = vunpack.c.l.b16 %v4123
    %v4331 = vunpack.c.l.b16 %v4124
    %v4332 = vunpack.c.l.b16 %v4125
    %v4333 = vunpack.c.l.b16 %v4126
    %v4334 = vunpack.c.l.b16 %v4127
    %v4335 = vunpack.c.l.b16 %v4128
    %v4336 = vunpack.c.l.b16 %v4129
    %v4337 = vunpack.c.l.b16 %v4130
    %v4338 = vunpack.c.l.b16 %v4131
    %v4339 = vunpack.c.l.b16 %v4132
    %v4340 = vunpack.c.l.b16 %v4133
    %v4341 = vunpack.c.l.b16 %v4134
    %v4342 = vunpack.c.l.b16 %v4135
    %v4343 = vunpack.c.l.b16 %v4136
    %v4344 = vunpack.c.l.b16 %v4137
    %v4345 = vunpack.c.l.b16 %v4138
    %v4346 = vunpack.c.l.b16 %v4139
    %v4347 = vunpack.c.l.b16 %v4140
    %v4348 = vunpack.c.l.b16 %v4141
    %v4349 = vunpack.c.l.b16 %v4142
    %v4350 = vunpack.c.l.b16 %v4143
    %v4351 = vunpack.c.l.b16 %v4144
    %v4352 = vunpack.c.l.b16 %v4145
    %v4353 = vunpack.c.l.b16 %v4146
    %v4354 = vunpack.c.l.b16 %v4147
    %v4355 = vunpack.c.l.b16 %v4148
    %v4356 = vunpack.c.l.b16 %v4149
    %v4357 = vunpack.c.l.b16 %v4150
    %v4358 = vunpack.c.l.b16 %v4151
    %v4359 = vunpack.c.l.b16 %v4152
    %v4360 = vunpack.c.l.b16 %v4153
    %v4361 = vunpack.c.l.b16 %v4154
    %v4362 = vunpack.c.l.b16 %v4155
    %v4363 = vunpack.c.l.b16 %v4156
    %v4364 = vunpack.c.l.b16 %v4157
    %v4365 = vunpack.c.l.b16 %v4158
    %v4366 = vunpack.c.l.b16 %v4159
    %v4367 = vunpack.c.l.b16 %v4160
    %v4368 = vunpack.c.l.b16 %v4161
    %v4369 = vunpack.c.l.b16 %v4162
    %v4370 = vunpack.c.l.b16 %v4163
    %v4371 = vunpack.c.l.b16 %v4164
    %v4372 = vunpack.c.l.b16 %v4165
    %v4373 = vunpack.c.l.b16 %v4166
    %v4374 = vunpack.c.l.b16 %v4167
    %v4375 = vunpack.c.l.b16 %v4168
    %v4376 = vunpack.c.l.b16 %v4169
    %v4377 = vunpack.c.l.b16 %v4170
    %v4378 = vunpack.c.l.b16 %v4171
    %v4379 = vunpack.c.l.b16 %v4172
    %v4380 = vunpack.c.l.b16 %v4173
    %v4381 = vunpack.c.l.b16 %v4174
    %v4382 = vunpack.c.l.b16 %v4175
    %v4383 = vunpack.c.l.b16 %v4176
    %v4384 = vunpack.c.l.b16 %v4177
    %v4385 = vunpack.c.l.b16 %v4178
    %v4386 = vunpack.c.l.b16 %v4179
    %v4387 = vunpack.c.l.b16 %v4180
    %v4388 = vunpack.c.l.b16 %v4181
    %v4389 = vunpack.c.l.b16 %v4182
    %v4390 = vunpack.c.l.b16 %v4183
    %v4391 = vunpack.c.l.b16 %v4184
    %v4392 = vunpack.c.l.b16 %v4185
    %v4393 = vpack.c.b16 %v4330, %v4329
    %v4394 = vpack.c.b16 %v4332, %v4331
    %v4395 = vpack.c.b16 %v4334, %v4333
    %v4396 = vpack.c.b16 %v4336, %v4335
    %v4397 = vpack.c.b16 %v4338, %v4337
    %v4398 = vpack.c.b16 %v4340, %v4339
    %v4399 = vpack.c.b16 %v4342, %v4341
    %v4400 = vpack.c.b16 %v4344, %v4343
    %v4401 = vpack.c.b16 %v4346, %v4345
    %v4402 = vpack.c.b16 %v4348, %v4347
    %v4403 = vpack.c.b16 %v4350, %v4349
    %v4404 = vpack.c.b16 %v4352, %v4351
    %v4405 = vpack.c.b16 %v4354, %v4353
    %v4406 = vpack.c.b16 %v4356, %v4355
    %v4407 = vpack.c.b16 %v4358, %v4357
    %v4408 = vpack.c.b16 %v4360, %v4359
    %v4409 = vpack.c.b16 %v4362, %v4361
    %v4410 = vpack.c.b16 %v4364, %v4363
    %v4411 = vpack.c.b16 %v4366, %v4365
    %v4412 = vpack.c.b16 %v4368, %v4367
    %v4413 = vpack.c.b16 %v4370, %v4369
    %v4414 = vpack.c.b16 %v4372, %v4371
    %v4415 = vpack.c.b16 %v4374, %v4373
    %v4416 = vpack.c.b16 %v4376, %v4375
    %v4417 = vpack.c.b16 %v4378, %v4377
    %v4418 = vpack.c.b16 %v4380, %v4379
    %v4419 = vpack.c.b16 %v4382, %v4381
    %v4420 = vpack.c.b16 %v4384, %v4383
    %v4421 = vpack.c.b16 %v4386, %v4385
    %v4422 = vpack.c.b16 %v4388, %v4387
    %v4423 = vpack.c.b16 %v4390, %v4389
    %v4424 = vpack.c.b16 %v4392, %v4391
    %4457 = vmatpush.bf16.msra.mxu0 %v4400
    %4458 = vmatpush.bf16.msra.mxu0 %v4399
    %4459 = vmatpush.bf16.msra.mxu0 %v4398
    %4460 = vmatpush.bf16.msra.mxu0 %v4397
    %4461 = vmatpush.bf16.msra.mxu0 %v4396
    %4462 = vmatpush.bf16.msra.mxu0 %v4395
    %4463 = vmatpush.bf16.msra.mxu0 %v4394
    %4464 = vmatpush.bf16.msra.mxu0 %v4393
    %4465 = vmatmul.bf16.gmra.mxu0 %v4118
    %v4466 = vpop.f32.mrf.mxu0
    %v4467 = vadd.f32 %v4261, %v4466
    %v4468 = vpop.f32.mrf.mxu0
    %v4469 = vadd.f32 %v4263, %v4468
    %4470 = vdwg.mxu0
    %4471 = vmatpush.bf16.msra.mxu0 %v4408
    %4472 = vmatpush.bf16.msra.mxu0 %v4407
    %4473 = vmatpush.bf16.msra.mxu0 %v4406
    %4474 = vmatpush.bf16.msra.mxu0 %v4405
    %4475 = vmatpush.bf16.msra.mxu0 %v4404
    %4476 = vmatpush.bf16.msra.mxu0 %v4403
    %4477 = vmatpush.bf16.msra.mxu0 %v4402
    %4478 = vmatpush.bf16.msra.mxu0 %v4401
    %4479 = vmatmul.bf16.gmra.mxu0 %v4119
    %v4480 = vpop.f32.mrf.mxu0
    %v4481 = vadd.f32 %v4467, %v4480
    %v4482 = vpop.f32.mrf.mxu0
    %v4483 = vadd.f32 %v4469, %v4482
    %4484 = vdwg.mxu0
    %4485 = vmatpush.bf16.msra.mxu0 %v4416
    %4486 = vmatpush.bf16.msra.mxu0 %v4415
    %4487 = vmatpush.bf16.msra.mxu0 %v4414
    %4488 = vmatpush.bf16.msra.mxu0 %v4413
    %4489 = vmatpush.bf16.msra.mxu0 %v4412
    %4490 = vmatpush.bf16.msra.mxu0 %v4411
    %4491 = vmatpush.bf16.msra.mxu0 %v4410
    %4492 = vmatpush.bf16.msra.mxu0 %v4409
    %4493 = vmatmul.bf16.gmra.mxu0 %v4120
    %v4494 = vpop.f32.mrf.mxu0
    %v4495 = vadd.f32 %v4481, %v4494
    %v4496 = vpop.f32.mrf.mxu0
    %v4497 = vadd.f32 %v4483, %v4496
    %4498 = vdwg.mxu0
    %4499 = vmatpush.bf16.msra.mxu0 %v4424
    %4500 = vmatpush.bf16.msra.mxu0 %v4423
    %4501 = vmatpush.bf16.msra.mxu0 %v4422
    %4502 = vmatpush.bf16.msra.mxu0 %v4421
    %4503 = vmatpush.bf16.msra.mxu0 %v4420
    %4504 = vmatpush.bf16.msra.mxu0 %v4419
    %4505 = vmatpush.bf16.msra.mxu0 %v4418
    %4506 = vmatpush.bf16.msra.mxu0 %v4417
    %4507 = vmatmul.bf16.gmra.mxu0 %v4121
    %v4508 = vpop.f32.mrf.mxu0
    %v4509 = vadd.f32 %v4495, %v4508
    %v4510 = vpop.f32.mrf.mxu0
    %v4511 = vadd.f32 %v4497, %v4510
    %4512 = vdwg.mxu0
    %v4513 = vld [vmem:[#allocation19] sm:$0x1]
    %v4515 = vperm.slane %v4513, 0
    %v4517 = vadd.f32 %v4509, %v4515
    %v4518 = vadd.f32 %v4511, %v4515
    %4519 = vmax.xlane.f32.xlu0 %v4517
    %v4520 = vpop.xlane.xlu0 %4519
    %4521 = vmax.xlane.f32.xlu0 %v4518
    %v4522 = vpop.xlane.xlu0 %4521
    %v4523 = vsub.f32 %v4517, %v4520
    %v4524 = vsub.f32 %v4518, %v4522
    %v4525 = vmul.f32 %v4523, 1.442695
    %v4526 = vpow.pop %v4525
    %v4527 = vmul.f32 %v4524, 1.442695
    %v4528 = vpow.pop %v4527
    %4529 = vadd.xlane.f32.xlu0 %v4526
    %v4530 = vpop.xlane.xlu0 %4529
    %4531 = vadd.xlane.f32.xlu0 %v4528
    %v4532 = vpop.xlane.xlu0 %4531
    %v4533 = vlog2.pop %v4530
    %v4534 = vmul.f32 %v4533, 0.6931472
    %v4535 = vlog2.pop %v4532
    %v4536 = vmul.f32 %v4535, 0.6931472
    %v4537 = vsub.f32 %v4523, %v4534
    %v4538 = vsub.f32 %v4524, %v4536
    %4539 = vst [vmem:[#allocation20] sm:$0xff] %v4537
    %4540 = vst [vmem:[#allocation20 + $0x8] sm:$0xff] %v4538
    // Predicated region
    $region90: #{tpu_custom_call.1} parent=1 // pred_check
      _
    $region91: #{tpu_custom_call.1} parent=1 // pred_check_branch
      %4542 = sbr.rel (0) target = $region93
    $region92: #{tpu_custom_call.1} parent=1 // pred_region
      %4544 = vsyncadd [#allocation4], 0
      %s4545 = sshll.u32 [#allocation20], 4
      %s4546 = int_to_ptr.vmem [resolvable:$true] %s4545
      %s4547 = sshll.u32 %s11, 4
      %s4548 = int_to_ptr.hbm [resolvable:$true] %s4547
      %4553 = dma.vmem_to_hbm [thread:$0]  %s4546, 256, %s4548, [#allocation4], 128, 128, 8
    $region93: #{tpu_custom_call.1} parent=1 // pred_fallthru
      _
    // Predicated region
    $region94: #{tpu_custom_call.1} parent=1 // pred_check
      _
    $region95: #{tpu_custom_call.1} parent=1 // pred_check_branch
      %4555 = sbr.rel (0) target = $region97
    $region96: #{tpu_custom_call.1} parent=1 // pred_region
      %4557 = dma.done [#allocation4], 256
    $region97: #{tpu_custom_call.1} parent=1 // pred_fallthru
      _
    %4558 = vsyncpa [#allocation3], 1
    %4559 = vsyncpa [#allocation6], 1
    %4560 = vsyncpa [#allocation9], 1
    %4561 = vsyncpa [#allocation12], 1
    %4562 = vsyncpa [#allocation15], 1
    %4563 = vsyncpa [#allocation18], 1
    %4564 = vsyncpa [#allocation4], 1

// kernel: tpu_custom_call.1
$region0: #{tpu_custom_call.1}
  #allocation0 [shape = 'u32[]', space=smem, size = 0x4, offset = 0x4, fixed_abs, tag = 'smem constant byte address 0x4 - core index']
  #allocation1 [shape = 'u32[72,128]{1,0:T(1,128)}', space=vmem, size = 0x9000, scoped, tag = 'internal scratch']
  %s0 = inlined_call_operand.hbm [shape: bf16[16,768], index: 0, kind: input, shape index: {}]
  %s1 = inlined_call_operand.hbm [shape: bf16[16,128], index: 1, kind: input, shape index: {}]
  %s2 = inlined_call_operand.hbm [shape: bf16[768,768], index: 2, kind: input, shape index: {}]
  %s3 = inlined_call_operand.hbm [shape: f32[1,768], index: 3, kind: input, shape index: {}]
  %s4 = inlined_call_operand.hbm [shape: bf16[768,512], index: 4, kind: input, shape index: {}]
  %s5 = inlined_call_operand.hbm [shape: f32[1,512], index: 5, kind: input, shape index: {}]
  %s6 = inlined_call_operand.hbm [shape: bf16[128,128], index: 6, kind: input, shape index: {}]
  %s7 = inlined_call_operand.hbm [shape: f32[1,128], index: 7, kind: input, shape index: {}]
  %s8 = inlined_call_operand.hbm [shape: bf16[512,128], index: 8, kind: input, shape index: {}]
  %s9 = inlined_call_operand.hbm [shape: bf16[128,128], index: 9, kind: input, shape index: {}]
  %s10 = inlined_call_operand.hbm [shape: f32[1,128], index: 10, kind: input, shape index: {}]
  %s11 = inlined_call_operand.hbm [shape: f32[16,128], index: 11, kind: output, shape index: {}]
  %s12 = sld [smem:[#allocation0]]
  $region98: #{tpu_custom_call.1} parent=0
    _
  %s14 = ssub.s32 1, %s12
  %s15 = scalar_select 0, %s14, %s12
  $region1: #{tpu_custom_call.1} parent=0
    #allocation2 [shape = 'u8[24576]{0}', space=vmem, size = 0x6000, scoped, tag = 'input window, operand 0, single buffered']
    #allocation3 [shape = 's32[1]{0}', space=sflag, size = 0x4, scoped, tag = 'scoped memory for tpu_custom_call.1']
    #allocation4 [shape = 's32[1]{0}', space=sflag, size = 0x4, scoped, tag = 'scoped memory for tpu_custom_call.1']
    #allocation5 [shape = 'u8[4096]{0}', space=vmem, size = 0x1000, scoped, tag = 'input window, operand 1, single buffered']
    #allocation6 [shape = 's32[1]{0}', space=sflag, size = 0x4, scoped, tag = 'scoped memory for tpu_custom_call.1']
    #allocation7 [shape = 'u8[1179648]{0}', space=vmem, size = 0x120000, scoped, tag = 'input window, operand 2, single buffered']
    #allocation8 [shape = 'u8[3072]{0}', space=vmem, size = 0xc00, scoped, tag = 'input window, operand 3, single buffered']
    #allocation9 [shape = 's32[1]{0}', space=sflag, size = 0x4, scoped, tag = 'scoped memory for tpu_custom_call.1']
    #allocation10 [shape = 'u8[786432]{0}', space=vmem, size = 0xc0000, scoped, tag = 'input window, operand 4, single buffered']
    #allocation11 [shape = 'u8[2048]{0}', space=vmem, size = 0x800, scoped, tag = 'input window, operand 5, single buffered']
    #allocation12 [shape = 's32[1]{0}', space=sflag, size = 0x4, scoped, tag = 'scoped memory for tpu_custom_call.1']
    #allocation13 [shape = 'u8[32768]{0}', space=vmem, size = 0x8000, scoped, tag = 'input window, operand 6, single buffered']
    #allocation14 [shape = 'u8[512]{0}', space=vmem, size = 0x400, scoped, tag = 'input window, operand 7, single buffered']
    #allocation15 [shape = 's32[1]{0}', space=sflag, size = 0x4, scoped, tag = 'scoped memory for tpu_custom_call.1']
    #allocation16 [shape = 'u8[131072]{0}', space=vmem, size = 0x20000, scoped, tag = 'input window, operand 8, single buffered']
    #allocation17 [shape = 'u8[32768]{0}', space=vmem, size = 0x8000, scoped, tag = 'input window, operand 9, single buffered']
    #allocation18 [shape = 's32[1]{0}', space=sflag, size = 0x4, scoped, tag = 'scoped memory for tpu_custom_call.1']
    #allocation19 [shape = 'u8[512]{0}', space=vmem, size = 0x400, scoped, tag = 'input window, operand 10, single buffered']
    #allocation20 [shape = 'u8[8192]{0}', space=vmem, size = 0x2000, scoped, tag = 'output window, operand 0, single buffered']
    %16 = vsyncpa [#allocation3], 0
    %17 = vsyncpa [#allocation6], 0
    %18 = vsyncpa [#allocation9], 0
    %19 = vsyncpa [#allocation12], 0
    %20 = vsyncpa [#allocation15], 0
    %21 = vsyncpa [#allocation18], 0
    %22 = vsyncpa [#allocation4], 0
    // Predicated region
    $region2: #{tpu_custom_call.1} parent=1 // pred_check
      _
    $region3: #{tpu_custom_call.1} parent=1 // pred_check_branch
      %24 = sbr.rel (0) target = $region5
    $region4: #{tpu_custom_call.1} parent=1 // pred_region
      %26 = vsyncadd [#allocation3], 0
      %s27 = sshll.u32 %s0, 4
      %s28 = int_to_ptr.hbm [resolvable:$true] %s27
      %s29 = sshll.u32 [#allocation2], 4
      %s30 = int_to_ptr.vmem [resolvable:$true] %s29
      %35 = dma.hbm_to_vmem [thread:$0]  %s28, 768, %s30, [#allocation3], 384, 384, 24
    $region5: #{tpu_custom_call.1} parent=1 // pred_fallthru
      _
    // Predicated region
    $region6: #{tpu_custom_call.1} parent=1 // pred_check
      _
    $region7: #{tpu_custom_call.1} parent=1 // pred_check_branch
      %37 = sbr.rel (0) target = $region9
    $region8: #{tpu_custom_call.1} parent=1 // pred_region
      %39 = vsyncadd [#allocation6], 0
      %s40 = sshll.u32 %s1, 4
      %s41 = int_to_ptr.hbm [resolvable:$true] %s40
      %s42 = sshll.u32 [#allocation5], 4
      %s43 = int_to_ptr.vmem [resolvable:$true] %s42
      %48 = dma.hbm_to_vmem [thread:$0]  %s41, 128, %s43, [#allocation6], 64, 64, 4
    $region9: #{tpu_custom_call.1} parent=1 // pred_fallthru
      _
    // Predicated region
    $region10: #{tpu_custom_call.1} parent=1 // pred_check
      _
    $region11: #{tpu_custom_call.1} parent=1 // pred_check_branch
      %50 = sbr.rel (0) target = $region13
    $region12: #{tpu_custom_call.1} parent=1 // pred_region
      %52 = vsyncadd [#allocation6], 0
      %s53 = sshll.u32 %s2, 4
      %s54 = int_to_ptr.hbm [resolvable:$true] %s53
      %s55 = sshll.u32 [#allocation7], 4
      %s56 = int_to_ptr.vmem [resolvable:$true] %s55
      %61 = dma.hbm_to_vmem [thread:$0]  %s54, 36864, %s56, [#allocation6], 384, 384, 24
    $region13: #{tpu_custom_call.1} parent=1 // pred_fallthru
      _
    // Predicated region
    $region14: #{tpu_custom_call.1} parent=1 // pred_check
      _
    $region15: #{tpu_custom_call.1} parent=1 // pred_check_branch
      %63 = sbr.rel (0) target = $region17
    $region16: #{tpu_custom_call.1} parent=1 // pred_region
      %65 = vsyncadd [#allocation9], 0
      %s67 = sshll.u32 %s3, 4
      %s68 = int_to_ptr.hbm [resolvable:$true] %s67
      %s69 = sshll.u32 [#allocation8], 4
      %s70 = int_to_ptr.vmem [resolvable:$true] %s69
      %72 = dma.hbm_to_vmem [thread:$0]  %s68, 96, %s70, [#allocation9]
    $region17: #{tpu_custom_call.1} parent=1 // pred_fallthru
      _
    // Predicated region
    $region18: #{tpu_custom_call.1} parent=1 // pred_check
      _
    $region19: #{tpu_custom_call.1} parent=1 // pred_check_branch
      %74 = sbr.rel (0) target = $region21
    $region20: #{tpu_custom_call.1} parent=1 // pred_region
      %76 = vsyncadd [#allocation9], 0
      %s77 = sshll.u32 %s4, 4
      %s78 = int_to_ptr.hbm [resolvable:$true] %s77
      %s79 = sshll.u32 [#allocation10], 4
      %s80 = int_to_ptr.vmem [resolvable:$true] %s79
      %85 = dma.hbm_to_vmem [thread:$0]  %s78, 24576, %s80, [#allocation9], 256, 256, 16
    $region21: #{tpu_custom_call.1} parent=1 // pred_fallthru
      _
    // Predicated region
    $region22: #{tpu_custom_call.1} parent=1 // pred_check
      _
    $region23: #{tpu_custom_call.1} parent=1 // pred_check_branch
      %87 = sbr.rel (0) target = $region25
    $region24: #{tpu_custom_call.1} parent=1 // pred_region
      %89 = vsyncadd [#allocation12], 0
      %s91 = sshll.u32 %s5, 4
      %s92 = int_to_ptr.hbm [resolvable:$true] %s91
      %s93 = sshll.u32 [#allocation11], 4
      %s94 = int_to_ptr.vmem [resolvable:$true] %s93
      %96 = dma.hbm_to_vmem [thread:$0]  %s92, 64, %s94, [#allocation12]
    $region25: #{tpu_custom_call.1} parent=1 // pred_fallthru
      _
    // Predicated region
    $region26: #{tpu_custom_call.1} parent=1 // pred_check
      _
    $region27: #{tpu_custom_call.1} parent=1 // pred_check_branch
      %98 = sbr.rel (0) target = $region29
    $region28: #{tpu_custom_call.1} parent=1 // pred_region
      %100 = vsyncadd [#allocation12], 0
      %s101 = sshll.u32 %s6, 4
      %s102 = int_to_ptr.hbm [resolvable:$true] %s101
      %s103 = sshll.u32 [#allocation13], 4
      %s104 = int_to_ptr.vmem [resolvable:$true] %s103
      %109 = dma.hbm_to_vmem [thread:$0]  %s102, 1024, %s104, [#allocation12], 64, 64, 4
    $region29: #{tpu_custom_call.1} parent=1 // pred_fallthru
      _
    // Predicated region
    $region30: #{tpu_custom_call.1} parent=1 // pred_check
      _
    $region31: #{tpu_custom_call.1} parent=1 // pred_check_branch
      %111 = sbr.rel (0) target = $region33
    $region32: #{tpu_custom_call.1} parent=1 // pred_region
      %113 = vsyncadd [#allocation15], 0
      %s115 = sshll.u32 %s7, 4
      %s116 = int_to_ptr.hbm [resolvable:$true] %s115
      %s117 = sshll.u32 [#allocation14], 4
      %s118 = int_to_ptr.vmem [resolvable:$true] %s117
      %120 = dma.hbm_to_vmem [thread:$0]  %s116, 16, %s118, [#allocation15]
    $region33: #{tpu_custom_call.1} parent=1 // pred_fallthru
      _
    // Predicated region
    $region34: #{tpu_custom_call.1} parent=1 // pred_check
      _
    $region35: #{tpu_custom_call.1} parent=1 // pred_check_branch
      %122 = sbr.rel (0) target = $region37
    $region36: #{tpu_custom_call.1} parent=1 // pred_region
      %124 = vsyncadd [#allocation15], 0
      %s125 = sshll.u32 %s8, 4
      %s126 = int_to_ptr.hbm [resolvable:$true] %s125
      %s127 = sshll.u32 [#allocation16], 4
      %s128 = int_to_ptr.vmem [resolvable:$true] %s127
      %133 = dma.hbm_to_vmem [thread:$0]  %s126, 4096, %s128, [#allocation15], 64, 64, 4
    $region37: #{tpu_custom_call.1} parent=1 // pred_fallthru
      _
    // Predicated region
    $region38: #{tpu_custom_call.1} parent=1 // pred_check
      _
    $region39: #{tpu_custom_call.1} parent=1 // pred_check_branch
      %135 = sbr.rel (0) target = $region41
    $region40: #{tpu_custom_call.1} parent=1 // pred_region
      %137 = vsyncadd [#allocation18], 0
      %s138 = sshll.u32 %s9, 4
      %s139 = int_to_ptr.hbm [resolvable:$true] %s138
      %s140 = sshll.u32 [#allocation17], 4
      %s141 = int_to_ptr.vmem [resolvable:$true] %s140
      %146 = dma.hbm_to_vmem [thread:$0]  %s139, 1024, %s141, [#allocation18], 64, 64, 4
    $region41: #{tpu_custom_call.1} parent=1 // pred_fallthru
      _
    // Predicated region
    $region42: #{tpu_custom_call.1} parent=1 // pred_check
      _
    $region43: #{tpu_custom_call.1} parent=1 // pred_check_branch
      %148 = sbr.rel (0) target = $region45
    $region44: #{tpu_custom_call.1} parent=1 // pred_region
      %150 = vsyncadd [#allocation18], 0
      %s152 = sshll.u32 %s10, 4
      %s153 = int_to_ptr.hbm [resolvable:$true] %s152
      %s154 = sshll.u32 [#allocation19], 4
      %s155 = int_to_ptr.vmem [resolvable:$true] %s154
      %157 = dma.hbm_to_vmem [thread:$0]  %s153, 16, %s155, [#allocation18]
    $region45: #{tpu_custom_call.1} parent=1 // pred_fallthru
      _
    // Predicated region
    $region46: #{tpu_custom_call.1} parent=1 // pred_check
      _
    $region47: #{tpu_custom_call.1} parent=1 // pred_check_branch
      %159 = sbr.rel (0) target = $region49
    $region48: #{tpu_custom_call.1} parent=1 // pred_region
      %161 = dma.done [#allocation3], 768
    $region49: #{tpu_custom_call.1} parent=1 // pred_fallthru
      _
    // Predicated region
    $region50: #{tpu_custom_call.1} parent=1 // pred_check
      _
    $region51: #{tpu_custom_call.1} parent=1 // pred_check_branch
      %163 = sbr.rel (0) target = $region53
    $region52: #{tpu_custom_call.1} parent=1 // pred_region
      %165 = dma.done [#allocation6], 128
    $region53: #{tpu_custom_call.1} parent=1 // pred_fallthru
      _
    // Predicated region
    $region54: #{tpu_custom_call.1} parent=1 // pred_check
      _
    $region55: #{tpu_custom_call.1} parent=1 // pred_check_branch
      %167 = sbr.rel (0) target = $region57
    $region56: #{tpu_custom_call.1} parent=1 // pred_region
      %169 = dma.done [#allocation6], 36864
    $region57: #{tpu_custom_call.1} parent=1 // pred_fallthru
      _
    // Predicated region
    $region58: #{tpu_custom_call.1} parent=1 // pred_check
      _
    $region59: #{tpu_custom_call.1} parent=1 // pred_check_branch
      %171 = sbr.rel (0) target = $region61
    $region60: #{tpu_custom_call.1} parent=1 // pred_region
      %173 = dma.done [#allocation9], 96
    $region61: #{tpu_custom_call.1} parent=1 // pred_fallthru
      _
    // Predicated region
    $region62: #{tpu_custom_call.1} parent=1 // pred_check
      _
    $region63: #{tpu_custom_call.1} parent=1 // pred_check_branch
      %175 = sbr.rel (0) target = $region65
    $region64: #{tpu_custom_call.1} parent=1 // pred_region
      %177 = dma.done [#allocation9], 24576
    $region65: #{tpu_custom_call.1} parent=1 // pred_fallthru
      _
    // Predicated region
    $region66: #{tpu_custom_call.1} parent=1 // pred_check
      _
    $region67: #{tpu_custom_call.1} parent=1 // pred_check_branch
      %179 = sbr.rel (0) target = $region69
    $region68: #{tpu_custom_call.1} parent=1 // pred_region
      %181 = dma.done [#allocation12], 64
    $region69: #{tpu_custom_call.1} parent=1 // pred_fallthru
      _
    // Predicated region
    $region70: #{tpu_custom_call.1} parent=1 // pred_check
      _
    $region71: #{tpu_custom_call.1} parent=1 // pred_check_branch
      %183 = sbr.rel (0) target = $region73
    $region72: #{tpu_custom_call.1} parent=1 // pred_region
      %185 = dma.done [#allocation12], 1024
    $region73: #{tpu_custom_call.1} parent=1 // pred_fallthru
      _
    // Predicated region
    $region74: #{tpu_custom_call.1} parent=1 // pred_check
      _
    $region75: #{tpu_custom_call.1} parent=1 // pred_check_branch
      %187 = sbr.rel (0) target = $region77
    $region76: #{tpu_custom_call.1} parent=1 // pred_region
      %189 = dma.done [#allocation15], 16
    $region77: #{tpu_custom_call.1} parent=1 // pred_fallthru
      _
    // Predicated region
    $region78: #{tpu_custom_call.1} parent=1 // pred_check
      _
    $region79: #{tpu_custom_call.1} parent=1 // pred_check_branch
      %191 = sbr.rel (0) target = $region81
    $region80: #{tpu_custom_call.1} parent=1 // pred_region
      %193 = dma.done [#allocation15], 4096
    $region81: #{tpu_custom_call.1} parent=1 // pred_fallthru
      _
    // Predicated region
    $region82: #{tpu_custom_call.1} parent=1 // pred_check
      _
    $region83: #{tpu_custom_call.1} parent=1 // pred_check_branch
      %195 = sbr.rel (0) target = $region85
    $region84: #{tpu_custom_call.1} parent=1 // pred_region
      %197 = dma.done [#allocation18], 1024
    $region85: #{tpu_custom_call.1} parent=1 // pred_fallthru
      _
    // Predicated region
    $region86: #{tpu_custom_call.1} parent=1 // pred_check
      _
    $region87: #{tpu_custom_call.1} parent=1 // pred_check_branch
      %199 = sbr.rel (0) target = $region89
    $region88: #{tpu_custom_call.1} parent=1 // pred_region
      %201 = dma.done [#allocation18], 16
    $region89: #{tpu_custom_call.1} parent=1 // pred_fallthru
      _
    %v202 = vld [vmem:[#allocation2] sm:$0xff]
    %v203 = vld [vmem:[#allocation2 + $0x8] sm:$0xff]
    %v204 = vld [vmem:[#allocation2 + $0x10] sm:$0xff]
    %v205 = vld [vmem:[#allocation2 + $0x18] sm:$0xff]
    %v206 = vld [vmem:[#allocation2 + $0x20] sm:$0xff]
    %v207 = vld [vmem:[#allocation2 + $0x28] sm:$0xff]
    %v208 = vld [vmem:[#allocation7] sm:$0xff]
    %v209 = vld [vmem:[#allocation7 + $0x8] sm:$0xff]
    %v210 = vld [vmem:[#allocation7 + $0x10] sm:$0xff]
    %v211 = vld [vmem:[#allocation7 + $0x18] sm:$0xff]
    %v212 = vld [vmem:[#allocation7 + $0x20] sm:$0xff]
    %v213 = vld [vmem:[#allocation7 + $0x28] sm:$0xff]
    %v214 = vld [vmem:[#allocation7 + $0x30] sm:$0xff]
    %v215 = vld [vmem:[#allocation7 + $0x38] sm:$0xff]
    %v216 = vld [vmem:[#allocation7 + $0x40] sm:$0xff]
    %v217 = vld [vmem:[#allocation7 + $0x48] sm:$0xff]
    %v218 = vld [vmem:[#allocation7 + $0x50] sm:$0xff]
    %v219 = vld [vmem:[#allocation7 + $0x58] sm:$0xff]
    %v220 = vld [vmem:[#allocation7 + $0x60] sm:$0xff]
    %v221 = vld [vmem:[#allocation7 + $0x68] sm:$0xff]
    %v222 = vld [vmem:[#allocation7 + $0x70] sm:$0xff]
    %v223 = vld [vmem:[#allocation7 + $0x78] sm:$0xff]
    %v224 = vld [vmem:[#allocation7 + $0x80] sm:$0xff]
    %v225 = vld [vmem:[#allocation7 + $0x88] sm:$0xff]
    %v226 = vld [vmem:[#allocation7 + $0x90] sm:$0xff]
    %v227 = vld [vmem:[#allocation7 + $0x98] sm:$0xff]
    %v228 = vld [vmem:[#allocation7 + $0xa0] sm:$0xff]
    %v229 = vld [vmem:[#allocation7 + $0xa8] sm:$0xff]
    %v230 = vld [vmem:[#allocation7 + $0xb0] sm:$0xff]
    %v231 = vld [vmem:[#allocation7 + $0xb8] sm:$0xff]
    %v232 = vld [vmem:[#allocation7 + $0xc0] sm:$0xff]
    %v233 = vld [vmem:[#allocation7 + $0xc8] sm:$0xff]
    %v234 = vld [vmem:[#allocation7 + $0xd0] sm:$0xff]
    %v235 = vld [vmem:[#allocation7 + $0xd8] sm:$0xff]
    %v236 = vld [vmem:[#allocation7 + $0xe0] sm:$0xff]
    %v237 = vld [vmem:[#allocation7 + $0xe8] sm:$0xff]
    %v238 = vld [vmem:[#allocation7 + $0xf0] sm:$0xff]
    %v239 = vld [vmem:[#allocation7 + $0xf8] sm:$0xff]
    %v240 = vld [vmem:[#allocation7 + $0x100] sm:$0xff]
    %v241 = vld [vmem:[#allocation7 + $0x108] sm:$0xff]
    %v242 = vld [vmem:[#allocation7 + $0x110] sm:$0xff]
    %v243 = vld [vmem:[#allocation7 + $0x118] sm:$0xff]
    %v244 = vld [vmem:[#allocation7 + $0x120] sm:$0xff]
    %v245 = vld [vmem:[#allocation7 + $0x128] sm:$0xff]
    %v246 = vld [vmem:[#allocation7 + $0x130] sm:$0xff]
    %v247 = vld [vmem:[#allocation7 + $0x138] sm:$0xff]
    %v248 = vld [vmem:[#allocation7 + $0x140] sm:$0xff]
    %v249 = vld [vmem:[#allocation7 + $0x148] sm:$0xff]
    %v250 = vld [vmem:[#allocation7 + $0x150] sm:$0xff]
    %v251 = vld [vmem:[#allocation7 + $0x158] sm:$0xff]
    %v252 = vld [vmem:[#allocation7 + $0x160] sm:$0xff]
    %v253 = vld [vmem:[#allocation7 + $0x168] sm:$0xff]
    %v254 = vld [vmem:[#allocation7 + $0x170] sm:$0xff]
    %v255 = vld [vmem:[#allocation7 + $0x178] sm:$0xff]
    %v256 = vld [vmem:[#allocation7 + $0x180] sm:$0xff]
    %v257 = vld [vmem:[#allocation7 + $0x188] sm:$0xff]
    %v258 = vld [vmem:[#allocation7 + $0x190] sm:$0xff]
    %v259 = vld [vmem:[#allocation7 + $0x198] sm:$0xff]
    %v260 = vld [vmem:[#allocation7 + $0x1a0] sm:$0xff]
    %v261 = vld [vmem:[#allocation7 + $0x1a8] sm:$0xff]
    %v262 = vld [vmem:[#allocation7 + $0x1b0] sm:$0xff]
    %v263 = vld [vmem:[#allocation7 + $0x1b8] sm:$0xff]
    %v264 = vld [vmem:[#allocation7 + $0x1c0] sm:$0xff]
    %v265 = vld [vmem:[#allocation7 + $0x1c8] sm:$0xff]
    %v266 = vld [vmem:[#allocation7 + $0x1d0] sm:$0xff]
    %v267 = vld [vmem:[#allocation7 + $0x1d8] sm:$0xff]
    %v268 = vld [vmem:[#allocation7 + $0x1e0] sm:$0xff]
    %v269 = vld [vmem:[#allocation7 + $0x1e8] sm:$0xff]
    %v270 = vld [vmem:[#allocation7 + $0x1f0] sm:$0xff]
    %v271 = vld [vmem:[#allocation7 + $0x1f8] sm:$0xff]
    %v272 = vld [vmem:[#allocation7 + $0x200] sm:$0xff]
    %v273 = vld [vmem:[#allocation7 + $0x208] sm:$0xff]
    %v274 = vld [vmem:[#allocation7 + $0x210] sm:$0xff]
    %v275 = vld [vmem:[#allocation7 + $0x218] sm:$0xff]
    %v276 = vld [vmem:[#allocation7 + $0x220] sm:$0xff]
    %v277 = vld [vmem:[#allocation7 + $0x228] sm:$0xff]
    %v278 = vld [vmem:[#allocation7 + $0x230] sm:$0xff]
    %v279 = vld [vmem:[#allocation7 + $0x238] sm:$0xff]
    %v280 = vld [vmem:[#allocation7 + $0x240] sm:$0xff]
    %v281 = vld [vmem:[#allocation7 + $0x248] sm:$0xff]
    %v282 = vld [vmem:[#allocation7 + $0x250] sm:$0xff]
    %v283 = vld [vmem:[#allocation7 + $0x258] sm:$0xff]
    %v284 = vld [vmem:[#allocation7 + $0x260] sm:$0xff]
    %v285 = vld [vmem:[#allocation7 + $0x268] sm:$0xff]
    %v286 = vld [vmem:[#allocation7 + $0x270] sm:$0xff]
    %v287 = vld [vmem:[#allocation7 + $0x278] sm:$0xff]
    %v288 = vld [vmem:[#allocation7 + $0x280] sm:$0xff]
    %v289 = vld [vmem:[#allocation7 + $0x288] sm:$0xff]
    %v290 = vld [vmem:[#allocation7 + $0x290] sm:$0xff]
    %v291 = vld [vmem:[#allocation7 + $0x298] sm:$0xff]
    %v292 = vld [vmem:[#allocation7 + $0x2a0] sm:$0xff]
    %v293 = vld [vmem:[#allocation7 + $0x2a8] sm:$0xff]
    %v294 = vld [vmem:[#allocation7 + $0x2b0] sm:$0xff]
    %v295 = vld [vmem:[#allocation7 + $0x2b8] sm:$0xff]
    %v296 = vld [vmem:[#allocation7 + $0x2c0] sm:$0xff]
    %v297 = vld [vmem:[#allocation7 + $0x2c8] sm:$0xff]
    %v298 = vld [vmem:[#allocation7 + $0x2d0] sm:$0xff]
    %v299 = vld [vmem:[#allocation7 + $0x2d8] sm:$0xff]
    %v300 = vld [vmem:[#allocation7 + $0x2e0] sm:$0xff]
    %v301 = vld [vmem:[#allocation7 + $0x2e8] sm:$0xff]
    %v302 = vld [vmem:[#allocation7 + $0x2f0] sm:$0xff]
    %v303 = vld [vmem:[#allocation7 + $0x2f8] sm:$0xff]
    %v304 = vld [vmem:[#allocation7 + $0x300] sm:$0xff]
    %v305 = vld [vmem:[#allocation7 + $0x308] sm:$0xff]
    %v306 = vld [vmem:[#allocation7 + $0x310] sm:$0xff]
    %v307 = vld [vmem:[#allocation7 + $0x318] sm:$0xff]
    %v308 = vld [vmem:[#allocation7 + $0x320] sm:$0xff]
    %v309 = vld [vmem:[#allocation7 + $0x328] sm:$0xff]
    %v310 = vld [vmem:[#allocation7 + $0x330] sm:$0xff]
    %v311 = vld [vmem:[#allocation7 + $0x338] sm:$0xff]
    %v312 = vld [vmem:[#allocation7 + $0x340] sm:$0xff]
    %v313 = vld [vmem:[#allocation7 + $0x348] sm:$0xff]
    %v314 = vld [vmem:[#allocation7 + $0x350] sm:$0xff]
    %v315 = vld [vmem:[#allocation7 + $0x358] sm:$0xff]
    %v316 = vld [vmem:[#allocation7 + $0x360] sm:$0xff]
    %v317 = vld [vmem:[#allocation7 + $0x368] sm:$0xff]
    %v318 = vld [vmem:[#allocation7 + $0x370] sm:$0xff]
    %v319 = vld [vmem:[#allocation7 + $0x378] sm:$0xff]
    %v320 = vld [vmem:[#allocation7 + $0x380] sm:$0xff]
    %v321 = vld [vmem:[#allocation7 + $0x388] sm:$0xff]
    %v322 = vld [vmem:[#allocation7 + $0x390] sm:$0xff]
    %v323 = vld [vmem:[#allocation7 + $0x398] sm:$0xff]
    %v324 = vld [vmem:[#allocation7 + $0x3a0] sm:$0xff]
    %v325 = vld [vmem:[#allocation7 + $0x3a8] sm:$0xff]
    %v326 = vld [vmem:[#allocation7 + $0x3b0] sm:$0xff]
    %v327 = vld [vmem:[#allocation7 + $0x3b8] sm:$0xff]
    %v328 = vld [vmem:[#allocation7 + $0x3c0] sm:$0xff]
    %v329 = vld [vmem:[#allocation7 + $0x3c8] sm:$0xff]
    %v330 = vld [vmem:[#allocation7 + $0x3d0] sm:$0xff]
    %v331 = vld [vmem:[#allocation7 + $0x3d8] sm:$0xff]
    %v332 = vld [vmem:[#allocation7 + $0x3e0] sm:$0xff]
    %v333 = vld [vmem:[#allocation7 + $0x3e8] sm:$0xff]
    %v334 = vld [vmem:[#allocation7 + $0x3f0] sm:$0xff]
    %v335 = vld [vmem:[#allocation7 + $0x3f8] sm:$0xff]
    %v336 = vld [vmem:[#allocation7 + $0x400] sm:$0xff]
    %v337 = vld [vmem:[#allocation7 + $0x408] sm:$0xff]
    %v338 = vld [vmem:[#allocation7 + $0x410] sm:$0xff]
    %v339 = vld [vmem:[#allocation7 + $0x418] sm:$0xff]
    %v340 = vld [vmem:[#allocation7 + $0x420] sm:$0xff]
    %v341 = vld [vmem:[#allocation7 + $0x428] sm:$0xff]
    %v342 = vld [vmem:[#allocation7 + $0x430] sm:$0xff]
    %v343 = vld [vmem:[#allocation7 + $0x438] sm:$0xff]
    %v344 = vld [vmem:[#allocation7 + $0x440] sm:$0xff]
    %v345 = vld [vmem:[#allocation7 + $0x448] sm:$0xff]
    %v346 = vld [vmem:[#allocation7 + $0x450] sm:$0xff]
    %v347 = vld [vmem:[#allocation7 + $0x458] sm:$0xff]
    %v348 = vld [vmem:[#allocation7 + $0x460] sm:$0xff]
    %v349 = vld [vmem:[#allocation7 + $0x468] sm:$0xff]
    %v350 = vld [vmem:[#allocation7 + $0x470] sm:$0xff]
    %v351 = vld [vmem:[#allocation7 + $0x478] sm:$0xff]
    %v352 = vld [vmem:[#allocation7 + $0x480] sm:$0xff]
    %v353 = vld [vmem:[#allocation7 + $0x488] sm:$0xff]
    %v354 = vld [vmem:[#allocation7 + $0x490] sm:$0xff]
    %v355 = vld [vmem:[#allocation7 + $0x498] sm:$0xff]
    %v356 = vld [vmem:[#allocation7 + $0x4a0] sm:$0xff]
    %v357 = vld [vmem:[#allocation7 + $0x4a8] sm:$0xff]
    %v358 = vld [vmem:[#allocation7 + $0x4b0] sm:$0xff]
    %v359 = vld [vmem:[#allocation7 + $0x4b8] sm:$0xff]
    %v360 = vld [vmem:[#allocation7 + $0x4c0] sm:$0xff]
    %v361 = vld [vmem:[#allocation7 + $0x4c8] sm:$0xff]
    %v362 = vld [vmem:[#allocation7 + $0x4d0] sm:$0xff]
    %v363 = vld [vmem:[#allocation7 + $0x4d8] sm:$0xff]
    %v364 = vld [vmem:[#allocation7 + $0x4e0] sm:$0xff]
    %v365 = vld [vmem:[#allocation7 + $0x4e8] sm:$0xff]
    %v366 = vld [vmem:[#allocation7 + $0x4f0] sm:$0xff]
    %v367 = vld [vmem:[#allocation7 + $0x4f8] sm:$0xff]
    %v368 = vld [vmem:[#allocation7 + $0x500] sm:$0xff]
    %v369 = vld [vmem:[#allocation7 + $0x508] sm:$0xff]
    %v370 = vld [vmem:[#allocation7 + $0x510] sm:$0xff]
    %v371 = vld [vmem:[#allocation7 + $0x518] sm:$0xff]
    %v372 = vld [vmem:[#allocation7 + $0x520] sm:$0xff]
    %v373 = vld [vmem:[#allocation7 + $0x528] sm:$0xff]
    %v374 = vld [vmem:[#allocation7 + $0x530] sm:$0xff]
    %v375 = vld [vmem:[#allocation7 + $0x538] sm:$0xff]
    %v376 = vld [vmem:[#allocation7 + $0x540] sm:$0xff]
    %v377 = vld [vmem:[#allocation7 + $0x548] sm:$0xff]
    %v378 = vld [vmem:[#allocation7 + $0x550] sm:$0xff]
    %v379 = vld [vmem:[#allocation7 + $0x558] sm:$0xff]
    %v380 = vld [vmem:[#allocation7 + $0x560] sm:$0xff]
    %v381 = vld [vmem:[#allocation7 + $0x568] sm:$0xff]
    %v382 = vld [vmem:[#allocation7 + $0x570] sm:$0xff]
    %v383 = vld [vmem:[#allocation7 + $0x578] sm:$0xff]
    %v384 = vld [vmem:[#allocation7 + $0x580] sm:$0xff]
    %v385 = vld [vmem:[#allocation7 + $0x588] sm:$0xff]
    %v386 = vld [vmem:[#allocation7 + $0x590] sm:$0xff]
    %v387 = vld [vmem:[#allocation7 + $0x598] sm:$0xff]
    %v388 = vld [vmem:[#allocation7 + $0x5a0] sm:$0xff]
    %v389 = vld [vmem:[#allocation7 + $0x5a8] sm:$0xff]
    %v390 = vld [vmem:[#allocation7 + $0x5b0] sm:$0xff]
    %v391 = vld [vmem:[#allocation7 + $0x5b8] sm:$0xff]
    %v392 = vld [vmem:[#allocation7 + $0x5c0] sm:$0xff]
    %v393 = vld [vmem:[#allocation7 + $0x5c8] sm:$0xff]
    %v394 = vld [vmem:[#allocation7 + $0x5d0] sm:$0xff]
    %v395 = vld [vmem:[#allocation7 + $0x5d8] sm:$0xff]
    %v396 = vld [vmem:[#allocation7 + $0x5e0] sm:$0xff]
    %v397 = vld [vmem:[#allocation7 + $0x5e8] sm:$0xff]
    %v398 = vld [vmem:[#allocation7 + $0x5f0] sm:$0xff]
    %v399 = vld [vmem:[#allocation7 + $0x5f8] sm:$0xff]
    %v400 = vld [vmem:[#allocation7 + $0x600] sm:$0xff]
    %v401 = vld [vmem:[#allocation7 + $0x608] sm:$0xff]
    %v402 = vld [vmem:[#allocation7 + $0x610] sm:$0xff]
    %v403 = vld [vmem:[#allocation7 + $0x618] sm:$0xff]
    %v404 = vld [vmem:[#allocation7 + $0x620] sm:$0xff]
    %v405 = vld [vmem:[#allocation7 + $0x628] sm:$0xff]
    %v406 = vld [vmem:[#allocation7 + $0x630] sm:$0xff]
    %v407 = vld [vmem:[#allocation7 + $0x638] sm:$0xff]
    %v408 = vld [vmem:[#allocation7 + $0x640] sm:$0xff]
    %v409 = vld [vmem:[#allocation7 + $0x648] sm:$0xff]
    %v410 = vld [vmem:[#allocation7 + $0x650] sm:$0xff]
    %v411 = vld [vmem:[#allocation7 + $0x658] sm:$0xff]
    %v412 = vld [vmem:[#allocation7 + $0x660] sm:$0xff]
    %v413 = vld [vmem:[#allocation7 + $0x668] sm:$0xff]
    %v414 = vld [vmem:[#allocation7 + $0x670] sm:$0xff]
    %v415 = vld [vmem:[#allocation7 + $0x678] sm:$0xff]
    %v416 = vld [vmem:[#allocation7 + $0x680] sm:$0xff]
    %v417 = vld [vmem:[#allocation7 + $0x688] sm:$0xff]
    %v418 = vld [vmem:[#allocation7 + $0x690] sm:$0xff]
    %v419 = vld [vmem:[#allocation7 + $0x698] sm:$0xff]
    %v420 = vld [vmem:[#allocation7 + $0x6a0] sm:$0xff]
    %v421 = vld [vmem:[#allocation7 + $0x6a8] sm:$0xff]
    %v422 = vld [vmem:[#allocation7 + $0x6b0] sm:$0xff]
    %v423 = vld [vmem:[#allocation7 + $0x6b8] sm:$0xff]
    %v424 = vld [vmem:[#allocation7 + $0x6c0] sm:$0xff]
    %v425 = vld [vmem:[#allocation7 + $0x6c8] sm:$0xff]
    %v426 = vld [vmem:[#allocation7 + $0x6d0] sm:$0xff]
    %v427 = vld [vmem:[#allocation7 + $0x6d8] sm:$0xff]
    %v428 = vld [vmem:[#allocation7 + $0x6e0] sm:$0xff]
    %v429 = vld [vmem:[#allocation7 + $0x6e8] sm:$0xff]
    %v430 = vld [vmem:[#allocation7 + $0x6f0] sm:$0xff]
    %v431 = vld [vmem:[#allocation7 + $0x6f8] sm:$0xff]
    %v432 = vld [vmem:[#allocation7 + $0x700] sm:$0xff]
    %v433 = vld [vmem:[#allocation7 + $0x708] sm:$0xff]
    %v434 = vld [vmem:[#allocation7 + $0x710] sm:$0xff]
    %v435 = vld [vmem:[#allocation7 + $0x718] sm:$0xff]
    %v436 = vld [vmem:[#allocation7 + $0x720] sm:$0xff]
    %v437 = vld [vmem:[#allocation7 + $0x728] sm:$0xff]
    %v438 = vld [vmem:[#allocation7 + $0x730] sm:$0xff]
    %v439 = vld [vmem:[#allocation7 + $0x738] sm:$0xff]
    %v440 = vld [vmem:[#allocation7 + $0x740] sm:$0xff]
    %v441 = vld [vmem:[#allocation7 + $0x748] sm:$0xff]
    %v442 = vld [vmem:[#allocation7 + $0x750] sm:$0xff]
    %v443 = vld [vmem:[#allocation7 + $0x758] sm:$0xff]
    %v444 = vld [vmem:[#allocation7 + $0x760] sm:$0xff]
    %v445 = vld [vmem:[#allocation7 + $0x768] sm:$0xff]
    %v446 = vld [vmem:[#allocation7 + $0x770] sm:$0xff]
    %v447 = vld [vmem:[#allocation7 + $0x778] sm:$0xff]
    %v448 = vld [vmem:[#allocation7 + $0x780] sm:$0xff]
    %v449 = vld [vmem:[#allocation7 + $0x788] sm:$0xff]
    %v450 = vld [vmem:[#allocation7 + $0x790] sm:$0xff]
    %v451 = vld [vmem:[#allocation7 + $0x798] sm:$0xff]
    %v452 = vld [vmem:[#allocation7 + $0x7a0] sm:$0xff]
    %v453 = vld [vmem:[#allocation7 + $0x7a8] sm:$0xff]
    %v454 = vld [vmem:[#allocation7 + $0x7b0] sm:$0xff]
    %v455 = vld [vmem:[#allocation7 + $0x7b8] sm:$0xff]
    %v456 = vld [vmem:[#allocation7 + $0x7c0] sm:$0xff]
    %v457 = vld [vmem:[#allocation7 + $0x7c8] sm:$0xff]
    %v458 = vld [vmem:[#allocation7 + $0x7d0] sm:$0xff]
    %v459 = vld [vmem:[#allocation7 + $0x7d8] sm:$0xff]
    %v460 = vld [vmem:[#allocation7 + $0x7e0] sm:$0xff]
    %v461 = vld [vmem:[#allocation7 + $0x7e8] sm:$0xff]
    %v462 = vld [vmem:[#allocation7 + $0x7f0] sm:$0xff]
    %v463 = vld [vmem:[#allocation7 + $0x7f8] sm:$0xff]
    %v464 = vld [vmem:[#allocation7 + $0x800] sm:$0xff]
    %v465 = vld [vmem:[#allocation7 + $0x808] sm:$0xff]
    %v466 = vld [vmem:[#allocation7 + $0x810] sm:$0xff]
    %v467 = vld [vmem:[#allocation7 + $0x818] sm:$0xff]
    %v468 = vld [vmem:[#allocation7 + $0x820] sm:$0xff]
    %v469 = vld [vmem:[#allocation7 + $0x828] sm:$0xff]
    %v470 = vld [vmem:[#allocation7 + $0x830] sm:$0xff]
    %v471 = vld [vmem:[#allocation7 + $0x838] sm:$0xff]
    %v472 = vld [vmem:[#allocation7 + $0x840] sm:$0xff]
    %v473 = vld [vmem:[#allocation7 + $0x848] sm:$0xff]
    %v474 = vld [vmem:[#allocation7 + $0x850] sm:$0xff]
    %v475 = vld [vmem:[#allocation7 + $0x858] sm:$0xff]
    %v476 = vld [vmem:[#allocation7 + $0x860] sm:$0xff]
    %v477 = vld [vmem:[#allocation7 + $0x868] sm:$0xff]
    %v478 = vld [vmem:[#allocation7 + $0x870] sm:$0xff]
    %v479 = vld [vmem:[#allocation7 + $0x878] sm:$0xff]
    %v480 = vld [vmem:[#allocation7 + $0x880] sm:$0xff]
    %v481 = vld [vmem:[#allocation7 + $0x888] sm:$0xff]
    %v482 = vld [vmem:[#allocation7 + $0x890] sm:$0xff]
    %v483 = vld [vmem:[#allocation7 + $0x898] sm:$0xff]
    %v484 = vld [vmem:[#allocation7 + $0x8a0] sm:$0xff]
    %v485 = vld [vmem:[#allocation7 + $0x8a8] sm:$0xff]
    %v486 = vld [vmem:[#allocation7 + $0x8b0] sm:$0xff]
    %v487 = vld [vmem:[#allocation7 + $0x8b8] sm:$0xff]
    %v488 = vld [vmem:[#allocation7 + $0x8c0] sm:$0xff]
    %v489 = vld [vmem:[#allocation7 + $0x8c8] sm:$0xff]
    %v490 = vld [vmem:[#allocation7 + $0x8d0] sm:$0xff]
    %v491 = vld [vmem:[#allocation7 + $0x8d8] sm:$0xff]
    %v492 = vld [vmem:[#allocation7 + $0x8e0] sm:$0xff]
    %v493 = vld [vmem:[#allocation7 + $0x8e8] sm:$0xff]
    %v494 = vld [vmem:[#allocation7 + $0x8f0] sm:$0xff]
    %v495 = vld [vmem:[#allocation7 + $0x8f8] sm:$0xff]
    %v496 = vld [vmem:[#allocation8] sm:$0x3f]
    %v498 = vperm.slane %v496, 0
    %v499 = vperm.slane %v496, 1
    %v500 = vperm.slane %v496, 2
    %v501 = vperm.slane %v496, 3
    %v502 = vperm.slane %v496, 4
    %v503 = vperm.slane %v496, 5
    %v516 = vunpack.c.l.b16 %v202
    %v517 = vunpack.c.h.b16 %v202
    %v518 = vunpack.c.l.b16 %v203
    %v519 = vunpack.c.h.b16 %v203
    %v520 = vunpack.c.l.b16 %v204
    %v521 = vunpack.c.h.b16 %v204
    %v522 = vunpack.c.l.b16 %v205
    %v523 = vunpack.c.h.b16 %v205
    %v524 = vunpack.c.l.b16 %v206
    %v525 = vunpack.c.h.b16 %v206
    %v526 = vunpack.c.l.b16 %v207
    %v527 = vunpack.c.h.b16 %v207
    %v528 = vpack.c.b16 %v522, %v516
    %v529 = vpack.c.b16 %v523, %v517
    %v530 = vpack.c.b16 %v524, %v518
    %v531 = vpack.c.b16 %v525, %v519
    %v532 = vpack.c.b16 %v526, %v520
    %v533 = vpack.c.b16 %v527, %v521
    %v828 = vunpack.c.l.b16 %v208
    %v829 = vunpack.c.h.b16 %v208
    %v830 = vunpack.c.l.b16 %v209
    %v831 = vunpack.c.h.b16 %v209
    %v832 = vunpack.c.l.b16 %v210
    %v833 = vunpack.c.h.b16 %v210
    %v834 = vunpack.c.l.b16 %v211
    %v835 = vunpack.c.h.b16 %v211
    %v836 = vunpack.c.l.b16 %v212
    %v837 = vunpack.c.h.b16 %v212
    %v838 = vunpack.c.l.b16 %v213
    %v839 = vunpack.c.h.b16 %v213
    %v840 = vunpack.c.l.b16 %v214
    %v841 = vunpack.c.h.b16 %v214
    %v842 = vunpack.c.l.b16 %v215
    %v843 = vunpack.c.h.b16 %v215
    %v844 = vunpack.c.l.b16 %v216
    %v845 = vunpack.c.h.b16 %v216
    %v846 = vunpack.c.l.b16 %v217
    %v847 = vunpack.c.h.b16 %v217
    %v848 = vunpack.c.l.b16 %v218
    %v849 = vunpack.c.h.b16 %v218
    %v850 = vunpack.c.l.b16 %v219
    %v851 = vunpack.c.h.b16 %v219
    %v852 = vunpack.c.l.b16 %v220
    %v853 = vunpack.c.h.b16 %v220
    %v854 = vunpack.c.l.b16 %v221
    %v855 = vunpack.c.h.b16 %v221
    %v856 = vunpack.c.l.b16 %v222
    %v857 = vunpack.c.h.b16 %v222
    %v858 = vunpack.c.l.b16 %v223
    %v859 = vunpack.c.h.b16 %v223
    %v860 = vunpack.c.l.b16 %v224
    %v861 = vunpack.c.h.b16 %v224
    %v862 = vunpack.c.l.b16 %v225
    %v863 = vunpack.c.h.b16 %v225
    %v864 = vunpack.c.l.b16 %v226
    %v865 = vunpack.c.h.b16 %v226
    %v866 = vunpack.c.l.b16 %v227
    %v867 = vunpack.c.h.b16 %v227
    %v868 = vunpack.c.l.b16 %v228
    %v869 = vunpack.c.h.b16 %v228
    %v870 = vunpack.c.l.b16 %v229
    %v871 = vunpack.c.h.b16 %v229
    %v872 = vunpack.c.l.b16 %v230
    %v873 = vunpack.c.h.b16 %v230
    %v874 = vunpack.c.l.b16 %v231
    %v875 = vunpack.c.h.b16 %v231
    %v876 = vunpack.c.l.b16 %v232
    %v877 = vunpack.c.h.b16 %v232
    %v878 = vunpack.c.l.b16 %v233
    %v879 = vunpack.c.h.b16 %v233
    %v880 = vunpack.c.l.b16 %v234
    %v881 = vunpack.c.h.b16 %v234
    %v882 = vunpack.c.l.b16 %v235
    %v883 = vunpack.c.h.b16 %v235
    %v884 = vunpack.c.l.b16 %v236
    %v885 = vunpack.c.h.b16 %v236
    %v886 = vunpack.c.l.b16 %v237
    %v887 = vunpack.c.h.b16 %v237
    %v888 = vunpack.c.l.b16 %v238
    %v889 = vunpack.c.h.b16 %v238
    %v890 = vunpack.c.l.b16 %v239
    %v891 = vunpack.c.h.b16 %v239
    %v892 = vunpack.c.l.b16 %v240
    %v893 = vunpack.c.h.b16 %v240
    %v894 = vunpack.c.l.b16 %v241
    %v895 = vunpack.c.h.b16 %v241
    %v896 = vunpack.c.l.b16 %v242
    %v897 = vunpack.c.h.b16 %v242
    %v898 = vunpack.c.l.b16 %v243
    %v899 = vunpack.c.h.b16 %v243
    %v900 = vunpack.c.l.b16 %v244
    %v901 = vunpack.c.h.b16 %v244
    %v902 = vunpack.c.l.b16 %v245
    %v903 = vunpack.c.h.b16 %v245
    %v904 = vunpack.c.l.b16 %v246
    %v905 = vunpack.c.h.b16 %v246
    %v906 = vunpack.c.l.b16 %v247
    %v907 = vunpack.c.h.b16 %v247
    %v908 = vunpack.c.l.b16 %v248
    %v909 = vunpack.c.h.b16 %v248
    %v910 = vunpack.c.l.b16 %v249
    %v911 = vunpack.c.h.b16 %v249
    %v912 = vunpack.c.l.b16 %v250
    %v913 = vunpack.c.h.b16 %v250
    %v914 = vunpack.c.l.b16 %v251
    %v915 = vunpack.c.h.b16 %v251
    %v916 = vunpack.c.l.b16 %v252
    %v917 = vunpack.c.h.b16 %v252
    %v918 = vunpack.c.l.b16 %v253
    %v919 = vunpack.c.h.b16 %v253
    %v920 = vunpack.c.l.b16 %v254
    %v921 = vunpack.c.h.b16 %v254
    %v922 = vunpack.c.l.b16 %v255
    %v923 = vunpack.c.h.b16 %v255
    %v924 = vunpack.c.l.b16 %v256
    %v925 = vunpack.c.h.b16 %v256
    %v926 = vunpack.c.l.b16 %v257
    %v927 = vunpack.c.h.b16 %v257
    %v928 = vunpack.c.l.b16 %v258
    %v929 = vunpack.c.h.b16 %v258
    %v930 = vunpack.c.l.b16 %v259
    %v931 = vunpack.c.h.b16 %v259
    %v932 = vunpack.c.l.b16 %v260
    %v933 = vunpack.c.h.b16 %v260
    %v934 = vunpack.c.l.b16 %v261
    %v935 = vunpack.c.h.b16 %v261
    %v936 = vunpack.c.l.b16 %v262
    %v937 = vunpack.c.h.b16 %v262
    %v938 = vunpack.c.l.b16 %v263
    %v939 = vunpack.c.h.b16 %v263
    %v940 = vunpack.c.l.b16 %v264
    %v941 = vunpack.c.h.b16 %v264
    %v942 = vunpack.c.l.b16 %v265
    %v943 = vunpack.c.h.b16 %v265
    %v944 = vunpack.c.l.b16 %v266
    %v945 = vunpack.c.h.b16 %v266
    %v946 = vunpack.c.l.b16 %v267
    %v947 = vunpack.c.h.b16 %v267
    %v948 = vunpack.c.l.b16 %v268
    %v949 = vunpack.c.h.b16 %v268
    %v950 = vunpack.c.l.b16 %v269
    %v951 = vunpack.c.h.b16 %v269
    %v952 = vunpack.c.l.b16 %v270
    %v953 = vunpack.c.h.b16 %v270
    %v954 = vunpack.c.l.b16 %v271
    %v955 = vunpack.c.h.b16 %v271
    %v956 = vunpack.c.l.b16 %v272
    %v957 = vunpack.c.h.b16 %v272
    %v958 = vunpack.c.l.b16 %v273
    %v959 = vunpack.c.h.b16 %v273
    %v960 = vunpack.c.l.b16 %v274
    %v961 = vunpack.c.h.b16 %v274
    %v962 = vunpack.c.l.b16 %v275
    %v963 = vunpack.c.h.b16 %v275
    %v964 = vunpack.c.l.b16 %v276
    %v965 = vunpack.c.h.b16 %v276
    %v966 = vunpack.c.l.b16 %v277
    %v967 = vunpack.c.h.b16 %v277
    %v968 = vunpack.c.l.b16 %v278
    %v969 = vunpack.c.h.b16 %v278
    %v970 = vunpack.c.l.b16 %v279
    %v971 = vunpack.c.h.b16 %v279
    %v972 = vunpack.c.l.b16 %v280
    %v973 = vunpack.c.h.b16 %v280
    %v974 = vunpack.c.l.b16 %v281
    %v975 = vunpack.c.h.b16 %v281
    %v976 = vunpack.c.l.b16 %v282
    %v977 = vunpack.c.h.b16 %v282
    %v978 = vunpack.c.l.b16 %v283
    %v979 = vunpack.c.h.b16 %v283
    %v980 = vunpack.c.l.b16 %v284
    %v981 = vunpack.c.h.b16 %v284
    %v982 = vunpack.c.l.b16 %v285
    %v983 = vunpack.c.h.b16 %v285
    %v984 = vunpack.c.l.b16 %v286
    %v985 = vunpack.c.h.b16 %v286
    %v986 = vunpack.c.l.b16 %v287
    %v987 = vunpack.c.h.b16 %v287
    %v988 = vunpack.c.l.b16 %v288
    %v989 = vunpack.c.h.b16 %v288
    %v990 = vunpack.c.l.b16 %v289
    %v991 = vunpack.c.h.b16 %v289
    %v992 = vunpack.c.l.b16 %v290
    %v993 = vunpack.c.h.b16 %v290
    %v994 = vunpack.c.l.b16 %v291
    %v995 = vunpack.c.h.b16 %v291
    %v996 = vunpack.c.l.b16 %v292
    %v997 = vunpack.c.h.b16 %v292
    %v998 = vunpack.c.l.b16 %v293
    %v999 = vunpack.c.h.b16 %v293
    %v1000 = vunpack.c.l.b16 %v294
    %v1001 = vunpack.c.h.b16 %v294
    %v1002 = vunpack.c.l.b16 %v295
    %v1003 = vunpack.c.h.b16 %v295
    %v1004 = vunpack.c.l.b16 %v296
    %v1005 = vunpack.c.h.b16 %v296
    %v1006 = vunpack.c.l.b16 %v297
    %v1007 = vunpack.c.h.b16 %v297
    %v1008 = vunpack.c.l.b16 %v298
    %v1009 = vunpack.c.h.b16 %v298
    %v1010 = vunpack.c.l.b16 %v299
    %v1011 = vunpack.c.h.b16 %v299
    %v1012 = vunpack.c.l.b16 %v300
    %v1013 = vunpack.c.h.b16 %v300
    %v1014 = vunpack.c.l.b16 %v301
    %v1015 = vunpack.c.h.b16 %v301
    %v1016 = vunpack.c.l.b16 %v302
    %v1017 = vunpack.c.h.b16 %v302
    %v1018 = vunpack.c.l.b16 %v303
    %v1019 = vunpack.c.h.b16 %v303
    %v1020 = vunpack.c.l.b16 %v304
    %v1021 = vunpack.c.h.b16 %v304
    %v1022 = vunpack.c.l.b16 %v305
    %v1023 = vunpack.c.h.b16 %v305
    %v1024 = vunpack.c.l.b16 %v306
    %v1025 = vunpack.c.h.b16 %v306
    %v1026 = vunpack.c.l.b16 %v307
    %v1027 = vunpack.c.h.b16 %v307
    %v1028 = vunpack.c.l.b16 %v308
    %v1029 = vunpack.c.h.b16 %v308
    %v1030 = vunpack.c.l.b16 %v309
    %v1031 = vunpack.c.h.b16 %v309
    %v1032 = vunpack.c.l.b16 %v310
    %v1033 = vunpack.c.h.b16 %v310
    %v1034 = vunpack.c.l.b16 %v311
    %v1035 = vunpack.c.h.b16 %v311
    %v1036 = vunpack.c.l.b16 %v312
    %v1037 = vunpack.c.h.b16 %v312
    %v1038 = vunpack.c.l.b16 %v313
    %v1039 = vunpack.c.h.b16 %v313
    %v1040 = vunpack.c.l.b16 %v314
    %v1041 = vunpack.c.h.b16 %v314
    %v1042 = vunpack.c.l.b16 %v315
    %v1043 = vunpack.c.h.b16 %v315
    %v1044 = vunpack.c.l.b16 %v316
    %v1045 = vunpack.c.h.b16 %v316
    %v1046 = vunpack.c.l.b16 %v317
    %v1047 = vunpack.c.h.b16 %v317
    %v1048 = vunpack.c.l.b16 %v318
    %v1049 = vunpack.c.h.b16 %v318
    %v1050 = vunpack.c.l.b16 %v319
    %v1051 = vunpack.c.h.b16 %v319
    %v1052 = vunpack.c.l.b16 %v320
    %v1053 = vunpack.c.h.b16 %v320
    %v1054 = vunpack.c.l.b16 %v321
    %v1055 = vunpack.c.h.b16 %v321
    %v1056 = vunpack.c.l.b16 %v322
    %v1057 = vunpack.c.h.b16 %v322
    %v1058 = vunpack.c.l.b16 %v323
    %v1059 = vunpack.c.h.b16 %v323
    %v1060 = vunpack.c.l.b16 %v324
    %v1061 = vunpack.c.h.b16 %v324
    %v1062 = vunpack.c.l.b16 %v325
    %v1063 = vunpack.c.h.b16 %v325
    %v1064 = vunpack.c.l.b16 %v326
    %v1065 = vunpack.c.h.b16 %v326
    %v1066 = vunpack.c.l.b16 %v327
    %v1067 = vunpack.c.h.b16 %v327
    %v1068 = vunpack.c.l.b16 %v328
    %v1069 = vunpack.c.h.b16 %v328
    %v1070 = vunpack.c.l.b16 %v329
    %v1071 = vunpack.c.h.b16 %v329
    %v1072 = vunpack.c.l.b16 %v330
    %v1073 = vunpack.c.h.b16 %v330
    %v1074 = vunpack.c.l.b16 %v331
    %v1075 = vunpack.c.h.b16 %v331
    %v1076 = vunpack.c.l.b16 %v332
    %v1077 = vunpack.c.h.b16 %v332
    %v1078 = vunpack.c.l.b16 %v333
    %v1079 = vunpack.c.h.b16 %v333
    %v1080 = vunpack.c.l.b16 %v334
    %v1081 = vunpack.c.h.b16 %v334
    %v1082 = vunpack.c.l.b16 %v335
    %v1083 = vunpack.c.h.b16 %v335
    %v1084 = vunpack.c.l.b16 %v336
    %v1085 = vunpack.c.h.b16 %v336
    %v1086 = vunpack.c.l.b16 %v337
    %v1087 = vunpack.c.h.b16 %v337
    %v1088 = vunpack.c.l.b16 %v338
    %v1089 = vunpack.c.h.b16 %v338
    %v1090 = vunpack.c.l.b16 %v339
    %v1091 = vunpack.c.h.b16 %v339
    %v1092 = vunpack.c.l.b16 %v340
    %v1093 = vunpack.c.h.b16 %v340
    %v1094 = vunpack.c.l.b16 %v341
    %v1095 = vunpack.c.h.b16 %v341
    %v1096 = vunpack.c.l.b16 %v342
    %v1097 = vunpack.c.h.b16 %v342
    %v1098 = vunpack.c.l.b16 %v343
    %v1099 = vunpack.c.h.b16 %v343
    %v1100 = vunpack.c.l.b16 %v344
    %v1101 = vunpack.c.h.b16 %v344
    %v1102 = vunpack.c.l.b16 %v345
    %v1103 = vunpack.c.h.b16 %v345
    %v1104 = vunpack.c.l.b16 %v346
    %v1105 = vunpack.c.h.b16 %v346
    %v1106 = vunpack.c.l.b16 %v347
    %v1107 = vunpack.c.h.b16 %v347
    %v1108 = vunpack.c.l.b16 %v348
    %v1109 = vunpack.c.h.b16 %v348
    %v1110 = vunpack.c.l.b16 %v349
    %v1111 = vunpack.c.h.b16 %v349
    %v1112 = vunpack.c.l.b16 %v350
    %v1113 = vunpack.c.h.b16 %v350
    %v1114 = vunpack.c.l.b16 %v351
    %v1115 = vunpack.c.h.b16 %v351
    %v1116 = vunpack.c.l.b16 %v352
    %v1117 = vunpack.c.h.b16 %v352
    %v1118 = vunpack.c.l.b16 %v353
    %v1119 = vunpack.c.h.b16 %v353
    %v1120 = vunpack.c.l.b16 %v354
    %v1121 = vunpack.c.h.b16 %v354
    %v1122 = vunpack.c.l.b16 %v355
    %v1123 = vunpack.c.h.b16 %v355
    %v1124 = vunpack.c.l.b16 %v356
    %v1125 = vunpack.c.h.b16 %v356
    %v1126 = vunpack.c.l.b16 %v357
    %v1127 = vunpack.c.h.b16 %v357
    %v1128 = vunpack.c.l.b16 %v358
    %v1129 = vunpack.c.h.b16 %v358
    %v1130 = vunpack.c.l.b16 %v359
    %v1131 = vunpack.c.h.b16 %v359
    %v1132 = vunpack.c.l.b16 %v360
    %v1133 = vunpack.c.h.b16 %v360
    %v1134 = vunpack.c.l.b16 %v361
    %v1135 = vunpack.c.h.b16 %v361
    %v1136 = vunpack.c.l.b16 %v362
    %v1137 = vunpack.c.h.b16 %v362
    %v1138 = vunpack.c.l.b16 %v363
    %v1139 = vunpack.c.h.b16 %v363
    %v1140 = vunpack.c.l.b16 %v364
    %v1141 = vunpack.c.h.b16 %v364
    %v1142 = vunpack.c.l.b16 %v365
    %v1143 = vunpack.c.h.b16 %v365
    %v1144 = vunpack.c.l.b16 %v366
    %v1145 = vunpack.c.h.b16 %v366
    %v1146 = vunpack.c.l.b16 %v367
    %v1147 = vunpack.c.h.b16 %v367
    %v1148 = vunpack.c.l.b16 %v368
    %v1149 = vunpack.c.h.b16 %v368
    %v1150 = vunpack.c.l.b16 %v369
    %v1151 = vunpack.c.h.b16 %v369
    %v1152 = vunpack.c.l.b16 %v370
    %v1153 = vunpack.c.h.b16 %v370
    %v1154 = vunpack.c.l.b16 %v371
    %v1155 = vunpack.c.h.b16 %v371
    %v1156 = vunpack.c.l.b16 %v372
    %v1157 = vunpack.c.h.b16 %v372
    %v1158 = vunpack.c.l.b16 %v373
    %v1159 = vunpack.c.h.b16 %v373
    %v1160 = vunpack.c.l.b16 %v374
    %v1161 = vunpack.c.h.b16 %v374
    %v1162 = vunpack.c.l.b16 %v375
    %v1163 = vunpack.c.h.b16 %v375
    %v1164 = vunpack.c.l.b16 %v376
    %v1165 = vunpack.c.h.b16 %v376
    %v1166 = vunpack.c.l.b16 %v377
    %v1167 = vunpack.c.h.b16 %v377
    %v1168 = vunpack.c.l.b16 %v378
    %v1169 = vunpack.c.h.b16 %v378
    %v1170 = vunpack.c.l.b16 %v379
    %v1171 = vunpack.c.h.b16 %v379
    %v1172 = vunpack.c.l.b16 %v380
    %v1173 = vunpack.c.h.b16 %v380
    %v1174 = vunpack.c.l.b16 %v381
    %v1175 = vunpack.c.h.b16 %v381
    %v1176 = vunpack.c.l.b16 %v382
    %v1177 = vunpack.c.h.b16 %v382
    %v1178 = vunpack.c.l.b16 %v383
    %v1179 = vunpack.c.h.b16 %v383
    %v1180 = vunpack.c.l.b16 %v384
    %v1181 = vunpack.c.h.b16 %v384
    %v1182 = vunpack.c.l.b16 %v385
    %v1183 = vunpack.c.h.b16 %v385
    %v1184 = vunpack.c.l.b16 %v386
    %v1185 = vunpack.c.h.b16 %v386
    %v1186 = vunpack.c.l.b16 %v387
    %v1187 = vunpack.c.h.b16 %v387
    %v1188 = vunpack.c.l.b16 %v388
    %v1189 = vunpack.c.h.b16 %v388
    %v1190 = vunpack.c.l.b16 %v389
    %v1191 = vunpack.c.h.b16 %v389
    %v1192 = vunpack.c.l.b16 %v390
    %v1193 = vunpack.c.h.b16 %v390
    %v1194 = vunpack.c.l.b16 %v391
    %v1195 = vunpack.c.h.b16 %v391
    %v1196 = vunpack.c.l.b16 %v392
    %v1197 = vunpack.c.h.b16 %v392
    %v1198 = vunpack.c.l.b16 %v393
    %v1199 = vunpack.c.h.b16 %v393
    %v1200 = vunpack.c.l.b16 %v394
    %v1201 = vunpack.c.h.b16 %v394
    %v1202 = vunpack.c.l.b16 %v395
    %v1203 = vunpack.c.h.b16 %v395
    %v1204 = vunpack.c.l.b16 %v396
    %v1205 = vunpack.c.h.b16 %v396
    %v1206 = vunpack.c.l.b16 %v397
    %v1207 = vunpack.c.h.b16 %v397
    %v1208 = vunpack.c.l.b16 %v398
    %v1209 = vunpack.c.h.b16 %v398
    %v1210 = vunpack.c.l.b16 %v399
    %v1211 = vunpack.c.h.b16 %v399
    %v1212 = vunpack.c.l.b16 %v400
    %v1213 = vunpack.c.h.b16 %v400
    %v1214 = vunpack.c.l.b16 %v401
    %v1215 = vunpack.c.h.b16 %v401
    %v1216 = vunpack.c.l.b16 %v402
    %v1217 = vunpack.c.h.b16 %v402
    %v1218 = vunpack.c.l.b16 %v403
    %v1219 = vunpack.c.h.b16 %v403
    %v1220 = vunpack.c.l.b16 %v404
    %v1221 = vunpack.c.h.b16 %v404
    %v1222 = vunpack.c.l.b16 %v405
    %v1223 = vunpack.c.h.b16 %v405
    %v1224 = vunpack.c.l.b16 %v406
    %v1225 = vunpack.c.h.b16 %v406
    %v1226 = vunpack.c.l.b16 %v407
    %v1227 = vunpack.c.h.b16 %v407
    %v1228 = vunpack.c.l.b16 %v408
    %v1229 = vunpack.c.h.b16 %v408
    %v1230 = vunpack.c.l.b16 %v409
    %v1231 = vunpack.c.h.b16 %v409
    %v1232 = vunpack.c.l.b16 %v410
    %v1233 = vunpack.c.h.b16 %v410
    %v1234 = vunpack.c.l.b16 %v411
    %v1235 = vunpack.c.h.b16 %v411
    %v1236 = vunpack.c.l.b16 %v412
    %v1237 = vunpack.c.h.b16 %v412
    %v1238 = vunpack.c.l.b16 %v413
    %v1239 = vunpack.c.h.b16 %v413
    %v1240 = vunpack.c.l.b16 %v414
    %v1241 = vunpack.c.h.b16 %v414
    %v1242 = vunpack.c.l.b16 %v415
    %v1243 = vunpack.c.h.b16 %v415
    %v1244 = vunpack.c.l.b16 %v416
    %v1245 = vunpack.c.h.b16 %v416
    %v1246 = vunpack.c.l.b16 %v417
    %v1247 = vunpack.c.h.b16 %v417
    %v1248 = vunpack.c.l.b16 %v418
    %v1249 = vunpack.c.h.b16 %v418
    %v1250 = vunpack.c.l.b16 %v419
    %v1251 = vunpack.c.h.b16 %v419
    %v1252 = vunpack.c.l.b16 %v420
    %v1253 = vunpack.c.h.b16 %v420
    %v1254 = vunpack.c.l.b16 %v421
    %v1255 = vunpack.c.h.b16 %v421
    %v1256 = vunpack.c.l.b16 %v422
    %v1257 = vunpack.c.h.b16 %v422
    %v1258 = vunpack.c.l.b16 %v423
    %v1259 = vunpack.c.h.b16 %v423
    %v1260 = vunpack.c.l.b16 %v424
    %v1261 = vunpack.c.h.b16 %v424
    %v1262 = vunpack.c.l.b16 %v425
    %v1263 = vunpack.c.h.b16 %v425
    %v1264 = vunpack.c.l.b16 %v426
    %v1265 = vunpack.c.h.b16 %v426
    %v1266 = vunpack.c.l.b16 %v427
    %v1267 = vunpack.c.h.b16 %v427
    %v1268 = vunpack.c.l.b16 %v428
    %v1269 = vunpack.c.h.b16 %v428
    %v1270 = vunpack.c.l.b16 %v429
    %v1271 = vunpack.c.h.b16 %v429
    %v1272 = vunpack.c.l.b16 %v430
    %v1273 = vunpack.c.h.b16 %v430
    %v1274 = vunpack.c.l.b16 %v431
    %v1275 = vunpack.c.h.b16 %v431
    %v1276 = vunpack.c.l.b16 %v432
    %v1277 = vunpack.c.h.b16 %v432
    %v1278 = vunpack.c.l.b16 %v433
    %v1279 = vunpack.c.h.b16 %v433
    %v1280 = vunpack.c.l.b16 %v434
    %v1281 = vunpack.c.h.b16 %v434
    %v1282 = vunpack.c.l.b16 %v435
    %v1283 = vunpack.c.h.b16 %v435
    %v1284 = vunpack.c.l.b16 %v436
    %v1285 = vunpack.c.h.b16 %v436
    %v1286 = vunpack.c.l.b16 %v437
    %v1287 = vunpack.c.h.b16 %v437
    %v1288 = vunpack.c.l.b16 %v438
    %v1289 = vunpack.c.h.b16 %v438
    %v1290 = vunpack.c.l.b16 %v439
    %v1291 = vunpack.c.h.b16 %v439
    %v1292 = vunpack.c.l.b16 %v440
    %v1293 = vunpack.c.h.b16 %v440
    %v1294 = vunpack.c.l.b16 %v441
    %v1295 = vunpack.c.h.b16 %v441
    %v1296 = vunpack.c.l.b16 %v442
    %v1297 = vunpack.c.h.b16 %v442
    %v1298 = vunpack.c.l.b16 %v443
    %v1299 = vunpack.c.h.b16 %v443
    %v1300 = vunpack.c.l.b16 %v444
    %v1301 = vunpack.c.h.b16 %v444
    %v1302 = vunpack.c.l.b16 %v445
    %v1303 = vunpack.c.h.b16 %v445
    %v1304 = vunpack.c.l.b16 %v446
    %v1305 = vunpack.c.h.b16 %v446
    %v1306 = vunpack.c.l.b16 %v447
    %v1307 = vunpack.c.h.b16 %v447
    %v1308 = vunpack.c.l.b16 %v448
    %v1309 = vunpack.c.h.b16 %v448
    %v1310 = vunpack.c.l.b16 %v449
    %v1311 = vunpack.c.h.b16 %v449
    %v1312 = vunpack.c.l.b16 %v450
    %v1313 = vunpack.c.h.b16 %v450
    %v1314 = vunpack.c.l.b16 %v451
    %v1315 = vunpack.c.h.b16 %v451
    %v1316 = vunpack.c.l.b16 %v452
    %v1317 = vunpack.c.h.b16 %v452
    %v1318 = vunpack.c.l.b16 %v453
    %v1319 = vunpack.c.h.b16 %v453
    %v1320 = vunpack.c.l.b16 %v454
    %v1321 = vunpack.c.h.b16 %v454
    %v1322 = vunpack.c.l.b16 %v455
    %v1323 = vunpack.c.h.b16 %v455
    %v1324 = vunpack.c.l.b16 %v456
    %v1325 = vunpack.c.h.b16 %v456
    %v1326 = vunpack.c.l.b16 %v457
    %v1327 = vunpack.c.h.b16 %v457
    %v1328 = vunpack.c.l.b16 %v458
    %v1329 = vunpack.c.h.b16 %v458
    %v1330 = vunpack.c.l.b16 %v459
    %v1331 = vunpack.c.h.b16 %v459
    %v1332 = vunpack.c.l.b16 %v460
    %v1333 = vunpack.c.h.b16 %v460
    %v1334 = vunpack.c.l.b16 %v461
    %v1335 = vunpack.c.h.b16 %v461
    %v1336 = vunpack.c.l.b16 %v462
    %v1337 = vunpack.c.h.b16 %v462
    %v1338 = vunpack.c.l.b16 %v463
    %v1339 = vunpack.c.h.b16 %v463
    %v1340 = vunpack.c.l.b16 %v464
    %v1341 = vunpack.c.h.b16 %v464
    %v1342 = vunpack.c.l.b16 %v465
    %v1343 = vunpack.c.h.b16 %v465
    %v1344 = vunpack.c.l.b16 %v466
    %v1345 = vunpack.c.h.b16 %v466
    %v1346 = vunpack.c.l.b16 %v467
    %v1347 = vunpack.c.h.b16 %v467
    %v1348 = vunpack.c.l.b16 %v468
    %v1349 = vunpack.c.h.b16 %v468
    %v1350 = vunpack.c.l.b16 %v469
    %v1351 = vunpack.c.h.b16 %v469
    %v1352 = vunpack.c.l.b16 %v470
    %v1353 = vunpack.c.h.b16 %v470
    %v1354 = vunpack.c.l.b16 %v471
    %v1355 = vunpack.c.h.b16 %v471
    %v1356 = vunpack.c.l.b16 %v472
    %v1357 = vunpack.c.h.b16 %v472
    %v1358 = vunpack.c.l.b16 %v473
    %v1359 = vunpack.c.h.b16 %v473
    %v1360 = vunpack.c.l.b16 %v474
    %v1361 = vunpack.c.h.b16 %v474
    %v1362 = vunpack.c.l.b16 %v475
    %v1363 = vunpack.c.h.b16 %v475
    %v1364 = vunpack.c.l.b16 %v476
    %v1365 = vunpack.c.h.b16 %v476
    %v1366 = vunpack.c.l.b16 %v477
    %v1367 = vunpack.c.h.b16 %v477
    %v1368 = vunpack.c.l.b16 %v478
    %v1369 = vunpack.c.h.b16 %v478
    %v1370 = vunpack.c.l.b16 %v479
    %v1371 = vunpack.c.h.b16 %v479
    %v1372 = vunpack.c.l.b16 %v480
    %v1373 = vunpack.c.h.b16 %v480
    %v1374 = vunpack.c.l.b16 %v481
    %v1375 = vunpack.c.h.b16 %v481
    %v1376 = vunpack.c.l.b16 %v482
    %v1377 = vunpack.c.h.b16 %v482
    %v1378 = vunpack.c.l.b16 %v483
    %v1379 = vunpack.c.h.b16 %v483
    %v1380 = vunpack.c.l.b16 %v484
    %v1381 = vunpack.c.h.b16 %v484
    %v1382 = vunpack.c.l.b16 %v485
    %v1383 = vunpack.c.h.b16 %v485
    %v1384 = vunpack.c.l.b16 %v486
    %v1385 = vunpack.c.h.b16 %v486
    %v1386 = vunpack.c.l.b16 %v487
    %v1387 = vunpack.c.h.b16 %v487
    %v1388 = vunpack.c.l.b16 %v488
    %v1389 = vunpack.c.h.b16 %v488
    %v1390 = vunpack.c.l.b16 %v489
    %v1391 = vunpack.c.h.b16 %v489
    %v1392 = vunpack.c.l.b16 %v490
    %v1393 = vunpack.c.h.b16 %v490
    %v1394 = vunpack.c.l.b16 %v491
    %v1395 = vunpack.c.h.b16 %v491
    %v1396 = vunpack.c.l.b16 %v492
    %v1397 = vunpack.c.h.b16 %v492
    %v1398 = vunpack.c.l.b16 %v493
    %v1399 = vunpack.c.h.b16 %v493
    %v1400 = vunpack.c.l.b16 %v494
    %v1401 = vunpack.c.h.b16 %v494
    %v1402 = vunpack.c.l.b16 %v495
    %v1403 = vunpack.c.h.b16 %v495
    %v1404 = vpack.c.b16 %v834, %v828
    %v1405 = vpack.c.b16 %v835, %v829
    %v1406 = vpack.c.b16 %v836, %v830
    %v1407 = vpack.c.b16 %v837, %v831
    %v1408 = vpack.c.b16 %v838, %v832
    %v1409 = vpack.c.b16 %v839, %v833
    %v1410 = vpack.c.b16 %v846, %v840
    %v1411 = vpack.c.b16 %v847, %v841
    %v1412 = vpack.c.b16 %v848, %v842
    %v1413 = vpack.c.b16 %v849, %v843
    %v1414 = vpack.c.b16 %v850, %v844
    %v1415 = vpack.c.b16 %v851, %v845
    %v1416 = vpack.c.b16 %v858, %v852
    %v1417 = vpack.c.b16 %v859, %v853
    %v1418 = vpack.c.b16 %v860, %v854
    %v1419 = vpack.c.b16 %v861, %v855
    %v1420 = vpack.c.b16 %v862, %v856
    %v1421 = vpack.c.b16 %v863, %v857
    %v1422 = vpack.c.b16 %v870, %v864
    %v1423 = vpack.c.b16 %v871, %v865
    %v1424 = vpack.c.b16 %v872, %v866
    %v1425 = vpack.c.b16 %v873, %v867
    %v1426 = vpack.c.b16 %v874, %v868
    %v1427 = vpack.c.b16 %v875, %v869
    %v1428 = vpack.c.b16 %v882, %v876
    %v1429 = vpack.c.b16 %v883, %v877
    %v1430 = vpack.c.b16 %v884, %v878
    %v1431 = vpack.c.b16 %v885, %v879
    %v1432 = vpack.c.b16 %v886, %v880
    %v1433 = vpack.c.b16 %v887, %v881
    %v1434 = vpack.c.b16 %v894, %v888
    %v1435 = vpack.c.b16 %v895, %v889
    %v1436 = vpack.c.b16 %v896, %v890
    %v1437 = vpack.c.b16 %v897, %v891
    %v1438 = vpack.c.b16 %v898, %v892
    %v1439 = vpack.c.b16 %v899, %v893
    %v1440 = vpack.c.b16 %v906, %v900
    %v1441 = vpack.c.b16 %v907, %v901
    %v1442 = vpack.c.b16 %v908, %v902
    %v1443 = vpack.c.b16 %v909, %v903
    %v1444 = vpack.c.b16 %v910, %v904
    %v1445 = vpack.c.b16 %v911, %v905
    %v1446 = vpack.c.b16 %v918, %v912
    %v1447 = vpack.c.b16 %v919, %v913
    %v1448 = vpack.c.b16 %v920, %v914
    %v1449 = vpack.c.b16 %v921, %v915
    %v1450 = vpack.c.b16 %v922, %v916
    %v1451 = vpack.c.b16 %v923, %v917
    %v1452 = vpack.c.b16 %v930, %v924
    %v1453 = vpack.c.b16 %v931, %v925
    %v1454 = vpack.c.b16 %v932, %v926
    %v1455 = vpack.c.b16 %v933, %v927
    %v1456 = vpack.c.b16 %v934, %v928
    %v1457 = vpack.c.b16 %v935, %v929
    %v1458 = vpack.c.b16 %v942, %v936
    %v1459 = vpack.c.b16 %v943, %v937
    %v1460 = vpack.c.b16 %v944, %v938
    %v1461 = vpack.c.b16 %v945, %v939
    %v1462 = vpack.c.b16 %v946, %v940
    %v1463 = vpack.c.b16 %v947, %v941
    %v1464 = vpack.c.b16 %v954, %v948
    %v1465 = vpack.c.b16 %v955, %v949
    %v1466 = vpack.c.b16 %v956, %v950
    %v1467 = vpack.c.b16 %v957, %v951
    %v1468 = vpack.c.b16 %v958, %v952
    %v1469 = vpack.c.b16 %v959, %v953
    %v1470 = vpack.c.b16 %v966, %v960
    %v1471 = vpack.c.b16 %v967, %v961
    %v1472 = vpack.c.b16 %v968, %v962
    %v1473 = vpack.c.b16 %v969, %v963
    %v1474 = vpack.c.b16 %v970, %v964
    %v1475 = vpack.c.b16 %v971, %v965
    %v1476 = vpack.c.b16 %v978, %v972
    %v1477 = vpack.c.b16 %v979, %v973
    %v1478 = vpack.c.b16 %v980, %v974
    %v1479 = vpack.c.b16 %v981, %v975
    %v1480 = vpack.c.b16 %v982, %v976
    %v1481 = vpack.c.b16 %v983, %v977
    %v1482 = vpack.c.b16 %v990, %v984
    %v1483 = vpack.c.b16 %v991, %v985
    %v1484 = vpack.c.b16 %v992, %v986
    %v1485 = vpack.c.b16 %v993, %v987
    %v1486 = vpack.c.b16 %v994, %v988
    %v1487 = vpack.c.b16 %v995, %v989
    %v1488 = vpack.c.b16 %v1002, %v996
    %v1489 = vpack.c.b16 %v1003, %v997
    %v1490 = vpack.c.b16 %v1004, %v998
    %v1491 = vpack.c.b16 %v1005, %v999
    %v1492 = vpack.c.b16 %v1006, %v1000
    %v1493 = vpack.c.b16 %v1007, %v1001
    %v1494 = vpack.c.b16 %v1014, %v1008
    %v1495 = vpack.c.b16 %v1015, %v1009
    %v1496 = vpack.c.b16 %v1016, %v1010
    %v1497 = vpack.c.b16 %v1017, %v1011
    %v1498 = vpack.c.b16 %v1018, %v1012
    %v1499 = vpack.c.b16 %v1019, %v1013
    %v1500 = vpack.c.b16 %v1026, %v1020
    %v1501 = vpack.c.b16 %v1027, %v1021
    %v1502 = vpack.c.b16 %v1028, %v1022
    %v1503 = vpack.c.b16 %v1029, %v1023
    %v1504 = vpack.c.b16 %v1030, %v1024
    %v1505 = vpack.c.b16 %v1031, %v1025
    %v1506 = vpack.c.b16 %v1038, %v1032
    %v1507 = vpack.c.b16 %v1039, %v1033
    %v1508 = vpack.c.b16 %v1040, %v1034
    %v1509 = vpack.c.b16 %v1041, %v1035
    %v1510 = vpack.c.b16 %v1042, %v1036
    %v1511 = vpack.c.b16 %v1043, %v1037
    %v1512 = vpack.c.b16 %v1050, %v1044
    %v1513 = vpack.c.b16 %v1051, %v1045
    %v1514 = vpack.c.b16 %v1052, %v1046
    %v1515 = vpack.c.b16 %v1053, %v1047
    %v1516 = vpack.c.b16 %v1054, %v1048
    %v1517 = vpack.c.b16 %v1055, %v1049
    %v1518 = vpack.c.b16 %v1062, %v1056
    %v1519 = vpack.c.b16 %v1063, %v1057
    %v1520 = vpack.c.b16 %v1064, %v1058
    %v1521 = vpack.c.b16 %v1065, %v1059
    %v1522 = vpack.c.b16 %v1066, %v1060
    %v1523 = vpack.c.b16 %v1067, %v1061
    %v1524 = vpack.c.b16 %v1074, %v1068
    %v1525 = vpack.c.b16 %v1075, %v1069
    %v1526 = vpack.c.b16 %v1076, %v1070
    %v1527 = vpack.c.b16 %v1077, %v1071
    %v1528 = vpack.c.b16 %v1078, %v1072
    %v1529 = vpack.c.b16 %v1079, %v1073
    %v1530 = vpack.c.b16 %v1086, %v1080
    %v1531 = vpack.c.b16 %v1087, %v1081
    %v1532 = vpack.c.b16 %v1088, %v1082
    %v1533 = vpack.c.b16 %v1089, %v1083
    %v1534 = vpack.c.b16 %v1090, %v1084
    %v1535 = vpack.c.b16 %v1091, %v1085
    %v1536 = vpack.c.b16 %v1098, %v1092
    %v1537 = vpack.c.b16 %v1099, %v1093
    %v1538 = vpack.c.b16 %v1100, %v1094
    %v1539 = vpack.c.b16 %v1101, %v1095
    %v1540 = vpack.c.b16 %v1102, %v1096
    %v1541 = vpack.c.b16 %v1103, %v1097
    %v1542 = vpack.c.b16 %v1110, %v1104
    %v1543 = vpack.c.b16 %v1111, %v1105
    %v1544 = vpack.c.b16 %v1112, %v1106
    %v1545 = vpack.c.b16 %v1113, %v1107
    %v1546 = vpack.c.b16 %v1114, %v1108
    %v1547 = vpack.c.b16 %v1115, %v1109
    %v1548 = vpack.c.b16 %v1122, %v1116
    %v1549 = vpack.c.b16 %v1123, %v1117
    %v1550 = vpack.c.b16 %v1124, %v1118
    %v1551 = vpack.c.b16 %v1125, %v1119
    %v1552 = vpack.c.b16 %v1126, %v1120
    %v1553 = vpack.c.b16 %v1127, %v1121
    %v1554 = vpack.c.b16 %v1134, %v1128
    %v1555 = vpack.c.b16 %v1135, %v1129
    %v1556 = vpack.c.b16 %v1136, %v1130
    %v1557 = vpack.c.b16 %v1137, %v1131
    %v1558 = vpack.c.b16 %v1138, %v1132
    %v1559 = vpack.c.b16 %v1139, %v1133
    %v1560 = vpack.c.b16 %v1146, %v1140
    %v1561 = vpack.c.b16 %v1147, %v1141
    %v1562 = vpack.c.b16 %v1148, %v1142
    %v1563 = vpack.c.b16 %v1149, %v1143
    %v1564 = vpack.c.b16 %v1150, %v1144
    %v1565 = vpack.c.b16 %v1151, %v1145
    %v1566 = vpack.c.b16 %v1158, %v1152
    %v1567 = vpack.c.b16 %v1159, %v1153
    %v1568 = vpack.c.b16 %v1160, %v1154
    %v1569 = vpack.c.b16 %v1161, %v1155
    %v1570 = vpack.c.b16 %v1162, %v1156
    %v1571 = vpack.c.b16 %v1163, %v1157
    %v1572 = vpack.c.b16 %v1170, %v1164
    %v1573 = vpack.c.b16 %v1171, %v1165
    %v1574 = vpack.c.b16 %v1172, %v1166
    %v1575 = vpack.c.b16 %v1173, %v1167
    %v1576 = vpack.c.b16 %v1174, %v1168
    %v1577 = vpack.c.b16 %v1175, %v1169
    %v1578 = vpack.c.b16 %v1182, %v1176
    %v1579 = vpack.c.b16 %v1183, %v1177
    %v1580 = vpack.c.b16 %v1184, %v1178
    %v1581 = vpack.c.b16 %v1185, %v1179
    %v1582 = vpack.c.b16 %v1186, %v1180
    %v1583 = vpack.c.b16 %v1187, %v1181
    %v1584 = vpack.c.b16 %v1194, %v1188
    %v1585 = vpack.c.b16 %v1195, %v1189
    %v1586 = vpack.c.b16 %v1196, %v1190
    %v1587 = vpack.c.b16 %v1197, %v1191
    %v1588 = vpack.c.b16 %v1198, %v1192
    %v1589 = vpack.c.b16 %v1199, %v1193
    %v1590 = vpack.c.b16 %v1206, %v1200
    %v1591 = vpack.c.b16 %v1207, %v1201
    %v1592 = vpack.c.b16 %v1208, %v1202
    %v1593 = vpack.c.b16 %v1209, %v1203
    %v1594 = vpack.c.b16 %v1210, %v1204
    %v1595 = vpack.c.b16 %v1211, %v1205
    %v1596 = vpack.c.b16 %v1218, %v1212
    %v1597 = vpack.c.b16 %v1219, %v1213
    %v1598 = vpack.c.b16 %v1220, %v1214
    %v1599 = vpack.c.b16 %v1221, %v1215
    %v1600 = vpack.c.b16 %v1222, %v1216
    %v1601 = vpack.c.b16 %v1223, %v1217
    %v1602 = vpack.c.b16 %v1230, %v1224
    %v1603 = vpack.c.b16 %v1231, %v1225
    %v1604 = vpack.c.b16 %v1232, %v1226
    %v1605 = vpack.c.b16 %v1233, %v1227
    %v1606 = vpack.c.b16 %v1234, %v1228
    %v1607 = vpack.c.b16 %v1235, %v1229
    %v1608 = vpack.c.b16 %v1242, %v1236
    %v1609 = vpack.c.b16 %v1243, %v1237
    %v1610 = vpack.c.b16 %v1244, %v1238
    %v1611 = vpack.c.b16 %v1245, %v1239
    %v1612 = vpack.c.b16 %v1246, %v1240
    %v1613 = vpack.c.b16 %v1247, %v1241
    %v1614 = vpack.c.b16 %v1254, %v1248
    %v1615 = vpack.c.b16 %v1255, %v1249
    %v1616 = vpack.c.b16 %v1256, %v1250
    %v1617 = vpack.c.b16 %v1257, %v1251
    %v1618 = vpack.c.b16 %v1258, %v1252
    %v1619 = vpack.c.b16 %v1259, %v1253
    %v1620 = vpack.c.b16 %v1266, %v1260
    %v1621 = vpack.c.b16 %v1267, %v1261
    %v1622 = vpack.c.b16 %v1268, %v1262
    %v1623 = vpack.c.b16 %v1269, %v1263
    %v1624 = vpack.c.b16 %v1270, %v1264
    %v1625 = vpack.c.b16 %v1271, %v1265
    %v1626 = vpack.c.b16 %v1278, %v1272
    %v1627 = vpack.c.b16 %v1279, %v1273
    %v1628 = vpack.c.b16 %v1280, %v1274
    %v1629 = vpack.c.b16 %v1281, %v1275
    %v1630 = vpack.c.b16 %v1282, %v1276
    %v1631 = vpack.c.b16 %v1283, %v1277
    %v1632 = vpack.c.b16 %v1290, %v1284
    %v1633 = vpack.c.b16 %v1291, %v1285
    %v1634 = vpack.c.b16 %v1292, %v1286
    %v1635 = vpack.c.b16 %v1293, %v1287
    %v1636 = vpack.c.b16 %v1294, %v1288
    %v1637 = vpack.c.b16 %v1295, %v1289
    %v1638 = vpack.c.b16 %v1302, %v1296
    %v1639 = vpack.c.b16 %v1303, %v1297
    %v1640 = vpack.c.b16 %v1304, %v1298
    %v1641 = vpack.c.b16 %v1305, %v1299
    %v1642 = vpack.c.b16 %v1306, %v1300
    %v1643 = vpack.c.b16 %v1307, %v1301
    %v1644 = vpack.c.b16 %v1314, %v1308
    %v1645 = vpack.c.b16 %v1315, %v1309
    %v1646 = vpack.c.b16 %v1316, %v1310
    %v1647 = vpack.c.b16 %v1317, %v1311
    %v1648 = vpack.c.b16 %v1318, %v1312
    %v1649 = vpack.c.b16 %v1319, %v1313
    %v1650 = vpack.c.b16 %v1326, %v1320
    %v1651 = vpack.c.b16 %v1327, %v1321
    %v1652 = vpack.c.b16 %v1328, %v1322
    %v1653 = vpack.c.b16 %v1329, %v1323
    %v1654 = vpack.c.b16 %v1330, %v1324
    %v1655 = vpack.c.b16 %v1331, %v1325
    %v1656 = vpack.c.b16 %v1338, %v1332
    %v1657 = vpack.c.b16 %v1339, %v1333
    %v1658 = vpack.c.b16 %v1340, %v1334
    %v1659 = vpack.c.b16 %v1341, %v1335
    %v1660 = vpack.c.b16 %v1342, %v1336
    %v1661 = vpack.c.b16 %v1343, %v1337
    %v1662 = vpack.c.b16 %v1350, %v1344
    %v1663 = vpack.c.b16 %v1351, %v1345
    %v1664 = vpack.c.b16 %v1352, %v1346
    %v1665 = vpack.c.b16 %v1353, %v1347
    %v1666 = vpack.c.b16 %v1354, %v1348
    %v1667 = vpack.c.b16 %v1355, %v1349
    %v1668 = vpack.c.b16 %v1362, %v1356
    %v1669 = vpack.c.b16 %v1363, %v1357
    %v1670 = vpack.c.b16 %v1364, %v1358
    %v1671 = vpack.c.b16 %v1365, %v1359
    %v1672 = vpack.c.b16 %v1366, %v1360
    %v1673 = vpack.c.b16 %v1367, %v1361
    %v1674 = vpack.c.b16 %v1374, %v1368
    %v1675 = vpack.c.b16 %v1375, %v1369
    %v1676 = vpack.c.b16 %v1376, %v1370
    %v1677 = vpack.c.b16 %v1377, %v1371
    %v1678 = vpack.c.b16 %v1378, %v1372
    %v1679 = vpack.c.b16 %v1379, %v1373
    %v1680 = vpack.c.b16 %v1386, %v1380
    %v1681 = vpack.c.b16 %v1387, %v1381
    %v1682 = vpack.c.b16 %v1388, %v1382
    %v1683 = vpack.c.b16 %v1389, %v1383
    %v1684 = vpack.c.b16 %v1390, %v1384
    %v1685 = vpack.c.b16 %v1391, %v1385
    %v1686 = vpack.c.b16 %v1398, %v1392
    %v1687 = vpack.c.b16 %v1399, %v1393
    %v1688 = vpack.c.b16 %v1400, %v1394
    %v1689 = vpack.c.b16 %v1401, %v1395
    %v1690 = vpack.c.b16 %v1402, %v1396
    %v1691 = vpack.c.b16 %v1403, %v1397
    %1980 = vmatpush.bf16.msra.mxu0 %v1446
    %1981 = vmatpush.bf16.msra.mxu0 %v1440
    %1982 = vmatpush.bf16.msra.mxu0 %v1434
    %1983 = vmatpush.bf16.msra.mxu0 %v1428
    %1984 = vmatpush.bf16.msra.mxu0 %v1422
    %1985 = vmatpush.bf16.msra.mxu0 %v1416
    %1986 = vmatpush.bf16.msra.mxu0 %v1410
    %1987 = vmatpush.bf16.msra.mxu0 %v1404
    %1988 = vmatmul.bf16.gmra.mxu0 %v528
    %v1989 = vpop.f32.mrf.mxu0
    %v1990 = vadd.f32 %v498, %v1989
    %v1991 = vpop.f32.mrf.mxu0
    %v1992 = vadd.f32 %v498, %v1991
    %1993 = vdwg.mxu0
    %1994 = vmatpush.bf16.msra.mxu0 %v1494
    %1995 = vmatpush.bf16.msra.mxu0 %v1488
    %1996 = vmatpush.bf16.msra.mxu0 %v1482
    %1997 = vmatpush.bf16.msra.mxu0 %v1476
    %1998 = vmatpush.bf16.msra.mxu0 %v1470
    %1999 = vmatpush.bf16.msra.mxu0 %v1464
    %2000 = vmatpush.bf16.msra.mxu0 %v1458
    %2001 = vmatpush.bf16.msra.mxu0 %v1452
    %2002 = vmatmul.bf16.gmra.mxu0 %v529
    %v2003 = vpop.f32.mrf.mxu0
    %v2004 = vadd.f32 %v1990, %v2003
    %v2005 = vpop.f32.mrf.mxu0
    %v2006 = vadd.f32 %v1992, %v2005
    %2007 = vdwg.mxu0
    %2008 = vmatpush.bf16.msra.mxu0 %v1542
    %2009 = vmatpush.bf16.msra.mxu0 %v1536
    %2010 = vmatpush.bf16.msra.mxu0 %v1530
    %2011 = vmatpush.bf16.msra.mxu0 %v1524
    %2012 = vmatpush.bf16.msra.mxu0 %v1518
    %2013 = vmatpush.bf16.msra.mxu0 %v1512
    %2014 = vmatpush.bf16.msra.mxu0 %v1506
    %2015 = vmatpush.bf16.msra.mxu0 %v1500
    %2016 = vmatmul.bf16.gmra.mxu0 %v530
    %v2017 = vpop.f32.mrf.mxu0
    %v2018 = vadd.f32 %v2004, %v2017
    %v2019 = vpop.f32.mrf.mxu0
    %v2020 = vadd.f32 %v2006, %v2019
    %2021 = vdwg.mxu0
    %2022 = vmatpush.bf16.msra.mxu0 %v1590
    %2023 = vmatpush.bf16.msra.mxu0 %v1584
    %2024 = vmatpush.bf16.msra.mxu0 %v1578
    %2025 = vmatpush.bf16.msra.mxu0 %v1572
    %2026 = vmatpush.bf16.msra.mxu0 %v1566
    %2027 = vmatpush.bf16.msra.mxu0 %v1560
    %2028 = vmatpush.bf16.msra.mxu0 %v1554
    %2029 = vmatpush.bf16.msra.mxu0 %v1548
    %2030 = vmatmul.bf16.gmra.mxu0 %v531
    %v2031 = vpop.f32.mrf.mxu0
    %v2032 = vadd.f32 %v2018, %v2031
    %v2033 = vpop.f32.mrf.mxu0
    %v2034 = vadd.f32 %v2020, %v2033
    %2035 = vdwg.mxu0
    %2036 = vmatpush.bf16.msra.mxu0 %v1638
    %2037 = vmatpush.bf16.msra.mxu0 %v1632
    %2038 = vmatpush.bf16.msra.mxu0 %v1626
    %2039 = vmatpush.bf16.msra.mxu0 %v1620
    %2040 = vmatpush.bf16.msra.mxu0 %v1614
    %2041 = vmatpush.bf16.msra.mxu0 %v1608
    %2042 = vmatpush.bf16.msra.mxu0 %v1602
    %2043 = vmatpush.bf16.msra.mxu0 %v1596
    %2044 = vmatmul.bf16.gmra.mxu0 %v532
    %v2045 = vpop.f32.mrf.mxu0
    %v2046 = vadd.f32 %v2032, %v2045
    %v2047 = vpop.f32.mrf.mxu0
    %v2048 = vadd.f32 %v2034, %v2047
    %2049 = vdwg.mxu0
    %2050 = vmatpush.bf16.msra.mxu0 %v1686
    %2051 = vmatpush.bf16.msra.mxu0 %v1680
    %2052 = vmatpush.bf16.msra.mxu0 %v1674
    %2053 = vmatpush.bf16.msra.mxu0 %v1668
    %2054 = vmatpush.bf16.msra.mxu0 %v1662
    %2055 = vmatpush.bf16.msra.mxu0 %v1656
    %2056 = vmatpush.bf16.msra.mxu0 %v1650
    %2057 = vmatpush.bf16.msra.mxu0 %v1644
    %2058 = vmatmul.bf16.gmra.mxu0 %v533
    %v2059 = vpop.f32.mrf.mxu0
    %v2060 = vadd.f32 %v2046, %v2059
    %v2061 = vpop.f32.mrf.mxu0
    %v2062 = vadd.f32 %v2048, %v2061
    %2063 = vdwg.mxu0
    %2064 = vmatpush.bf16.msra.mxu0 %v1447
    %2065 = vmatpush.bf16.msra.mxu0 %v1441
    %2066 = vmatpush.bf16.msra.mxu0 %v1435
    %2067 = vmatpush.bf16.msra.mxu0 %v1429
    %2068 = vmatpush.bf16.msra.mxu0 %v1423
    %2069 = vmatpush.bf16.msra.mxu0 %v1417
    %2070 = vmatpush.bf16.msra.mxu0 %v1411
    %2071 = vmatpush.bf16.msra.mxu0 %v1405
    %2072 = vmatmul.bf16.gmra.mxu0 %v528
    %v2073 = vpop.f32.mrf.mxu0
    %v2074 = vadd.f32 %v499, %v2073
    %v2075 = vpop.f32.mrf.mxu0
    %v2076 = vadd.f32 %v499, %v2075
    %2077 = vdwg.mxu0
    %2078 = vmatpush.bf16.msra.mxu0 %v1495
    %2079 = vmatpush.bf16.msra.mxu0 %v1489
    %2080 = vmatpush.bf16.msra.mxu0 %v1483
    %2081 = vmatpush.bf16.msra.mxu0 %v1477
    %2082 = vmatpush.bf16.msra.mxu0 %v1471
    %2083 = vmatpush.bf16.msra.mxu0 %v1465
    %2084 = vmatpush.bf16.msra.mxu0 %v1459
    %2085 = vmatpush.bf16.msra.mxu0 %v1453
    %2086 = vmatmul.bf16.gmra.mxu0 %v529
    %v2087 = vpop.f32.mrf.mxu0
    %v2088 = vadd.f32 %v2074, %v2087
    %v2089 = vpop.f32.mrf.mxu0
    %v2090 = vadd.f32 %v2076, %v2089
    %2091 = vdwg.mxu0
    %2092 = vmatpush.bf16.msra.mxu0 %v1543
    %2093 = vmatpush.bf16.msra.mxu0 %v1537
    %2094 = vmatpush.bf16.msra.mxu0 %v1531
    %2095 = vmatpush.bf16.msra.mxu0 %v1525
    %2096 = vmatpush.bf16.msra.mxu0 %v1519
    %2097 = vmatpush.bf16.msra.mxu0 %v1513
    %2098 = vmatpush.bf16.msra.mxu0 %v1507
    %2099 = vmatpush.bf16.msra.mxu0 %v1501
    %2100 = vmatmul.bf16.gmra.mxu0 %v530
    %v2101 = vpop.f32.mrf.mxu0
    %v2102 = vadd.f32 %v2088, %v2101
    %v2103 = vpop.f32.mrf.mxu0
    %v2104 = vadd.f32 %v2090, %v2103
    %2105 = vdwg.mxu0
    %2106 = vmatpush.bf16.msra.mxu0 %v1591
    %2107 = vmatpush.bf16.msra.mxu0 %v1585
    %2108 = vmatpush.bf16.msra.mxu0 %v1579
    %2109 = vmatpush.bf16.msra.mxu0 %v1573
    %2110 = vmatpush.bf16.msra.mxu0 %v1567
    %2111 = vmatpush.bf16.msra.mxu0 %v1561
    %2112 = vmatpush.bf16.msra.mxu0 %v1555
    %2113 = vmatpush.bf16.msra.mxu0 %v1549
    %2114 = vmatmul.bf16.gmra.mxu0 %v531
    %v2115 = vpop.f32.mrf.mxu0
    %v2116 = vadd.f32 %v2102, %v2115
    %v2117 = vpop.f32.mrf.mxu0
    %v2118 = vadd.f32 %v2104, %v2117
    %2119 = vdwg.mxu0
    %2120 = vmatpush.bf16.msra.mxu0 %v1639
    %2121 = vmatpush.bf16.msra.mxu0 %v1633
    %2122 = vmatpush.bf16.msra.mxu0 %v1627
    %2123 = vmatpush.bf16.msra.mxu0 %v1621
    %2124 = vmatpush.bf16.msra.mxu0 %v1615
    %2125 = vmatpush.bf16.msra.mxu0 %v1609
    %2126 = vmatpush.bf16.msra.mxu0 %v1603
    %2127 = vmatpush.bf16.msra.mxu0 %v1597
    %2128 = vmatmul.bf16.gmra.mxu0 %v532
    %v2129 = vpop.f32.mrf.mxu0
    %v2130 = vadd.f32 %v2116, %v2129
    %v2131 = vpop.f32.mrf.mxu0
    %v2132 = vadd.f32 %v2118, %v2131
    %2133 = vdwg.mxu0
    %2134 = vmatpush.bf16.msra.mxu0 %v1687
    %2135 = vmatpush.bf16.msra.mxu0 %v1681
    %2136 = vmatpush.bf16.msra.mxu0 %v1675
    %2137 = vmatpush.bf16.msra.mxu0 %v1669
    %2138 = vmatpush.bf16.msra.mxu0 %v1663
    %2139 = vmatpush.bf16.msra.mxu0 %v1657
    %2140 = vmatpush.bf16.msra.mxu0 %v1651
    %2141 = vmatpush.bf16.msra.mxu0 %v1645
    %2142 = vmatmul.bf16.gmra.mxu0 %v533
    %v2143 = vpop.f32.mrf.mxu0
    %v2144 = vadd.f32 %v2130, %v2143
    %v2145 = vpop.f32.mrf.mxu0
    %v2146 = vadd.f32 %v2132, %v2145
    %2147 = vdwg.mxu0
    %2148 = vmatpush.bf16.msra.mxu0 %v1448
    %2149 = vmatpush.bf16.msra.mxu0 %v1442
    %2150 = vmatpush.bf16.msra.mxu0 %v1436
    %2151 = vmatpush.bf16.msra.mxu0 %v1430
    %2152 = vmatpush.bf16.msra.mxu0 %v1424
    %2153 = vmatpush.bf16.msra.mxu0 %v1418
    %2154 = vmatpush.bf16.msra.mxu0 %v1412
    %2155 = vmatpush.bf16.msra.mxu0 %v1406
    %2156 = vmatmul.bf16.gmra.mxu0 %v528
    %v2157 = vpop.f32.mrf.mxu0
    %v2158 = vadd.f32 %v500, %v2157
    %v2159 = vpop.f32.mrf.mxu0
    %v2160 = vadd.f32 %v500, %v2159
    %2161 = vdwg.mxu0
    %2162 = vmatpush.bf16.msra.mxu0 %v1496
    %2163 = vmatpush.bf16.msra.mxu0 %v1490
    %2164 = vmatpush.bf16.msra.mxu0 %v1484
    %2165 = vmatpush.bf16.msra.mxu0 %v1478
    %2166 = vmatpush.bf16.msra.mxu0 %v1472
    %2167 = vmatpush.bf16.msra.mxu0 %v1466
    %2168 = vmatpush.bf16.msra.mxu0 %v1460
    %2169 = vmatpush.bf16.msra.mxu0 %v1454
    %2170 = vmatmul.bf16.gmra.mxu0 %v529
    %v2171 = vpop.f32.mrf.mxu0
    %v2172 = vadd.f32 %v2158, %v2171
    %v2173 = vpop.f32.mrf.mxu0
    %v2174 = vadd.f32 %v2160, %v2173
    %2175 = vdwg.mxu0
    %2176 = vmatpush.bf16.msra.mxu0 %v1544
    %2177 = vmatpush.bf16.msra.mxu0 %v1538
    %2178 = vmatpush.bf16.msra.mxu0 %v1532
    %2179 = vmatpush.bf16.msra.mxu0 %v1526
    %2180 = vmatpush.bf16.msra.mxu0 %v1520
    %2181 = vmatpush.bf16.msra.mxu0 %v1514
    %2182 = vmatpush.bf16.msra.mxu0 %v1508
    %2183 = vmatpush.bf16.msra.mxu0 %v1502
    %2184 = vmatmul.bf16.gmra.mxu0 %v530
    %v2185 = vpop.f32.mrf.mxu0
    %v2186 = vadd.f32 %v2172, %v2185
    %v2187 = vpop.f32.mrf.mxu0
    %v2188 = vadd.f32 %v2174, %v2187
    %2189 = vdwg.mxu0
    %2190 = vmatpush.bf16.msra.mxu0 %v1592
    %2191 = vmatpush.bf16.msra.mxu0 %v1586
    %2192 = vmatpush.bf16.msra.mxu0 %v1580
    %2193 = vmatpush.bf16.msra.mxu0 %v1574
    %2194 = vmatpush.bf16.msra.mxu0 %v1568
    %2195 = vmatpush.bf16.msra.mxu0 %v1562
    %2196 = vmatpush.bf16.msra.mxu0 %v1556
    %2197 = vmatpush.bf16.msra.mxu0 %v1550
    %2198 = vmatmul.bf16.gmra.mxu0 %v531
    %v2199 = vpop.f32.mrf.mxu0
    %v2200 = vadd.f32 %v2186, %v2199
    %v2201 = vpop.f32.mrf.mxu0
    %v2202 = vadd.f32 %v2188, %v2201
    %2203 = vdwg.mxu0
    %2204 = vmatpush.bf16.msra.mxu0 %v1640
    %2205 = vmatpush.bf16.msra.mxu0 %v1634
    %2206 = vmatpush.bf16.msra.mxu0 %v1628
    %2207 = vmatpush.bf16.msra.mxu0 %v1622
    %2208 = vmatpush.bf16.msra.mxu0 %v1616
    %2209 = vmatpush.bf16.msra.mxu0 %v1610
    %2210 = vmatpush.bf16.msra.mxu0 %v1604
    %2211 = vmatpush.bf16.msra.mxu0 %v1598
    %2212 = vmatmul.bf16.gmra.mxu0 %v532
    %v2213 = vpop.f32.mrf.mxu0
    %v2214 = vadd.f32 %v2200, %v2213
    %v2215 = vpop.f32.mrf.mxu0
    %v2216 = vadd.f32 %v2202, %v2215
    %2217 = vdwg.mxu0
    %2218 = vmatpush.bf16.msra.mxu0 %v1688
    %2219 = vmatpush.bf16.msra.mxu0 %v1682
    %2220 = vmatpush.bf16.msra.mxu0 %v1676
    %2221 = vmatpush.bf16.msra.mxu0 %v1670
    %2222 = vmatpush.bf16.msra.mxu0 %v1664
    %2223 = vmatpush.bf16.msra.mxu0 %v1658
    %2224 = vmatpush.bf16.msra.mxu0 %v1652
    %2225 = vmatpush.bf16.msra.mxu0 %v1646
    %2226 = vmatmul.bf16.gmra.mxu0 %v533
    %v2227 = vpop.f32.mrf.mxu0
    %v2228 = vadd.f32 %v2214, %v2227
    %v2229 = vpop.f32.mrf.mxu0
    %v2230 = vadd.f32 %v2216, %v2229
    %2231 = vdwg.mxu0
    %2232 = vmatpush.bf16.msra.mxu0 %v1449
    %2233 = vmatpush.bf16.msra.mxu0 %v1443
    %2234 = vmatpush.bf16.msra.mxu0 %v1437
    %2235 = vmatpush.bf16.msra.mxu0 %v1431
    %2236 = vmatpush.bf16.msra.mxu0 %v1425
    %2237 = vmatpush.bf16.msra.mxu0 %v1419
    %2238 = vmatpush.bf16.msra.mxu0 %v1413
    %2239 = vmatpush.bf16.msra.mxu0 %v1407
    %2240 = vmatmul.bf16.gmra.mxu0 %v528
    %v2241 = vpop.f32.mrf.mxu0
    %v2242 = vadd.f32 %v501, %v2241
    %v2243 = vpop.f32.mrf.mxu0
    %v2244 = vadd.f32 %v501, %v2243
    %2245 = vdwg.mxu0
    %2246 = vmatpush.bf16.msra.mxu0 %v1497
    %2247 = vmatpush.bf16.msra.mxu0 %v1491
    %2248 = vmatpush.bf16.msra.mxu0 %v1485
    %2249 = vmatpush.bf16.msra.mxu0 %v1479
    %2250 = vmatpush.bf16.msra.mxu0 %v1473
    %2251 = vmatpush.bf16.msra.mxu0 %v1467
    %2252 = vmatpush.bf16.msra.mxu0 %v1461
    %2253 = vmatpush.bf16.msra.mxu0 %v1455
    %2254 = vmatmul.bf16.gmra.mxu0 %v529
    %v2255 = vpop.f32.mrf.mxu0
    %v2256 = vadd.f32 %v2242, %v2255
    %v2257 = vpop.f32.mrf.mxu0
    %v2258 = vadd.f32 %v2244, %v2257
    %2259 = vdwg.mxu0
    %2260 = vmatpush.bf16.msra.mxu0 %v1545
    %2261 = vmatpush.bf16.msra.mxu0 %v1539
    %2262 = vmatpush.bf16.msra.mxu0 %v1533
    %2263 = vmatpush.bf16.msra.mxu0 %v1527
    %2264 = vmatpush.bf16.msra.mxu0 %v1521
    %2265 = vmatpush.bf16.msra.mxu0 %v1515
    %2266 = vmatpush.bf16.msra.mxu0 %v1509
    %2267 = vmatpush.bf16.msra.mxu0 %v1503
    %2268 = vmatmul.bf16.gmra.mxu0 %v530
    %v2269 = vpop.f32.mrf.mxu0
    %v2270 = vadd.f32 %v2256, %v2269
    %v2271 = vpop.f32.mrf.mxu0
    %v2272 = vadd.f32 %v2258, %v2271
    %2273 = vdwg.mxu0
    %2274 = vmatpush.bf16.msra.mxu0 %v1593
    %2275 = vmatpush.bf16.msra.mxu0 %v1587
    %2276 = vmatpush.bf16.msra.mxu0 %v1581
    %2277 = vmatpush.bf16.msra.mxu0 %v1575
    %2278 = vmatpush.bf16.msra.mxu0 %v1569
    %2279 = vmatpush.bf16.msra.mxu0 %v1563
    %2280 = vmatpush.bf16.msra.mxu0 %v1557
    %2281 = vmatpush.bf16.msra.mxu0 %v1551
    %2282 = vmatmul.bf16.gmra.mxu0 %v531
    %v2283 = vpop.f32.mrf.mxu0
    %v2284 = vadd.f32 %v2270, %v2283
    %v2285 = vpop.f32.mrf.mxu0
    %v2286 = vadd.f32 %v2272, %v2285
    %2287 = vdwg.mxu0
    %2288 = vmatpush.bf16.msra.mxu0 %v1641
    %2289 = vmatpush.bf16.msra.mxu0 %v1635
    %2290 = vmatpush.bf16.msra.mxu0 %v1629
    %2291 = vmatpush.bf16.msra.mxu0 %v1623
    %2292 = vmatpush.bf16.msra.mxu0 %v1617
    %2293 = vmatpush.bf16.msra.mxu0 %v1611
    %2294 = vmatpush.bf16.msra.mxu0 %v1605
    %2295 = vmatpush.bf16.msra.mxu0 %v1599
    %2296 = vmatmul.bf16.gmra.mxu0 %v532
    %v2297 = vpop.f32.mrf.mxu0
    %v2298 = vadd.f32 %v2284, %v2297
    %v2299 = vpop.f32.mrf.mxu0
    %v2300 = vadd.f32 %v2286, %v2299
    %2301 = vdwg.mxu0
    %2302 = vmatpush.bf16.msra.mxu0 %v1689
    %2303 = vmatpush.bf16.msra.mxu0 %v1683
    %2304 = vmatpush.bf16.msra.mxu0 %v1677
    %2305 = vmatpush.bf16.msra.mxu0 %v1671
    %2306 = vmatpush.bf16.msra.mxu0 %v1665
    %2307 = vmatpush.bf16.msra.mxu0 %v1659
    %2308 = vmatpush.bf16.msra.mxu0 %v1653
    %2309 = vmatpush.bf16.msra.mxu0 %v1647
    %2310 = vmatmul.bf16.gmra.mxu0 %v533
    %v2311 = vpop.f32.mrf.mxu0
    %v2312 = vadd.f32 %v2298, %v2311
    %v2313 = vpop.f32.mrf.mxu0
    %v2314 = vadd.f32 %v2300, %v2313
    %2315 = vdwg.mxu0
    %2316 = vmatpush.bf16.msra.mxu0 %v1450
    %2317 = vmatpush.bf16.msra.mxu0 %v1444
    %2318 = vmatpush.bf16.msra.mxu0 %v1438
    %2319 = vmatpush.bf16.msra.mxu0 %v1432
    %2320 = vmatpush.bf16.msra.mxu0 %v1426
    %2321 = vmatpush.bf16.msra.mxu0 %v1420
    %2322 = vmatpush.bf16.msra.mxu0 %v1414
    %2323 = vmatpush.bf16.msra.mxu0 %v1408
    %2324 = vmatmul.bf16.gmra.mxu0 %v528
    %v2325 = vpop.f32.mrf.mxu0
    %v2326 = vadd.f32 %v502, %v2325
    %v2327 = vpop.f32.mrf.mxu0
    %v2328 = vadd.f32 %v502, %v2327
    %2329 = vdwg.mxu0
    %2330 = vmatpush.bf16.msra.mxu0 %v1498
    %2331 = vmatpush.bf16.msra.mxu0 %v1492
    %2332 = vmatpush.bf16.msra.mxu0 %v1486
    %2333 = vmatpush.bf16.msra.mxu0 %v1480
    %2334 = vmatpush.bf16.msra.mxu0 %v1474
    %2335 = vmatpush.bf16.msra.mxu0 %v1468
    %2336 = vmatpush.bf16.msra.mxu0 %v1462
    %2337 = vmatpush.bf16.msra.mxu0 %v1456
    %2338 = vmatmul.bf16.gmra.mxu0 %v529
    %v2339 = vpop.f32.mrf.mxu0
    %v2340 = vadd.f32 %v2326, %v2339
    %v2341 = vpop.f32.mrf.mxu0
    %v2342 = vadd.f32 %v2328, %v2341
    %2343 = vdwg.mxu0
    %2344 = vmatpush.bf16.msra.mxu0 %v1546
    %2345 = vmatpush.bf16.msra.mxu0 %v1540
    %2346 = vmatpush.bf16.msra.mxu0 %v1534
    %2347 = vmatpush.bf16.msra.mxu0 %v1528
    %2348 = vmatpush.bf16.msra.mxu0 %v1522
    %2349 = vmatpush.bf16.msra.mxu0 %v1516
    %2350 = vmatpush.bf16.msra.mxu0 %v1510
    %2351 = vmatpush.bf16.msra.mxu0 %v1504
    %2352 = vmatmul.bf16.gmra.mxu0 %v530
    %v2353 = vpop.f32.mrf.mxu0
    %v2354 = vadd.f32 %v2340, %v2353
    %v2355 = vpop.f32.mrf.mxu0
    %v2356 = vadd.f32 %v2342, %v2355
    %2357 = vdwg.mxu0
    %2358 = vmatpush.bf16.msra.mxu0 %v1594
    %2359 = vmatpush.bf16.msra.mxu0 %v1588
    %2360 = vmatpush.bf16.msra.mxu0 %v1582
    %2361 = vmatpush.bf16.msra.mxu0 %v1576
    %2362 = vmatpush.bf16.msra.mxu0 %v1570
    %2363 = vmatpush.bf16.msra.mxu0 %v1564
    %2364 = vmatpush.bf16.msra.mxu0 %v1558
    %2365 = vmatpush.bf16.msra.mxu0 %v1552
    %2366 = vmatmul.bf16.gmra.mxu0 %v531
    %v2367 = vpop.f32.mrf.mxu0
    %v2368 = vadd.f32 %v2354, %v2367
    %v2369 = vpop.f32.mrf.mxu0
    %v2370 = vadd.f32 %v2356, %v2369
    %2371 = vdwg.mxu0
    %2372 = vmatpush.bf16.msra.mxu0 %v1642
    %2373 = vmatpush.bf16.msra.mxu0 %v1636
    %2374 = vmatpush.bf16.msra.mxu0 %v1630
    %2375 = vmatpush.bf16.msra.mxu0 %v1624
    %2376 = vmatpush.bf16.msra.mxu0 %v1618
    %2377 = vmatpush.bf16.msra.mxu0 %v1612
    %2378 = vmatpush.bf16.msra.mxu0 %v1606
    %2379 = vmatpush.bf16.msra.mxu0 %v1600
    %2380 = vmatmul.bf16.gmra.mxu0 %v532
    %v2381 = vpop.f32.mrf.mxu0
    %v2382 = vadd.f32 %v2368, %v2381
    %v2383 = vpop.f32.mrf.mxu0
    %v2384 = vadd.f32 %v2370, %v2383
    %2385 = vdwg.mxu0
    %2386 = vmatpush.bf16.msra.mxu0 %v1690
    %2387 = vmatpush.bf16.msra.mxu0 %v1684
    %2388 = vmatpush.bf16.msra.mxu0 %v1678
    %2389 = vmatpush.bf16.msra.mxu0 %v1672
    %2390 = vmatpush.bf16.msra.mxu0 %v1666
    %2391 = vmatpush.bf16.msra.mxu0 %v1660
    %2392 = vmatpush.bf16.msra.mxu0 %v1654
    %2393 = vmatpush.bf16.msra.mxu0 %v1648
    %2394 = vmatmul.bf16.gmra.mxu0 %v533
    %v2395 = vpop.f32.mrf.mxu0
    %v2396 = vadd.f32 %v2382, %v2395
    %v2397 = vpop.f32.mrf.mxu0
    %v2398 = vadd.f32 %v2384, %v2397
    %2399 = vdwg.mxu0
    %2400 = vmatpush.bf16.msra.mxu0 %v1451
    %2401 = vmatpush.bf16.msra.mxu0 %v1445
    %2402 = vmatpush.bf16.msra.mxu0 %v1439
    %2403 = vmatpush.bf16.msra.mxu0 %v1433
    %2404 = vmatpush.bf16.msra.mxu0 %v1427
    %2405 = vmatpush.bf16.msra.mxu0 %v1421
    %2406 = vmatpush.bf16.msra.mxu0 %v1415
    %2407 = vmatpush.bf16.msra.mxu0 %v1409
    %2408 = vmatmul.bf16.gmra.mxu0 %v528
    %v2409 = vpop.f32.mrf.mxu0
    %v2410 = vadd.f32 %v503, %v2409
    %v2411 = vpop.f32.mrf.mxu0
    %v2412 = vadd.f32 %v503, %v2411
    %2413 = vdwg.mxu0
    %2414 = vmatpush.bf16.msra.mxu0 %v1499
    %2415 = vmatpush.bf16.msra.mxu0 %v1493
    %2416 = vmatpush.bf16.msra.mxu0 %v1487
    %2417 = vmatpush.bf16.msra.mxu0 %v1481
    %2418 = vmatpush.bf16.msra.mxu0 %v1475
    %2419 = vmatpush.bf16.msra.mxu0 %v1469
    %2420 = vmatpush.bf16.msra.mxu0 %v1463
    %2421 = vmatpush.bf16.msra.mxu0 %v1457
    %2422 = vmatmul.bf16.gmra.mxu0 %v529
    %v2423 = vpop.f32.mrf.mxu0
    %v2424 = vadd.f32 %v2410, %v2423
    %v2425 = vpop.f32.mrf.mxu0
    %v2426 = vadd.f32 %v2412, %v2425
    %2427 = vdwg.mxu0
    %2428 = vmatpush.bf16.msra.mxu0 %v1547
    %2429 = vmatpush.bf16.msra.mxu0 %v1541
    %2430 = vmatpush.bf16.msra.mxu0 %v1535
    %2431 = vmatpush.bf16.msra.mxu0 %v1529
    %2432 = vmatpush.bf16.msra.mxu0 %v1523
    %2433 = vmatpush.bf16.msra.mxu0 %v1517
    %2434 = vmatpush.bf16.msra.mxu0 %v1511
    %2435 = vmatpush.bf16.msra.mxu0 %v1505
    %2436 = vmatmul.bf16.gmra.mxu0 %v530
    %v2437 = vpop.f32.mrf.mxu0
    %v2438 = vadd.f32 %v2424, %v2437
    %v2439 = vpop.f32.mrf.mxu0
    %v2440 = vadd.f32 %v2426, %v2439
    %2441 = vdwg.mxu0
    %2442 = vmatpush.bf16.msra.mxu0 %v1595
    %2443 = vmatpush.bf16.msra.mxu0 %v1589
    %2444 = vmatpush.bf16.msra.mxu0 %v1583
    %2445 = vmatpush.bf16.msra.mxu0 %v1577
    %2446 = vmatpush.bf16.msra.mxu0 %v1571
    %2447 = vmatpush.bf16.msra.mxu0 %v1565
    %2448 = vmatpush.bf16.msra.mxu0 %v1559
    %2449 = vmatpush.bf16.msra.mxu0 %v1553
    %2450 = vmatmul.bf16.gmra.mxu0 %v531
    %v2451 = vpop.f32.mrf.mxu0
    %v2452 = vadd.f32 %v2438, %v2451
    %v2453 = vpop.f32.mrf.mxu0
    %v2454 = vadd.f32 %v2440, %v2453
    %2455 = vdwg.mxu0
    %2456 = vmatpush.bf16.msra.mxu0 %v1643
    %2457 = vmatpush.bf16.msra.mxu0 %v1637
    %2458 = vmatpush.bf16.msra.mxu0 %v1631
    %2459 = vmatpush.bf16.msra.mxu0 %v1625
    %2460 = vmatpush.bf16.msra.mxu0 %v1619
    %2461 = vmatpush.bf16.msra.mxu0 %v1613
    %2462 = vmatpush.bf16.msra.mxu0 %v1607
    %2463 = vmatpush.bf16.msra.mxu0 %v1601
    %2464 = vmatmul.bf16.gmra.mxu0 %v532
    %v2465 = vpop.f32.mrf.mxu0
    %v2466 = vadd.f32 %v2452, %v2465
    %v2467 = vpop.f32.mrf.mxu0
    %v2468 = vadd.f32 %v2454, %v2467
    %2469 = vdwg.mxu0
    %2470 = vmatpush.bf16.msra.mxu0 %v1691
    %2471 = vmatpush.bf16.msra.mxu0 %v1685
    %2472 = vmatpush.bf16.msra.mxu0 %v1679
    %2473 = vmatpush.bf16.msra.mxu0 %v1673
    %2474 = vmatpush.bf16.msra.mxu0 %v1667
    %2475 = vmatpush.bf16.msra.mxu0 %v1661
    %2476 = vmatpush.bf16.msra.mxu0 %v1655
    %2477 = vmatpush.bf16.msra.mxu0 %v1649
    %2478 = vmatmul.bf16.gmra.mxu0 %v533
    %v2479 = vpop.f32.mrf.mxu0
    %v2480 = vadd.f32 %v2466, %v2479
    %v2481 = vpop.f32.mrf.mxu0
    %v2482 = vadd.f32 %v2468, %v2481
    %2483 = vdwg.mxu0
    %v2484 = vpack.c.bf16 %v2062, %v2060
    %v2485 = vpack.c.bf16 %v2146, %v2144
    %v2486 = vpack.c.bf16 %v2230, %v2228
    %v2487 = vpack.c.bf16 %v2314, %v2312
    %v2488 = vpack.c.bf16 %v2398, %v2396
    %v2489 = vpack.c.bf16 %v2482, %v2480
    %v2490 = vunpack.c.l.bf16 %v2484
    %v2491 = vunpack.c.l.bf16 %v2485
    %v2492 = vunpack.c.l.bf16 %v2486
    %v2493 = vunpack.c.l.bf16 %v2487
    %v2494 = vunpack.c.l.bf16 %v2488
    %v2495 = vunpack.c.l.bf16 %v2489
    %v2496 = vunpack.c.h.bf16 %v2484
    %v2497 = vunpack.c.h.bf16 %v2485
    %v2498 = vunpack.c.h.bf16 %v2486
    %v2499 = vunpack.c.h.bf16 %v2487
    %v2500 = vunpack.c.h.bf16 %v2488
    %v2501 = vunpack.c.h.bf16 %v2489
    %v2502 = vtanh.pop %v2490
    %v2503 = vtanh.pop %v2491
    %v2504 = vtanh.pop %v2492
    %v2505 = vtanh.pop %v2493
    %v2506 = vtanh.pop %v2494
    %v2507 = vtanh.pop %v2495
    %v2508 = vtanh.pop %v2496
    %v2509 = vtanh.pop %v2497
    %v2510 = vtanh.pop %v2498
    %v2511 = vtanh.pop %v2499
    %v2512 = vtanh.pop %v2500
    %v2513 = vtanh.pop %v2501
    %v2514 = vpack.c.bf16 %v2508, %v2502
    %v2515 = vpack.c.bf16 %v2509, %v2503
    %v2516 = vpack.c.bf16 %v2510, %v2504
    %v2517 = vpack.c.bf16 %v2511, %v2505
    %v2518 = vpack.c.bf16 %v2512, %v2506
    %v2519 = vpack.c.bf16 %v2513, %v2507
    %v2520 = vld [vmem:[#allocation10] sm:$0xff]
    %v2521 = vld [vmem:[#allocation10 + $0x8] sm:$0xff]
    %v2522 = vld [vmem:[#allocation10 + $0x10] sm:$0xff]
    %v2523 = vld [vmem:[#allocation10 + $0x18] sm:$0xff]
    %v2524 = vld [vmem:[#allocation10 + $0x20] sm:$0xff]
    %v2525 = vld [vmem:[#allocation10 + $0x28] sm:$0xff]
    %v2526 = vld [vmem:[#allocation10 + $0x30] sm:$0xff]
    %v2527 = vld [vmem:[#allocation10 + $0x38] sm:$0xff]
    %v2528 = vld [vmem:[#allocation10 + $0x40] sm:$0xff]
    %v2529 = vld [vmem:[#allocation10 + $0x48] sm:$0xff]
    %v2530 = vld [vmem:[#allocation10 + $0x50] sm:$0xff]
    %v2531 = vld [vmem:[#allocation10 + $0x58] sm:$0xff]
    %v2532 = vld [vmem:[#allocation10 + $0x60] sm:$0xff]
    %v2533 = vld [vmem:[#allocation10 + $0x68] sm:$0xff]
    %v2534 = vld [vmem:[#allocation10 + $0x70] sm:$0xff]
    %v2535 = vld [vmem:[#allocation10 + $0x78] sm:$0xff]
    %v2536 = vld [vmem:[#allocation10 + $0x80] sm:$0xff]
    %v2537 = vld [vmem:[#allocation10 + $0x88] sm:$0xff]
    %v2538 = vld [vmem:[#allocation10 + $0x90] sm:$0xff]
    %v2539 = vld [vmem:[#allocation10 + $0x98] sm:$0xff]
    %v2540 = vld [vmem:[#allocation10 + $0xa0] sm:$0xff]
    %v2541 = vld [vmem:[#allocation10 + $0xa8] sm:$0xff]
    %v2542 = vld [vmem:[#allocation10 + $0xb0] sm:$0xff]
    %v2543 = vld [vmem:[#allocation10 + $0xb8] sm:$0xff]
    %v2544 = vld [vmem:[#allocation10 + $0xc0] sm:$0xff]
    %v2545 = vld [vmem:[#allocation10 + $0xc8] sm:$0xff]
    %v2546 = vld [vmem:[#allocation10 + $0xd0] sm:$0xff]
    %v2547 = vld [vmem:[#allocation10 + $0xd8] sm:$0xff]
    %v2548 = vld [vmem:[#allocation10 + $0xe0] sm:$0xff]
    %v2549 = vld [vmem:[#allocation10 + $0xe8] sm:$0xff]
    %v2550 = vld [vmem:[#allocation10 + $0xf0] sm:$0xff]
    %v2551 = vld [vmem:[#allocation10 + $0xf8] sm:$0xff]
    %v2552 = vld [vmem:[#allocation10 + $0x100] sm:$0xff]
    %v2553 = vld [vmem:[#allocation10 + $0x108] sm:$0xff]
    %v2554 = vld [vmem:[#allocation10 + $0x110] sm:$0xff]
    %v2555 = vld [vmem:[#allocation10 + $0x118] sm:$0xff]
    %v2556 = vld [vmem:[#allocation10 + $0x120] sm:$0xff]
    %v2557 = vld [vmem:[#allocation10 + $0x128] sm:$0xff]
    %v2558 = vld [vmem:[#allocation10 + $0x130] sm:$0xff]
    %v2559 = vld [vmem:[#allocation10 + $0x138] sm:$0xff]
    %v2560 = vld [vmem:[#allocation10 + $0x140] sm:$0xff]
    %v2561 = vld [vmem:[#allocation10 + $0x148] sm:$0xff]
    %v2562 = vld [vmem:[#allocation10 + $0x150] sm:$0xff]
    %v2563 = vld [vmem:[#allocation10 + $0x158] sm:$0xff]
    %v2564 = vld [vmem:[#allocation10 + $0x160] sm:$0xff]
    %v2565 = vld [vmem:[#allocation10 + $0x168] sm:$0xff]
    %v2566 = vld [vmem:[#allocation10 + $0x170] sm:$0xff]
    %v2567 = vld [vmem:[#allocation10 + $0x178] sm:$0xff]
    %v2568 = vld [vmem:[#allocation10 + $0x180] sm:$0xff]
    %v2569 = vld [vmem:[#allocation10 + $0x188] sm:$0xff]
    %v2570 = vld [vmem:[#allocation10 + $0x190] sm:$0xff]
    %v2571 = vld [vmem:[#allocation10 + $0x198] sm:$0xff]
    %v2572 = vld [vmem:[#allocation10 + $0x1a0] sm:$0xff]
    %v2573 = vld [vmem:[#allocation10 + $0x1a8] sm:$0xff]
    %v2574 = vld [vmem:[#allocation10 + $0x1b0] sm:$0xff]
    %v2575 = vld [vmem:[#allocation10 + $0x1b8] sm:$0xff]
    %v2576 = vld [vmem:[#allocation10 + $0x1c0] sm:$0xff]
    %v2577 = vld [vmem:[#allocation10 + $0x1c8] sm:$0xff]
    %v2578 = vld [vmem:[#allocation10 + $0x1d0] sm:$0xff]
    %v2579 = vld [vmem:[#allocation10 + $0x1d8] sm:$0xff]
    %v2580 = vld [vmem:[#allocation10 + $0x1e0] sm:$0xff]
    %v2581 = vld [vmem:[#allocation10 + $0x1e8] sm:$0xff]
    %v2582 = vld [vmem:[#allocation10 + $0x1f0] sm:$0xff]
    %v2583 = vld [vmem:[#allocation10 + $0x1f8] sm:$0xff]
    %v2584 = vld [vmem:[#allocation10 + $0x200] sm:$0xff]
    %v2585 = vld [vmem:[#allocation10 + $0x208] sm:$0xff]
    %v2586 = vld [vmem:[#allocation10 + $0x210] sm:$0xff]
    %v2587 = vld [vmem:[#allocation10 + $0x218] sm:$0xff]
    %v2588 = vld [vmem:[#allocation10 + $0x220] sm:$0xff]
    %v2589 = vld [vmem:[#allocation10 + $0x228] sm:$0xff]
    %v2590 = vld [vmem:[#allocation10 + $0x230] sm:$0xff]
    %v2591 = vld [vmem:[#allocation10 + $0x238] sm:$0xff]
    %v2592 = vld [vmem:[#allocation10 + $0x240] sm:$0xff]
    %v2593 = vld [vmem:[#allocation10 + $0x248] sm:$0xff]
    %v2594 = vld [vmem:[#allocation10 + $0x250] sm:$0xff]
    %v2595 = vld [vmem:[#allocation10 + $0x258] sm:$0xff]
    %v2596 = vld [vmem:[#allocation10 + $0x260] sm:$0xff]
    %v2597 = vld [vmem:[#allocation10 + $0x268] sm:$0xff]
    %v2598 = vld [vmem:[#allocation10 + $0x270] sm:$0xff]
    %v2599 = vld [vmem:[#allocation10 + $0x278] sm:$0xff]
    %v2600 = vld [vmem:[#allocation10 + $0x280] sm:$0xff]
    %v2601 = vld [vmem:[#allocation10 + $0x288] sm:$0xff]
    %v2602 = vld [vmem:[#allocation10 + $0x290] sm:$0xff]
    %v2603 = vld [vmem:[#allocation10 + $0x298] sm:$0xff]
    %v2604 = vld [vmem:[#allocation10 + $0x2a0] sm:$0xff]
    %v2605 = vld [vmem:[#allocation10 + $0x2a8] sm:$0xff]
    %v2606 = vld [vmem:[#allocation10 + $0x2b0] sm:$0xff]
    %v2607 = vld [vmem:[#allocation10 + $0x2b8] sm:$0xff]
    %v2608 = vld [vmem:[#allocation10 + $0x2c0] sm:$0xff]
    %v2609 = vld [vmem:[#allocation10 + $0x2c8] sm:$0xff]
    %v2610 = vld [vmem:[#allocation10 + $0x2d0] sm:$0xff]
    %v2611 = vld [vmem:[#allocation10 + $0x2d8] sm:$0xff]
    %v2612 = vld [vmem:[#allocation10 + $0x2e0] sm:$0xff]
    %v2613 = vld [vmem:[#allocation10 + $0x2e8] sm:$0xff]
    %v2614 = vld [vmem:[#allocation10 + $0x2f0] sm:$0xff]
    %v2615 = vld [vmem:[#allocation10 + $0x2f8] sm:$0xff]
    %v2616 = vld [vmem:[#allocation10 + $0x300] sm:$0xff]
    %v2617 = vld [vmem:[#allocation10 + $0x308] sm:$0xff]
    %v2618 = vld [vmem:[#allocation10 + $0x310] sm:$0xff]
    %v2619 = vld [vmem:[#allocation10 + $0x318] sm:$0xff]
    %v2620 = vld [vmem:[#allocation10 + $0x320] sm:$0xff]
    %v2621 = vld [vmem:[#allocation10 + $0x328] sm:$0xff]
    %v2622 = vld [vmem:[#allocation10 + $0x330] sm:$0xff]
    %v2623 = vld [vmem:[#allocation10 + $0x338] sm:$0xff]
    %v2624 = vld [vmem:[#allocation10 + $0x340] sm:$0xff]
    %v2625 = vld [vmem:[#allocation10 + $0x348] sm:$0xff]
    %v2626 = vld [vmem:[#allocation10 + $0x350] sm:$0xff]
    %v2627 = vld [vmem:[#allocation10 + $0x358] sm:$0xff]
    %v2628 = vld [vmem:[#allocation10 + $0x360] sm:$0xff]
    %v2629 = vld [vmem:[#allocation10 + $0x368] sm:$0xff]
    %v2630 = vld [vmem:[#allocation10 + $0x370] sm:$0xff]
    %v2631 = vld [vmem:[#allocation10 + $0x378] sm:$0xff]
    %v2632 = vld [vmem:[#allocation10 + $0x380] sm:$0xff]
    %v2633 = vld [vmem:[#allocation10 + $0x388] sm:$0xff]
    %v2634 = vld [vmem:[#allocation10 + $0x390] sm:$0xff]
    %v2635 = vld [vmem:[#allocation10 + $0x398] sm:$0xff]
    %v2636 = vld [vmem:[#allocation10 + $0x3a0] sm:$0xff]
    %v2637 = vld [vmem:[#allocation10 + $0x3a8] sm:$0xff]
    %v2638 = vld [vmem:[#allocation10 + $0x3b0] sm:$0xff]
    %v2639 = vld [vmem:[#allocation10 + $0x3b8] sm:$0xff]
    %v2640 = vld [vmem:[#allocation10 + $0x3c0] sm:$0xff]
    %v2641 = vld [vmem:[#allocation10 + $0x3c8] sm:$0xff]
    %v2642 = vld [vmem:[#allocation10 + $0x3d0] sm:$0xff]
    %v2643 = vld [vmem:[#allocation10 + $0x3d8] sm:$0xff]
    %v2644 = vld [vmem:[#allocation10 + $0x3e0] sm:$0xff]
    %v2645 = vld [vmem:[#allocation10 + $0x3e8] sm:$0xff]
    %v2646 = vld [vmem:[#allocation10 + $0x3f0] sm:$0xff]
    %v2647 = vld [vmem:[#allocation10 + $0x3f8] sm:$0xff]
    %v2648 = vld [vmem:[#allocation10 + $0x400] sm:$0xff]
    %v2649 = vld [vmem:[#allocation10 + $0x408] sm:$0xff]
    %v2650 = vld [vmem:[#allocation10 + $0x410] sm:$0xff]
    %v2651 = vld [vmem:[#allocation10 + $0x418] sm:$0xff]
    %v2652 = vld [vmem:[#allocation10 + $0x420] sm:$0xff]
    %v2653 = vld [vmem:[#allocation10 + $0x428] sm:$0xff]
    %v2654 = vld [vmem:[#allocation10 + $0x430] sm:$0xff]
    %v2655 = vld [vmem:[#allocation10 + $0x438] sm:$0xff]
    %v2656 = vld [vmem:[#allocation10 + $0x440] sm:$0xff]
    %v2657 = vld [vmem:[#allocation10 + $0x448] sm:$0xff]
    %v2658 = vld [vmem:[#allocation10 + $0x450] sm:$0xff]
    %v2659 = vld [vmem:[#allocation10 + $0x458] sm:$0xff]
    %v2660 = vld [vmem:[#allocation10 + $0x460] sm:$0xff]
    %v2661 = vld [vmem:[#allocation10 + $0x468] sm:$0xff]
    %v2662 = vld [vmem:[#allocation10 + $0x470] sm:$0xff]
    %v2663 = vld [vmem:[#allocation10 + $0x478] sm:$0xff]
    %v2664 = vld [vmem:[#allocation10 + $0x480] sm:$0xff]
    %v2665 = vld [vmem:[#allocation10 + $0x488] sm:$0xff]
    %v2666 = vld [vmem:[#allocation10 + $0x490] sm:$0xff]
    %v2667 = vld [vmem:[#allocation10 + $0x498] sm:$0xff]
    %v2668 = vld [vmem:[#allocation10 + $0x4a0] sm:$0xff]
    %v2669 = vld [vmem:[#allocation10 + $0x4a8] sm:$0xff]
    %v2670 = vld [vmem:[#allocation10 + $0x4b0] sm:$0xff]
    %v2671 = vld [vmem:[#allocation10 + $0x4b8] sm:$0xff]
    %v2672 = vld [vmem:[#allocation10 + $0x4c0] sm:$0xff]
    %v2673 = vld [vmem:[#allocation10 + $0x4c8] sm:$0xff]
    %v2674 = vld [vmem:[#allocation10 + $0x4d0] sm:$0xff]
    %v2675 = vld [vmem:[#allocation10 + $0x4d8] sm:$0xff]
    %v2676 = vld [vmem:[#allocation10 + $0x4e0] sm:$0xff]
    %v2677 = vld [vmem:[#allocation10 + $0x4e8] sm:$0xff]
    %v2678 = vld [vmem:[#allocation10 + $0x4f0] sm:$0xff]
    %v2679 = vld [vmem:[#allocation10 + $0x4f8] sm:$0xff]
    %v2680 = vld [vmem:[#allocation10 + $0x500] sm:$0xff]
    %v2681 = vld [vmem:[#allocation10 + $0x508] sm:$0xff]
    %v2682 = vld [vmem:[#allocation10 + $0x510] sm:$0xff]
    %v2683 = vld [vmem:[#allocation10 + $0x518] sm:$0xff]
    %v2684 = vld [vmem:[#allocation10 + $0x520] sm:$0xff]
    %v2685 = vld [vmem:[#allocation10 + $0x528] sm:$0xff]
    %v2686 = vld [vmem:[#allocation10 + $0x530] sm:$0xff]
    %v2687 = vld [vmem:[#allocation10 + $0x538] sm:$0xff]
    %v2688 = vld [vmem:[#allocation10 + $0x540] sm:$0xff]
    %v2689 = vld [vmem:[#allocation10 + $0x548] sm:$0xff]
    %v2690 = vld [vmem:[#allocation10 + $0x550] sm:$0xff]
    %v2691 = vld [vmem:[#allocation10 + $0x558] sm:$0xff]
    %v2692 = vld [vmem:[#allocation10 + $0x560] sm:$0xff]
    %v2693 = vld [vmem:[#allocation10 + $0x568] sm:$0xff]
    %v2694 = vld [vmem:[#allocation10 + $0x570] sm:$0xff]
    %v2695 = vld [vmem:[#allocation10 + $0x578] sm:$0xff]
    %v2696 = vld [vmem:[#allocation10 + $0x580] sm:$0xff]
    %v2697 = vld [vmem:[#allocation10 + $0x588] sm:$0xff]
    %v2698 = vld [vmem:[#allocation10 + $0x590] sm:$0xff]
    %v2699 = vld [vmem:[#allocation10 + $0x598] sm:$0xff]
    %v2700 = vld [vmem:[#allocation10 + $0x5a0] sm:$0xff]
    %v2701 = vld [vmem:[#allocation10 + $0x5a8] sm:$0xff]
    %v2702 = vld [vmem:[#allocation10 + $0x5b0] sm:$0xff]
    %v2703 = vld [vmem:[#allocation10 + $0x5b8] sm:$0xff]
    %v2704 = vld [vmem:[#allocation10 + $0x5c0] sm:$0xff]
    %v2705 = vld [vmem:[#allocation10 + $0x5c8] sm:$0xff]
    %v2706 = vld [vmem:[#allocation10 + $0x5d0] sm:$0xff]
    %v2707 = vld [vmem:[#allocation10 + $0x5d8] sm:$0xff]
    %v2708 = vld [vmem:[#allocation10 + $0x5e0] sm:$0xff]
    %v2709 = vld [vmem:[#allocation10 + $0x5e8] sm:$0xff]
    %v2710 = vld [vmem:[#allocation10 + $0x5f0] sm:$0xff]
    %v2711 = vld [vmem:[#allocation10 + $0x5f8] sm:$0xff]
    %v2712 = vld [vmem:[#allocation11] sm:$0xf]
    %v2714 = vperm.slane %v2712, 0
    %v2715 = vperm.slane %v2712, 1
    %v2716 = vperm.slane %v2712, 2
    %v2717 = vperm.slane %v2712, 3
    %v2914 = vunpack.c.l.b16 %v2520
    %v2915 = vunpack.c.h.b16 %v2520
    %v2916 = vunpack.c.l.b16 %v2521
    %v2917 = vunpack.c.h.b16 %v2521
    %v2918 = vunpack.c.l.b16 %v2522
    %v2919 = vunpack.c.h.b16 %v2522
    %v2920 = vunpack.c.l.b16 %v2523
    %v2921 = vunpack.c.h.b16 %v2523
    %v2922 = vunpack.c.l.b16 %v2524
    %v2923 = vunpack.c.h.b16 %v2524
    %v2924 = vunpack.c.l.b16 %v2525
    %v2925 = vunpack.c.h.b16 %v2525
    %v2926 = vunpack.c.l.b16 %v2526
    %v2927 = vunpack.c.h.b16 %v2526
    %v2928 = vunpack.c.l.b16 %v2527
    %v2929 = vunpack.c.h.b16 %v2527
    %v2930 = vunpack.c.l.b16 %v2528
    %v2931 = vunpack.c.h.b16 %v2528
    %v2932 = vunpack.c.l.b16 %v2529
    %v2933 = vunpack.c.h.b16 %v2529
    %v2934 = vunpack.c.l.b16 %v2530
    %v2935 = vunpack.c.h.b16 %v2530
    %v2936 = vunpack.c.l.b16 %v2531
    %v2937 = vunpack.c.h.b16 %v2531
    %v2938 = vunpack.c.l.b16 %v2532
    %v2939 = vunpack.c.h.b16 %v2532
    %v2940 = vunpack.c.l.b16 %v2533
    %v2941 = vunpack.c.h.b16 %v2533
    %v2942 = vunpack.c.l.b16 %v2534
    %v2943 = vunpack.c.h.b16 %v2534
    %v2944 = vunpack.c.l.b16 %v2535
    %v2945 = vunpack.c.h.b16 %v2535
    %v2946 = vunpack.c.l.b16 %v2536
    %v2947 = vunpack.c.h.b16 %v2536
    %v2948 = vunpack.c.l.b16 %v2537
    %v2949 = vunpack.c.h.b16 %v2537
    %v2950 = vunpack.c.l.b16 %v2538
    %v2951 = vunpack.c.h.b16 %v2538
    %v2952 = vunpack.c.l.b16 %v2539
    %v2953 = vunpack.c.h.b16 %v2539
    %v2954 = vunpack.c.l.b16 %v2540
    %v2955 = vunpack.c.h.b16 %v2540
    %v2956 = vunpack.c.l.b16 %v2541
    %v2957 = vunpack.c.h.b16 %v2541
    %v2958 = vunpack.c.l.b16 %v2542
    %v2959 = vunpack.c.h.b16 %v2542
    %v2960 = vunpack.c.l.b16 %v2543
    %v2961 = vunpack.c.h.b16 %v2543
    %v2962 = vunpack.c.l.b16 %v2544
    %v2963 = vunpack.c.h.b16 %v2544
    %v2964 = vunpack.c.l.b16 %v2545
    %v2965 = vunpack.c.h.b16 %v2545
    %v2966 = vunpack.c.l.b16 %v2546
    %v2967 = vunpack.c.h.b16 %v2546
    %v2968 = vunpack.c.l.b16 %v2547
    %v2969 = vunpack.c.h.b16 %v2547
    %v2970 = vunpack.c.l.b16 %v2548
    %v2971 = vunpack.c.h.b16 %v2548
    %v2972 = vunpack.c.l.b16 %v2549
    %v2973 = vunpack.c.h.b16 %v2549
    %v2974 = vunpack.c.l.b16 %v2550
    %v2975 = vunpack.c.h.b16 %v2550
    %v2976 = vunpack.c.l.b16 %v2551
    %v2977 = vunpack.c.h.b16 %v2551
    %v2978 = vunpack.c.l.b16 %v2552
    %v2979 = vunpack.c.h.b16 %v2552
    %v2980 = vunpack.c.l.b16 %v2553
    %v2981 = vunpack.c.h.b16 %v2553
    %v2982 = vunpack.c.l.b16 %v2554
    %v2983 = vunpack.c.h.b16 %v2554
    %v2984 = vunpack.c.l.b16 %v2555
    %v2985 = vunpack.c.h.b16 %v2555
    %v2986 = vunpack.c.l.b16 %v2556
    %v2987 = vunpack.c.h.b16 %v2556
    %v2988 = vunpack.c.l.b16 %v2557
    %v2989 = vunpack.c.h.b16 %v2557
    %v2990 = vunpack.c.l.b16 %v2558
    %v2991 = vunpack.c.h.b16 %v2558
    %v2992 = vunpack.c.l.b16 %v2559
    %v2993 = vunpack.c.h.b16 %v2559
    %v2994 = vunpack.c.l.b16 %v2560
    %v2995 = vunpack.c.h.b16 %v2560
    %v2996 = vunpack.c.l.b16 %v2561
    %v2997 = vunpack.c.h.b16 %v2561
    %v2998 = vunpack.c.l.b16 %v2562
    %v2999 = vunpack.c.h.b16 %v2562
    %v3000 = vunpack.c.l.b16 %v2563
    %v3001 = vunpack.c.h.b16 %v2563
    %v3002 = vunpack.c.l.b16 %v2564
    %v3003 = vunpack.c.h.b16 %v2564
    %v3004 = vunpack.c.l.b16 %v2565
    %v3005 = vunpack.c.h.b16 %v2565
    %v3006 = vunpack.c.l.b16 %v2566
    %v3007 = vunpack.c.h.b16 %v2566
    %v3008 = vunpack.c.l.b16 %v2567
    %v3009 = vunpack.c.h.b16 %v2567
    %v3010 = vunpack.c.l.b16 %v2568
    %v3011 = vunpack.c.h.b16 %v2568
    %v3012 = vunpack.c.l.b16 %v2569
    %v3013 = vunpack.c.h.b16 %v2569
    %v3014 = vunpack.c.l.b16 %v2570
    %v3015 = vunpack.c.h.b16 %v2570
    %v3016 = vunpack.c.l.b16 %v2571
    %v3017 = vunpack.c.h.b16 %v2571
    %v3018 = vunpack.c.l.b16 %v2572
    %v3019 = vunpack.c.h.b16 %v2572
    %v3020 = vunpack.c.l.b16 %v2573
    %v3021 = vunpack.c.h.b16 %v2573
    %v3022 = vunpack.c.l.b16 %v2574
    %v3023 = vunpack.c.h.b16 %v2574
    %v3024 = vunpack.c.l.b16 %v2575
    %v3025 = vunpack.c.h.b16 %v2575
    %v3026 = vunpack.c.l.b16 %v2576
    %v3027 = vunpack.c.h.b16 %v2576
    %v3028 = vunpack.c.l.b16 %v2577
    %v3029 = vunpack.c.h.b16 %v2577
    %v3030 = vunpack.c.l.b16 %v2578
    %v3031 = vunpack.c.h.b16 %v2578
    %v3032 = vunpack.c.l.b16 %v2579
    %v3033 = vunpack.c.h.b16 %v2579
    %v3034 = vunpack.c.l.b16 %v2580
    %v3035 = vunpack.c.h.b16 %v2580
    %v3036 = vunpack.c.l.b16 %v2581
    %v3037 = vunpack.c.h.b16 %v2581
    %v3038 = vunpack.c.l.b16 %v2582
    %v3039 = vunpack.c.h.b16 %v2582
    %v3040 = vunpack.c.l.b16 %v2583
    %v3041 = vunpack.c.h.b16 %v2583
    %v3042 = vunpack.c.l.b16 %v2584
    %v3043 = vunpack.c.h.b16 %v2584
    %v3044 = vunpack.c.l.b16 %v2585
    %v3045 = vunpack.c.h.b16 %v2585
    %v3046 = vunpack.c.l.b16 %v2586
    %v3047 = vunpack.c.h.b16 %v2586
    %v3048 = vunpack.c.l.b16 %v2587
    %v3049 = vunpack.c.h.b16 %v2587
    %v3050 = vunpack.c.l.b16 %v2588
    %v3051 = vunpack.c.h.b16 %v2588
    %v3052 = vunpack.c.l.b16 %v2589
    %v3053 = vunpack.c.h.b16 %v2589
    %v3054 = vunpack.c.l.b16 %v2590
    %v3055 = vunpack.c.h.b16 %v2590
    %v3056 = vunpack.c.l.b16 %v2591
    %v3057 = vunpack.c.h.b16 %v2591
    %v3058 = vunpack.c.l.b16 %v2592
    %v3059 = vunpack.c.h.b16 %v2592
    %v3060 = vunpack.c.l.b16 %v2593
    %v3061 = vunpack.c.h.b16 %v2593
    %v3062 = vunpack.c.l.b16 %v2594
    %v3063 = vunpack.c.h.b16 %v2594
    %v3064 = vunpack.c.l.b16 %v2595
    %v3065 = vunpack.c.h.b16 %v2595
    %v3066 = vunpack.c.l.b16 %v2596
    %v3067 = vunpack.c.h.b16 %v2596
    %v3068 = vunpack.c.l.b16 %v2597
    %v3069 = vunpack.c.h.b16 %v2597
    %v3070 = vunpack.c.l.b16 %v2598
    %v3071 = vunpack.c.h.b16 %v2598
    %v3072 = vunpack.c.l.b16 %v2599
    %v3073 = vunpack.c.h.b16 %v2599
    %v3074 = vunpack.c.l.b16 %v2600
    %v3075 = vunpack.c.h.b16 %v2600
    %v3076 = vunpack.c.l.b16 %v2601
    %v3077 = vunpack.c.h.b16 %v2601
    %v3078 = vunpack.c.l.b16 %v2602
    %v3079 = vunpack.c.h.b16 %v2602
    %v3080 = vunpack.c.l.b16 %v2603
    %v3081 = vunpack.c.h.b16 %v2603
    %v3082 = vunpack.c.l.b16 %v2604
    %v3083 = vunpack.c.h.b16 %v2604
    %v3084 = vunpack.c.l.b16 %v2605
    %v3085 = vunpack.c.h.b16 %v2605
    %v3086 = vunpack.c.l.b16 %v2606
    %v3087 = vunpack.c.h.b16 %v2606
    %v3088 = vunpack.c.l.b16 %v2607
    %v3089 = vunpack.c.h.b16 %v2607
    %v3090 = vunpack.c.l.b16 %v2608
    %v3091 = vunpack.c.h.b16 %v2608
    %v3092 = vunpack.c.l.b16 %v2609
    %v3093 = vunpack.c.h.b16 %v2609
    %v3094 = vunpack.c.l.b16 %v2610
    %v3095 = vunpack.c.h.b16 %v2610
    %v3096 = vunpack.c.l.b16 %v2611
    %v3097 = vunpack.c.h.b16 %v2611
    %v3098 = vunpack.c.l.b16 %v2612
    %v3099 = vunpack.c.h.b16 %v2612
    %v3100 = vunpack.c.l.b16 %v2613
    %v3101 = vunpack.c.h.b16 %v2613
    %v3102 = vunpack.c.l.b16 %v2614
    %v3103 = vunpack.c.h.b16 %v2614
    %v3104 = vunpack.c.l.b16 %v2615
    %v3105 = vunpack.c.h.b16 %v2615
    %v3106 = vunpack.c.l.b16 %v2616
    %v3107 = vunpack.c.h.b16 %v2616
    %v3108 = vunpack.c.l.b16 %v2617
    %v3109 = vunpack.c.h.b16 %v2617
    %v3110 = vunpack.c.l.b16 %v2618
    %v3111 = vunpack.c.h.b16 %v2618
    %v3112 = vunpack.c.l.b16 %v2619
    %v3113 = vunpack.c.h.b16 %v2619
    %v3114 = vunpack.c.l.b16 %v2620
    %v3115 = vunpack.c.h.b16 %v2620
    %v3116 = vunpack.c.l.b16 %v2621
    %v3117 = vunpack.c.h.b16 %v2621
    %v3118 = vunpack.c.l.b16 %v2622
    %v3119 = vunpack.c.h.b16 %v2622
    %v3120 = vunpack.c.l.b16 %v2623
    %v3121 = vunpack.c.h.b16 %v2623
    %v3122 = vunpack.c.l.b16 %v2624
    %v3123 = vunpack.c.h.b16 %v2624
    %v3124 = vunpack.c.l.b16 %v2625
    %v3125 = vunpack.c.h.b16 %v2625
    %v3126 = vunpack.c.l.b16 %v2626
    %v3127 = vunpack.c.h.b16 %v2626
    %v3128 = vunpack.c.l.b16 %v2627
    %v3129 = vunpack.c.h.b16 %v2627
    %v3130 = vunpack.c.l.b16 %v2628
    %v3131 = vunpack.c.h.b16 %v2628
    %v3132 = vunpack.c.l.b16 %v2629
    %v3133 = vunpack.c.h.b16 %v2629
    %v3134 = vunpack.c.l.b16 %v2630
    %v3135 = vunpack.c.h.b16 %v2630
    %v3136 = vunpack.c.l.b16 %v2631
    %v3137 = vunpack.c.h.b16 %v2631
    %v3138 = vunpack.c.l.b16 %v2632
    %v3139 = vunpack.c.h.b16 %v2632
    %v3140 = vunpack.c.l.b16 %v2633
    %v3141 = vunpack.c.h.b16 %v2633
    %v3142 = vunpack.c.l.b16 %v2634
    %v3143 = vunpack.c.h.b16 %v2634
    %v3144 = vunpack.c.l.b16 %v2635
    %v3145 = vunpack.c.h.b16 %v2635
    %v3146 = vunpack.c.l.b16 %v2636
    %v3147 = vunpack.c.h.b16 %v2636
    %v3148 = vunpack.c.l.b16 %v2637
    %v3149 = vunpack.c.h.b16 %v2637
    %v3150 = vunpack.c.l.b16 %v2638
    %v3151 = vunpack.c.h.b16 %v2638
    %v3152 = vunpack.c.l.b16 %v2639
    %v3153 = vunpack.c.h.b16 %v2639
    %v3154 = vunpack.c.l.b16 %v2640
    %v3155 = vunpack.c.h.b16 %v2640
    %v3156 = vunpack.c.l.b16 %v2641
    %v3157 = vunpack.c.h.b16 %v2641
    %v3158 = vunpack.c.l.b16 %v2642
    %v3159 = vunpack.c.h.b16 %v2642
    %v3160 = vunpack.c.l.b16 %v2643
    %v3161 = vunpack.c.h.b16 %v2643
    %v3162 = vunpack.c.l.b16 %v2644
    %v3163 = vunpack.c.h.b16 %v2644
    %v3164 = vunpack.c.l.b16 %v2645
    %v3165 = vunpack.c.h.b16 %v2645
    %v3166 = vunpack.c.l.b16 %v2646
    %v3167 = vunpack.c.h.b16 %v2646
    %v3168 = vunpack.c.l.b16 %v2647
    %v3169 = vunpack.c.h.b16 %v2647
    %v3170 = vunpack.c.l.b16 %v2648
    %v3171 = vunpack.c.h.b16 %v2648
    %v3172 = vunpack.c.l.b16 %v2649
    %v3173 = vunpack.c.h.b16 %v2649
    %v3174 = vunpack.c.l.b16 %v2650
    %v3175 = vunpack.c.h.b16 %v2650
    %v3176 = vunpack.c.l.b16 %v2651
    %v3177 = vunpack.c.h.b16 %v2651
    %v3178 = vunpack.c.l.b16 %v2652
    %v3179 = vunpack.c.h.b16 %v2652
    %v3180 = vunpack.c.l.b16 %v2653
    %v3181 = vunpack.c.h.b16 %v2653
    %v3182 = vunpack.c.l.b16 %v2654
    %v3183 = vunpack.c.h.b16 %v2654
    %v3184 = vunpack.c.l.b16 %v2655
    %v3185 = vunpack.c.h.b16 %v2655
    %v3186 = vunpack.c.l.b16 %v2656
    %v3187 = vunpack.c.h.b16 %v2656
    %v3188 = vunpack.c.l.b16 %v2657
    %v3189 = vunpack.c.h.b16 %v2657
    %v3190 = vunpack.c.l.b16 %v2658
    %v3191 = vunpack.c.h.b16 %v2658
    %v3192 = vunpack.c.l.b16 %v2659
    %v3193 = vunpack.c.h.b16 %v2659
    %v3194 = vunpack.c.l.b16 %v2660
    %v3195 = vunpack.c.h.b16 %v2660
    %v3196 = vunpack.c.l.b16 %v2661
    %v3197 = vunpack.c.h.b16 %v2661
    %v3198 = vunpack.c.l.b16 %v2662
    %v3199 = vunpack.c.h.b16 %v2662
    %v3200 = vunpack.c.l.b16 %v2663
    %v3201 = vunpack.c.h.b16 %v2663
    %v3202 = vunpack.c.l.b16 %v2664
    %v3203 = vunpack.c.h.b16 %v2664
    %v3204 = vunpack.c.l.b16 %v2665
    %v3205 = vunpack.c.h.b16 %v2665
    %v3206 = vunpack.c.l.b16 %v2666
    %v3207 = vunpack.c.h.b16 %v2666
    %v3208 = vunpack.c.l.b16 %v2667
    %v3209 = vunpack.c.h.b16 %v2667
    %v3210 = vunpack.c.l.b16 %v2668
    %v3211 = vunpack.c.h.b16 %v2668
    %v3212 = vunpack.c.l.b16 %v2669
    %v3213 = vunpack.c.h.b16 %v2669
    %v3214 = vunpack.c.l.b16 %v2670
    %v3215 = vunpack.c.h.b16 %v2670
    %v3216 = vunpack.c.l.b16 %v2671
    %v3217 = vunpack.c.h.b16 %v2671
    %v3218 = vunpack.c.l.b16 %v2672
    %v3219 = vunpack.c.h.b16 %v2672
    %v3220 = vunpack.c.l.b16 %v2673
    %v3221 = vunpack.c.h.b16 %v2673
    %v3222 = vunpack.c.l.b16 %v2674
    %v3223 = vunpack.c.h.b16 %v2674
    %v3224 = vunpack.c.l.b16 %v2675
    %v3225 = vunpack.c.h.b16 %v2675
    %v3226 = vunpack.c.l.b16 %v2676
    %v3227 = vunpack.c.h.b16 %v2676
    %v3228 = vunpack.c.l.b16 %v2677
    %v3229 = vunpack.c.h.b16 %v2677
    %v3230 = vunpack.c.l.b16 %v2678
    %v3231 = vunpack.c.h.b16 %v2678
    %v3232 = vunpack.c.l.b16 %v2679
    %v3233 = vunpack.c.h.b16 %v2679
    %v3234 = vunpack.c.l.b16 %v2680
    %v3235 = vunpack.c.h.b16 %v2680
    %v3236 = vunpack.c.l.b16 %v2681
    %v3237 = vunpack.c.h.b16 %v2681
    %v3238 = vunpack.c.l.b16 %v2682
    %v3239 = vunpack.c.h.b16 %v2682
    %v3240 = vunpack.c.l.b16 %v2683
    %v3241 = vunpack.c.h.b16 %v2683
    %v3242 = vunpack.c.l.b16 %v2684
    %v3243 = vunpack.c.h.b16 %v2684
    %v3244 = vunpack.c.l.b16 %v2685
    %v3245 = vunpack.c.h.b16 %v2685
    %v3246 = vunpack.c.l.b16 %v2686
    %v3247 = vunpack.c.h.b16 %v2686
    %v3248 = vunpack.c.l.b16 %v2687
    %v3249 = vunpack.c.h.b16 %v2687
    %v3250 = vunpack.c.l.b16 %v2688
    %v3251 = vunpack.c.h.b16 %v2688
    %v3252 = vunpack.c.l.b16 %v2689
    %v3253 = vunpack.c.h.b16 %v2689
    %v3254 = vunpack.c.l.b16 %v2690
    %v3255 = vunpack.c.h.b16 %v2690
    %v3256 = vunpack.c.l.b16 %v2691
    %v3257 = vunpack.c.h.b16 %v2691
    %v3258 = vunpack.c.l.b16 %v2692
    %v3259 = vunpack.c.h.b16 %v2692
    %v3260 = vunpack.c.l.b16 %v2693
    %v3261 = vunpack.c.h.b16 %v2693
    %v3262 = vunpack.c.l.b16 %v2694
    %v3263 = vunpack.c.h.b16 %v2694
    %v3264 = vunpack.c.l.b16 %v2695
    %v3265 = vunpack.c.h.b16 %v2695
    %v3266 = vunpack.c.l.b16 %v2696
    %v3267 = vunpack.c.h.b16 %v2696
    %v3268 = vunpack.c.l.b16 %v2697
    %v3269 = vunpack.c.h.b16 %v2697
    %v3270 = vunpack.c.l.b16 %v2698
    %v3271 = vunpack.c.h.b16 %v2698
    %v3272 = vunpack.c.l.b16 %v2699
    %v3273 = vunpack.c.h.b16 %v2699
    %v3274 = vunpack.c.l.b16 %v2700
    %v3275 = vunpack.c.h.b16 %v2700
    %v3276 = vunpack.c.l.b16 %v2701
    %v3277 = vunpack.c.h.b16 %v2701
    %v3278 = vunpack.c.l.b16 %v2702
    %v3279 = vunpack.c.h.b16 %v2702
    %v3280 = vunpack.c.l.b16 %v2703
    %v3281 = vunpack.c.h.b16 %v2703
    %v3282 = vunpack.c.l.b16 %v2704
    %v3283 = vunpack.c.h.b16 %v2704
    %v3284 = vunpack.c.l.b16 %v2705
    %v3285 = vunpack.c.h.b16 %v2705
    %v3286 = vunpack.c.l.b16 %v2706
    %v3287 = vunpack.c.h.b16 %v2706
    %v3288 = vunpack.c.l.b16 %v2707
    %v3289 = vunpack.c.h.b16 %v2707
    %v3290 = vunpack.c.l.b16 %v2708
    %v3291 = vunpack.c.h.b16 %v2708
    %v3292 = vunpack.c.l.b16 %v2709
    %v3293 = vunpack.c.h.b16 %v2709
    %v3294 = vunpack.c.l.b16 %v2710
    %v3295 = vunpack.c.h.b16 %v2710
    %v3296 = vunpack.c.l.b16 %v2711
    %v3297 = vunpack.c.h.b16 %v2711
    %v3298 = vpack.c.b16 %v2918, %v2914
    %v3299 = vpack.c.b16 %v2919, %v2915
    %v3300 = vpack.c.b16 %v2920, %v2916
    %v3301 = vpack.c.b16 %v2921, %v2917
    %v3302 = vpack.c.b16 %v2926, %v2922
    %v3303 = vpack.c.b16 %v2927, %v2923
    %v3304 = vpack.c.b16 %v2928, %v2924
    %v3305 = vpack.c.b16 %v2929, %v2925
    %v3306 = vpack.c.b16 %v2934, %v2930
    %v3307 = vpack.c.b16 %v2935, %v2931
    %v3308 = vpack.c.b16 %v2936, %v2932
    %v3309 = vpack.c.b16 %v2937, %v2933
    %v3310 = vpack.c.b16 %v2942, %v2938
    %v3311 = vpack.c.b16 %v2943, %v2939
    %v3312 = vpack.c.b16 %v2944, %v2940
    %v3313 = vpack.c.b16 %v2945, %v2941
    %v3314 = vpack.c.b16 %v2950, %v2946
    %v3315 = vpack.c.b16 %v2951, %v2947
    %v3316 = vpack.c.b16 %v2952, %v2948
    %v3317 = vpack.c.b16 %v2953, %v2949
    %v3318 = vpack.c.b16 %v2958, %v2954
    %v3319 = vpack.c.b16 %v2959, %v2955
    %v3320 = vpack.c.b16 %v2960, %v2956
    %v3321 = vpack.c.b16 %v2961, %v2957
    %v3322 = vpack.c.b16 %v2966, %v2962
    %v3323 = vpack.c.b16 %v2967, %v2963
    %v3324 = vpack.c.b16 %v2968, %v2964
    %v3325 = vpack.c.b16 %v2969, %v2965
    %v3326 = vpack.c.b16 %v2974, %v2970
    %v3327 = vpack.c.b16 %v2975, %v2971
    %v3328 = vpack.c.b16 %v2976, %v2972
    %v3329 = vpack.c.b16 %v2977, %v2973
    %v3330 = vpack.c.b16 %v2982, %v2978
    %v3331 = vpack.c.b16 %v2983, %v2979
    %v3332 = vpack.c.b16 %v2984, %v2980
    %v3333 = vpack.c.b16 %v2985, %v2981
    %v3334 = vpack.c.b16 %v2990, %v2986
    %v3335 = vpack.c.b16 %v2991, %v2987
    %v3336 = vpack.c.b16 %v2992, %v2988
    %v3337 = vpack.c.b16 %v2993, %v2989
    %v3338 = vpack.c.b16 %v2998, %v2994
    %v3339 = vpack.c.b16 %v2999, %v2995
    %v3340 = vpack.c.b16 %v3000, %v2996
    %v3341 = vpack.c.b16 %v3001, %v2997
    %v3342 = vpack.c.b16 %v3006, %v3002
    %v3343 = vpack.c.b16 %v3007, %v3003
    %v3344 = vpack.c.b16 %v3008, %v3004
    %v3345 = vpack.c.b16 %v3009, %v3005
    %v3346 = vpack.c.b16 %v3014, %v3010
    %v3347 = vpack.c.b16 %v3015, %v3011
    %v3348 = vpack.c.b16 %v3016, %v3012
    %v3349 = vpack.c.b16 %v3017, %v3013
    %v3350 = vpack.c.b16 %v3022, %v3018
    %v3351 = vpack.c.b16 %v3023, %v3019
    %v3352 = vpack.c.b16 %v3024, %v3020
    %v3353 = vpack.c.b16 %v3025, %v3021
    %v3354 = vpack.c.b16 %v3030, %v3026
    %v3355 = vpack.c.b16 %v3031, %v3027
    %v3356 = vpack.c.b16 %v3032, %v3028
    %v3357 = vpack.c.b16 %v3033, %v3029
    %v3358 = vpack.c.b16 %v3038, %v3034
    %v3359 = vpack.c.b16 %v3039, %v3035
    %v3360 = vpack.c.b16 %v3040, %v3036
    %v3361 = vpack.c.b16 %v3041, %v3037
    %v3362 = vpack.c.b16 %v3046, %v3042
    %v3363 = vpack.c.b16 %v3047, %v3043
    %v3364 = vpack.c.b16 %v3048, %v3044
    %v3365 = vpack.c.b16 %v3049, %v3045
    %v3366 = vpack.c.b16 %v3054, %v3050
    %v3367 = vpack.c.b16 %v3055, %v3051
    %v3368 = vpack.c.b16 %v3056, %v3052
    %v3369 = vpack.c.b16 %v3057, %v3053
    %v3370 = vpack.c.b16 %v3062, %v3058
    %v3371 = vpack.c.b16 %v3063, %v3059
    %v3372 = vpack.c.b16 %v3064, %v3060
    %v3373 = vpack.c.b16 %v3065, %v3061
    %v3374 = vpack.c.b16 %v3070, %v3066
    %v3375 = vpack.c.b16 %v3071, %v3067
    %v3376 = vpack.c.b16 %v3072, %v3068
    %v3377 = vpack.c.b16 %v3073, %v3069
    %v3378 = vpack.c.b16 %v3078, %v3074
    %v3379 = vpack.c.b16 %v3079, %v3075
    %v3380 = vpack.c.b16 %v3080, %v3076
    %v3381 = vpack.c.b16 %v3081, %v3077
    %v3382 = vpack.c.b16 %v3086, %v3082
    %v3383 = vpack.c.b16 %v3087, %v3083
    %v3384 = vpack.c.b16 %v3088, %v3084
    %v3385 = vpack.c.b16 %v3089, %v3085
    %v3386 = vpack.c.b16 %v3094, %v3090
    %v3387 = vpack.c.b16 %v3095, %v3091
    %v3388 = vpack.c.b16 %v3096, %v3092
    %v3389 = vpack.c.b16 %v3097, %v3093
    %v3390 = vpack.c.b16 %v3102, %v3098
    %v3391 = vpack.c.b16 %v3103, %v3099
    %v3392 = vpack.c.b16 %v3104, %v3100
    %v3393 = vpack.c.b16 %v3105, %v3101
    %v3394 = vpack.c.b16 %v3110, %v3106
    %v3395 = vpack.c.b16 %v3111, %v3107
    %v3396 = vpack.c.b16 %v3112, %v3108
    %v3397 = vpack.c.b16 %v3113, %v3109
    %v3398 = vpack.c.b16 %v3118, %v3114
    %v3399 = vpack.c.b16 %v3119, %v3115
    %v3400 = vpack.c.b16 %v3120, %v3116
    %v3401 = vpack.c.b16 %v3121, %v3117
    %v3402 = vpack.c.b16 %v3126, %v3122
    %v3403 = vpack.c.b16 %v3127, %v3123
    %v3404 = vpack.c.b16 %v3128, %v3124
    %v3405 = vpack.c.b16 %v3129, %v3125
    %v3406 = vpack.c.b16 %v3134, %v3130
    %v3407 = vpack.c.b16 %v3135, %v3131
    %v3408 = vpack.c.b16 %v3136, %v3132
    %v3409 = vpack.c.b16 %v3137, %v3133
    %v3410 = vpack.c.b16 %v3142, %v3138
    %v3411 = vpack.c.b16 %v3143, %v3139
    %v3412 = vpack.c.b16 %v3144, %v3140
    %v3413 = vpack.c.b16 %v3145, %v3141
    %v3414 = vpack.c.b16 %v3150, %v3146
    %v3415 = vpack.c.b16 %v3151, %v3147
    %v3416 = vpack.c.b16 %v3152, %v3148
    %v3417 = vpack.c.b16 %v3153, %v3149
    %v3418 = vpack.c.b16 %v3158, %v3154
    %v3419 = vpack.c.b16 %v3159, %v3155
    %v3420 = vpack.c.b16 %v3160, %v3156
    %v3421 = vpack.c.b16 %v3161, %v3157
    %v3422 = vpack.c.b16 %v3166, %v3162
    %v3423 = vpack.c.b16 %v3167, %v3163
    %v3424 = vpack.c.b16 %v3168, %v3164
    %v3425 = vpack.c.b16 %v3169, %v3165
    %v3426 = vpack.c.b16 %v3174, %v3170
    %v3427 = vpack.c.b16 %v3175, %v3171
    %v3428 = vpack.c.b16 %v3176, %v3172
    %v3429 = vpack.c.b16 %v3177, %v3173
    %v3430 = vpack.c.b16 %v3182, %v3178
    %v3431 = vpack.c.b16 %v3183, %v3179
    %v3432 = vpack.c.b16 %v3184, %v3180
    %v3433 = vpack.c.b16 %v3185, %v3181
    %v3434 = vpack.c.b16 %v3190, %v3186
    %v3435 = vpack.c.b16 %v3191, %v3187
    %v3436 = vpack.c.b16 %v3192, %v3188
    %v3437 = vpack.c.b16 %v3193, %v3189
    %v3438 = vpack.c.b16 %v3198, %v3194
    %v3439 = vpack.c.b16 %v3199, %v3195
    %v3440 = vpack.c.b16 %v3200, %v3196
    %v3441 = vpack.c.b16 %v3201, %v3197
    %v3442 = vpack.c.b16 %v3206, %v3202
    %v3443 = vpack.c.b16 %v3207, %v3203
    %v3444 = vpack.c.b16 %v3208, %v3204
    %v3445 = vpack.c.b16 %v3209, %v3205
    %v3446 = vpack.c.b16 %v3214, %v3210
    %v3447 = vpack.c.b16 %v3215, %v3211
    %v3448 = vpack.c.b16 %v3216, %v3212
    %v3449 = vpack.c.b16 %v3217, %v3213
    %v3450 = vpack.c.b16 %v3222, %v3218
    %v3451 = vpack.c.b16 %v3223, %v3219
    %v3452 = vpack.c.b16 %v3224, %v3220
    %v3453 = vpack.c.b16 %v3225, %v3221
    %v3454 = vpack.c.b16 %v3230, %v3226
    %v3455 = vpack.c.b16 %v3231, %v3227
    %v3456 = vpack.c.b16 %v3232, %v3228
    %v3457 = vpack.c.b16 %v3233, %v3229
    %v3458 = vpack.c.b16 %v3238, %v3234
    %v3459 = vpack.c.b16 %v3239, %v3235
    %v3460 = vpack.c.b16 %v3240, %v3236
    %v3461 = vpack.c.b16 %v3241, %v3237
    %v3462 = vpack.c.b16 %v3246, %v3242
    %v3463 = vpack.c.b16 %v3247, %v3243
    %v3464 = vpack.c.b16 %v3248, %v3244
    %v3465 = vpack.c.b16 %v3249, %v3245
    %v3466 = vpack.c.b16 %v3254, %v3250
    %v3467 = vpack.c.b16 %v3255, %v3251
    %v3468 = vpack.c.b16 %v3256, %v3252
    %v3469 = vpack.c.b16 %v3257, %v3253
    %v3470 = vpack.c.b16 %v3262, %v3258
    %v3471 = vpack.c.b16 %v3263, %v3259
    %v3472 = vpack.c.b16 %v3264, %v3260
    %v3473 = vpack.c.b16 %v3265, %v3261
    %v3474 = vpack.c.b16 %v3270, %v3266
    %v3475 = vpack.c.b16 %v3271, %v3267
    %v3476 = vpack.c.b16 %v3272, %v3268
    %v3477 = vpack.c.b16 %v3273, %v3269
    %v3478 = vpack.c.b16 %v3278, %v3274
    %v3479 = vpack.c.b16 %v3279, %v3275
    %v3480 = vpack.c.b16 %v3280, %v3276
    %v3481 = vpack.c.b16 %v3281, %v3277
    %v3482 = vpack.c.b16 %v3286, %v3282
    %v3483 = vpack.c.b16 %v3287, %v3283
    %v3484 = vpack.c.b16 %v3288, %v3284
    %v3485 = vpack.c.b16 %v3289, %v3285
    %v3486 = vpack.c.b16 %v3294, %v3290
    %v3487 = vpack.c.b16 %v3295, %v3291
    %v3488 = vpack.c.b16 %v3296, %v3292
    %v3489 = vpack.c.b16 %v3297, %v3293
    %3682 = vmatpush.bf16.msra.mxu0 %v3326
    %3683 = vmatpush.bf16.msra.mxu0 %v3322
    %3684 = vmatpush.bf16.msra.mxu0 %v3318
    %3685 = vmatpush.bf16.msra.mxu0 %v3314
    %3686 = vmatpush.bf16.msra.mxu0 %v3310
    %3687 = vmatpush.bf16.msra.mxu0 %v3306
    %3688 = vmatpush.bf16.msra.mxu0 %v3302
    %3689 = vmatpush.bf16.msra.mxu0 %v3298
    %3690 = vmatmul.bf16.gmra.mxu0 %v2514
    %v3691 = vpop.f32.mrf.mxu0
    %v3692 = vadd.f32 %v2714, %v3691
    %v3693 = vpop.f32.mrf.mxu0
    %v3694 = vadd.f32 %v2714, %v3693
    %3695 = vdwg.mxu0
    %3696 = vmatpush.bf16.msra.mxu0 %v3358
    %3697 = vmatpush.bf16.msra.mxu0 %v3354
    %3698 = vmatpush.bf16.msra.mxu0 %v3350
    %3699 = vmatpush.bf16.msra.mxu0 %v3346
    %3700 = vmatpush.bf16.msra.mxu0 %v3342
    %3701 = vmatpush.bf16.msra.mxu0 %v3338
    %3702 = vmatpush.bf16.msra.mxu0 %v3334
    %3703 = vmatpush.bf16.msra.mxu0 %v3330
    %3704 = vmatmul.bf16.gmra.mxu0 %v2515
    %v3705 = vpop.f32.mrf.mxu0
    %v3706 = vadd.f32 %v3692, %v3705
    %v3707 = vpop.f32.mrf.mxu0
    %v3708 = vadd.f32 %v3694, %v3707
    %3709 = vdwg.mxu0
    %3710 = vmatpush.bf16.msra.mxu0 %v3390
    %3711 = vmatpush.bf16.msra.mxu0 %v3386
    %3712 = vmatpush.bf16.msra.mxu0 %v3382
    %3713 = vmatpush.bf16.msra.mxu0 %v3378
    %3714 = vmatpush.bf16.msra.mxu0 %v3374
    %3715 = vmatpush.bf16.msra.mxu0 %v3370
    %3716 = vmatpush.bf16.msra.mxu0 %v3366
    %3717 = vmatpush.bf16.msra.mxu0 %v3362
    %3718 = vmatmul.bf16.gmra.mxu0 %v2516
    %v3719 = vpop.f32.mrf.mxu0
    %v3720 = vadd.f32 %v3706, %v3719
    %v3721 = vpop.f32.mrf.mxu0
    %v3722 = vadd.f32 %v3708, %v3721
    %3723 = vdwg.mxu0
    %3724 = vmatpush.bf16.msra.mxu0 %v3422
    %3725 = vmatpush.bf16.msra.mxu0 %v3418
    %3726 = vmatpush.bf16.msra.mxu0 %v3414
    %3727 = vmatpush.bf16.msra.mxu0 %v3410
    %3728 = vmatpush.bf16.msra.mxu0 %v3406
    %3729 = vmatpush.bf16.msra.mxu0 %v3402
    %3730 = vmatpush.bf16.msra.mxu0 %v3398
    %3731 = vmatpush.bf16.msra.mxu0 %v3394
    %3732 = vmatmul.bf16.gmra.mxu0 %v2517
    %v3733 = vpop.f32.mrf.mxu0
    %v3734 = vadd.f32 %v3720, %v3733
    %v3735 = vpop.f32.mrf.mxu0
    %v3736 = vadd.f32 %v3722, %v3735
    %3737 = vdwg.mxu0
    %3738 = vmatpush.bf16.msra.mxu0 %v3454
    %3739 = vmatpush.bf16.msra.mxu0 %v3450
    %3740 = vmatpush.bf16.msra.mxu0 %v3446
    %3741 = vmatpush.bf16.msra.mxu0 %v3442
    %3742 = vmatpush.bf16.msra.mxu0 %v3438
    %3743 = vmatpush.bf16.msra.mxu0 %v3434
    %3744 = vmatpush.bf16.msra.mxu0 %v3430
    %3745 = vmatpush.bf16.msra.mxu0 %v3426
    %3746 = vmatmul.bf16.gmra.mxu0 %v2518
    %v3747 = vpop.f32.mrf.mxu0
    %v3748 = vadd.f32 %v3734, %v3747
    %v3749 = vpop.f32.mrf.mxu0
    %v3750 = vadd.f32 %v3736, %v3749
    %3751 = vdwg.mxu0
    %3752 = vmatpush.bf16.msra.mxu0 %v3486
    %3753 = vmatpush.bf16.msra.mxu0 %v3482
    %3754 = vmatpush.bf16.msra.mxu0 %v3478
    %3755 = vmatpush.bf16.msra.mxu0 %v3474
    %3756 = vmatpush.bf16.msra.mxu0 %v3470
    %3757 = vmatpush.bf16.msra.mxu0 %v3466
    %3758 = vmatpush.bf16.msra.mxu0 %v3462
    %3759 = vmatpush.bf16.msra.mxu0 %v3458
    %3760 = vmatmul.bf16.gmra.mxu0 %v2519
    %v3761 = vpop.f32.mrf.mxu0
    %v3762 = vadd.f32 %v3748, %v3761
    %v3763 = vpop.f32.mrf.mxu0
    %v3764 = vadd.f32 %v3750, %v3763
    %3765 = vdwg.mxu0
    %3766 = vmatpush.bf16.msra.mxu0 %v3327
    %3767 = vmatpush.bf16.msra.mxu0 %v3323
    %3768 = vmatpush.bf16.msra.mxu0 %v3319
    %3769 = vmatpush.bf16.msra.mxu0 %v3315
    %3770 = vmatpush.bf16.msra.mxu0 %v3311
    %3771 = vmatpush.bf16.msra.mxu0 %v3307
    %3772 = vmatpush.bf16.msra.mxu0 %v3303
    %3773 = vmatpush.bf16.msra.mxu0 %v3299
    %3774 = vmatmul.bf16.gmra.mxu0 %v2514
    %v3775 = vpop.f32.mrf.mxu0
    %v3776 = vadd.f32 %v2715, %v3775
    %v3777 = vpop.f32.mrf.mxu0
    %v3778 = vadd.f32 %v2715, %v3777
    %3779 = vdwg.mxu0
    %3780 = vmatpush.bf16.msra.mxu0 %v3359
    %3781 = vmatpush.bf16.msra.mxu0 %v3355
    %3782 = vmatpush.bf16.msra.mxu0 %v3351
    %3783 = vmatpush.bf16.msra.mxu0 %v3347
    %3784 = vmatpush.bf16.msra.mxu0 %v3343
    %3785 = vmatpush.bf16.msra.mxu0 %v3339
    %3786 = vmatpush.bf16.msra.mxu0 %v3335
    %3787 = vmatpush.bf16.msra.mxu0 %v3331
    %3788 = vmatmul.bf16.gmra.mxu0 %v2515
    %v3789 = vpop.f32.mrf.mxu0
    %v3790 = vadd.f32 %v3776, %v3789
    %v3791 = vpop.f32.mrf.mxu0
    %v3792 = vadd.f32 %v3778, %v3791
    %3793 = vdwg.mxu0
    %3794 = vmatpush.bf16.msra.mxu0 %v3391
    %3795 = vmatpush.bf16.msra.mxu0 %v3387
    %3796 = vmatpush.bf16.msra.mxu0 %v3383
    %3797 = vmatpush.bf16.msra.mxu0 %v3379
    %3798 = vmatpush.bf16.msra.mxu0 %v3375
    %3799 = vmatpush.bf16.msra.mxu0 %v3371
    %3800 = vmatpush.bf16.msra.mxu0 %v3367
    %3801 = vmatpush.bf16.msra.mxu0 %v3363
    %3802 = vmatmul.bf16.gmra.mxu0 %v2516
    %v3803 = vpop.f32.mrf.mxu0
    %v3804 = vadd.f32 %v3790, %v3803
    %v3805 = vpop.f32.mrf.mxu0
    %v3806 = vadd.f32 %v3792, %v3805
    %3807 = vdwg.mxu0
    %3808 = vmatpush.bf16.msra.mxu0 %v3423
    %3809 = vmatpush.bf16.msra.mxu0 %v3419
    %3810 = vmatpush.bf16.msra.mxu0 %v3415
    %3811 = vmatpush.bf16.msra.mxu0 %v3411
    %3812 = vmatpush.bf16.msra.mxu0 %v3407
    %3813 = vmatpush.bf16.msra.mxu0 %v3403
    %3814 = vmatpush.bf16.msra.mxu0 %v3399
    %3815 = vmatpush.bf16.msra.mxu0 %v3395
    %3816 = vmatmul.bf16.gmra.mxu0 %v2517
    %v3817 = vpop.f32.mrf.mxu0
    %v3818 = vadd.f32 %v3804, %v3817
    %v3819 = vpop.f32.mrf.mxu0
    %v3820 = vadd.f32 %v3806, %v3819
    %3821 = vdwg.mxu0
    %3822 = vmatpush.bf16.msra.mxu0 %v3455
    %3823 = vmatpush.bf16.msra.mxu0 %v3451
    %3824 = vmatpush.bf16.msra.mxu0 %v3447
    %3825 = vmatpush.bf16.msra.mxu0 %v3443
    %3826 = vmatpush.bf16.msra.mxu0 %v3439
    %3827 = vmatpush.bf16.msra.mxu0 %v3435
    %3828 = vmatpush.bf16.msra.mxu0 %v3431
    %3829 = vmatpush.bf16.msra.mxu0 %v3427
    %3830 = vmatmul.bf16.gmra.mxu0 %v2518
    %v3831 = vpop.f32.mrf.mxu0
    %v3832 = vadd.f32 %v3818, %v3831
    %v3833 = vpop.f32.mrf.mxu0
    %v3834 = vadd.f32 %v3820, %v3833
    %3835 = vdwg.mxu0
    %3836 = vmatpush.bf16.msra.mxu0 %v3487
    %3837 = vmatpush.bf16.msra.mxu0 %v3483
    %3838 = vmatpush.bf16.msra.mxu0 %v3479
    %3839 = vmatpush.bf16.msra.mxu0 %v3475
    %3840 = vmatpush.bf16.msra.mxu0 %v3471
    %3841 = vmatpush.bf16.msra.mxu0 %v3467
    %3842 = vmatpush.bf16.msra.mxu0 %v3463
    %3843 = vmatpush.bf16.msra.mxu0 %v3459
    %3844 = vmatmul.bf16.gmra.mxu0 %v2519
    %v3845 = vpop.f32.mrf.mxu0
    %v3846 = vadd.f32 %v3832, %v3845
    %v3847 = vpop.f32.mrf.mxu0
    %v3848 = vadd.f32 %v3834, %v3847
    %3849 = vdwg.mxu0
    %3850 = vmatpush.bf16.msra.mxu0 %v3328
    %3851 = vmatpush.bf16.msra.mxu0 %v3324
    %3852 = vmatpush.bf16.msra.mxu0 %v3320
    %3853 = vmatpush.bf16.msra.mxu0 %v3316
    %3854 = vmatpush.bf16.msra.mxu0 %v3312
    %3855 = vmatpush.bf16.msra.mxu0 %v3308
    %3856 = vmatpush.bf16.msra.mxu0 %v3304
    %3857 = vmatpush.bf16.msra.mxu0 %v3300
    %3858 = vmatmul.bf16.gmra.mxu0 %v2514
    %v3859 = vpop.f32.mrf.mxu0
    %v3860 = vadd.f32 %v2716, %v3859
    %v3861 = vpop.f32.mrf.mxu0
    %v3862 = vadd.f32 %v2716, %v3861
    %3863 = vdwg.mxu0
    %3864 = vmatpush.bf16.msra.mxu0 %v3360
    %3865 = vmatpush.bf16.msra.mxu0 %v3356
    %3866 = vmatpush.bf16.msra.mxu0 %v3352
    %3867 = vmatpush.bf16.msra.mxu0 %v3348
    %3868 = vmatpush.bf16.msra.mxu0 %v3344
    %3869 = vmatpush.bf16.msra.mxu0 %v3340
    %3870 = vmatpush.bf16.msra.mxu0 %v3336
    %3871 = vmatpush.bf16.msra.mxu0 %v3332
    %3872 = vmatmul.bf16.gmra.mxu0 %v2515
    %v3873 = vpop.f32.mrf.mxu0
    %v3874 = vadd.f32 %v3860, %v3873
    %v3875 = vpop.f32.mrf.mxu0
    %v3876 = vadd.f32 %v3862, %v3875
    %3877 = vdwg.mxu0
    %3878 = vmatpush.bf16.msra.mxu0 %v3392
    %3879 = vmatpush.bf16.msra.mxu0 %v3388
    %3880 = vmatpush.bf16.msra.mxu0 %v3384
    %3881 = vmatpush.bf16.msra.mxu0 %v3380
    %3882 = vmatpush.bf16.msra.mxu0 %v3376
    %3883 = vmatpush.bf16.msra.mxu0 %v3372
    %3884 = vmatpush.bf16.msra.mxu0 %v3368
    %3885 = vmatpush.bf16.msra.mxu0 %v3364
    %3886 = vmatmul.bf16.gmra.mxu0 %v2516
    %v3887 = vpop.f32.mrf.mxu0
    %v3888 = vadd.f32 %v3874, %v3887
    %v3889 = vpop.f32.mrf.mxu0
    %v3890 = vadd.f32 %v3876, %v3889
    %3891 = vdwg.mxu0
    %3892 = vmatpush.bf16.msra.mxu0 %v3424
    %3893 = vmatpush.bf16.msra.mxu0 %v3420
    %3894 = vmatpush.bf16.msra.mxu0 %v3416
    %3895 = vmatpush.bf16.msra.mxu0 %v3412
    %3896 = vmatpush.bf16.msra.mxu0 %v3408
    %3897 = vmatpush.bf16.msra.mxu0 %v3404
    %3898 = vmatpush.bf16.msra.mxu0 %v3400
    %3899 = vmatpush.bf16.msra.mxu0 %v3396
    %3900 = vmatmul.bf16.gmra.mxu0 %v2517
    %v3901 = vpop.f32.mrf.mxu0
    %v3902 = vadd.f32 %v3888, %v3901
    %v3903 = vpop.f32.mrf.mxu0
    %v3904 = vadd.f32 %v3890, %v3903
    %3905 = vdwg.mxu0
    %3906 = vmatpush.bf16.msra.mxu0 %v3456
    %3907 = vmatpush.bf16.msra.mxu0 %v3452
    %3908 = vmatpush.bf16.msra.mxu0 %v3448
    %3909 = vmatpush.bf16.msra.mxu0 %v3444
    %3910 = vmatpush.bf16.msra.mxu0 %v3440
    %3911 = vmatpush.bf16.msra.mxu0 %v3436
    %3912 = vmatpush.bf16.msra.mxu0 %v3432
    %3913 = vmatpush.bf16.msra.mxu0 %v3428
    %3914 = vmatmul.bf16.gmra.mxu0 %v2518
    %v3915 = vpop.f32.mrf.mxu0
    %v3916 = vadd.f32 %v3902, %v3915
    %v3917 = vpop.f32.mrf.mxu0
    %v3918 = vadd.f32 %v3904, %v3917
    %3919 = vdwg.mxu0
    %3920 = vmatpush.bf16.msra.mxu0 %v3488
    %3921 = vmatpush.bf16.msra.mxu0 %v3484
    %3922 = vmatpush.bf16.msra.mxu0 %v3480
    %3923 = vmatpush.bf16.msra.mxu0 %v3476
    %3924 = vmatpush.bf16.msra.mxu0 %v3472
    %3925 = vmatpush.bf16.msra.mxu0 %v3468
    %3926 = vmatpush.bf16.msra.mxu0 %v3464
    %3927 = vmatpush.bf16.msra.mxu0 %v3460
    %3928 = vmatmul.bf16.gmra.mxu0 %v2519
    %v3929 = vpop.f32.mrf.mxu0
    %v3930 = vadd.f32 %v3916, %v3929
    %v3931 = vpop.f32.mrf.mxu0
    %v3932 = vadd.f32 %v3918, %v3931
    %3933 = vdwg.mxu0
    %3934 = vmatpush.bf16.msra.mxu0 %v3329
    %3935 = vmatpush.bf16.msra.mxu0 %v3325
    %3936 = vmatpush.bf16.msra.mxu0 %v3321
    %3937 = vmatpush.bf16.msra.mxu0 %v3317
    %3938 = vmatpush.bf16.msra.mxu0 %v3313
    %3939 = vmatpush.bf16.msra.mxu0 %v3309
    %3940 = vmatpush.bf16.msra.mxu0 %v3305
    %3941 = vmatpush.bf16.msra.mxu0 %v3301
    %3942 = vmatmul.bf16.gmra.mxu0 %v2514
    %v3943 = vpop.f32.mrf.mxu0
    %v3944 = vadd.f32 %v2717, %v3943
    %v3945 = vpop.f32.mrf.mxu0
    %v3946 = vadd.f32 %v2717, %v3945
    %3947 = vdwg.mxu0
    %3948 = vmatpush.bf16.msra.mxu0 %v3361
    %3949 = vmatpush.bf16.msra.mxu0 %v3357
    %3950 = vmatpush.bf16.msra.mxu0 %v3353
    %3951 = vmatpush.bf16.msra.mxu0 %v3349
    %3952 = vmatpush.bf16.msra.mxu0 %v3345
    %3953 = vmatpush.bf16.msra.mxu0 %v3341
    %3954 = vmatpush.bf16.msra.mxu0 %v3337
    %3955 = vmatpush.bf16.msra.mxu0 %v3333
    %3956 = vmatmul.bf16.gmra.mxu0 %v2515
    %v3957 = vpop.f32.mrf.mxu0
    %v3958 = vadd.f32 %v3944, %v3957
    %v3959 = vpop.f32.mrf.mxu0
    %v3960 = vadd.f32 %v3946, %v3959
    %3961 = vdwg.mxu0
    %3962 = vmatpush.bf16.msra.mxu0 %v3393
    %3963 = vmatpush.bf16.msra.mxu0 %v3389
    %3964 = vmatpush.bf16.msra.mxu0 %v3385
    %3965 = vmatpush.bf16.msra.mxu0 %v3381
    %3966 = vmatpush.bf16.msra.mxu0 %v3377
    %3967 = vmatpush.bf16.msra.mxu0 %v3373
    %3968 = vmatpush.bf16.msra.mxu0 %v3369
    %3969 = vmatpush.bf16.msra.mxu0 %v3365
    %3970 = vmatmul.bf16.gmra.mxu0 %v2516
    %v3971 = vpop.f32.mrf.mxu0
    %v3972 = vadd.f32 %v3958, %v3971
    %v3973 = vpop.f32.mrf.mxu0
    %v3974 = vadd.f32 %v3960, %v3973
    %3975 = vdwg.mxu0
    %3976 = vmatpush.bf16.msra.mxu0 %v3425
    %3977 = vmatpush.bf16.msra.mxu0 %v3421
    %3978 = vmatpush.bf16.msra.mxu0 %v3417
    %3979 = vmatpush.bf16.msra.mxu0 %v3413
    %3980 = vmatpush.bf16.msra.mxu0 %v3409
    %3981 = vmatpush.bf16.msra.mxu0 %v3405
    %3982 = vmatpush.bf16.msra.mxu0 %v3401
    %3983 = vmatpush.bf16.msra.mxu0 %v3397
    %3984 = vmatmul.bf16.gmra.mxu0 %v2517
    %v3985 = vpop.f32.mrf.mxu0
    %v3986 = vadd.f32 %v3972, %v3985
    %v3987 = vpop.f32.mrf.mxu0
    %v3988 = vadd.f32 %v3974, %v3987
    %3989 = vdwg.mxu0
    %3990 = vmatpush.bf16.msra.mxu0 %v3457
    %3991 = vmatpush.bf16.msra.mxu0 %v3453
    %3992 = vmatpush.bf16.msra.mxu0 %v3449
    %3993 = vmatpush.bf16.msra.mxu0 %v3445
    %3994 = vmatpush.bf16.msra.mxu0 %v3441
    %3995 = vmatpush.bf16.msra.mxu0 %v3437
    %3996 = vmatpush.bf16.msra.mxu0 %v3433
    %3997 = vmatpush.bf16.msra.mxu0 %v3429
    %3998 = vmatmul.bf16.gmra.mxu0 %v2518
    %v3999 = vpop.f32.mrf.mxu0
    %v4000 = vadd.f32 %v3986, %v3999
    %v4001 = vpop.f32.mrf.mxu0
    %v4002 = vadd.f32 %v3988, %v4001
    %4003 = vdwg.mxu0
    %4004 = vmatpush.bf16.msra.mxu0 %v3489
    %4005 = vmatpush.bf16.msra.mxu0 %v3485
    %4006 = vmatpush.bf16.msra.mxu0 %v3481
    %4007 = vmatpush.bf16.msra.mxu0 %v3477
    %4008 = vmatpush.bf16.msra.mxu0 %v3473
    %4009 = vmatpush.bf16.msra.mxu0 %v3469
    %4010 = vmatpush.bf16.msra.mxu0 %v3465
    %4011 = vmatpush.bf16.msra.mxu0 %v3461
    %4012 = vmatmul.bf16.gmra.mxu0 %v2519
    %v4013 = vpop.f32.mrf.mxu0
    %v4014 = vadd.f32 %v4000, %v4013
    %v4015 = vpop.f32.mrf.mxu0
    %v4016 = vadd.f32 %v4002, %v4015
    %4017 = vdwg.mxu0
    %v4018 = vmax.f32 %v3762, 0.0
    %v4019 = vmax.f32 %v3846, 0.0
    %v4020 = vmax.f32 %v3930, 0.0
    %v4021 = vmax.f32 %v4014, 0.0
    %v4022 = vmax.f32 %v3764, 0.0
    %v4023 = vmax.f32 %v3848, 0.0
    %v4024 = vmax.f32 %v3932, 0.0
    %v4025 = vmax.f32 %v4016, 0.0
    %v4026 = vld [vmem:[#allocation5] sm:$0xf]
    %v4027 = vld [vmem:[#allocation5 + $0x4] sm:$0xf]
    %v4028 = vld [vmem:[#allocation13] sm:$0xf]
    %v4029 = vld [vmem:[#allocation13 + $0x4] sm:$0xf]
    %v4030 = vld [vmem:[#allocation13 + $0x8] sm:$0xf]
    %v4031 = vld [vmem:[#allocation13 + $0xc] sm:$0xf]
    %v4032 = vld [vmem:[#allocation13 + $0x10] sm:$0xf]
    %v4033 = vld [vmem:[#allocation13 + $0x14] sm:$0xf]
    %v4034 = vld [vmem:[#allocation13 + $0x18] sm:$0xf]
    %v4035 = vld [vmem:[#allocation13 + $0x1c] sm:$0xf]
    %v4036 = vld [vmem:[#allocation13 + $0x20] sm:$0xf]
    %v4037 = vld [vmem:[#allocation13 + $0x24] sm:$0xf]
    %v4038 = vld [vmem:[#allocation13 + $0x28] sm:$0xf]
    %v4039 = vld [vmem:[#allocation13 + $0x2c] sm:$0xf]
    %v4040 = vld [vmem:[#allocation13 + $0x30] sm:$0xf]
    %v4041 = vld [vmem:[#allocation13 + $0x34] sm:$0xf]
    %v4042 = vld [vmem:[#allocation13 + $0x38] sm:$0xf]
    %v4043 = vld [vmem:[#allocation13 + $0x3c] sm:$0xf]
    %v4044 = vld [vmem:[#allocation14] sm:$0x1]
    %v4046 = vperm.slane %v4044, 0
    %v4050 = vunpack.c.l.b16 %v4026
    %v4051 = vunpack.c.l.b16 %v4027
    %v4052 = vpack.c.b16 %v4051, %v4050
    %v4070 = vunpack.c.l.b16 %v4028
    %v4071 = vunpack.c.l.b16 %v4029
    %v4072 = vunpack.c.l.b16 %v4030
    %v4073 = vunpack.c.l.b16 %v4031
    %v4074 = vunpack.c.l.b16 %v4032
    %v4075 = vunpack.c.l.b16 %v4033
    %v4076 = vunpack.c.l.b16 %v4034
    %v4077 = vunpack.c.l.b16 %v4035
    %v4078 = vunpack.c.l.b16 %v4036
    %v4079 = vunpack.c.l.b16 %v4037
    %v4080 = vunpack.c.l.b16 %v4038
    %v4081 = vunpack.c.l.b16 %v4039
    %v4082 = vunpack.c.l.b16 %v4040
    %v4083 = vunpack.c.l.b16 %v4041
    %v4084 = vunpack.c.l.b16 %v4042
    %v4085 = vunpack.c.l.b16 %v4043
    %v4086 = vpack.c.b16 %v4071, %v4070
    %v4087 = vpack.c.b16 %v4073, %v4072
    %v4088 = vpack.c.b16 %v4075, %v4074
    %v4089 = vpack.c.b16 %v4077, %v4076
    %v4090 = vpack.c.b16 %v4079, %v4078
    %v4091 = vpack.c.b16 %v4081, %v4080
    %v4092 = vpack.c.b16 %v4083, %v4082
    %v4093 = vpack.c.b16 %v4085, %v4084
    %4102 = vmatpush.bf16.msra.mxu0 %v4093
    %4103 = vmatpush.bf16.msra.mxu0 %v4092
    %4104 = vmatpush.bf16.msra.mxu0 %v4091
    %4105 = vmatpush.bf16.msra.mxu0 %v4090
    %4106 = vmatpush.bf16.msra.mxu0 %v4089
    %4107 = vmatpush.bf16.msra.mxu0 %v4088
    %4108 = vmatpush.bf16.msra.mxu0 %v4087
    %4109 = vmatpush.bf16.msra.mxu0 %v4086
    %4110 = vmatmul.bf16.gmra.mxu0 %v4052
    %v4111 = vpop.f32.mrf.mxu0
    %v4112 = vadd.f32 %v4046, %v4111
    %v4113 = vpop.f32.mrf.mxu0
    %v4114 = vadd.f32 %v4046, %v4113
    %4115 = vdwg.mxu0
    %v4116 = vmax.f32 %v4112, 0.0
    %v4117 = vmax.f32 %v4114, 0.0
    %v4118 = vpack.c.bf16 %v4022, %v4018
    %v4119 = vpack.c.bf16 %v4023, %v4019
    %v4120 = vpack.c.bf16 %v4024, %v4020
    %v4121 = vpack.c.bf16 %v4025, %v4021
    %v4122 = vld [vmem:[#allocation16] sm:$0xf]
    %v4123 = vld [vmem:[#allocation16 + $0x4] sm:$0xf]
    %v4124 = vld [vmem:[#allocation16 + $0x8] sm:$0xf]
    %v4125 = vld [vmem:[#allocation16 + $0xc] sm:$0xf]
    %v4126 = vld [vmem:[#allocation16 + $0x10] sm:$0xf]
    %v4127 = vld [vmem:[#allocation16 + $0x14] sm:$0xf]
    %v4128 = vld [vmem:[#allocation16 + $0x18] sm:$0xf]
    %v4129 = vld [vmem:[#allocation16 + $0x1c] sm:$0xf]
    %v4130 = vld [vmem:[#allocation16 + $0x20] sm:$0xf]
    %v4131 = vld [vmem:[#allocation16 + $0x24] sm:$0xf]
    %v4132 = vld [vmem:[#allocation16 + $0x28] sm:$0xf]
    %v4133 = vld [vmem:[#allocation16 + $0x2c] sm:$0xf]
    %v4134 = vld [vmem:[#allocation16 + $0x30] sm:$0xf]
    %v4135 = vld [vmem:[#allocation16 + $0x34] sm:$0xf]
    %v4136 = vld [vmem:[#allocation16 + $0x38] sm:$0xf]
    %v4137 = vld [vmem:[#allocation16 + $0x3c] sm:$0xf]
    %v4138 = vld [vmem:[#allocation16 + $0x40] sm:$0xf]
    %v4139 = vld [vmem:[#allocation16 + $0x44] sm:$0xf]
    %v4140 = vld [vmem:[#allocation16 + $0x48] sm:$0xf]
    %v4141 = vld [vmem:[#allocation16 + $0x4c] sm:$0xf]
    %v4142 = vld [vmem:[#allocation16 + $0x50] sm:$0xf]
    %v4143 = vld [vmem:[#allocation16 + $0x54] sm:$0xf]
    %v4144 = vld [vmem:[#allocation16 + $0x58] sm:$0xf]
    %v4145 = vld [vmem:[#allocation16 + $0x5c] sm:$0xf]
    %v4146 = vld [vmem:[#allocation16 + $0x60] sm:$0xf]
    %v4147 = vld [vmem:[#allocation16 + $0x64] sm:$0xf]
    %v4148 = vld [vmem:[#allocation16 + $0x68] sm:$0xf]
    %v4149 = vld [vmem:[#allocation16 + $0x6c] sm:$0xf]
    %v4150 = vld [vmem:[#allocation16 + $0x70] sm:$0xf]
    %v4151 = vld [vmem:[#allocation16 + $0x74] sm:$0xf]
    %v4152 = vld [vmem:[#allocation16 + $0x78] sm:$0xf]
    %v4153 = vld [vmem:[#allocation16 + $0x7c] sm:$0xf]
    %v4154 = vld [vmem:[#allocation16 + $0x80] sm:$0xf]
    %v4155 = vld [vmem:[#allocation16 + $0x84] sm:$0xf]
    %v4156 = vld [vmem:[#allocation16 + $0x88] sm:$0xf]
    %v4157 = vld [vmem:[#allocation16 + $0x8c] sm:$0xf]
    %v4158 = vld [vmem:[#allocation16 + $0x90] sm:$0xf]
    %v4159 = vld [vmem:[#allocation16 + $0x94] sm:$0xf]
    %v4160 = vld [vmem:[#allocation16 + $0x98] sm:$0xf]
    %v4161 = vld [vmem:[#allocation16 + $0x9c] sm:$0xf]
    %v4162 = vld [vmem:[#allocation16 + $0xa0] sm:$0xf]
    %v4163 = vld [vmem:[#allocation16 + $0xa4] sm:$0xf]
    %v4164 = vld [vmem:[#allocation16 + $0xa8] sm:$0xf]
    %v4165 = vld [vmem:[#allocation16 + $0xac] sm:$0xf]
    %v4166 = vld [vmem:[#allocation16 + $0xb0] sm:$0xf]
    %v4167 = vld [vmem:[#allocation16 + $0xb4] sm:$0xf]
    %v4168 = vld [vmem:[#allocation16 + $0xb8] sm:$0xf]
    %v4169 = vld [vmem:[#allocation16 + $0xbc] sm:$0xf]
    %v4170 = vld [vmem:[#allocation16 + $0xc0] sm:$0xf]
    %v4171 = vld [vmem:[#allocation16 + $0xc4] sm:$0xf]
    %v4172 = vld [vmem:[#allocation16 + $0xc8] sm:$0xf]
    %v4173 = vld [vmem:[#allocation16 + $0xcc] sm:$0xf]
    %v4174 = vld [vmem:[#allocation16 + $0xd0] sm:$0xf]
    %v4175 = vld [vmem:[#allocation16 + $0xd4] sm:$0xf]
    %v4176 = vld [vmem:[#allocation16 + $0xd8] sm:$0xf]
    %v4177 = vld [vmem:[#allocation16 + $0xdc] sm:$0xf]
    %v4178 = vld [vmem:[#allocation16 + $0xe0] sm:$0xf]
    %v4179 = vld [vmem:[#allocation16 + $0xe4] sm:$0xf]
    %v4180 = vld [vmem:[#allocation16 + $0xe8] sm:$0xf]
    %v4181 = vld [vmem:[#allocation16 + $0xec] sm:$0xf]
    %v4182 = vld [vmem:[#allocation16 + $0xf0] sm:$0xf]
    %v4183 = vld [vmem:[#allocation16 + $0xf4] sm:$0xf]
    %v4184 = vld [vmem:[#allocation16 + $0xf8] sm:$0xf]
    %v4185 = vld [vmem:[#allocation16 + $0xfc] sm:$0xf]
    %v4186 = vpack.c.bf16 %v4117, %v4116
    %v4187 = vld [vmem:[#allocation17] sm:$0xf]
    %v4188 = vld [vmem:[#allocation17 + $0x4] sm:$0xf]
    %v4189 = vld [vmem:[#allocation17 + $0x8] sm:$0xf]
    %v4190 = vld [vmem:[#allocation17 + $0xc] sm:$0xf]
    %v4191 = vld [vmem:[#allocation17 + $0x10] sm:$0xf]
    %v4192 = vld [vmem:[#allocation17 + $0x14] sm:$0xf]
    %v4193 = vld [vmem:[#allocation17 + $0x18] sm:$0xf]
    %v4194 = vld [vmem:[#allocation17 + $0x1c] sm:$0xf]
    %v4195 = vld [vmem:[#allocation17 + $0x20] sm:$0xf]
    %v4196 = vld [vmem:[#allocation17 + $0x24] sm:$0xf]
    %v4197 = vld [vmem:[#allocation17 + $0x28] sm:$0xf]
    %v4198 = vld [vmem:[#allocation17 + $0x2c] sm:$0xf]
    %v4199 = vld [vmem:[#allocation17 + $0x30] sm:$0xf]
    %v4200 = vld [vmem:[#allocation17 + $0x34] sm:$0xf]
    %v4201 = vld [vmem:[#allocation17 + $0x38] sm:$0xf]
    %v4202 = vld [vmem:[#allocation17 + $0x3c] sm:$0xf]
    %v4219 = vunpack.c.l.b16 %v4187
    %v4220 = vunpack.c.l.b16 %v4188
    %v4221 = vunpack.c.l.b16 %v4189
    %v4222 = vunpack.c.l.b16 %v4190
    %v4223 = vunpack.c.l.b16 %v4191
    %v4224 = vunpack.c.l.b16 %v4192
    %v4225 = vunpack.c.l.b16 %v4193
    %v4226 = vunpack.c.l.b16 %v4194
    %v4227 = vunpack.c.l.b16 %v4195
    %v4228 = vunpack.c.l.b16 %v4196
    %v4229 = vunpack.c.l.b16 %v4197
    %v4230 = vunpack.c.l.b16 %v4198
    %v4231 = vunpack.c.l.b16 %v4199
    %v4232 = vunpack.c.l.b16 %v4200
    %v4233 = vunpack.c.l.b16 %v4201
    %v4234 = vunpack.c.l.b16 %v4202
    %v4235 = vpack.c.b16 %v4220, %v4219
    %v4236 = vpack.c.b16 %v4222, %v4221
    %v4237 = vpack.c.b16 %v4224, %v4223
    %v4238 = vpack.c.b16 %v4226, %v4225
    %v4239 = vpack.c.b16 %v4228, %v4227
    %v4240 = vpack.c.b16 %v4230, %v4229
    %v4241 = vpack.c.b16 %v4232, %v4231
    %v4242 = vpack.c.b16 %v4234, %v4233
    %4251 = vmatpush.bf16.msra.mxu0 %v4242
    %4252 = vmatpush.bf16.msra.mxu0 %v4241
    %4253 = vmatpush.bf16.msra.mxu0 %v4240
    %4254 = vmatpush.bf16.msra.mxu0 %v4239
    %4255 = vmatpush.bf16.msra.mxu0 %v4238
    %4256 = vmatpush.bf16.msra.mxu0 %v4237
    %4257 = vmatpush.bf16.msra.mxu0 %v4236
    %4258 = vmatpush.bf16.msra.mxu0 %v4235
    %4259 = vmatmul.bf16.gmra.mxu0 %v4186
    %v4260 = vpop.f32.mrf.mxu0
    %v4261 = vadd.f32 0.0, %v4260
    %v4262 = vpop.f32.mrf.mxu0
    %v4263 = vadd.f32 0.0, %v4262
    %4264 = vdwg.mxu0
    %v4329 = vunpack.c.l.b16 %v4122
    %v4330 = vunpack.c.l.b16 %v4123
    %v4331 = vunpack.c.l.b16 %v4124
    %v4332 = vunpack.c.l.b16 %v4125
    %v4333 = vunpack.c.l.b16 %v4126
    %v4334 = vunpack.c.l.b16 %v4127
    %v4335 = vunpack.c.l.b16 %v4128
    %v4336 = vunpack.c.l.b16 %v4129
    %v4337 = vunpack.c.l.b16 %v4130
    %v4338 = vunpack.c.l.b16 %v4131
    %v4339 = vunpack.c.l.b16 %v4132
    %v4340 = vunpack.c.l.b16 %v4133
    %v4341 = vunpack.c.l.b16 %v4134
    %v4342 = vunpack.c.l.b16 %v4135
    %v4343 = vunpack.c.l.b16 %v4136
    %v4344 = vunpack.c.l.b16 %v4137
    %v4345 = vunpack.c.l.b16 %v4138
    %v4346 = vunpack.c.l.b16 %v4139
    %v4347 = vunpack.c.l.b16 %v4140
    %v4348 = vunpack.c.l.b16 %v4141
    %v4349 = vunpack.c.l.b16 %v4142
    %v4350 = vunpack.c.l.b16 %v4143
    %v4351 = vunpack.c.l.b16 %v4144
    %v4352 = vunpack.c.l.b16 %v4145
    %v4353 = vunpack.c.l.b16 %v4146
    %v4354 = vunpack.c.l.b16 %v4147
    %v4355 = vunpack.c.l.b16 %v4148
    %v4356 = vunpack.c.l.b16 %v4149
    %v4357 = vunpack.c.l.b16 %v4150
    %v4358 = vunpack.c.l.b16 %v4151
    %v4359 = vunpack.c.l.b16 %v4152
    %v4360 = vunpack.c.l.b16 %v4153
    %v4361 = vunpack.c.l.b16 %v4154
    %v4362 = vunpack.c.l.b16 %v4155
    %v4363 = vunpack.c.l.b16 %v4156
    %v4364 = vunpack.c.l.b16 %v4157
    %v4365 = vunpack.c.l.b16 %v4158
    %v4366 = vunpack.c.l.b16 %v4159
    %v4367 = vunpack.c.l.b16 %v4160
    %v4368 = vunpack.c.l.b16 %v4161
    %v4369 = vunpack.c.l.b16 %v4162
    %v4370 = vunpack.c.l.b16 %v4163
    %v4371 = vunpack.c.l.b16 %v4164
    %v4372 = vunpack.c.l.b16 %v4165
    %v4373 = vunpack.c.l.b16 %v4166
    %v4374 = vunpack.c.l.b16 %v4167
    %v4375 = vunpack.c.l.b16 %v4168
    %v4376 = vunpack.c.l.b16 %v4169
    %v4377 = vunpack.c.l.b16 %v4170
    %v4378 = vunpack.c.l.b16 %v4171
    %v4379 = vunpack.c.l.b16 %v4172
    %v4380 = vunpack.c.l.b16 %v4173
    %v4381 = vunpack.c.l.b16 %v4174
    %v4382 = vunpack.c.l.b16 %v4175
    %v4383 = vunpack.c.l.b16 %v4176
    %v4384 = vunpack.c.l.b16 %v4177
    %v4385 = vunpack.c.l.b16 %v4178
    %v4386 = vunpack.c.l.b16 %v4179
    %v4387 = vunpack.c.l.b16 %v4180
    %v4388 = vunpack.c.l.b16 %v4181
    %v4389 = vunpack.c.l.b16 %v4182
    %v4390 = vunpack.c.l.b16 %v4183
    %v4391 = vunpack.c.l.b16 %v4184
    %v4392 = vunpack.c.l.b16 %v4185
    %v4393 = vpack.c.b16 %v4330, %v4329
    %v4394 = vpack.c.b16 %v4332, %v4331
    %v4395 = vpack.c.b16 %v4334, %v4333
    %v4396 = vpack.c.b16 %v4336, %v4335
    %v4397 = vpack.c.b16 %v4338, %v4337
    %v4398 = vpack.c.b16 %v4340, %v4339
    %v4399 = vpack.c.b16 %v4342, %v4341
    %v4400 = vpack.c.b16 %v4344, %v4343
    %v4401 = vpack.c.b16 %v4346, %v4345
    %v4402 = vpack.c.b16 %v4348, %v4347
    %v4403 = vpack.c.b16 %v4350, %v4349
    %v4404 = vpack.c.b16 %v4352, %v4351
    %v4405 = vpack.c.b16 %v4354, %v4353
    %v4406 = vpack.c.b16 %v4356, %v4355
    %v4407 = vpack.c.b16 %v4358, %v4357
    %v4408 = vpack.c.b16 %v4360, %v4359
    %v4409 = vpack.c.b16 %v4362, %v4361
    %v4410 = vpack.c.b16 %v4364, %v4363
    %v4411 = vpack.c.b16 %v4366, %v4365
    %v4412 = vpack.c.b16 %v4368, %v4367
    %v4413 = vpack.c.b16 %v4370, %v4369
    %v4414 = vpack.c.b16 %v4372, %v4371
    %v4415 = vpack.c.b16 %v4374, %v4373
    %v4416 = vpack.c.b16 %v4376, %v4375
    %v4417 = vpack.c.b16 %v4378, %v4377
    %v4418 = vpack.c.b16 %v4380, %v4379
    %v4419 = vpack.c.b16 %v4382, %v4381
    %v4420 = vpack.c.b16 %v4384, %v4383
    %v4421 = vpack.c.b16 %v4386, %v4385
    %v4422 = vpack.c.b16 %v4388, %v4387
    %v4423 = vpack.c.b16 %v4390, %v4389
    %v4424 = vpack.c.b16 %v4392, %v4391
    %4457 = vmatpush.bf16.msra.mxu0 %v4400
    %4458 = vmatpush.bf16.msra.mxu0 %v4399
    %4459 = vmatpush.bf16.msra.mxu0 %v4398
    %4460 = vmatpush.bf16.msra.mxu0 %v4397
    %4461 = vmatpush.bf16.msra.mxu0 %v4396
    %4462 = vmatpush.bf16.msra.mxu0 %v4395
    %4463 = vmatpush.bf16.msra.mxu0 %v4394
    %4464 = vmatpush.bf16.msra.mxu0 %v4393
    %4465 = vmatmul.bf16.gmra.mxu0 %v4118
    %v4466 = vpop.f32.mrf.mxu0
    %v4467 = vadd.f32 %v4261, %v4466
    %v4468 = vpop.f32.mrf.mxu0
    %v4469 = vadd.f32 %v4263, %v4468
    %4470 = vdwg.mxu0
    %4471 = vmatpush.bf16.msra.mxu0 %v4408
    %4472 = vmatpush.bf16.msra.mxu0 %v4407
    %4473 = vmatpush.bf16.msra.mxu0 %v4406
    %4474 = vmatpush.bf16.msra.mxu0 %v4405
    %4475 = vmatpush.bf16.msra.mxu0 %v4404
    %4476 = vmatpush.bf16.msra.mxu0 %v4403
    %4477 = vmatpush.bf16.msra.mxu0 %v4402
    %4478 = vmatpush.bf16.msra.mxu0 %v4401
    %4479 = vmatmul.bf16.gmra.mxu0 %v4119
    %v4480 = vpop.f32.mrf.mxu0
    %v4481 = vadd.f32 %v4467, %v4480
    %v4482 = vpop.f32.mrf.mxu0
    %v4483 = vadd.f32 %v4469, %v4482
    %4484 = vdwg.mxu0
    %4485 = vmatpush.bf16.msra.mxu0 %v4416
    %4486 = vmatpush.bf16.msra.mxu0 %v4415
    %4487 = vmatpush.bf16.msra.mxu0 %v4414
    %4488 = vmatpush.bf16.msra.mxu0 %v4413
    %4489 = vmatpush.bf16.msra.mxu0 %v4412
    %4490 = vmatpush.bf16.msra.mxu0 %v4411
    %4491 = vmatpush.bf16.msra.mxu0 %v4410
    %4492 = vmatpush.bf16.msra.mxu0 %v4409
    %4493 = vmatmul.bf16.gmra.mxu0 %v4120
    %v4494 = vpop.f32.mrf.mxu0
    %v4495 = vadd.f32 %v4481, %v4494
    %v4496 = vpop.f32.mrf.mxu0
    %v4497 = vadd.f32 %v4483, %v4496
    %4498 = vdwg.mxu0
    %4499 = vmatpush.bf16.msra.mxu0 %v4424
    %4500 = vmatpush.bf16.msra.mxu0 %v4423
    %4501 = vmatpush.bf16.msra.mxu0 %v4422
    %4502 = vmatpush.bf16.msra.mxu0 %v4421
    %4503 = vmatpush.bf16.msra.mxu0 %v4420
    %4504 = vmatpush.bf16.msra.mxu0 %v4419
    %4505 = vmatpush.bf16.msra.mxu0 %v4418
    %4506 = vmatpush.bf16.msra.mxu0 %v4417
    %4507 = vmatmul.bf16.gmra.mxu0 %v4121
    %v4508 = vpop.f32.mrf.mxu0
    %v4509 = vadd.f32 %v4495, %v4508
    %v4510 = vpop.f32.mrf.mxu0
    %v4511 = vadd.f32 %v4497, %v4510
    %4512 = vdwg.mxu0
    %v4513 = vld [vmem:[#allocation19] sm:$0x1]
    %v4515 = vperm.slane %v4513, 0
    %v4517 = vadd.f32 %v4509, %v4515
    %v4518 = vadd.f32 %v4511, %v4515
    %4519 = vmax.xlane.f32.xlu0 %v4517
    %v4520 = vpop.xlane.xlu0 %4519
    %4521 = vmax.xlane.f32.xlu0 %v4518
    %v4522 = vpop.xlane.xlu0 %4521
    %v4523 = vsub.f32 %v4517, %v4520
    %v4524 = vsub.f32 %v4518, %v4522
    %v4525 = vmul.f32 %v4523, 1.442695
    %v4526 = vpow.pop %v4525
    %v4527 = vmul.f32 %v4524, 1.442695
    %v4528 = vpow.pop %v4527
    %4529 = vadd.xlane.f32.xlu0 %v4526
    %v4530 = vpop.xlane.xlu0 %4529
    %4531 = vadd.xlane.f32.xlu0 %v4528
    %v4532 = vpop.xlane.xlu0 %4531
    %v4533 = vlog2.pop %v4530
    %v4534 = vmul.f32 %v4533, 0.6931472
    %v4535 = vlog2.pop %v4532
    %v4536 = vmul.f32 %v4535, 0.6931472
    %v4537 = vsub.f32 %v4523, %v4534
    %v4538 = vsub.f32 %v4524, %v4536
    %4539 = vst [vmem:[#allocation20] sm:$0xff] %v4537
    %4540 = vst [vmem:[#allocation20 + $0x8] sm:$0xff] %v4538
    // Predicated region
    $region90: #{tpu_custom_call.1} parent=1 // pred_check
      _
    $region91: #{tpu_custom_call.1} parent=1 // pred_check_branch
      %4542 = sbr.rel (0) target = $region93
    $region92: #{tpu_custom_call.1} parent=1 // pred_region
      %4544 = vsyncadd [#allocation4], 0
      %s4545 = sshll.u32 [#allocation20], 4
      %s4546 = int_to_ptr.vmem [resolvable:$true] %s4545
      %s4547 = sshll.u32 %s11, 4
      %s4548 = int_to_ptr.hbm [resolvable:$true] %s4547
      %4553 = dma.vmem_to_hbm [thread:$0]  %s4546, 256, %s4548, [#allocation4], 128, 128, 8
    $region93: #{tpu_custom_call.1} parent=1 // pred_fallthru
      _
    // Predicated region
    $region94: #{tpu_custom_call.1} parent=1 // pred_check
      _
    $region95: #{tpu_custom_call.1} parent=1 // pred_check_branch
      %4555 = sbr.rel (0) target = $region97
    $region96: #{tpu_custom_call.1} parent=1 // pred_region
      %4557 = dma.done [#allocation4], 256
    $region97: #{tpu_custom_call.1} parent=1 // pred_fallthru
      _
    %4558 = vsyncpa [#allocation3], 1
    %4559 = vsyncpa [#allocation6], 1
    %4560 = vsyncpa [#allocation9], 1
    %4561 = vsyncpa [#allocation12], 1
    %4562 = vsyncpa [#allocation15], 1
    %4563 = vsyncpa [#allocation18], 1
    %4564 = vsyncpa [#allocation4], 1

</llo_original>
